<compile_context>
chip_gen: v6e
topology: v6e:2x2x1
jax: 0.10.0
libtpu: 0.0.40
codegen_flags: <defaults>
</compile_context>

<pallas_src>
import functools

import jax
import jax.numpy as jnp
from jax.experimental import pallas as pl
from jax.experimental.pallas import tpu as pltpu

PAD_BATCH_ID = 2 ** 30  # sentinel batch id for padded points
BIG_DIST = 1e30         # "infinity" for the running top-k
BIG_POS = 2 ** 30       # "infinity" for argmin-by-position


def _round_up(v, m):
    return ((v + m - 1) // m) * m


def _pick_tile(n, pref=512):
    """Row tile: big enough to amortize grid-step overhead, clamped for tiny N."""
    if n >= pref:
        return pref
    return _round_up(max(n, 8), 8)


def _vmem_limit_bytes():
    """Generation-aware VMEM budget (v7x has 64 MiB/TC, v5e/v6e have 128 MiB)."""
    try:
        info = pltpu.get_tpu_info()
        cap = int(getattr(info, "vmem_capacity_bytes", 64 * 1024 * 1024))
    except Exception:  # pragma: no cover - conservative fallback
        cap = 64 * 1024 * 1024
    return min(cap * 7 // 10, 100 * 1024 * 1024)


# ----------------------------------------------------------------------------
# Kernel 1: fused pairwise-distance + running top-k (k nearest, incl. self).
#   grid = (row tiles [parallel], col tiles [arbitrary])
#   scratch: best_dist/best_idx (tile, k) kept in VMEM across the column sweep.
# Per column tile we merge the new candidates into the running top-k via k
# selection steps (min + first-argmin + removal) over the concatenated pool.
# ----------------------------------------------------------------------------
def _knn_kernel(xr_ref, xc_ref, sqn_ref, br_ref, bc_ref, idx_ref,
                bestd_ref, besti_ref, *, k, tile_c):
    j = pl.program_id(1)

    @pl.when(j == 0)
    def _():
        bestd_ref[...] = jnp.full(bestd_ref.shape, BIG_DIST, jnp.float32)
        besti_ref[...] = jnp.zeros(besti_ref.shape, jnp.int32)

    # (TR, TC) gram on the MXU in bf16, f32 accumulation.
    gram = jax.lax.dot_general(
        xr_ref[...], xc_ref[...], (((1,), (1,)), ((), ())),
        preferred_element_type=jnp.float32)
    cross = (br_ref[...] != bc_ref[...]).astype(jnp.float32)   # batch mask
    # ||x_i||^2 is constant per row -> dropped (does not change per-row ordering).
    dist = sqn_ref[...] - 2.0 * gram + cross * 1e9              # (TR, TC)

    tr = dist.shape[0]
    gcol = jax.lax.broadcasted_iota(jnp.int32, (tr, tile_c), 1) + j * tile_c
    cand_d = jnp.concatenate([bestd_ref[...], dist], axis=-1)   # (TR, k+TC)
    cand_i = jnp.concatenate([besti_ref[...], gcol], axis=-1)
    pos = jax.lax.broadcasted_iota(jnp.int32, cand_d.shape, 1)

    new_d, new_i = [], []
    for _ in range(k):
        m = jnp.min(cand_d, axis=-1, keepdims=True)                       # (TR,1)
        selpos = jnp.min(jnp.where(cand_d == m, pos, jnp.int32(BIG_POS)),
                         axis=-1, keepdims=True)                          # first min
        selmask = pos == selpos
        new_d.append(m)
        new_i.append(jnp.max(jnp.where(selmask, cand_i, 0),
                             axis=-1, keepdims=True))
        cand_d = jnp.where(selmask, BIG_DIST, cand_d)                     # remove it

    bestd_ref[...] = jnp.concatenate(new_d, axis=-1)
    besti_ref[...] = jnp.concatenate(new_i, axis=-1)

    @pl.when(j == pl.num_programs(1) - 1)
    def _():
        idx_ref[...] = besti_ref[...]


def knn_graph(x, batch, k, tile):
    """k nearest neighbors (incl. self) within each batch; returns (N, k) int32.

    Neighbor *set* matches torch_cluster.knn; tie-breaking / ordering may differ,
    which is irrelevant to the max-aggregated EdgeConv.
    """
    n, d = x.shape
    assert n % tile == 0
    sqn = jnp.sum(x.astype(jnp.float32) ** 2, axis=-1)[None, :]   # (1, N) f32
    b_row = batch.astype(jnp.int32)[:, None]                      # (N, 1)
    b_col = batch.astype(jnp.int32)[None, :]                      # (1, N)
    kernel = functools.partial(_knn_kernel, k=k, tile_c=tile)
    return pl.pallas_call(
        kernel,
        out_shape=jax.ShapeDtypeStruct((n, k), jnp.int32),
        grid_spec=pltpu.PrefetchScalarGridSpec(
            num_scalar_prefetch=0,
            grid=(n // tile, n // tile),
            in_specs=[
                pl.BlockSpec((tile, d), lambda i, j: (i, 0)),   # row tile of x
                pl.BlockSpec((tile, d), lambda i, j: (j, 0)),   # col tile of x
                pl.BlockSpec((1, tile), lambda i, j: (0, j)),   # ||x_j||^2 cols
                pl.BlockSpec((tile, 1), lambda i, j: (i, 0)),   # batch ids rows
                pl.BlockSpec((1, tile), lambda i, j: (0, j)),   # batch ids cols
            ],
            out_specs=pl.BlockSpec((tile, k), lambda i, j: (i, 0)),
            scratch_shapes=[pltpu.VMEM((tile, k), jnp.float32),
                            pltpu.VMEM((tile, k), jnp.int32)]),
        compiler_params=pltpu.CompilerParams(
            dimension_semantics=("parallel", "arbitrary"),
            vmem_limit_bytes=_vmem_limit_bytes()),
    )(x, x, sqn, b_row, b_col)


# ----------------------------------------------------------------------------
# Kernel 2: DynamicEdgeConv message MLP + max aggregation
#   message(i, j) = Lin2( relu( BN( Lin1( [x_i, x_j - x_i] ) ) ) )
#   out_i = max_j message(i, j)
# BN folded into Lin1; Lin1([x_i, x_j-x_i]) = x_i @ (W1a - W1b) + x_j @ W1b.
# ----------------------------------------------------------------------------
def _edge_conv_kernel(xi_ref, xj_ref, w1s_ref, w1n_ref, b1_ref, w2_ref, b2_ref,
                      o_ref, *, k):
    xi = xi_ref[...]                                          # (TN, C) bf16
    tn = xi.shape[0]
    base = jnp.dot(xi, w1s_ref[...],
                   preferred_element_type=jnp.float32) + b1_ref[...]     # (TN, H)
    xj = xj_ref[...]                                          # (k, TN, C) bf16
    nbr = jnp.dot(xj.reshape(k * tn, -1), w1n_ref[...],
                  preferred_element_type=jnp.float32)         # (k*TN, H)
    h = jnp.maximum(nbr.reshape(k, tn, -1) + base[None, :, :], 0.0)      # ReLU
    h2 = jnp.dot(h.reshape(k * tn, -1).astype(jnp.bfloat16), w2_ref[...],
                 preferred_element_type=jnp.float32) + b2_ref[...]       # (k*TN, O)
    o_ref[...] = jnp.max(h2.reshape(k, tn, -1), axis=0).astype(o_ref.dtype)


def edge_conv(x, nbr_idx, params, k, tile):
    n, c = x.shape
    assert n % tile == 0
    w1s, w1n, b1, w2, b2 = params
    out_dim = w2.shape[1]
    # TODO(synk): the (k, N, C) neighbor gather is still a JAX-level HBM round
    # trip (now bf16); an in-kernel gather from a VMEM-resident x would remove it.
    xj = x[nbr_idx.T]                                         # (k, N, C) bf16
    kernel = functools.partial(_edge_conv_kernel, k=k)
    return pl.pallas_call(
        kernel,
        out_shape=jax.ShapeDtypeStruct((n, out_dim), jnp.bfloat16),
        grid_spec=pltpu.PrefetchScalarGridSpec(
            num_scalar_prefetch=0,
            grid=(n // tile,),
            in_specs=[
                pl.BlockSpec((tile, c), lambda i: (i, 0)),
                pl.BlockSpec((k, tile, c), lambda i: (0, i, 0)),
                pl.BlockSpec(w1s.shape, lambda i: (0, 0)),
                pl.BlockSpec(w1n.shape, lambda i: (0, 0)),
                pl.BlockSpec(b1.shape, lambda i: (0, 0)),
                pl.BlockSpec(w2.shape, lambda i: (0, 0)),
                pl.BlockSpec(b2.shape, lambda i: (0, 0)),
            ],
            out_specs=pl.BlockSpec((tile, out_dim), lambda i: (i, 0))),
        compiler_params=pltpu.CompilerParams(
            dimension_semantics=("parallel",),
            vmem_limit_bytes=_vmem_limit_bytes()),
    )(x, xj, w1s, w1n, b1, w2, b2)


# ----------------------------------------------------------------------------
# Kernel 3: segmentation MLP [192, 1024, 256, 128, C] + log_softmax.
# x1/x2/x3 are concatenated to (tile, 192) in VMEM so the first layer is a
# single K=192 MXU matmul; the (N, 192) concat never hits HBM.
# Dropout(p=0.5) is the eval-mode identity.
# ----------------------------------------------------------------------------
def _seg_mlp_kernel(x1_ref, x2_ref, x3_ref, w1_ref, b1_ref, w2_ref, b2_ref,
                    w3_ref, b3_ref, w4_ref, b4_ref, o_ref):
    xcat = jnp.concatenate([x1_ref[...], x2_ref[...], x3_ref[...]], axis=-1)
    h = jnp.maximum(jnp.dot(xcat, w1_ref[...],
                            preferred_element_type=jnp.float32) + b1_ref[...], 0.0)
    h = jnp.maximum(jnp.dot(h.astype(jnp.bfloat16), w2_ref[...],
                            preferred_element_type=jnp.float32) + b2_ref[...], 0.0)
    h = jnp.maximum(jnp.dot(h.astype(jnp.bfloat16), w3_ref[...],
                            preferred_element_type=jnp.float32) + b3_ref[...], 0.0)
    z = jnp.dot(h.astype(jnp.bfloat16), w4_ref[...],
                preferred_element_type=jnp.float32) + b4_ref[...]
    zmax = jnp.max(z, axis=-1, keepdims=True)
    lse = jnp.log(jnp.sum(jnp.exp(z - zmax), axis=-1, keepdims=True)) + zmax
    o_ref[...] = z - lse                                      # log_softmax (f32)


def seg_mlp(x1, x2, x3, params, tile):
    n, c = x1.shape
    assert n % tile == 0
    w4 = params[-2]
    out_dim = w4.shape[1]
    act_specs = [pl.BlockSpec((tile, c), lambda i: (i, 0)) for _ in range(3)]
    weight_specs = [pl.BlockSpec(p.shape, lambda i: (0, 0)) for p in params]
    return pl.pallas_call(
        _seg_mlp_kernel,
        out_shape=jax.ShapeDtypeStruct((n, out_dim), jnp.float32),
        grid_spec=pltpu.PrefetchScalarGridSpec(
            num_scalar_prefetch=0,
            grid=(n // tile,),
            in_specs=act_specs + weight_specs,
            out_specs=pl.BlockSpec((tile, out_dim), lambda i: (i, 0))),
        compiler_params=pltpu.CompilerParams(
            dimension_semantics=("parallel",),
            vmem_limit_bytes=_vmem_limit_bytes()),
    )(x1, x2, x3, *params)


# ----------------------------------------------------------------------------
# Parameter construction (deterministic, PyTorch-default-like init) + inference prep
# ----------------------------------------------------------------------------
def _linear(key, fan_in, fan_out):
    kw, kb = jax.random.split(key)
    bound = 1.0 / float(fan_in) ** 0.5
    w = jax.random.uniform(kw, (fan_in, fan_out), jnp.float32, -bound, bound)
    b = jax.random.uniform(kb, (1, fan_out), jnp.float32, -bound, bound)
    return w, b


def _edge_mlp_params(key, in_dim, hid, out_dim):
    k1, k2 = jax.random.split(key)
    w1, b1 = _linear(k1, in_dim, hid)
    # BatchNorm1d(hid) eval mode with init running stats (mean=0, var=1, affine id)
    eps = 1e-5
    gamma = jnp.ones((1, hid), jnp.float32)
    beta = jnp.zeros((1, hid), jnp.float32)
    run_mean = jnp.zeros((1, hid), jnp.float32)
    run_var = jnp.ones((1, hid), jnp.float32)
    scale = gamma / jnp.sqrt(run_var + eps)
    shift = beta - run_mean * scale
    w2, b2 = _linear(k2, hid, out_dim)
    return (w1, b1, scale, shift, w2, b2)


def init_net_params(key, out_channels):
    k1, k2, k3, k4, k5, k6, k7 = jax.random.split(key, 7)
    params = {
        "conv1": _edge_mlp_params(k1, 2 * 6, 64, 64),
        "conv2": _edge_mlp_params(k2, 2 * 64, 64, 64),
        "conv3": _edge_mlp_params(k3, 2 * 64, 64, 64),
    }
    w1, b1 = _linear(k4, 3 * 64, 1024)
    w2, b2 = _linear(k5, 1024, 256)
    w3, b3 = _linear(k6, 256, 128)
    w4, b4 = _linear(k7, 128, out_channels)
    params["mlp"] = (w1, b1, w2, b2, w3, b3, w4, b4)
    return params


def prep_inference_params(params):
    """Fold BN into Lin1, split conv W1 into self/neighbor halves, cast to bf16."""
    prepped = {}
    for name in ("conv1", "conv2", "conv3"):
        w1, b1, scale, shift, w2, b2 = params[name]
        w1f = w1 * scale                                      # BN folded into Lin1
        b1f = b1 * scale + shift
        c = w1.shape[0] // 2
        w1_self = (w1f[:c] - w1f[c:]).astype(jnp.bfloat16)    # acts on x_i
        w1_nbr = w1f[c:].astype(jnp.bfloat16)                 # acts on x_j
        prepped[name] = (w1_self, w1_nbr, b1f,
                         w2.astype(jnp.bfloat16), b2)
    w1, b1, w2, b2, w3, b3, w4, b4 = params["mlp"]
    prepped["mlp"] = (w1.astype(jnp.bfloat16), b1,
                      w2.astype(jnp.bfloat16), b2,
                      w3.astype(jnp.bfloat16), b3,
                      w4.astype(jnp.bfloat16), b4)
    return prepped


# ----------------------------------------------------------------------------
# Net.forward
# ----------------------------------------------------------------------------
def net_forward(x, pos, batch, params, k, tile_pref=512):
    n = x.shape[0]
    x0 = jnp.concatenate([x, pos], axis=-1).astype(jnp.bfloat16)   # (N, 6)
    # Pad N up to a tile multiple; padded points get a sentinel batch id so they
    # never enter real neighborhoods, and are sliced off at the end.  With the
    # default tile_pref=512 any realistic point cloud gets >=2 row tiles, which
    # lets the "parallel" grid axis shard across v7x's two TensorCores.
    tile = _pick_tile(n, tile_pref)
    n_pad = _round_up(n, tile)
    pad = n_pad - n
    if pad:
        x0 = jnp.concatenate(
            [x0, jnp.zeros((pad, x0.shape[1]), x0.dtype)], axis=0)
        batch = jnp.concatenate(
            [batch, jnp.full((pad,), PAD_BATCH_ID, batch.dtype)], axis=0)

    x1 = edge_conv(x0, knn_graph(x0, batch, k, tile), params["conv1"], k, tile)
    x2 = edge_conv(x1, knn_graph(x1, batch, k, tile), params["conv2"], k, tile)
    x3 = edge_conv(x2, knn_graph(x2, batch, k, tile), params["conv3"], k, tile)
    out = seg_mlp(x1, x2, x3, params["mlp"], tile)            # (N_pad, C) log-probs
    return out[:n]


if __name__ == "__main__":
    key = jax.random.PRNGKey(0)
    kx, kp, kparam = jax.random.split(key, 3)

    num_graphs = 2
    pts_per_graph = 32
    n = num_graphs * pts_per_graph                            # 64 points total
    k = 8                                                     # Net(..., k=8)
    out_channels = 8

    x = jax.random.normal(kx, (n, 3), jnp.float32)            # data.x  (colors)
    pos = jax.random.normal(kp, (n, 3), jnp.float32)          # data.pos
    batch = jnp.repeat(jnp.arange(num_graphs, dtype=jnp.int32), pts_per_graph)

    params = prep_inference_params(init_net_params(kparam, out_channels))

    forward = jax.jit(functools.partial(net_forward, k=k, tile_pref=512))
    out = forward(x, pos, batch, params)
    out = jax.block_until_ready(out)

    assert out.shape == (n, out_channels)
    assert bool(jnp.all(jnp.isfinite(out)))
    # log_softmax sanity: rows sum to ~1 in prob space
    assert bool(jnp.allclose(jnp.sum(jnp.exp(out), axis=1), 1.0, atol=1e-4))
    print("KERNEL_OK")
</pallas_src>

<mosaic_0001>
module attributes {stable_mosaic.version = 11 : i64} {
  func.func @_edge_conv_kernel(%arg0: i32, %arg1: memref<64x6xbf16, #tpu.memory_space<vmem>>, %arg2: memref<8x64x6xbf16, #tpu.memory_space<vmem>>, %arg3: memref<6x64xbf16, #tpu.memory_space<vmem>>, %arg4: memref<6x64xbf16, #tpu.memory_space<vmem>>, %arg5: memref<1x64xf32, #tpu.memory_space<vmem>>, %arg6: memref<64x64xbf16, #tpu.memory_space<vmem>>, %arg7: memref<1x64xf32, #tpu.memory_space<vmem>>, %arg8: memref<64x64xbf16, #tpu.memory_space<vmem>>) attributes {dimension_semantics = [#tpu.dimension_semantics<parallel>], iteration_bounds = array<i64: 1>, scalar_prefetch = 0 : i64, scratch_operands = 0 : i64, tpu.core_type = #tpu.core_type<tc>, window_params = [{transform_indices = @transform_0, window_bounds = array<i64: 64, 6>}, {transform_indices = @transform_1, window_bounds = array<i64: 8, 64, 6>}, {pipeline_mode = #tpu.pipeline_mode<synchronous>, transform_indices = @transform_2, window_bounds = array<i64: 6, 64>}, {pipeline_mode = #tpu.pipeline_mode<synchronous>, transform_indices = @transform_3, window_bounds = array<i64: 6, 64>}, {pipeline_mode = #tpu.pipeline_mode<synchronous>, transform_indices = @transform_4, window_bounds = array<i64: 1, 64>}, {pipeline_mode = #tpu.pipeline_mode<synchronous>, transform_indices = @transform_5, window_bounds = array<i64: 64, 64>}, {pipeline_mode = #tpu.pipeline_mode<synchronous>, transform_indices = @transform_6, window_bounds = array<i64: 1, 64>}, {transform_indices = @transform_7, window_bounds = array<i64: 64, 64>}]} {
    %c0 = arith.constant 0 : index
    %c0_0 = arith.constant 0 : index
    %0 = vector.load %arg1[%c0, %c0_0] : memref<64x6xbf16, #tpu.memory_space<vmem>>, vector<64x6xbf16>
    %c0_1 = arith.constant 0 : index
    %c0_2 = arith.constant 0 : index
    %1 = vector.load %arg3[%c0_1, %c0_2] : memref<6x64xbf16, #tpu.memory_space<vmem>>, vector<6x64xbf16>
    %cst = arith.constant dense<0.000000e+00> : vector<64x64xf32>
    %2 = tpu.matmul %0, %1, %cst {dimension_numbers = #tpu.dot_dimension_numbers<[1], [0], [0], [1], [0, 0, 1, 1], [], []>} : vector<64x6xbf16>, vector<6x64xbf16>, vector<64x64xf32> -> vector<64x64xf32>
    %c0_3 = arith.constant 0 : index
    %c0_4 = arith.constant 0 : index
    %3 = vector.load %arg5[%c0_3, %c0_4] : memref<1x64xf32, #tpu.memory_space<vmem>>, vector<1x64xf32>
    %4 = vector.broadcast %3 : vector<1x64xf32> to vector<64x64xf32>
    %5 = arith.addf %2, %4 : vector<64x64xf32>
    %c0_5 = arith.constant 0 : index
    %c0_6 = arith.constant 0 : index
    %c0_7 = arith.constant 0 : index
    %6 = vector.load %arg2[%c0_5, %c0_6, %c0_7] : memref<8x64x6xbf16, #tpu.memory_space<vmem>>, vector<8x64x6xbf16>
    %7 = vector.shape_cast %6 : vector<8x64x6xbf16> to vector<512x6xbf16>
    %c0_8 = arith.constant 0 : index
    %c0_9 = arith.constant 0 : index
    %8 = vector.load %arg4[%c0_8, %c0_9] : memref<6x64xbf16, #tpu.memory_space<vmem>>, vector<6x64xbf16>
    %cst_10 = arith.constant dense<0.000000e+00> : vector<512x64xf32>
    %9 = tpu.matmul %7, %8, %cst_10 {dimension_numbers = #tpu.dot_dimension_numbers<[1], [0], [0], [1], [0, 0, 1, 1], [], []>} : vector<512x6xbf16>, vector<6x64xbf16>, vector<512x64xf32> -> vector<512x64xf32>
    %10 = vector.shape_cast %9 : vector<512x64xf32> to vector<8x64x64xf32>
    %11 = vector.shape_cast %5 : vector<64x64xf32> to vector<1x64x64xf32>
    %12 = vector.broadcast %11 : vector<1x64x64xf32> to vector<8x64x64xf32>
    %13 = arith.addf %10, %12 : vector<8x64x64xf32>
    %cst_11 = arith.constant 0.000000e+00 : f32
    %14 = vector.broadcast %cst_11 : f32 to vector<8x64x64xf32>
    %15 = arith.maximumf %13, %14 : vector<8x64x64xf32>
    %16 = vector.shape_cast %15 : vector<8x64x64xf32> to vector<512x64xf32>
    %17 = arith.truncf %16 : vector<512x64xf32> to vector<512x64xbf16>
    %c0_12 = arith.constant 0 : index
    %c0_13 = arith.constant 0 : index
    %18 = vector.load %arg6[%c0_12, %c0_13] : memref<64x64xbf16, #tpu.memory_space<vmem>>, vector<64x64xbf16>
    %cst_14 = arith.constant dense<0.000000e+00> : vector<512x64xf32>
    %19 = tpu.matmul %17, %18, %cst_14 {dimension_numbers = #tpu.dot_dimension_numbers<[1], [0], [0], [1], [0, 0, 1, 1], [], []>} : vector<512x64xbf16>, vector<64x64xbf16>, vector<512x64xf32> -> vector<512x64xf32>
    %c0_15 = arith.constant 0 : index
    %c0_16 = arith.constant 0 : index
    %20 = vector.load %arg7[%c0_15, %c0_16] : memref<1x64xf32, #tpu.memory_space<vmem>>, vector<1x64xf32>
    %21 = vector.broadcast %20 : vector<1x64xf32> to vector<512x64xf32>
    %22 = arith.addf %19, %21 : vector<512x64xf32>
    %23 = vector.shape_cast %22 : vector<512x64xf32> to vector<8x64x64xf32>
    %cst_17 = arith.constant dense<0xFF800000> : vector<64x64xf32>
    %24 = vector.multi_reduction <maximumf>, %23, %cst_17 [0] : vector<8x64x64xf32> to vector<64x64xf32>
    %25 = arith.truncf %24 : vector<64x64xf32> to vector<64x64xbf16>
    %c0_18 = arith.constant 0 : index
    %c0_19 = arith.constant 0 : index
    %26 = vector.load %arg8[%c0_18, %c0_19] : memref<64x64xbf16, #tpu.memory_space<vmem>>, vector<64x64xbf16>
    tpu.vector_store %arg8[%c0_18, %c0_19], %25 {strides = array<i32>} : memref<64x64xbf16, #tpu.memory_space<vmem>>, vector<64x64xbf16>,
    return
  }
  func.func @transform_0(%arg0: i32) -> (i32, i32) {
    %c0_i32 = arith.constant 0 : i32
    %c0_i32_0 = arith.constant 0 : i32
    return %arg0, %c0_i32 : i32, i32
  }
  func.func @transform_1(%arg0: i32) -> (i32, i32, i32) {
    %c0_i32 = arith.constant 0 : i32
    %c0_i32_0 = arith.constant 0 : i32
    %c0_i32_1 = arith.constant 0 : i32
    return %c0_i32, %arg0, %c0_i32_0 : i32, i32, i32
  }
  func.func @transform_2(%arg0: i32) -> (i32, i32) {
    %c0_i32 = arith.constant 0 : i32
    %c0_i32_0 = arith.constant 0 : i32
    %c0_i32_1 = arith.constant 0 : i32
    return %c0_i32, %c0_i32_0 : i32, i32
  }
  func.func @transform_3(%arg0: i32) -> (i32, i32) {
    %c0_i32 = arith.constant 0 : i32
    %c0_i32_0 = arith.constant 0 : i32
    %c0_i32_1 = arith.constant 0 : i32
    return %c0_i32, %c0_i32_0 : i32, i32
  }
  func.func @transform_4(%arg0: i32) -> (i32, i32) {
    %c0_i32 = arith.constant 0 : i32
    %c0_i32_0 = arith.constant 0 : i32
    %c0_i32_1 = arith.constant 0 : i32
    return %c0_i32, %c0_i32_0 : i32, i32
  }
  func.func @transform_5(%arg0: i32) -> (i32, i32) {
    %c0_i32 = arith.constant 0 : i32
    %c0_i32_0 = arith.constant 0 : i32
    %c0_i32_1 = arith.constant 0 : i32
    return %c0_i32, %c0_i32_0 : i32, i32
  }
  func.func @transform_6(%arg0: i32) -> (i32, i32) {
    %c0_i32 = arith.constant 0 : i32
    %c0_i32_0 = arith.constant 0 : i32
    %c0_i32_1 = arith.constant 0 : i32
    return %c0_i32, %c0_i32_0 : i32, i32
  }
  func.func @transform_7(%arg0: i32) -> (i32, i32) {
    %c0_i32 = arith.constant 0 : i32
    %c0_i32_0 = arith.constant 0 : i32
    return %arg0, %c0_i32 : i32, i32
  }
}

module attributes {stable_mosaic.version = 11 : i64} {
  func.func @_knn_kernel(%arg0: i32, %arg1: i32, %arg2: memref<64x64xbf16, #tpu.memory_space<vmem>>, %arg3: memref<64x64xbf16, #tpu.memory_space<vmem>>, %arg4: memref<1x64xf32, #tpu.memory_space<vmem>>, %arg5: memref<64x1xi32, #tpu.memory_space<vmem>>, %arg6: memref<1x64xi32, #tpu.memory_space<vmem>>, %arg7: memref<64x8xi32, #tpu.memory_space<vmem>>, %arg8: memref<64x8xf32, #tpu.memory_space<vmem>>, %arg9: memref<64x8xi32, #tpu.memory_space<vmem>>) attributes {dimension_semantics = [#tpu.dimension_semantics<parallel>, #tpu.dimension_semantics<arbitrary>], iteration_bounds = array<i64: 1, 1>, scalar_prefetch = 0 : i64, scratch_operands = 2 : i64, tpu.core_type = #tpu.core_type<tc>, window_params = [{transform_indices = @transform_0, window_bounds = array<i64: 64, 64>}, {transform_indices = @transform_1, window_bounds = array<i64: 64, 64>}, {transform_indices = @transform_2, window_bounds = array<i64: 1, 64>}, {transform_indices = @transform_3, window_bounds = array<i64: 64, 1>}, {transform_indices = @transform_4, window_bounds = array<i64: 1, 64>}, {transform_indices = @transform_5, window_bounds = array<i64: 64, 8>}]} {
    %c0_i32 = arith.constant 0 : i32
    %0 = arith.cmpi eq, %arg1, %c0_i32 : i32
    %1 = arith.extui %0 : i1 to i32
    %c0_i32_0 = arith.constant 0 : i32
    %2 = arith.cmpi ne, %1, %c0_i32_0 : i32
    scf.if %2 {
      %cst_68 = arith.constant 1.000000e+30 : f32
      %163 = vector.broadcast %cst_68 : f32 to vector<64x8xf32>
      %c0_69 = arith.constant 0 : index
      %c0_70 = arith.constant 0 : index
      %164 = vector.load %arg8[%c0_69, %c0_70] : memref<64x8xf32, #tpu.memory_space<vmem>>, vector<64x8xf32>
      tpu.vector_store %arg8[%c0_69, %c0_70], %163 {strides = array<i32>} : memref<64x8xf32, #tpu.memory_space<vmem>>, vector<64x8xf32>,
      %c0_i32_71 = arith.constant 0 : i32
      %165 = vector.broadcast %c0_i32_71 : i32 to vector<64x8xi32>
      %c0_72 = arith.constant 0 : index
      %c0_73 = arith.constant 0 : index
      %166 = vector.load %arg9[%c0_72, %c0_73] : memref<64x8xi32, #tpu.memory_space<vmem>>, vector<64x8xi32>
      tpu.vector_store %arg9[%c0_72, %c0_73], %165 {strides = array<i32>} : memref<64x8xi32, #tpu.memory_space<vmem>>, vector<64x8xi32>,
    } else {
    }
    %c0 = arith.constant 0 : index
    %c0_1 = arith.constant 0 : index
    %3 = vector.load %arg2[%c0, %c0_1] : memref<64x64xbf16, #tpu.memory_space<vmem>>, vector<64x64xbf16>
    %c0_2 = arith.constant 0 : index
    %c0_3 = arith.constant 0 : index
    %4 = vector.load %arg3[%c0_2, %c0_3] : memref<64x64xbf16, #tpu.memory_space<vmem>>, vector<64x64xbf16>
    %cst = arith.constant dense<0.000000e+00> : vector<64x64xf32>
    %5 = tpu.matmul %3, %4, %cst {dimension_numbers = #tpu.dot_dimension_numbers<[1], [1], [0], [0], [0, 0, 1, 0], [], []>} : vector<64x64xbf16>, vector<64x64xbf16>, vector<64x64xf32> -> vector<64x64xf32>
    %c0_4 = arith.constant 0 : index
    %c0_5 = arith.constant 0 : index
    %6 = vector.load %arg5[%c0_4, %c0_5] : memref<64x1xi32, #tpu.memory_space<vmem>>, vector<64x1xi32>
    %c0_6 = arith.constant 0 : index
    %c0_7 = arith.constant 0 : index
    %7 = vector.load %arg6[%c0_6, %c0_7] : memref<1x64xi32, #tpu.memory_space<vmem>>, vector<1x64xi32>
    %8 = vector.broadcast %6 : vector<64x1xi32> to vector<64x64xi32>
    %9 = vector.broadcast %7 : vector<1x64xi32> to vector<64x64xi32>
    %10 = arith.cmpi ne, %8, %9 : vector<64x64xi32>
    %11 = arith.extui %10 : vector<64x64xi1> to vector<64x64xi32>
    %12 = arith.sitofp %11 : vector<64x64xi32> to vector<64x64xf32>
    %c0_8 = arith.constant 0 : index
    %c0_9 = arith.constant 0 : index
    %13 = vector.load %arg4[%c0_8, %c0_9] : memref<1x64xf32, #tpu.memory_space<vmem>>, vector<1x64xf32>
    %cst_10 = arith.constant 2.000000e+00 : f32
    %14 = vector.broadcast %cst_10 : f32 to vector<64x64xf32>
    %15 = arith.mulf %14, %5 : vector<64x64xf32>
    %16 = vector.broadcast %13 : vector<1x64xf32> to vector<64x64xf32>
    %17 = arith.subf %16, %15 : vector<64x64xf32>
    %cst_11 = arith.constant 1.000000e+09 : f32
    %18 = vector.broadcast %cst_11 : f32 to vector<64x64xf32>
    %19 = arith.mulf %12, %18 : vector<64x64xf32>
    %20 = arith.addf %17, %19 : vector<64x64xf32>
    %21 = tpu.iota {dimensions = array<i32: 1>} : vector<64x64xi32>
    %c64_i32 = arith.constant 64 : i32
    %22 = arith.muli %arg1, %c64_i32 : i32
    %23 = vector.broadcast %22 : i32 to vector<64x64xi32>
    %24 = arith.addi %21, %23 : vector<64x64xi32>
    %c0_12 = arith.constant 0 : index
    %c0_13 = arith.constant 0 : index
    %25 = vector.load %arg8[%c0_12, %c0_13] : memref<64x8xf32, #tpu.memory_space<vmem>>, vector<64x8xf32>
    %26 = tpu.concatenate %25, %20 in 1 : vector<64x8xf32>, vector<64x64xf32> -> vector<64x72xf32>
    %c0_14 = arith.constant 0 : index
    %c0_15 = arith.constant 0 : index
    %27 = vector.load %arg9[%c0_14, %c0_15] : memref<64x8xi32, #tpu.memory_space<vmem>>, vector<64x8xi32>
    %28 = tpu.concatenate %27, %24 in 1 : vector<64x8xi32>, vector<64x64xi32> -> vector<64x72xi32>
    %29 = tpu.iota {dimensions = array<i32: 1>} : vector<64x72xi32>
    %cst_16 = arith.constant dense<0x7F800000> : vector<64xf32>
    %30 = vector.multi_reduction <minimumf>, %26, %cst_16 [1] : vector<64x72xf32> to vector<64xf32>
    %31 = vector.shape_cast %30 : vector<64xf32> to vector<64x1xf32>
    %32 = vector.broadcast %31 : vector<64x1xf32> to vector<64x72xf32>
    %33 = arith.cmpf oeq, %26, %32 : vector<64x72xf32>
    %c1073741824_i32 = arith.constant 1073741824 : i32
    %34 = vector.broadcast %c1073741824_i32 : i32 to vector<64x72xi32>
    %35 = arith.select %33, %29, %34 : vector<64x72xi1>, vector<64x72xi32>
    %cst_17 = arith.constant dense<2147483647> : vector<64xi32>
    %36 = vector.multi_reduction <minsi>, %35, %cst_17 [1] : vector<64x72xi32> to vector<64xi32>
    %37 = vector.shape_cast %36 : vector<64xi32> to vector<64x1xi32>
    %38 = vector.broadcast %37 : vector<64x1xi32> to vector<64x72xi32>
    %39 = arith.cmpi eq, %29, %38 : vector<64x72xi32>
    %c0_i32_18 = arith.constant 0 : i32
    %40 = vector.broadcast %c0_i32_18 : i32 to vector<64x72xi32>
    %41 = arith.select %39, %28, %40 : vector<64x72xi1>, vector<64x72xi32>
    %cst_19 = arith.constant dense<-2147483648> : vector<64xi32>
    %42 = vector.multi_reduction <maxsi>, %41, %cst_19 [1] : vector<64x72xi32> to vector<64xi32>
    %43 = vector.shape_cast %42 : vector<64xi32> to vector<64x1xi32>
    %cst_20 = arith.constant 1.000000e+30 : f32
    %44 = vector.broadcast %cst_20 : f32 to vector<64x72xf32>
    %45 = arith.select %39, %44, %26 : vector<64x72xi1>, vector<64x72xf32>
    %cst_21 = arith.constant dense<0x7F800000> : vector<64xf32>
    %46 = vector.multi_reduction <minimumf>, %45, %cst_21 [1] : vector<64x72xf32> to vector<64xf32>
    %47 = vector.shape_cast %46 : vector<64xf32> to vector<64x1xf32>
    %48 = vector.broadcast %47 : vector<64x1xf32> to vector<64x72xf32>
    %49 = arith.cmpf oeq, %45, %48 : vector<64x72xf32>
    %c1073741824_i32_22 = arith.constant 1073741824 : i32
    %50 = vector.broadcast %c1073741824_i32_22 : i32 to vector<64x72xi32>
    %51 = arith.select %49, %29, %50 : vector<64x72xi1>, vector<64x72xi32>
    %cst_23 = arith.constant dense<2147483647> : vector<64xi32>
    %52 = vector.multi_reduction <minsi>, %51, %cst_23 [1] : vector<64x72xi32> to vector<64xi32>
    %53 = vector.shape_cast %52 : vector<64xi32> to vector<64x1xi32>
    %54 = vector.broadcast %53 : vector<64x1xi32> to vector<64x72xi32>
    %55 = arith.cmpi eq, %29, %54 : vector<64x72xi32>
    %c0_i32_24 = arith.constant 0 : i32
    %56 = vector.broadcast %c0_i32_24 : i32 to vector<64x72xi32>
    %57 = arith.select %55, %28, %56 : vector<64x72xi1>, vector<64x72xi32>
    %cst_25 = arith.constant dense<-2147483648> : vector<64xi32>
    %58 = vector.multi_reduction <maxsi>, %57, %cst_25 [1] : vector<64x72xi32> to vector<64xi32>
    %59 = vector.shape_cast %58 : vector<64xi32> to vector<64x1xi32>
    %cst_26 = arith.constant 1.000000e+30 : f32
    %60 = vector.broadcast %cst_26 : f32 to vector<64x72xf32>
    %61 = arith.select %55, %60, %45 : vector<64x72xi1>, vector<64x72xf32>
    %cst_27 = arith.constant dense<0x7F800000> : vector<64xf32>
    %62 = vector.multi_reduction <minimumf>, %61, %cst_27 [1] : vector<64x72xf32> to vector<64xf32>
    %63 = vector.shape_cast %62 : vector<64xf32> to vector<64x1xf32>
    %64 = vector.broadcast %63 : vector<64x1xf32> to vector<64x72xf32>
    %65 = arith.cmpf oeq, %61, %64 : vector<64x72xf32>
    %c1073741824_i32_28 = arith.constant 1073741824 : i32
    %66 = vector.broadcast %c1073741824_i32_28 : i32 to vector<64x72xi32>
    %67 = arith.select %65, %29, %66 : vector<64x72xi1>, vector<64x72xi32>
    %cst_29 = arith.constant dense<2147483647> : vector<64xi32>
    %68 = vector.multi_reduction <minsi>, %67, %cst_29 [1] : vector<64x72xi32> to vector<64xi32>
    %69 = vector.shape_cast %68 : vector<64xi32> to vector<64x1xi32>
    %70 = vector.broadcast %69 : vector<64x1xi32> to vector<64x72xi32>
    %71 = arith.cmpi eq, %29, %70 : vector<64x72xi32>
    %c0_i32_30 = arith.constant 0 : i32
    %72 = vector.broadcast %c0_i32_30 : i32 to vector<64x72xi32>
    %73 = arith.select %71, %28, %72 : vector<64x72xi1>, vector<64x72xi32>
    %cst_31 = arith.constant dense<-2147483648> : vector<64xi32>
    %74 = vector.multi_reduction <maxsi>, %73, %cst_31 [1] : vector<64x72xi32> to vector<64xi32>
    %75 = vector.shape_cast %74 : vector<64xi32> to vector<64x1xi32>
    %cst_32 = arith.constant 1.000000e+30 : f32
    %76 = vector.broadcast %cst_32 : f32 to vector<64x72xf32>
    %77 = arith.select %71, %76, %61 : vector<64x72xi1>, vector<64x72xf32>
    %cst_33 = arith.constant dense<0x7F800000> : vector<64xf32>
    %78 = vector.multi_reduction <minimumf>, %77, %cst_33 [1] : vector<64x72xf32> to vector<64xf32>
    %79 = vector.shape_cast %78 : vector<64xf32> to vector<64x1xf32>
    %80 = vector.broadcast %79 : vector<64x1xf32> to vector<64x72xf32>
    %81 = arith.cmpf oeq, %77, %80 : vector<64x72xf32>
    %c1073741824_i32_34 = arith.constant 1073741824 : i32
    %82 = vector.broadcast %c1073741824_i32_34 : i32 to vector<64x72xi32>
    %83 = arith.select %81, %29, %82 : vector<64x72xi1>, vector<64x72xi32>
    %cst_35 = arith.constant dense<2147483647> : vector<64xi32>
    %84 = vector.multi_reduction <minsi>, %83, %cst_35 [1] : vector<64x72xi32> to vector<64xi32>
    %85 = vector.shape_cast %84 : vector<64xi32> to vector<64x1xi32>
    %86 = vector.broadcast %85 : vector<64x1xi32> to vector<64x72xi32>
    %87 = arith.cmpi eq, %29, %86 : vector<64x72xi32>
    %c0_i32_36 = arith.constant 0 : i32
    %88 = vector.broadcast %c0_i32_36 : i32 to vector<64x72xi32>
    %89 = arith.select %87, %28, %88 : vector<64x72xi1>, vector<64x72xi32>
    %cst_37 = arith.constant dense<-2147483648> : vector<64xi32>
    %90 = vector.multi_reduction <maxsi>, %89, %cst_37 [1] : vector<64x72xi32> to vector<64xi32>
    %91 = vector.shape_cast %90 : vector<64xi32> to vector<64x1xi32>
    %cst_38 = arith.constant 1.000000e+30 : f32
    %92 = vector.broadcast %cst_38 : f32 to vector<64x72xf32>
    %93 = arith.select %87, %92, %77 : vector<64x72xi1>, vector<64x72xf32>
    %cst_39 = arith.constant dense<0x7F800000> : vector<64xf32>
    %94 = vector.multi_reduction <minimumf>, %93, %cst_39 [1] : vector<64x72xf32> to vector<64xf32>
    %95 = vector.shape_cast %94 : vector<64xf32> to vector<64x1xf32>
    %96 = vector.broadcast %95 : vector<64x1xf32> to vector<64x72xf32>
    %97 = arith.cmpf oeq, %93, %96 : vector<64x72xf32>
    %c1073741824_i32_40 = arith.constant 1073741824 : i32
    %98 = vector.broadcast %c1073741824_i32_40 : i32 to vector<64x72xi32>
    %99 = arith.select %97, %29, %98 : vector<64x72xi1>, vector<64x72xi32>
    %cst_41 = arith.constant dense<2147483647> : vector<64xi32>
    %100 = vector.multi_reduction <minsi>, %99, %cst_41 [1] : vector<64x72xi32> to vector<64xi32>
    %101 = vector.shape_cast %100 : vector<64xi32> to vector<64x1xi32>
    %102 = vector.broadcast %101 : vector<64x1xi32> to vector<64x72xi32>
    %103 = arith.cmpi eq, %29, %102 : vector<64x72xi32>
    %c0_i32_42 = arith.constant 0 : i32
    %104 = vector.broadcast %c0_i32_42 : i32 to vector<64x72xi32>
    %105 = arith.select %103, %28, %104 : vector<64x72xi1>, vector<64x72xi32>
    %cst_43 = arith.constant dense<-2147483648> : vector<64xi32>
    %106 = vector.multi_reduction <maxsi>, %105, %cst_43 [1] : vector<64x72xi32> to vector<64xi32>
    %107 = vector.shape_cast %106 : vector<64xi32> to vector<64x1xi32>
    %cst_44 = arith.constant 1.000000e+30 : f32
    %108 = vector.broadcast %cst_44 : f32 to vector<64x72xf32>
    %109 = arith.select %103, %108, %93 : vector<64x72xi1>, vector<64x72xf32>
    %cst_45 = arith.constant dense<0x7F800000> : vector<64xf32>
    %110 = vector.multi_reduction <minimumf>, %109, %cst_45 [1] : vector<64x72xf32> to vector<64xf32>
    %111 = vector.shape_cast %110 : vector<64xf32> to vector<64x1xf32>
    %112 = vector.broadcast %111 : vector<64x1xf32> to vector<64x72xf32>
    %113 = arith.cmpf oeq, %109, %112 : vector<64x72xf32>
    %c1073741824_i32_46 = arith.constant 1073741824 : i32
    %114 = vector.broadcast %c1073741824_i32_46 : i32 to vector<64x72xi32>
    %115 = arith.select %113, %29, %114 : vector<64x72xi1>, vector<64x72xi32>
    %cst_47 = arith.constant dense<2147483647> : vector<64xi32>
    %116 = vector.multi_reduction <minsi>, %115, %cst_47 [1] : vector<64x72xi32> to vector<64xi32>
    %117 = vector.shape_cast %116 : vector<64xi32> to vector<64x1xi32>
    %118 = vector.broadcast %117 : vector<64x1xi32> to vector<64x72xi32>
    %119 = arith.cmpi eq, %29, %118 : vector<64x72xi32>
    %c0_i32_48 = arith.constant 0 : i32
    %120 = vector.broadcast %c0_i32_48 : i32 to vector<64x72xi32>
    %121 = arith.select %119, %28, %120 : vector<64x72xi1>, vector<64x72xi32>
    %cst_49 = arith.constant dense<-2147483648> : vector<64xi32>
    %122 = vector.multi_reduction <maxsi>, %121, %cst_49 [1] : vector<64x72xi32> to vector<64xi32>
    %123 = vector.shape_cast %122 : vector<64xi32> to vector<64x1xi32>
    %cst_50 = arith.constant 1.000000e+30 : f32
    %124 = vector.broadcast %cst_50 : f32 to vector<64x72xf32>
    %125 = arith.select %119, %124, %109 : vector<64x72xi1>, vector<64x72xf32>
    %cst_51 = arith.constant dense<0x7F800000> : vector<64xf32>
    %126 = vector.multi_reduction <minimumf>, %125, %cst_51 [1] : vector<64x72xf32> to vector<64xf32>
    %127 = vector.shape_cast %126 : vector<64xf32> to vector<64x1xf32>
    %128 = vector.broadcast %127 : vector<64x1xf32> to vector<64x72xf32>
    %129 = arith.cmpf oeq, %125, %128 : vector<64x72xf32>
    %c1073741824_i32_52 = arith.constant 1073741824 : i32
    %130 = vector.broadcast %c1073741824_i32_52 : i32 to vector<64x72xi32>
    %131 = arith.select %129, %29, %130 : vector<64x72xi1>, vector<64x72xi32>
    %cst_53 = arith.constant dense<2147483647> : vector<64xi32>
    %132 = vector.multi_reduction <minsi>, %131, %cst_53 [1] : vector<64x72xi32> to vector<64xi32>
    %133 = vector.shape_cast %132 : vector<64xi32> to vector<64x1xi32>
    %134 = vector.broadcast %133 : vector<64x1xi32> to vector<64x72xi32>
    %135 = arith.cmpi eq, %29, %134 : vector<64x72xi32>
    %c0_i32_54 = arith.constant 0 : i32
    %136 = vector.broadcast %c0_i32_54 : i32 to vector<64x72xi32>
    %137 = arith.select %135, %28, %136 : vector<64x72xi1>, vector<64x72xi32>
    %cst_55 = arith.constant dense<-2147483648> : vector<64xi32>
    %138 = vector.multi_reduction <maxsi>, %137, %cst_55 [1] : vector<64x72xi32> to vector<64xi32>
    %139 = vector.shape_cast %138 : vector<64xi32> to vector<64x1xi32>
    %cst_56 = arith.constant 1.000000e+30 : f32
    %140 = vector.broadcast %cst_56 : f32 to vector<64x72xf32>
    %141 = arith.select %135, %140, %125 : vector<64x72xi1>, vector<64x72xf32>
    %cst_57 = arith.constant dense<0x7F800000> : vector<64xf32>
    %142 = vector.multi_reduction <minimumf>, %141, %cst_57 [1] : vector<64x72xf32> to vector<64xf32>
    %143 = vector.shape_cast %142 : vector<64xf32> to vector<64x1xf32>
    %144 = vector.broadcast %143 : vector<64x1xf32> to vector<64x72xf32>
    %145 = arith.cmpf oeq, %141, %144 : vector<64x72xf32>
    %c1073741824_i32_58 = arith.constant 1073741824 : i32
    %146 = vector.broadcast %c1073741824_i32_58 : i32 to vector<64x72xi32>
    %147 = arith.select %145, %29, %146 : vector<64x72xi1>, vector<64x72xi32>
    %cst_59 = arith.constant dense<2147483647> : vector<64xi32>
    %148 = vector.multi_reduction <minsi>, %147, %cst_59 [1] : vector<64x72xi32> to vector<64xi32>
    %149 = vector.shape_cast %148 : vector<64xi32> to vector<64x1xi32>
    %150 = vector.broadcast %149 : vector<64x1xi32> to vector<64x72xi32>
    %151 = arith.cmpi eq, %29, %150 : vector<64x72xi32>
    %c0_i32_60 = arith.constant 0 : i32
    %152 = vector.broadcast %c0_i32_60 : i32 to vector<64x72xi32>
    %153 = arith.select %151, %28, %152 : vector<64x72xi1>, vector<64x72xi32>
    %cst_61 = arith.constant dense<-2147483648> : vector<64xi32>
    %154 = vector.multi_reduction <maxsi>, %153, %cst_61 [1] : vector<64x72xi32> to vector<64xi32>
    %155 = vector.shape_cast %154 : vector<64xi32> to vector<64x1xi32>
    %156 = tpu.concatenate %31, %47, %63, %79, %95, %111, %127, %143 in 1 : vector<64x1xf32>, vector<64x1xf32>, vector<64x1xf32>, vector<64x1xf32>, vector<64x1xf32>, vector<64x1xf32>, vector<64x1xf32>, vector<64x1xf32> -> vector<64x8xf32>
    %c0_62 = arith.constant 0 : index
    %c0_63 = arith.constant 0 : index
    %157 = vector.load %arg8[%c0_62, %c0_63] : memref<64x8xf32, #tpu.memory_space<vmem>>, vector<64x8xf32>
    tpu.vector_store %arg8[%c0_62, %c0_63], %156 {strides = array<i32>} : memref<64x8xf32, #tpu.memory_space<vmem>>, vector<64x8xf32>,
    %158 = tpu.concatenate %43, %59, %75, %91, %107, %123, %139, %155 in 1 : vector<64x1xi32>, vector<64x1xi32>, vector<64x1xi32>, vector<64x1xi32>, vector<64x1xi32>, vector<64x1xi32>, vector<64x1xi32>, vector<64x1xi32> -> vector<64x8xi32>
    %c0_64 = arith.constant 0 : index
    %c0_65 = arith.constant 0 : index
    %159 = vector.load %arg9[%c0_64, %c0_65] : memref<64x8xi32, #tpu.memory_space<vmem>>, vector<64x8xi32>
    tpu.vector_store %arg9[%c0_64, %c0_65], %158 {strides = array<i32>} : memref<64x8xi32, #tpu.memory_space<vmem>>, vector<64x8xi32>,
    %c0_i32_66 = arith.constant 0 : i32
    %160 = arith.cmpi eq, %arg1, %c0_i32_66 : i32
    %161 = arith.extui %160 : i1 to i32
    %c0_i32_67 = arith.constant 0 : i32
    %162 = arith.cmpi ne, %161, %c0_i32_67 : i32
    scf.if %162 {
      %c0_68 = arith.constant 0 : index
      %c0_69 = arith.constant 0 : index
      %163 = vector.load %arg9[%c0_68, %c0_69] : memref<64x8xi32, #tpu.memory_space<vmem>>, vector<64x8xi32>
      %c0_70 = arith.constant 0 : index
      %c0_71 = arith.constant 0 : index
      %164 = vector.load %arg7[%c0_70, %c0_71] : memref<64x8xi32, #tpu.memory_space<vmem>>, vector<64x8xi32>
      tpu.vector_store %arg7[%c0_70, %c0_71], %163 {strides = array<i32>} : memref<64x8xi32, #tpu.memory_space<vmem>>, vector<64x8xi32>,
    } else {
    }
    return
  }
  func.func @transform_0(%arg0: i32, %arg1: i32) -> (i32, i32) {
    %c0_i32 = arith.constant 0 : i32
    %c0_i32_0 = arith.constant 0 : i32
    return %arg0, %c0_i32 : i32, i32
  }
  func.func @transform_1(%arg0: i32, %arg1: i32) -> (i32, i32) {
    %c0_i32 = arith.constant 0 : i32
    %c0_i32_0 = arith.constant 0 : i32
    return %arg1, %c0_i32 : i32, i32
  }
  func.func @transform_2(%arg0: i32, %arg1: i32) -> (i32, i32) {
    %c0_i32 = arith.constant 0 : i32
    %c0_i32_0 = arith.constant 0 : i32
    return %c0_i32, %arg1 : i32, i32
  }
  func.func @transform_3(%arg0: i32, %arg1: i32) -> (i32, i32) {
    %c0_i32 = arith.constant 0 : i32
    %c0_i32_0 = arith.constant 0 : i32
    return %arg0, %c0_i32 : i32, i32
  }
  func.func @transform_4(%arg0: i32, %arg1: i32) -> (i32, i32) {
    %c0_i32 = arith.constant 0 : i32
    %c0_i32_0 = arith.constant 0 : i32
    return %c0_i32, %arg1 : i32, i32
  }
  func.func @transform_5(%arg0: i32, %arg1: i32) -> (i32, i32) {
    %c0_i32 = arith.constant 0 : i32
    %c0_i32_0 = arith.constant 0 : i32
    return %arg0, %c0_i32 : i32, i32
  }
}

module attributes {stable_mosaic.version = 11 : i64} {
  func.func @_knn_kernel(%arg0: i32, %arg1: i32, %arg2: memref<64x6xbf16, #tpu.memory_space<vmem>>, %arg3: memref<64x6xbf16, #tpu.memory_space<vmem>>, %arg4: memref<1x64xf32, #tpu.memory_space<vmem>>, %arg5: memref<64x1xi32, #tpu.memory_space<vmem>>, %arg6: memref<1x64xi32, #tpu.memory_space<vmem>>, %arg7: memref<64x8xi32, #tpu.memory_space<vmem>>, %arg8: memref<64x8xf32, #tpu.memory_space<vmem>>, %arg9: memref<64x8xi32, #tpu.memory_space<vmem>>) attributes {dimension_semantics = [#tpu.dimension_semantics<parallel>, #tpu.dimension_semantics<arbitrary>], iteration_bounds = array<i64: 1, 1>, scalar_prefetch = 0 : i64, scratch_operands = 2 : i64, tpu.core_type = #tpu.core_type<tc>, window_params = [{transform_indices = @transform_0, window_bounds = array<i64: 64, 6>}, {transform_indices = @transform_1, window_bounds = array<i64: 64, 6>}, {transform_indices = @transform_2, window_bounds = array<i64: 1, 64>}, {transform_indices = @transform_3, window_bounds = array<i64: 64, 1>}, {transform_indices = @transform_4, window_bounds = array<i64: 1, 64>}, {transform_indices = @transform_5, window_bounds = array<i64: 64, 8>}]} {
    %c0_i32 = arith.constant 0 : i32
    %0 = arith.cmpi eq, %arg1, %c0_i32 : i32
    %1 = arith.extui %0 : i1 to i32
    %c0_i32_0 = arith.constant 0 : i32
    %2 = arith.cmpi ne, %1, %c0_i32_0 : i32
    scf.if %2 {
      %cst_68 = arith.constant 1.000000e+30 : f32
      %163 = vector.broadcast %cst_68 : f32 to vector<64x8xf32>
      %c0_69 = arith.constant 0 : index
      %c0_70 = arith.constant 0 : index
      %164 = vector.load %arg8[%c0_69, %c0_70] : memref<64x8xf32, #tpu.memory_space<vmem>>, vector<64x8xf32>
      tpu.vector_store %arg8[%c0_69, %c0_70], %163 {strides = array<i32>} : memref<64x8xf32, #tpu.memory_space<vmem>>, vector<64x8xf32>,
      %c0_i32_71 = arith.constant 0 : i32
      %165 = vector.broadcast %c0_i32_71 : i32 to vector<64x8xi32>
      %c0_72 = arith.constant 0 : index
      %c0_73 = arith.constant 0 : index
      %166 = vector.load %arg9[%c0_72, %c0_73] : memref<64x8xi32, #tpu.memory_space<vmem>>, vector<64x8xi32>
      tpu.vector_store %arg9[%c0_72, %c0_73], %165 {strides = array<i32>} : memref<64x8xi32, #tpu.memory_space<vmem>>, vector<64x8xi32>,
    } else {
    }
    %c0 = arith.constant 0 : index
    %c0_1 = arith.constant 0 : index
    %3 = vector.load %arg2[%c0, %c0_1] : memref<64x6xbf16, #tpu.memory_space<vmem>>, vector<64x6xbf16>
    %c0_2 = arith.constant 0 : index
    %c0_3 = arith.constant 0 : index
    %4 = vector.load %arg3[%c0_2, %c0_3] : memref<64x6xbf16, #tpu.memory_space<vmem>>, vector<64x6xbf16>
    %cst = arith.constant dense<0.000000e+00> : vector<64x64xf32>
    %5 = tpu.matmul %3, %4, %cst {dimension_numbers = #tpu.dot_dimension_numbers<[1], [1], [0], [0], [0, 0, 1, 0], [], []>} : vector<64x6xbf16>, vector<64x6xbf16>, vector<64x64xf32> -> vector<64x64xf32>
    %c0_4 = arith.constant 0 : index
    %c0_5 = arith.constant 0 : index
    %6 = vector.load %arg5[%c0_4, %c0_5] : memref<64x1xi32, #tpu.memory_space<vmem>>, vector<64x1xi32>
    %c0_6 = arith.constant 0 : index
    %c0_7 = arith.constant 0 : index
    %7 = vector.load %arg6[%c0_6, %c0_7] : memref<1x64xi32, #tpu.memory_space<vmem>>, vector<1x64xi32>
    %8 = vector.broadcast %6 : vector<64x1xi32> to vector<64x64xi32>
    %9 = vector.broadcast %7 : vector<1x64xi32> to vector<64x64xi32>
    %10 = arith.cmpi ne, %8, %9 : vector<64x64xi32>
    %11 = arith.extui %10 : vector<64x64xi1> to vector<64x64xi32>
    %12 = arith.sitofp %11 : vector<64x64xi32> to vector<64x64xf32>
    %c0_8 = arith.constant 0 : index
    %c0_9 = arith.constant 0 : index
    %13 = vector.load %arg4[%c0_8, %c0_9] : memref<1x64xf32, #tpu.memory_space<vmem>>, vector<1x64xf32>
    %cst_10 = arith.constant 2.000000e+00 : f32
    %14 = vector.broadcast %cst_10 : f32 to vector<64x64xf32>
    %15 = arith.mulf %14, %5 : vector<64x64xf32>
    %16 = vector.broadcast %13 : vector<1x64xf32> to vector<64x64xf32>
    %17 = arith.subf %16, %15 : vector<64x64xf32>
    %cst_11 = arith.constant 1.000000e+09 : f32
    %18 = vector.broadcast %cst_11 : f32 to vector<64x64xf32>
    %19 = arith.mulf %12, %18 : vector<64x64xf32>
    %20 = arith.addf %17, %19 : vector<64x64xf32>
    %21 = tpu.iota {dimensions = array<i32: 1>} : vector<64x64xi32>
    %c64_i32 = arith.constant 64 : i32
    %22 = arith.muli %arg1, %c64_i32 : i32
    %23 = vector.broadcast %22 : i32 to vector<64x64xi32>
    %24 = arith.addi %21, %23 : vector<64x64xi32>
    %c0_12 = arith.constant 0 : index
    %c0_13 = arith.constant 0 : index
    %25 = vector.load %arg8[%c0_12, %c0_13] : memref<64x8xf32, #tpu.memory_space<vmem>>, vector<64x8xf32>
    %26 = tpu.concatenate %25, %20 in 1 : vector<64x8xf32>, vector<64x64xf32> -> vector<64x72xf32>
    %c0_14 = arith.constant 0 : index
    %c0_15 = arith.constant 0 : index
    %27 = vector.load %arg9[%c0_14, %c0_15] : memref<64x8xi32, #tpu.memory_space<vmem>>, vector<64x8xi32>
    %28 = tpu.concatenate %27, %24 in 1 : vector<64x8xi32>, vector<64x64xi32> -> vector<64x72xi32>
    %29 = tpu.iota {dimensions = array<i32: 1>} : vector<64x72xi32>
    %cst_16 = arith.constant dense<0x7F800000> : vector<64xf32>
    %30 = vector.multi_reduction <minimumf>, %26, %cst_16 [1] : vector<64x72xf32> to vector<64xf32>
    %31 = vector.shape_cast %30 : vector<64xf32> to vector<64x1xf32>
    %32 = vector.broadcast %31 : vector<64x1xf32> to vector<64x72xf32>
    %33 = arith.cmpf oeq, %26, %32 : vector<64x72xf32>
    %c1073741824_i32 = arith.constant 1073741824 : i32
    %34 = vector.broadcast %c1073741824_i32 : i32 to vector<64x72xi32>
    %35 = arith.select %33, %29, %34 : vector<64x72xi1>, vector<64x72xi32>
    %cst_17 = arith.constant dense<2147483647> : vector<64xi32>
    %36 = vector.multi_reduction <minsi>, %35, %cst_17 [1] : vector<64x72xi32> to vector<64xi32>
    %37 = vector.shape_cast %36 : vector<64xi32> to vector<64x1xi32>
    %38 = vector.broadcast %37 : vector<64x1xi32> to vector<64x72xi32>
    %39 = arith.cmpi eq, %29, %38 : vector<64x72xi32>
    %c0_i32_18 = arith.constant 0 : i32
    %40 = vector.broadcast %c0_i32_18 : i32 to vector<64x72xi32>
    %41 = arith.select %39, %28, %40 : vector<64x72xi1>, vector<64x72xi32>
    %cst_19 = arith.constant dense<-2147483648> : vector<64xi32>
    %42 = vector.multi_reduction <maxsi>, %41, %cst_19 [1] : vector<64x72xi32> to vector<64xi32>
    %43 = vector.shape_cast %42 : vector<64xi32> to vector<64x1xi32>
    %cst_20 = arith.constant 1.000000e+30 : f32
    %44 = vector.broadcast %cst_20 : f32 to vector<64x72xf32>
    %45 = arith.select %39, %44, %26 : vector<64x72xi1>, vector<64x72xf32>
    %cst_21 = arith.constant dense<0x7F800000> : vector<64xf32>
    %46 = vector.multi_reduction <minimumf>, %45, %cst_21 [1] : vector<64x72xf32> to vector<64xf32>
    %47 = vector.shape_cast %46 : vector<64xf32> to vector<64x1xf32>
    %48 = vector.broadcast %47 : vector<64x1xf32> to vector<64x72xf32>
    %49 = arith.cmpf oeq, %45, %48 : vector<64x72xf32>
    %c1073741824_i32_22 = arith.constant 1073741824 : i32
    %50 = vector.broadcast %c1073741824_i32_22 : i32 to vector<64x72xi32>
    %51 = arith.select %49, %29, %50 : vector<64x72xi1>, vector<64x72xi32>
    %cst_23 = arith.constant dense<2147483647> : vector<64xi32>
    %52 = vector.multi_reduction <minsi>, %51, %cst_23 [1] : vector<64x72xi32> to vector<64xi32>
    %53 = vector.shape_cast %52 : vector<64xi32> to vector<64x1xi32>
    %54 = vector.broadcast %53 : vector<64x1xi32> to vector<64x72xi32>
    %55 = arith.cmpi eq, %29, %54 : vector<64x72xi32>
    %c0_i32_24 = arith.constant 0 : i32
    %56 = vector.broadcast %c0_i32_24 : i32 to vector<64x72xi32>
    %57 = arith.select %55, %28, %56 : vector<64x72xi1>, vector<64x72xi32>
    %cst_25 = arith.constant dense<-2147483648> : vector<64xi32>
    %58 = vector.multi_reduction <maxsi>, %57, %cst_25 [1] : vector<64x72xi32> to vector<64xi32>
    %59 = vector.shape_cast %58 : vector<64xi32> to vector<64x1xi32>
    %cst_26 = arith.constant 1.000000e+30 : f32
    %60 = vector.broadcast %cst_26 : f32 to vector<64x72xf32>
    %61 = arith.select %55, %60, %45 : vector<64x72xi1>, vector<64x72xf32>
    %cst_27 = arith.constant dense<0x7F800000> : vector<64xf32>
    %62 = vector.multi_reduction <minimumf>, %61, %cst_27 [1] : vector<64x72xf32> to vector<64xf32>
    %63 = vector.shape_cast %62 : vector<64xf32> to vector<64x1xf32>
    %64 = vector.broadcast %63 : vector<64x1xf32> to vector<64x72xf32>
    %65 = arith.cmpf oeq, %61, %64 : vector<64x72xf32>
    %c1073741824_i32_28 = arith.constant 1073741824 : i32
    %66 = vector.broadcast %c1073741824_i32_28 : i32 to vector<64x72xi32>
    %67 = arith.select %65, %29, %66 : vector<64x72xi1>, vector<64x72xi32>
    %cst_29 = arith.constant dense<2147483647> : vector<64xi32>
    %68 = vector.multi_reduction <minsi>, %67, %cst_29 [1] : vector<64x72xi32> to vector<64xi32>
    %69 = vector.shape_cast %68 : vector<64xi32> to vector<64x1xi32>
    %70 = vector.broadcast %69 : vector<64x1xi32> to vector<64x72xi32>
    %71 = arith.cmpi eq, %29, %70 : vector<64x72xi32>
    %c0_i32_30 = arith.constant 0 : i32
    %72 = vector.broadcast %c0_i32_30 : i32 to vector<64x72xi32>
    %73 = arith.select %71, %28, %72 : vector<64x72xi1>, vector<64x72xi32>
    %cst_31 = arith.constant dense<-2147483648> : vector<64xi32>
    %74 = vector.multi_reduction <maxsi>, %73, %cst_31 [1] : vector<64x72xi32> to vector<64xi32>
    %75 = vector.shape_cast %74 : vector<64xi32> to vector<64x1xi32>
    %cst_32 = arith.constant 1.000000e+30 : f32
    %76 = vector.broadcast %cst_32 : f32 to vector<64x72xf32>
    %77 = arith.select %71, %76, %61 : vector<64x72xi1>, vector<64x72xf32>
    %cst_33 = arith.constant dense<0x7F800000> : vector<64xf32>
    %78 = vector.multi_reduction <minimumf>, %77, %cst_33 [1] : vector<64x72xf32> to vector<64xf32>
    %79 = vector.shape_cast %78 : vector<64xf32> to vector<64x1xf32>
    %80 = vector.broadcast %79 : vector<64x1xf32> to vector<64x72xf32>
    %81 = arith.cmpf oeq, %77, %80 : vector<64x72xf32>
    %c1073741824_i32_34 = arith.constant 1073741824 : i32
    %82 = vector.broadcast %c1073741824_i32_34 : i32 to vector<64x72xi32>
    %83 = arith.select %81, %29, %82 : vector<64x72xi1>, vector<64x72xi32>
    %cst_35 = arith.constant dense<2147483647> : vector<64xi32>
    %84 = vector.multi_reduction <minsi>, %83, %cst_35 [1] : vector<64x72xi32> to vector<64xi32>
    %85 = vector.shape_cast %84 : vector<64xi32> to vector<64x1xi32>
    %86 = vector.broadcast %85 : vector<64x1xi32> to vector<64x72xi32>
    %87 = arith.cmpi eq, %29, %86 : vector<64x72xi32>
    %c0_i32_36 = arith.constant 0 : i32
    %88 = vector.broadcast %c0_i32_36 : i32 to vector<64x72xi32>
    %89 = arith.select %87, %28, %88 : vector<64x72xi1>, vector<64x72xi32>
    %cst_37 = arith.constant dense<-2147483648> : vector<64xi32>
    %90 = vector.multi_reduction <maxsi>, %89, %cst_37 [1] : vector<64x72xi32> to vector<64xi32>
    %91 = vector.shape_cast %90 : vector<64xi32> to vector<64x1xi32>
    %cst_38 = arith.constant 1.000000e+30 : f32
    %92 = vector.broadcast %cst_38 : f32 to vector<64x72xf32>
    %93 = arith.select %87, %92, %77 : vector<64x72xi1>, vector<64x72xf32>
    %cst_39 = arith.constant dense<0x7F800000> : vector<64xf32>
    %94 = vector.multi_reduction <minimumf>, %93, %cst_39 [1] : vector<64x72xf32> to vector<64xf32>
    %95 = vector.shape_cast %94 : vector<64xf32> to vector<64x1xf32>
    %96 = vector.broadcast %95 : vector<64x1xf32> to vector<64x72xf32>
    %97 = arith.cmpf oeq, %93, %96 : vector<64x72xf32>
    %c1073741824_i32_40 = arith.constant 1073741824 : i32
    %98 = vector.broadcast %c1073741824_i32_40 : i32 to vector<64x72xi32>
    %99 = arith.select %97, %29, %98 : vector<64x72xi1>, vector<64x72xi32>
    %cst_41 = arith.constant dense<2147483647> : vector<64xi32>
    %100 = vector.multi_reduction <minsi>, %99, %cst_41 [1] : vector<64x72xi32> to vector<64xi32>
    %101 = vector.shape_cast %100 : vector<64xi32> to vector<64x1xi32>
    %102 = vector.broadcast %101 : vector<64x1xi32> to vector<64x72xi32>
    %103 = arith.cmpi eq, %29, %102 : vector<64x72xi32>
    %c0_i32_42 = arith.constant 0 : i32
    %104 = vector.broadcast %c0_i32_42 : i32 to vector<64x72xi32>
    %105 = arith.select %103, %28, %104 : vector<64x72xi1>, vector<64x72xi32>
    %cst_43 = arith.constant dense<-2147483648> : vector<64xi32>
    %106 = vector.multi_reduction <maxsi>, %105, %cst_43 [1] : vector<64x72xi32> to vector<64xi32>
    %107 = vector.shape_cast %106 : vector<64xi32> to vector<64x1xi32>
    %cst_44 = arith.constant 1.000000e+30 : f32
    %108 = vector.broadcast %cst_44 : f32 to vector<64x72xf32>
    %109 = arith.select %103, %108, %93 : vector<64x72xi1>, vector<64x72xf32>
    %cst_45 = arith.constant dense<0x7F800000> : vector<64xf32>
    %110 = vector.multi_reduction <minimumf>, %109, %cst_45 [1] : vector<64x72xf32> to vector<64xf32>
    %111 = vector.shape_cast %110 : vector<64xf32> to vector<64x1xf32>
    %112 = vector.broadcast %111 : vector<64x1xf32> to vector<64x72xf32>
    %113 = arith.cmpf oeq, %109, %112 : vector<64x72xf32>
    %c1073741824_i32_46 = arith.constant 1073741824 : i32
    %114 = vector.broadcast %c1073741824_i32_46 : i32 to vector<64x72xi32>
    %115 = arith.select %113, %29, %114 : vector<64x72xi1>, vector<64x72xi32>
    %cst_47 = arith.constant dense<2147483647> : vector<64xi32>
    %116 = vector.multi_reduction <minsi>, %115, %cst_47 [1] : vector<64x72xi32> to vector<64xi32>
    %117 = vector.shape_cast %116 : vector<64xi32> to vector<64x1xi32>
    %118 = vector.broadcast %117 : vector<64x1xi32> to vector<64x72xi32>
    %119 = arith.cmpi eq, %29, %118 : vector<64x72xi32>
    %c0_i32_48 = arith.constant 0 : i32
    %120 = vector.broadcast %c0_i32_48 : i32 to vector<64x72xi32>
    %121 = arith.select %119, %28, %120 : vector<64x72xi1>, vector<64x72xi32>
    %cst_49 = arith.constant dense<-2147483648> : vector<64xi32>
    %122 = vector.multi_reduction <maxsi>, %121, %cst_49 [1] : vector<64x72xi32> to vector<64xi32>
    %123 = vector.shape_cast %122 : vector<64xi32> to vector<64x1xi32>
    %cst_50 = arith.constant 1.000000e+30 : f32
    %124 = vector.broadcast %cst_50 : f32 to vector<64x72xf32>
    %125 = arith.select %119, %124, %109 : vector<64x72xi1>, vector<64x72xf32>
    %cst_51 = arith.constant dense<0x7F800000> : vector<64xf32>
    %126 = vector.multi_reduction <minimumf>, %125, %cst_51 [1] : vector<64x72xf32> to vector<64xf32>
    %127 = vector.shape_cast %126 : vector<64xf32> to vector<64x1xf32>
    %128 = vector.broadcast %127 : vector<64x1xf32> to vector<64x72xf32>
    %129 = arith.cmpf oeq, %125, %128 : vector<64x72xf32>
    %c1073741824_i32_52 = arith.constant 1073741824 : i32
    %130 = vector.broadcast %c1073741824_i32_52 : i32 to vector<64x72xi32>
    %131 = arith.select %129, %29, %130 : vector<64x72xi1>, vector<64x72xi32>
    %cst_53 = arith.constant dense<2147483647> : vector<64xi32>
    %132 = vector.multi_reduction <minsi>, %131, %cst_53 [1] : vector<64x72xi32> to vector<64xi32>
    %133 = vector.shape_cast %132 : vector<64xi32> to vector<64x1xi32>
    %134 = vector.broadcast %133 : vector<64x1xi32> to vector<64x72xi32>
    %135 = arith.cmpi eq, %29, %134 : vector<64x72xi32>
    %c0_i32_54 = arith.constant 0 : i32
    %136 = vector.broadcast %c0_i32_54 : i32 to vector<64x72xi32>
    %137 = arith.select %135, %28, %136 : vector<64x72xi1>, vector<64x72xi32>
    %cst_55 = arith.constant dense<-2147483648> : vector<64xi32>
    %138 = vector.multi_reduction <maxsi>, %137, %cst_55 [1] : vector<64x72xi32> to vector<64xi32>
    %139 = vector.shape_cast %138 : vector<64xi32> to vector<64x1xi32>
    %cst_56 = arith.constant 1.000000e+30 : f32
    %140 = vector.broadcast %cst_56 : f32 to vector<64x72xf32>
    %141 = arith.select %135, %140, %125 : vector<64x72xi1>, vector<64x72xf32>
    %cst_57 = arith.constant dense<0x7F800000> : vector<64xf32>
    %142 = vector.multi_reduction <minimumf>, %141, %cst_57 [1] : vector<64x72xf32> to vector<64xf32>
    %143 = vector.shape_cast %142 : vector<64xf32> to vector<64x1xf32>
    %144 = vector.broadcast %143 : vector<64x1xf32> to vector<64x72xf32>
    %145 = arith.cmpf oeq, %141, %144 : vector<64x72xf32>
    %c1073741824_i32_58 = arith.constant 1073741824 : i32
    %146 = vector.broadcast %c1073741824_i32_58 : i32 to vector<64x72xi32>
    %147 = arith.select %145, %29, %146 : vector<64x72xi1>, vector<64x72xi32>
    %cst_59 = arith.constant dense<2147483647> : vector<64xi32>
    %148 = vector.multi_reduction <minsi>, %147, %cst_59 [1] : vector<64x72xi32> to vector<64xi32>
    %149 = vector.shape_cast %148 : vector<64xi32> to vector<64x1xi32>
    %150 = vector.broadcast %149 : vector<64x1xi32> to vector<64x72xi32>
    %151 = arith.cmpi eq, %29, %150 : vector<64x72xi32>
    %c0_i32_60 = arith.constant 0 : i32
    %152 = vector.broadcast %c0_i32_60 : i32 to vector<64x72xi32>
    %153 = arith.select %151, %28, %152 : vector<64x72xi1>, vector<64x72xi32>
    %cst_61 = arith.constant dense<-2147483648> : vector<64xi32>
    %154 = vector.multi_reduction <maxsi>, %153, %cst_61 [1] : vector<64x72xi32> to vector<64xi32>
    %155 = vector.shape_cast %154 : vector<64xi32> to vector<64x1xi32>
    %156 = tpu.concatenate %31, %47, %63, %79, %95, %111, %127, %143 in 1 : vector<64x1xf32>, vector<64x1xf32>, vector<64x1xf32>, vector<64x1xf32>, vector<64x1xf32>, vector<64x1xf32>, vector<64x1xf32>, vector<64x1xf32> -> vector<64x8xf32>
    %c0_62 = arith.constant 0 : index
    %c0_63 = arith.constant 0 : index
    %157 = vector.load %arg8[%c0_62, %c0_63] : memref<64x8xf32, #tpu.memory_space<vmem>>, vector<64x8xf32>
    tpu.vector_store %arg8[%c0_62, %c0_63], %156 {strides = array<i32>} : memref<64x8xf32, #tpu.memory_space<vmem>>, vector<64x8xf32>,
    %158 = tpu.concatenate %43, %59, %75, %91, %107, %123, %139, %155 in 1 : vector<64x1xi32>, vector<64x1xi32>, vector<64x1xi32>, vector<64x1xi32>, vector<64x1xi32>, vector<64x1xi32>, vector<64x1xi32>, vector<64x1xi32> -> vector<64x8xi32>
    %c0_64 = arith.constant 0 : index
    %c0_65 = arith.constant 0 : index
    %159 = vector.load %arg9[%c0_64, %c0_65] : memref<64x8xi32, #tpu.memory_space<vmem>>, vector<64x8xi32>
    tpu.vector_store %arg9[%c0_64, %c0_65], %158 {strides = array<i32>} : memref<64x8xi32, #tpu.memory_space<vmem>>, vector<64x8xi32>,
    %c0_i32_66 = arith.constant 0 : i32
    %160 = arith.cmpi eq, %arg1, %c0_i32_66 : i32
    %161 = arith.extui %160 : i1 to i32
    %c0_i32_67 = arith.constant 0 : i32
    %162 = arith.cmpi ne, %161, %c0_i32_67 : i32
    scf.if %162 {
      %c0_68 = arith.constant 0 : index
      %c0_69 = arith.constant 0 : index
      %163 = vector.load %arg9[%c0_68, %c0_69] : memref<64x8xi32, #tpu.memory_space<vmem>>, vector<64x8xi32>
      %c0_70 = arith.constant 0 : index
      %c0_71 = arith.constant 0 : index
      %164 = vector.load %arg7[%c0_70, %c0_71] : memref<64x8xi32, #tpu.memory_space<vmem>>, vector<64x8xi32>
      tpu.vector_store %arg7[%c0_70, %c0_71], %163 {strides = array<i32>} : memref<64x8xi32, #tpu.memory_space<vmem>>, vector<64x8xi32>,
    } else {
    }
    return
  }
  func.func @transform_0(%arg0: i32, %arg1: i32) -> (i32, i32) {
    %c0_i32 = arith.constant 0 : i32
    %c0_i32_0 = arith.constant 0 : i32
    return %arg0, %c0_i32 : i32, i32
  }
  func.func @transform_1(%arg0: i32, %arg1: i32) -> (i32, i32) {
    %c0_i32 = arith.constant 0 : i32
    %c0_i32_0 = arith.constant 0 : i32
    return %arg1, %c0_i32 : i32, i32
  }
  func.func @transform_2(%arg0: i32, %arg1: i32) -> (i32, i32) {
    %c0_i32 = arith.constant 0 : i32
    %c0_i32_0 = arith.constant 0 : i32
    return %c0_i32, %arg1 : i32, i32
  }
  func.func @transform_3(%arg0: i32, %arg1: i32) -> (i32, i32) {
    %c0_i32 = arith.constant 0 : i32
    %c0_i32_0 = arith.constant 0 : i32
    return %arg0, %c0_i32 : i32, i32
  }
  func.func @transform_4(%arg0: i32, %arg1: i32) -> (i32, i32) {
    %c0_i32 = arith.constant 0 : i32
    %c0_i32_0 = arith.constant 0 : i32
    return %c0_i32, %arg1 : i32, i32
  }
  func.func @transform_5(%arg0: i32, %arg1: i32) -> (i32, i32) {
    %c0_i32 = arith.constant 0 : i32
    %c0_i32_0 = arith.constant 0 : i32
    return %arg0, %c0_i32 : i32, i32
  }
}

module attributes {stable_mosaic.version = 11 : i64} {
  func.func @_edge_conv_kernel(%arg0: i32, %arg1: memref<64x64xbf16, #tpu.memory_space<vmem>>, %arg2: memref<8x64x64xbf16, #tpu.memory_space<vmem>>, %arg3: memref<64x64xbf16, #tpu.memory_space<vmem>>, %arg4: memref<64x64xbf16, #tpu.memory_space<vmem>>, %arg5: memref<1x64xf32, #tpu.memory_space<vmem>>, %arg6: memref<64x64xbf16, #tpu.memory_space<vmem>>, %arg7: memref<1x64xf32, #tpu.memory_space<vmem>>, %arg8: memref<64x64xbf16, #tpu.memory_space<vmem>>) attributes {dimension_semantics = [#tpu.dimension_semantics<parallel>], iteration_bounds = array<i64: 1>, scalar_prefetch = 0 : i64, scratch_operands = 0 : i64, tpu.core_type = #tpu.core_type<tc>, window_params = [{transform_indices = @transform_0, window_bounds = array<i64: 64, 64>}, {transform_indices = @transform_1, window_bounds = array<i64: 8, 64, 64>}, {pipeline_mode = #tpu.pipeline_mode<synchronous>, transform_indices = @transform_2, window_bounds = array<i64: 64, 64>}, {pipeline_mode = #tpu.pipeline_mode<synchronous>, transform_indices = @transform_3, window_bounds = array<i64: 64, 64>}, {pipeline_mode = #tpu.pipeline_mode<synchronous>, transform_indices = @transform_4, window_bounds = array<i64: 1, 64>}, {pipeline_mode = #tpu.pipeline_mode<synchronous>, transform_indices = @transform_5, window_bounds = array<i64: 64, 64>}, {pipeline_mode = #tpu.pipeline_mode<synchronous>, transform_indices = @transform_6, window_bounds = array<i64: 1, 64>}, {transform_indices = @transform_7, window_bounds = array<i64: 64, 64>}]} {
    %c0 = arith.constant 0 : index
    %c0_0 = arith.constant 0 : index
    %0 = vector.load %arg1[%c0, %c0_0] : memref<64x64xbf16, #tpu.memory_space<vmem>>, vector<64x64xbf16>
    %c0_1 = arith.constant 0 : index
    %c0_2 = arith.constant 0 : index
    %1 = vector.load %arg3[%c0_1, %c0_2] : memref<64x64xbf16, #tpu.memory_space<vmem>>, vector<64x64xbf16>
    %cst = arith.constant dense<0.000000e+00> : vector<64x64xf32>
    %2 = tpu.matmul %0, %1, %cst {dimension_numbers = #tpu.dot_dimension_numbers<[1], [0], [0], [1], [0, 0, 1, 1], [], []>} : vector<64x64xbf16>, vector<64x64xbf16>, vector<64x64xf32> -> vector<64x64xf32>
    %c0_3 = arith.constant 0 : index
    %c0_4 = arith.constant 0 : index
    %3 = vector.load %arg5[%c0_3, %c0_4] : memref<1x64xf32, #tpu.memory_space<vmem>>, vector<1x64xf32>
    %4 = vector.broadcast %3 : vector<1x64xf32> to vector<64x64xf32>
    %5 = arith.addf %2, %4 : vector<64x64xf32>
    %c0_5 = arith.constant 0 : index
    %c0_6 = arith.constant 0 : index
    %c0_7 = arith.constant 0 : index
    %6 = vector.load %arg2[%c0_5, %c0_6, %c0_7] : memref<8x64x64xbf16, #tpu.memory_space<vmem>>, vector<8x64x64xbf16>
    %7 = vector.shape_cast %6 : vector<8x64x64xbf16> to vector<512x64xbf16>
    %c0_8 = arith.constant 0 : index
    %c0_9 = arith.constant 0 : index
    %8 = vector.load %arg4[%c0_8, %c0_9] : memref<64x64xbf16, #tpu.memory_space<vmem>>, vector<64x64xbf16>
    %cst_10 = arith.constant dense<0.000000e+00> : vector<512x64xf32>
    %9 = tpu.matmul %7, %8, %cst_10 {dimension_numbers = #tpu.dot_dimension_numbers<[1], [0], [0], [1], [0, 0, 1, 1], [], []>} : vector<512x64xbf16>, vector<64x64xbf16>, vector<512x64xf32> -> vector<512x64xf32>
    %10 = vector.shape_cast %9 : vector<512x64xf32> to vector<8x64x64xf32>
    %11 = vector.shape_cast %5 : vector<64x64xf32> to vector<1x64x64xf32>
    %12 = vector.broadcast %11 : vector<1x64x64xf32> to vector<8x64x64xf32>
    %13 = arith.addf %10, %12 : vector<8x64x64xf32>
    %cst_11 = arith.constant 0.000000e+00 : f32
    %14 = vector.broadcast %cst_11 : f32 to vector<8x64x64xf32>
    %15 = arith.maximumf %13, %14 : vector<8x64x64xf32>
    %16 = vector.shape_cast %15 : vector<8x64x64xf32> to vector<512x64xf32>
    %17 = arith.truncf %16 : vector<512x64xf32> to vector<512x64xbf16>
    %c0_12 = arith.constant 0 : index
    %c0_13 = arith.constant 0 : index
    %18 = vector.load %arg6[%c0_12, %c0_13] : memref<64x64xbf16, #tpu.memory_space<vmem>>, vector<64x64xbf16>
    %cst_14 = arith.constant dense<0.000000e+00> : vector<512x64xf32>
    %19 = tpu.matmul %17, %18, %cst_14 {dimension_numbers = #tpu.dot_dimension_numbers<[1], [0], [0], [1], [0, 0, 1, 1], [], []>} : vector<512x64xbf16>, vector<64x64xbf16>, vector<512x64xf32> -> vector<512x64xf32>
    %c0_15 = arith.constant 0 : index
    %c0_16 = arith.constant 0 : index
    %20 = vector.load %arg7[%c0_15, %c0_16] : memref<1x64xf32, #tpu.memory_space<vmem>>, vector<1x64xf32>
    %21 = vector.broadcast %20 : vector<1x64xf32> to vector<512x64xf32>
    %22 = arith.addf %19, %21 : vector<512x64xf32>
    %23 = vector.shape_cast %22 : vector<512x64xf32> to vector<8x64x64xf32>
    %cst_17 = arith.constant dense<0xFF800000> : vector<64x64xf32>
    %24 = vector.multi_reduction <maximumf>, %23, %cst_17 [0] : vector<8x64x64xf32> to vector<64x64xf32>
    %25 = arith.truncf %24 : vector<64x64xf32> to vector<64x64xbf16>
    %c0_18 = arith.constant 0 : index
    %c0_19 = arith.constant 0 : index
    %26 = vector.load %arg8[%c0_18, %c0_19] : memref<64x64xbf16, #tpu.memory_space<vmem>>, vector<64x64xbf16>
    tpu.vector_store %arg8[%c0_18, %c0_19], %25 {strides = array<i32>} : memref<64x64xbf16, #tpu.memory_space<vmem>>, vector<64x64xbf16>,
    return
  }
  func.func @transform_0(%arg0: i32) -> (i32, i32) {
    %c0_i32 = arith.constant 0 : i32
    %c0_i32_0 = arith.constant 0 : i32
    return %arg0, %c0_i32 : i32, i32
  }
  func.func @transform_1(%arg0: i32) -> (i32, i32, i32) {
    %c0_i32 = arith.constant 0 : i32
    %c0_i32_0 = arith.constant 0 : i32
    %c0_i32_1 = arith.constant 0 : i32
    return %c0_i32, %arg0, %c0_i32_0 : i32, i32, i32
  }
  func.func @transform_2(%arg0: i32) -> (i32, i32) {
    %c0_i32 = arith.constant 0 : i32
    %c0_i32_0 = arith.constant 0 : i32
    %c0_i32_1 = arith.constant 0 : i32
    return %c0_i32, %c0_i32_0 : i32, i32
  }
  func.func @transform_3(%arg0: i32) -> (i32, i32) {
    %c0_i32 = arith.constant 0 : i32
    %c0_i32_0 = arith.constant 0 : i32
    %c0_i32_1 = arith.constant 0 : i32
    return %c0_i32, %c0_i32_0 : i32, i32
  }
  func.func @transform_4(%arg0: i32) -> (i32, i32) {
    %c0_i32 = arith.constant 0 : i32
    %c0_i32_0 = arith.constant 0 : i32
    %c0_i32_1 = arith.constant 0 : i32
    return %c0_i32, %c0_i32_0 : i32, i32
  }
  func.func @transform_5(%arg0: i32) -> (i32, i32) {
    %c0_i32 = arith.constant 0 : i32
    %c0_i32_0 = arith.constant 0 : i32
    %c0_i32_1 = arith.constant 0 : i32
    return %c0_i32, %c0_i32_0 : i32, i32
  }
  func.func @transform_6(%arg0: i32) -> (i32, i32) {
    %c0_i32 = arith.constant 0 : i32
    %c0_i32_0 = arith.constant 0 : i32
    %c0_i32_1 = arith.constant 0 : i32
    return %c0_i32, %c0_i32_0 : i32, i32
  }
  func.func @transform_7(%arg0: i32) -> (i32, i32) {
    %c0_i32 = arith.constant 0 : i32
    %c0_i32_0 = arith.constant 0 : i32
    return %arg0, %c0_i32 : i32, i32
  }
}

module attributes {stable_mosaic.version = 11 : i64} {
  func.func @_seg_mlp_kernel(%arg0: i32, %arg1: memref<64x64xbf16, #tpu.memory_space<vmem>>, %arg2: memref<64x64xbf16, #tpu.memory_space<vmem>>, %arg3: memref<64x64xbf16, #tpu.memory_space<vmem>>, %arg4: memref<192x1024xbf16, #tpu.memory_space<vmem>>, %arg5: memref<1x1024xf32, #tpu.memory_space<vmem>>, %arg6: memref<1024x256xbf16, #tpu.memory_space<vmem>>, %arg7: memref<1x256xf32, #tpu.memory_space<vmem>>, %arg8: memref<256x128xbf16, #tpu.memory_space<vmem>>, %arg9: memref<1x128xf32, #tpu.memory_space<vmem>>, %arg10: memref<128x8xbf16, #tpu.memory_space<vmem>>, %arg11: memref<1x8xf32, #tpu.memory_space<vmem>>, %arg12: memref<64x8xf32, #tpu.memory_space<vmem>>) attributes {dimension_semantics = [#tpu.dimension_semantics<parallel>], iteration_bounds = array<i64: 1>, scalar_prefetch = 0 : i64, scratch_operands = 0 : i64, tpu.core_type = #tpu.core_type<tc>, window_params = [{transform_indices = @transform_0, window_bounds = array<i64: 64, 64>}, {transform_indices = @transform_1, window_bounds = array<i64: 64, 64>}, {transform_indices = @transform_2, window_bounds = array<i64: 64, 64>}, {pipeline_mode = #tpu.pipeline_mode<synchronous>, transform_indices = @transform_3, window_bounds = array<i64: 192, 1024>}, {pipeline_mode = #tpu.pipeline_mode<synchronous>, transform_indices = @transform_4, window_bounds = array<i64: 1, 1024>}, {pipeline_mode = #tpu.pipeline_mode<synchronous>, transform_indices = @transform_5, window_bounds = array<i64: 1024, 256>}, {pipeline_mode = #tpu.pipeline_mode<synchronous>, transform_indices = @transform_6, window_bounds = array<i64: 1, 256>}, {pipeline_mode = #tpu.pipeline_mode<synchronous>, transform_indices = @transform_7, window_bounds = array<i64: 256, 128>}, {pipeline_mode = #tpu.pipeline_mode<synchronous>, transform_indices = @transform_8, window_bounds = array<i64: 1, 128>}, {pipeline_mode = #tpu.pipeline_mode<synchronous>, transform_indices = @transform_9, window_bounds = array<i64: 128, 8>}, {pipeline_mode = #tpu.pipeline_mode<synchronous>, transform_indices = @transform_10, window_bounds = array<i64: 1, 8>}, {transform_indices = @transform_11, window_bounds = array<i64: 64, 8>}]} {
    %c0 = arith.constant 0 : index
    %c0_0 = arith.constant 0 : index
    %0 = vector.load %arg1[%c0, %c0_0] : memref<64x64xbf16, #tpu.memory_space<vmem>>, vector<64x64xbf16>
    %c0_1 = arith.constant 0 : index
    %c0_2 = arith.constant 0 : index
    %1 = vector.load %arg2[%c0_1, %c0_2] : memref<64x64xbf16, #tpu.memory_space<vmem>>, vector<64x64xbf16>
    %c0_3 = arith.constant 0 : index
    %c0_4 = arith.constant 0 : index
    %2 = vector.load %arg3[%c0_3, %c0_4] : memref<64x64xbf16, #tpu.memory_space<vmem>>, vector<64x64xbf16>
    %3 = tpu.concatenate %0, %1, %2 in 1 : vector<64x64xbf16>, vector<64x64xbf16>, vector<64x64xbf16> -> vector<64x192xbf16>
    %c0_5 = arith.constant 0 : index
    %c0_6 = arith.constant 0 : index
    %4 = vector.load %arg4[%c0_5, %c0_6] : memref<192x1024xbf16, #tpu.memory_space<vmem>>, vector<192x1024xbf16>
    %cst = arith.constant dense<0.000000e+00> : vector<64x1024xf32>
    %5 = tpu.matmul %3, %4, %cst {dimension_numbers = #tpu.dot_dimension_numbers<[1], [0], [0], [1], [0, 0, 1, 1], [], []>} : vector<64x192xbf16>, vector<192x1024xbf16>, vector<64x1024xf32> -> vector<64x1024xf32>
    %c0_7 = arith.constant 0 : index
    %c0_8 = arith.constant 0 : index
    %6 = vector.load %arg5[%c0_7, %c0_8] : memref<1x1024xf32, #tpu.memory_space<vmem>>, vector<1x1024xf32>
    %7 = vector.broadcast %6 : vector<1x1024xf32> to vector<64x1024xf32>
    %8 = arith.addf %5, %7 : vector<64x1024xf32>
    %cst_9 = arith.constant 0.000000e+00 : f32
    %9 = vector.broadcast %cst_9 : f32 to vector<64x1024xf32>
    %10 = arith.maximumf %8, %9 : vector<64x1024xf32>
    %11 = arith.truncf %10 : vector<64x1024xf32> to vector<64x1024xbf16>
    %c0_10 = arith.constant 0 : index
    %c0_11 = arith.constant 0 : index
    %12 = vector.load %arg6[%c0_10, %c0_11] : memref<1024x256xbf16, #tpu.memory_space<vmem>>, vector<1024x256xbf16>
    %cst_12 = arith.constant dense<0.000000e+00> : vector<64x256xf32>
    %13 = tpu.matmul %11, %12, %cst_12 {dimension_numbers = #tpu.dot_dimension_numbers<[1], [0], [0], [1], [0, 0, 1, 1], [], []>} : vector<64x1024xbf16>, vector<1024x256xbf16>, vector<64x256xf32> -> vector<64x256xf32>
    %c0_13 = arith.constant 0 : index
    %c0_14 = arith.constant 0 : index
    %14 = vector.load %arg7[%c0_13, %c0_14] : memref<1x256xf32, #tpu.memory_space<vmem>>, vector<1x256xf32>
    %15 = vector.broadcast %14 : vector<1x256xf32> to vector<64x256xf32>
    %16 = arith.addf %13, %15 : vector<64x256xf32>
    %cst_15 = arith.constant 0.000000e+00 : f32
    %17 = vector.broadcast %cst_15 : f32 to vector<64x256xf32>
    %18 = arith.maximumf %16, %17 : vector<64x256xf32>
    %19 = arith.truncf %18 : vector<64x256xf32> to vector<64x256xbf16>
    %c0_16 = arith.constant 0 : index
    %c0_17 = arith.constant 0 : index
    %20 = vector.load %arg8[%c0_16, %c0_17] : memref<256x128xbf16, #tpu.memory_space<vmem>>, vector<256x128xbf16>
    %cst_18 = arith.constant dense<0.000000e+00> : vector<64x128xf32>
    %21 = tpu.matmul %19, %20, %cst_18 {dimension_numbers = #tpu.dot_dimension_numbers<[1], [0], [0], [1], [0, 0, 1, 1], [], []>} : vector<64x256xbf16>, vector<256x128xbf16>, vector<64x128xf32> -> vector<64x128xf32>
    %c0_19 = arith.constant 0 : index
    %c0_20 = arith.constant 0 : index
    %22 = vector.load %arg9[%c0_19, %c0_20] : memref<1x128xf32, #tpu.memory_space<vmem>>, vector<1x128xf32>
    %23 = vector.broadcast %22 : vector<1x128xf32> to vector<64x128xf32>
    %24 = arith.addf %21, %23 : vector<64x128xf32>
    %cst_21 = arith.constant 0.000000e+00 : f32
    %25 = vector.broadcast %cst_21 : f32 to vector<64x128xf32>
    %26 = arith.maximumf %24, %25 : vector<64x128xf32>
    %27 = arith.truncf %26 : vector<64x128xf32> to vector<64x128xbf16>
    %c0_22 = arith.constant 0 : index
    %c0_23 = arith.constant 0 : index
    %28 = vector.load %arg10[%c0_22, %c0_23] : memref<128x8xbf16, #tpu.memory_space<vmem>>, vector<128x8xbf16>
    %cst_24 = arith.constant dense<0.000000e+00> : vector<64x8xf32>
    %29 = tpu.matmul %27, %28, %cst_24 {dimension_numbers = #tpu.dot_dimension_numbers<[1], [0], [0], [1], [0, 0, 1, 1], [], []>} : vector<64x128xbf16>, vector<128x8xbf16>, vector<64x8xf32> -> vector<64x8xf32>
    %c0_25 = arith.constant 0 : index
    %c0_26 = arith.constant 0 : index
    %30 = vector.load %arg11[%c0_25, %c0_26] : memref<1x8xf32, #tpu.memory_space<vmem>>, vector<1x8xf32>
    %31 = vector.broadcast %30 : vector<1x8xf32> to vector<64x8xf32>
    %32 = arith.addf %29, %31 : vector<64x8xf32>
    %cst_27 = arith.constant dense<0xFF800000> : vector<64xf32>
    %33 = vector.multi_reduction <maximumf>, %32, %cst_27 [1] : vector<64x8xf32> to vector<64xf32>
    %34 = vector.shape_cast %33 : vector<64xf32> to vector<64x1xf32>
    %35 = vector.broadcast %34 : vector<64x1xf32> to vector<64x8xf32>
    %36 = arith.subf %32, %35 : vector<64x8xf32>
    %37 = math.exp %36 : vector<64x8xf32>
    %cst_28 = arith.constant dense<0.000000e+00> : vector<64xf32>
    %38 = vector.multi_reduction <add>, %37, %cst_28 [1] : vector<64x8xf32> to vector<64xf32>
    %39 = vector.shape_cast %38 : vector<64xf32> to vector<64x1xf32>
    %40 = math.log %39 : vector<64x1xf32>
    %41 = arith.addf %40, %34 : vector<64x1xf32>
    %42 = vector.broadcast %41 : vector<64x1xf32> to vector<64x8xf32>
    %43 = arith.subf %32, %42 : vector<64x8xf32>
    %c0_29 = arith.constant 0 : index
    %c0_30 = arith.constant 0 : index
    %44 = vector.load %arg12[%c0_29, %c0_30] : memref<64x8xf32, #tpu.memory_space<vmem>>, vector<64x8xf32>
    tpu.vector_store %arg12[%c0_29, %c0_30], %43 {strides = array<i32>} : memref<64x8xf32, #tpu.memory_space<vmem>>, vector<64x8xf32>,
    return
  }
  func.func @transform_0(%arg0: i32) -> (i32, i32) {
    %c0_i32 = arith.constant 0 : i32
    %c0_i32_0 = arith.constant 0 : i32
    return %arg0, %c0_i32 : i32, i32
  }
  func.func @transform_1(%arg0: i32) -> (i32, i32) {
    %c0_i32 = arith.constant 0 : i32
    %c0_i32_0 = arith.constant 0 : i32
    return %arg0, %c0_i32 : i32, i32
  }
  func.func @transform_2(%arg0: i32) -> (i32, i32) {
    %c0_i32 = arith.constant 0 : i32
    %c0_i32_0 = arith.constant 0 : i32
    return %arg0, %c0_i32 : i32, i32
  }
  func.func @transform_3(%arg0: i32) -> (i32, i32) {
    %c0_i32 = arith.constant 0 : i32
    %c0_i32_0 = arith.constant 0 : i32
    %c0_i32_1 = arith.constant 0 : i32
    return %c0_i32, %c0_i32_0 : i32, i32
  }
  func.func @transform_4(%arg0: i32) -> (i32, i32) {
    %c0_i32 = arith.constant 0 : i32
    %c0_i32_0 = arith.constant 0 : i32
    %c0_i32_1 = arith.constant 0 : i32
    return %c0_i32, %c0_i32_0 : i32, i32
  }
  func.func @transform_5(%arg0: i32) -> (i32, i32) {
    %c0_i32 = arith.constant 0 : i32
    %c0_i32_0 = arith.constant 0 : i32
    %c0_i32_1 = arith.constant 0 : i32
    return %c0_i32, %c0_i32_0 : i32, i32
  }
  func.func @transform_6(%arg0: i32) -> (i32, i32) {
    %c0_i32 = arith.constant 0 : i32
    %c0_i32_0 = arith.constant 0 : i32
    %c0_i32_1 = arith.constant 0 : i32
    return %c0_i32, %c0_i32_0 : i32, i32
  }
  func.func @transform_7(%arg0: i32) -> (i32, i32) {
    %c0_i32 = arith.constant 0 : i32
    %c0_i32_0 = arith.constant 0 : i32
    %c0_i32_1 = arith.constant 0 : i32
    return %c0_i32, %c0_i32_0 : i32, i32
  }
  func.func @transform_8(%arg0: i32) -> (i32, i32) {
    %c0_i32 = arith.constant 0 : i32
    %c0_i32_0 = arith.constant 0 : i32
    %c0_i32_1 = arith.constant 0 : i32
    return %c0_i32, %c0_i32_0 : i32, i32
  }
  func.func @transform_9(%arg0: i32) -> (i32, i32) {
    %c0_i32 = arith.constant 0 : i32
    %c0_i32_0 = arith.constant 0 : i32
    %c0_i32_1 = arith.constant 0 : i32
    return %c0_i32, %c0_i32_0 : i32, i32
  }
  func.func @transform_10(%arg0: i32) -> (i32, i32) {
    %c0_i32 = arith.constant 0 : i32
    %c0_i32_0 = arith.constant 0 : i32
    %c0_i32_1 = arith.constant 0 : i32
    return %c0_i32, %c0_i32_0 : i32, i32
  }
  func.func @transform_11(%arg0: i32) -> (i32, i32) {
    %c0_i32 = arith.constant 0 : i32
    %c0_i32_0 = arith.constant 0 : i32
    return %arg0, %c0_i32 : i32, i32
  }
}

</mosaic_0001>

<llo_original>
// kernel: net_forward.8
$region0: #{net_forward.8}
  #allocation0 [shape = 'u32[]', space=smem, size = 0x4, offset = 0x4, fixed_abs, tag = 'smem constant byte address 0x4 - core index']
  #allocation1 [shape = 'u32[144,128]{1,0:T(1,128)}', space=vmem, size = 0x12000, scoped, tag = 'internal scratch']
  %s0 = inlined_call_operand.vmem [shape: bf16[64,6], index: 0, kind: input, shape index: {}]
  %s1 = inlined_call_operand.vmem [shape: bf16[8,64,6], index: 1, kind: input, shape index: {}]
  %s2 = inlined_call_operand.vmem [shape: bf16[6,64], index: 2, kind: input, shape index: {}]
  %s3 = inlined_call_operand.vmem [shape: bf16[6,64], index: 3, kind: input, shape index: {}]
  %s4 = inlined_call_operand.vmem [shape: f32[1,64], index: 4, kind: input, shape index: {}]
  %s5 = inlined_call_operand.vmem [shape: bf16[64,64], index: 5, kind: input, shape index: {}]
  %s6 = inlined_call_operand.vmem [shape: f32[1,64], index: 6, kind: input, shape index: {}]
  %s7 = inlined_call_operand.vmem [shape: bf16[64,64], index: 7, kind: output, shape index: {}]
  %s8 = sld [smem:[#allocation0]]
  $region38: #{net_forward.8} parent=0
    _
  %s10 = ssub.s32 1, %s8
  %s11 = scalar_select 0, %s10, %s8
  // Predicated region
  $region2: #{net_forward.8} parent=0 // pred_check
    _
  $region3: #{net_forward.8} parent=0 // pred_check_branch
    %13 = sbr.rel (0) target = $region5
  $region4: #{net_forward.8} parent=0 // pred_region
    _
  $region5: #{net_forward.8} parent=0 // pred_fallthru
    _
  // Predicated region
  $region6: #{net_forward.8} parent=0 // pred_check
    _
  $region7: #{net_forward.8} parent=0 // pred_check_branch
    %15 = sbr.rel (0) target = $region9
  $region8: #{net_forward.8} parent=0 // pred_region
    _
  $region9: #{net_forward.8} parent=0 // pred_fallthru
    _
  // Predicated region
  $region10: #{net_forward.8} parent=0 // pred_check
    _
  $region11: #{net_forward.8} parent=0 // pred_check_branch
    %17 = sbr.rel (0) target = $region13
  $region12: #{net_forward.8} parent=0 // pred_region
    _
  $region13: #{net_forward.8} parent=0 // pred_fallthru
    _
  // Predicated region
  $region14: #{net_forward.8} parent=0 // pred_check
    _
  $region15: #{net_forward.8} parent=0 // pred_check_branch
    %19 = sbr.rel (0) target = $region17
  $region16: #{net_forward.8} parent=0 // pred_region
    _
  $region17: #{net_forward.8} parent=0 // pred_fallthru
    _
  // Predicated region
  $region18: #{net_forward.8} parent=0 // pred_check
    _
  $region19: #{net_forward.8} parent=0 // pred_check_branch
    %21 = sbr.rel (0) target = $region21
  $region20: #{net_forward.8} parent=0 // pred_region
    _
  $region21: #{net_forward.8} parent=0 // pred_fallthru
    _
  // Predicated region
  $region22: #{net_forward.8} parent=0 // pred_check
    _
  $region23: #{net_forward.8} parent=0 // pred_check_branch
    %23 = sbr.rel (0) target = $region25
  $region24: #{net_forward.8} parent=0 // pred_region
    _
  $region25: #{net_forward.8} parent=0 // pred_fallthru
    _
  // Predicated region
  $region26: #{net_forward.8} parent=0 // pred_check
    _
  $region27: #{net_forward.8} parent=0 // pred_check_branch
    %25 = sbr.rel (0) target = $region29
  $region28: #{net_forward.8} parent=0 // pred_region
    _
  $region29: #{net_forward.8} parent=0 // pred_fallthru
    _
  %v27 = vld [vmem:[%s0] sm:$0xf]
  %v28 = vld [vmem:[%s0 + $0x4] sm:$0xf]
  %v29 = vld [vmem:[%s0 + $0x8] sm:$0xf]
  %v30 = vld [vmem:[%s0 + $0xc] sm:$0xf]
  %v31 = vld [vmem:[%s0 + $0x10] sm:$0xf]
  %v32 = vld [vmem:[%s0 + $0x14] sm:$0xf]
  %v33 = vld [vmem:[%s0 + $0x18] sm:$0xf]
  %v34 = vld [vmem:[%s0 + $0x1c] sm:$0xf]
  %v35 = vld [vmem:[%s2] sm:$0x7]
  %v36 = vld [vmem:[%s4] sm:$0x1]
  %v38 = vlaneseq
  %v39 = vshrl.u32 %v38, 7
  %v40 = vsub.s32 0, %v39
  %v41 = vrot.slane %v36, %v40
  %v51 = vunpack.c.l.b16 %v27
  %v52 = vunpack.c.l.b16 %v28
  %v53 = vunpack.c.l.b16 %v29
  %v54 = vunpack.c.l.b16 %v30
  %v55 = vunpack.c.l.b16 %v31
  %v56 = vunpack.c.l.b16 %v32
  %v57 = vunpack.c.l.b16 %v33
  %v58 = vunpack.c.l.b16 %v34
  %v59 = vpack.c.b16 %v52, %v51
  %v60 = vpack.c.b16 %v54, %v53
  %v61 = vpack.c.b16 %v56, %v55
  %v62 = vpack.c.b16 %v58, %v57
  %vm63 = vcmask 48128
  %v65 = vsel %vm63, %v59, 0
  %v68 = vsel %vm63, %v60, 0
  %v71 = vsel %vm63, %v61, 0
  %v74 = vsel %vm63, %v62, 0
  %vm76 = vcmask 1042432
  %v78 = vsel %vm76, %v35, 0
  %80 = vmatprep.subr.bf16.mxu0 0
  %81 = vmatpush1.bf16.msra.mxu0 0
  %82 = vmatprep.subr.bf16.mxu0 0
  %83 = vmatpush1.bf16.msra.mxu0 0
  %84 = vmatprep.subr.bf16.mxu0 0
  %85 = vmatpush1.bf16.msra.mxu0 0
  %86 = vmatprep.subr.bf16.mxu0 0
  %87 = vmatpush1.bf16.msra.mxu0 0
  %88 = vmatprep.subr.bf16.mxu0 0
  %89 = vmatpush1.bf16.msra.mxu0 0
  %90 = vmatprep.subr.bf16.mxu0 0
  %91 = vmatpush1.bf16.msra.mxu0 0
  %92 = vmatprep.subr.bf16.mxu0 0
  %93 = vmatpush1.bf16.msra.mxu0 0
  %94 = vmatprep.subr.bf16.mxu0 0
  %95 = vmatpush1.bf16.msra.mxu0 %v78
  %96 = vmatprep.subr.bf16.mxu0 0
  %97 = vmatpush2.bf16.msra.mxu0 0
  %98 = vmatprep.subr.bf16.mxu0 0
  %99 = vmatpush2.bf16.msra.mxu0 0
  %100 = vmatprep.subr.bf16.mxu0 0
  %101 = vmatpush2.bf16.msra.mxu0 0
  %102 = vmatprep.subr.bf16.mxu0 0
  %103 = vmatpush2.bf16.msra.mxu0 0
  %104 = vmatprep.subr.bf16.mxu0 0
  %105 = vmatpush2.bf16.msra.mxu0 0
  %106 = vmatprep.subr.bf16.mxu0 0
  %107 = vmatpush2.bf16.msra.mxu0 0
  %108 = vmatprep.subr.bf16.mxu0 0
  %109 = vmatpush2.bf16.msra.mxu0 0
  %110 = vmatprep.subr.bf16.mxu0 0
  %111 = vmatpush2.bf16.msra.mxu0 0
  %112 = vmatprep.mubr.bf16.mxu0 0
  %113 = vmatmul.mubr.bf16.gmra.mxu0 %v65
  %v114 = vpop.f32.mrf.mxu0
  %v115 = vadd.f32 %v41, %v114
  %v116 = vpop.f32.mrf.mxu0
  %v117 = vpop.f32.mrf.mxu0
  %v118 = vadd.f32 %v41, %v117
  %v119 = vpop.f32.mrf.mxu0
  %120 = vmatprep.mubr.bf16.mxu0 0
  %121 = vmatmul.mubr.bf16.gmra.mxu0 %v68
  %v122 = vpop.f32.mrf.mxu0
  %v123 = vadd.f32 %v41, %v122
  %v124 = vpop.f32.mrf.mxu0
  %v125 = vpop.f32.mrf.mxu0
  %v126 = vadd.f32 %v41, %v125
  %v127 = vpop.f32.mrf.mxu0
  %128 = vmatprep.mubr.bf16.mxu0 0
  %129 = vmatmul.mubr.bf16.gmra.mxu0 %v71
  %v130 = vpop.f32.mrf.mxu0
  %v131 = vadd.f32 %v41, %v130
  %v132 = vpop.f32.mrf.mxu0
  %v133 = vpop.f32.mrf.mxu0
  %v134 = vadd.f32 %v41, %v133
  %v135 = vpop.f32.mrf.mxu0
  %136 = vmatprep.mubr.bf16.mxu0 0
  %137 = vmatmul.mubr.bf16.gmra.mxu0 %v74
  %v138 = vpop.f32.mrf.mxu0
  %v139 = vadd.f32 %v41, %v138
  %v140 = vpop.f32.mrf.mxu0
  %v141 = vpop.f32.mrf.mxu0
  %v142 = vadd.f32 %v41, %v141
  %v143 = vpop.f32.mrf.mxu0
  %144 = vdwg.mxu0
  %v145 = vld [vmem:[%s1] sm:$0xf]
  %v146 = vld [vmem:[%s1 + $0x4] sm:$0xf]
  %v147 = vld [vmem:[%s1 + $0x8] sm:$0xf]
  %v148 = vld [vmem:[%s1 + $0xc] sm:$0xf]
  %v149 = vld [vmem:[%s1 + $0x10] sm:$0xf]
  %v150 = vld [vmem:[%s1 + $0x14] sm:$0xf]
  %v151 = vld [vmem:[%s1 + $0x18] sm:$0xf]
  %v152 = vld [vmem:[%s1 + $0x1c] sm:$0xf]
  %v153 = vld [vmem:[%s1 + $0x20] sm:$0xf]
  %v154 = vld [vmem:[%s1 + $0x24] sm:$0xf]
  %v155 = vld [vmem:[%s1 + $0x28] sm:$0xf]
  %v156 = vld [vmem:[%s1 + $0x2c] sm:$0xf]
  %v157 = vld [vmem:[%s1 + $0x30] sm:$0xf]
  %v158 = vld [vmem:[%s1 + $0x34] sm:$0xf]
  %v159 = vld [vmem:[%s1 + $0x38] sm:$0xf]
  %v160 = vld [vmem:[%s1 + $0x3c] sm:$0xf]
  %v161 = vld [vmem:[%s1 + $0x40] sm:$0xf]
  %v162 = vld [vmem:[%s1 + $0x44] sm:$0xf]
  %v163 = vld [vmem:[%s1 + $0x48] sm:$0xf]
  %v164 = vld [vmem:[%s1 + $0x4c] sm:$0xf]
  %v165 = vld [vmem:[%s1 + $0x50] sm:$0xf]
  %v166 = vld [vmem:[%s1 + $0x54] sm:$0xf]
  %v167 = vld [vmem:[%s1 + $0x58] sm:$0xf]
  %v168 = vld [vmem:[%s1 + $0x5c] sm:$0xf]
  %v169 = vld [vmem:[%s1 + $0x60] sm:$0xf]
  %v170 = vld [vmem:[%s1 + $0x64] sm:$0xf]
  %v171 = vld [vmem:[%s1 + $0x68] sm:$0xf]
  %v172 = vld [vmem:[%s1 + $0x6c] sm:$0xf]
  %v173 = vld [vmem:[%s1 + $0x70] sm:$0xf]
  %v174 = vld [vmem:[%s1 + $0x74] sm:$0xf]
  %v175 = vld [vmem:[%s1 + $0x78] sm:$0xf]
  %v176 = vld [vmem:[%s1 + $0x7c] sm:$0xf]
  %v177 = vld [vmem:[%s1 + $0x80] sm:$0xf]
  %v178 = vld [vmem:[%s1 + $0x84] sm:$0xf]
  %v179 = vld [vmem:[%s1 + $0x88] sm:$0xf]
  %v180 = vld [vmem:[%s1 + $0x8c] sm:$0xf]
  %v181 = vld [vmem:[%s1 + $0x90] sm:$0xf]
  %v182 = vld [vmem:[%s1 + $0x94] sm:$0xf]
  %v183 = vld [vmem:[%s1 + $0x98] sm:$0xf]
  %v184 = vld [vmem:[%s1 + $0x9c] sm:$0xf]
  %v185 = vld [vmem:[%s1 + $0xa0] sm:$0xf]
  %v186 = vld [vmem:[%s1 + $0xa4] sm:$0xf]
  %v187 = vld [vmem:[%s1 + $0xa8] sm:$0xf]
  %v188 = vld [vmem:[%s1 + $0xac] sm:$0xf]
  %v189 = vld [vmem:[%s1 + $0xb0] sm:$0xf]
  %v190 = vld [vmem:[%s1 + $0xb4] sm:$0xf]
  %v191 = vld [vmem:[%s1 + $0xb8] sm:$0xf]
  %v192 = vld [vmem:[%s1 + $0xbc] sm:$0xf]
  %v193 = vld [vmem:[%s1 + $0xc0] sm:$0xf]
  %v194 = vld [vmem:[%s1 + $0xc4] sm:$0xf]
  %v195 = vld [vmem:[%s1 + $0xc8] sm:$0xf]
  %v196 = vld [vmem:[%s1 + $0xcc] sm:$0xf]
  %v197 = vld [vmem:[%s1 + $0xd0] sm:$0xf]
  %v198 = vld [vmem:[%s1 + $0xd4] sm:$0xf]
  %v199 = vld [vmem:[%s1 + $0xd8] sm:$0xf]
  %v200 = vld [vmem:[%s1 + $0xdc] sm:$0xf]
  %v201 = vld [vmem:[%s1 + $0xe0] sm:$0xf]
  %v202 = vld [vmem:[%s1 + $0xe4] sm:$0xf]
  %v203 = vld [vmem:[%s1 + $0xe8] sm:$0xf]
  %v204 = vld [vmem:[%s1 + $0xec] sm:$0xf]
  %v205 = vld [vmem:[%s1 + $0xf0] sm:$0xf]
  %v206 = vld [vmem:[%s1 + $0xf4] sm:$0xf]
  %v207 = vld [vmem:[%s1 + $0xf8] sm:$0xf]
  %v208 = vld [vmem:[%s1 + $0xfc] sm:$0xf]
  %v209 = vld [vmem:[%s3] sm:$0x7]
  %v274 = vunpack.c.l.b16 %v145
  %v275 = vunpack.c.l.b16 %v146
  %v276 = vunpack.c.l.b16 %v147
  %v277 = vunpack.c.l.b16 %v148
  %v278 = vunpack.c.l.b16 %v149
  %v279 = vunpack.c.l.b16 %v150
  %v280 = vunpack.c.l.b16 %v151
  %v281 = vunpack.c.l.b16 %v152
  %v282 = vunpack.c.l.b16 %v153
  %v283 = vunpack.c.l.b16 %v154
  %v284 = vunpack.c.l.b16 %v155
  %v285 = vunpack.c.l.b16 %v156
  %v286 = vunpack.c.l.b16 %v157
  %v287 = vunpack.c.l.b16 %v158
  %v288 = vunpack.c.l.b16 %v159
  %v289 = vunpack.c.l.b16 %v160
  %v290 = vunpack.c.l.b16 %v161
  %v291 = vunpack.c.l.b16 %v162
  %v292 = vunpack.c.l.b16 %v163
  %v293 = vunpack.c.l.b16 %v164
  %v294 = vunpack.c.l.b16 %v165
  %v295 = vunpack.c.l.b16 %v166
  %v296 = vunpack.c.l.b16 %v167
  %v297 = vunpack.c.l.b16 %v168
  %v298 = vunpack.c.l.b16 %v169
  %v299 = vunpack.c.l.b16 %v170
  %v300 = vunpack.c.l.b16 %v171
  %v301 = vunpack.c.l.b16 %v172
  %v302 = vunpack.c.l.b16 %v173
  %v303 = vunpack.c.l.b16 %v174
  %v304 = vunpack.c.l.b16 %v175
  %v305 = vunpack.c.l.b16 %v176
  %v306 = vunpack.c.l.b16 %v177
  %v307 = vunpack.c.l.b16 %v178
  %v308 = vunpack.c.l.b16 %v179
  %v309 = vunpack.c.l.b16 %v180
  %v310 = vunpack.c.l.b16 %v181
  %v311 = vunpack.c.l.b16 %v182
  %v312 = vunpack.c.l.b16 %v183
  %v313 = vunpack.c.l.b16 %v184
  %v314 = vunpack.c.l.b16 %v185
  %v315 = vunpack.c.l.b16 %v186
  %v316 = vunpack.c.l.b16 %v187
  %v317 = vunpack.c.l.b16 %v188
  %v318 = vunpack.c.l.b16 %v189
  %v319 = vunpack.c.l.b16 %v190
  %v320 = vunpack.c.l.b16 %v191
  %v321 = vunpack.c.l.b16 %v192
  %v322 = vunpack.c.l.b16 %v193
  %v323 = vunpack.c.l.b16 %v194
  %v324 = vunpack.c.l.b16 %v195
  %v325 = vunpack.c.l.b16 %v196
  %v326 = vunpack.c.l.b16 %v197
  %v327 = vunpack.c.l.b16 %v198
  %v328 = vunpack.c.l.b16 %v199
  %v329 = vunpack.c.l.b16 %v200
  %v330 = vunpack.c.l.b16 %v201
  %v331 = vunpack.c.l.b16 %v202
  %v332 = vunpack.c.l.b16 %v203
  %v333 = vunpack.c.l.b16 %v204
  %v334 = vunpack.c.l.b16 %v205
  %v335 = vunpack.c.l.b16 %v206
  %v336 = vunpack.c.l.b16 %v207
  %v337 = vunpack.c.l.b16 %v208
  %v338 = vpack.c.b16 %v275, %v274
  %v339 = vpack.c.b16 %v277, %v276
  %v340 = vpack.c.b16 %v279, %v278
  %v341 = vpack.c.b16 %v281, %v280
  %v342 = vpack.c.b16 %v283, %v282
  %v343 = vpack.c.b16 %v285, %v284
  %v344 = vpack.c.b16 %v287, %v286
  %v345 = vpack.c.b16 %v289, %v288
  %v346 = vpack.c.b16 %v291, %v290
  %v347 = vpack.c.b16 %v293, %v292
  %v348 = vpack.c.b16 %v295, %v294
  %v349 = vpack.c.b16 %v297, %v296
  %v350 = vpack.c.b16 %v299, %v298
  %v351 = vpack.c.b16 %v301, %v300
  %v352 = vpack.c.b16 %v303, %v302
  %v353 = vpack.c.b16 %v305, %v304
  %v354 = vpack.c.b16 %v307, %v306
  %v355 = vpack.c.b16 %v309, %v308
  %v356 = vpack.c.b16 %v311, %v310
  %v357 = vpack.c.b16 %v313, %v312
  %v358 = vpack.c.b16 %v315, %v314
  %v359 = vpack.c.b16 %v317, %v316
  %v360 = vpack.c.b16 %v319, %v318
  %v361 = vpack.c.b16 %v321, %v320
  %v362 = vpack.c.b16 %v323, %v322
  %v363 = vpack.c.b16 %v325, %v324
  %v364 = vpack.c.b16 %v327, %v326
  %v365 = vpack.c.b16 %v329, %v328
  %v366 = vpack.c.b16 %v331, %v330
  %v367 = vpack.c.b16 %v333, %v332
  %v368 = vpack.c.b16 %v335, %v334
  %v369 = vpack.c.b16 %v337, %v336
  %v371 = vsel %vm63, %v338, 0
  %v374 = vsel %vm63, %v339, 0
  %v377 = vsel %vm63, %v340, 0
  %v380 = vsel %vm63, %v341, 0
  %v383 = vsel %vm63, %v342, 0
  %v386 = vsel %vm63, %v343, 0
  %v389 = vsel %vm63, %v344, 0
  %v392 = vsel %vm63, %v345, 0
  %v395 = vsel %vm63, %v346, 0
  %v398 = vsel %vm63, %v347, 0
  %v401 = vsel %vm63, %v348, 0
  %v404 = vsel %vm63, %v349, 0
  %v407 = vsel %vm63, %v350, 0
  %v410 = vsel %vm63, %v351, 0
  %v413 = vsel %vm63, %v352, 0
  %v416 = vsel %vm63, %v353, 0
  %v419 = vsel %vm63, %v354, 0
  %v422 = vsel %vm63, %v355, 0
  %v425 = vsel %vm63, %v356, 0
  %v428 = vsel %vm63, %v357, 0
  %v431 = vsel %vm63, %v358, 0
  %v434 = vsel %vm63, %v359, 0
  %v437 = vsel %vm63, %v360, 0
  %v440 = vsel %vm63, %v361, 0
  %v443 = vsel %vm63, %v362, 0
  %v446 = vsel %vm63, %v363, 0
  %v449 = vsel %vm63, %v364, 0
  %v452 = vsel %vm63, %v365, 0
  %v455 = vsel %vm63, %v366, 0
  %v458 = vsel %vm63, %v367, 0
  %v461 = vsel %vm63, %v368, 0
  %v464 = vsel %vm63, %v369, 0
  %v467 = vsel %vm76, %v209, 0
  %469 = vmatprep.subr.bf16.mxu0 0
  %470 = vmatpush1.bf16.msra.mxu0 0
  %471 = vmatprep.subr.bf16.mxu0 0
  %472 = vmatpush1.bf16.msra.mxu0 0
  %473 = vmatprep.subr.bf16.mxu0 0
  %474 = vmatpush1.bf16.msra.mxu0 0
  %475 = vmatprep.subr.bf16.mxu0 0
  %476 = vmatpush1.bf16.msra.mxu0 0
  %477 = vmatprep.subr.bf16.mxu0 0
  %478 = vmatpush1.bf16.msra.mxu0 0
  %479 = vmatprep.subr.bf16.mxu0 0
  %480 = vmatpush1.bf16.msra.mxu0 0
  %481 = vmatprep.subr.bf16.mxu0 0
  %482 = vmatpush1.bf16.msra.mxu0 0
  %483 = vmatprep.subr.bf16.mxu0 0
  %484 = vmatpush1.bf16.msra.mxu0 %v467
  %485 = vmatprep.subr.bf16.mxu0 0
  %486 = vmatpush2.bf16.msra.mxu0 0
  %487 = vmatprep.subr.bf16.mxu0 0
  %488 = vmatpush2.bf16.msra.mxu0 0
  %489 = vmatprep.subr.bf16.mxu0 0
  %490 = vmatpush2.bf16.msra.mxu0 0
  %491 = vmatprep.subr.bf16.mxu0 0
  %492 = vmatpush2.bf16.msra.mxu0 0
  %493 = vmatprep.subr.bf16.mxu0 0
  %494 = vmatpush2.bf16.msra.mxu0 0
  %495 = vmatprep.subr.bf16.mxu0 0
  %496 = vmatpush2.bf16.msra.mxu0 0
  %497 = vmatprep.subr.bf16.mxu0 0
  %498 = vmatpush2.bf16.msra.mxu0 0
  %499 = vmatprep.subr.bf16.mxu0 0
  %500 = vmatpush2.bf16.msra.mxu0 0
  %501 = vmatprep.mubr.bf16.mxu0 0
  %502 = vmatmul.mubr.bf16.gmra.mxu0 %v371
  %v503 = vpop.f32.mrf.mxu0
  %v504 = vadd.f32 0.0, %v503
  %v505 = vpop.f32.mrf.mxu0
  %v506 = vpop.f32.mrf.mxu0
  %v507 = vadd.f32 0.0, %v506
  %v508 = vpop.f32.mrf.mxu0
  %509 = vmatprep.mubr.bf16.mxu0 0
  %510 = vmatmul.mubr.bf16.gmra.mxu0 %v374
  %v511 = vpop.f32.mrf.mxu0
  %v512 = vadd.f32 0.0, %v511
  %v513 = vpop.f32.mrf.mxu0
  %v514 = vpop.f32.mrf.mxu0
  %v515 = vadd.f32 0.0, %v514
  %v516 = vpop.f32.mrf.mxu0
  %517 = vmatprep.mubr.bf16.mxu0 0
  %518 = vmatmul.mubr.bf16.gmra.mxu0 %v377
  %v519 = vpop.f32.mrf.mxu0
  %v520 = vadd.f32 0.0, %v519
  %v521 = vpop.f32.mrf.mxu0
  %v522 = vpop.f32.mrf.mxu0
  %v523 = vadd.f32 0.0, %v522
  %v524 = vpop.f32.mrf.mxu0
  %525 = vmatprep.mubr.bf16.mxu0 0
  %526 = vmatmul.mubr.bf16.gmra.mxu0 %v380
  %v527 = vpop.f32.mrf.mxu0
  %v528 = vadd.f32 0.0, %v527
  %v529 = vpop.f32.mrf.mxu0
  %v530 = vpop.f32.mrf.mxu0
  %v531 = vadd.f32 0.0, %v530
  %v532 = vpop.f32.mrf.mxu0
  %533 = vmatprep.mubr.bf16.mxu0 0
  %534 = vmatmul.mubr.bf16.gmra.mxu0 %v383
  %v535 = vpop.f32.mrf.mxu0
  %v536 = vadd.f32 0.0, %v535
  %v537 = vpop.f32.mrf.mxu0
  %v538 = vpop.f32.mrf.mxu0
  %v539 = vadd.f32 0.0, %v538
  %v540 = vpop.f32.mrf.mxu0
  %541 = vmatprep.mubr.bf16.mxu0 0
  %542 = vmatmul.mubr.bf16.gmra.mxu0 %v386
  %v543 = vpop.f32.mrf.mxu0
  %v544 = vadd.f32 0.0, %v543
  %v545 = vpop.f32.mrf.mxu0
  %v546 = vpop.f32.mrf.mxu0
  %v547 = vadd.f32 0.0, %v546
  %v548 = vpop.f32.mrf.mxu0
  %549 = vmatprep.mubr.bf16.mxu0 0
  %550 = vmatmul.mubr.bf16.gmra.mxu0 %v389
  %v551 = vpop.f32.mrf.mxu0
  %v552 = vadd.f32 0.0, %v551
  %v553 = vpop.f32.mrf.mxu0
  %v554 = vpop.f32.mrf.mxu0
  %v555 = vadd.f32 0.0, %v554
  %v556 = vpop.f32.mrf.mxu0
  %557 = vmatprep.mubr.bf16.mxu0 0
  %558 = vmatmul.mubr.bf16.gmra.mxu0 %v392
  %v559 = vpop.f32.mrf.mxu0
  %v560 = vadd.f32 0.0, %v559
  %v561 = vpop.f32.mrf.mxu0
  %v562 = vpop.f32.mrf.mxu0
  %v563 = vadd.f32 0.0, %v562
  %v564 = vpop.f32.mrf.mxu0
  %565 = vmatprep.mubr.bf16.mxu0 0
  %566 = vmatmul.mubr.bf16.gmra.mxu0 %v395
  %v567 = vpop.f32.mrf.mxu0
  %v568 = vadd.f32 0.0, %v567
  %v569 = vpop.f32.mrf.mxu0
  %v570 = vpop.f32.mrf.mxu0
  %v571 = vadd.f32 0.0, %v570
  %v572 = vpop.f32.mrf.mxu0
  %573 = vmatprep.mubr.bf16.mxu0 0
  %574 = vmatmul.mubr.bf16.gmra.mxu0 %v398
  %v575 = vpop.f32.mrf.mxu0
  %v576 = vadd.f32 0.0, %v575
  %v577 = vpop.f32.mrf.mxu0
  %v578 = vpop.f32.mrf.mxu0
  %v579 = vadd.f32 0.0, %v578
  %v580 = vpop.f32.mrf.mxu0
  %581 = vmatprep.mubr.bf16.mxu0 0
  %582 = vmatmul.mubr.bf16.gmra.mxu0 %v401
  %v583 = vpop.f32.mrf.mxu0
  %v584 = vadd.f32 0.0, %v583
  %v585 = vpop.f32.mrf.mxu0
  %v586 = vpop.f32.mrf.mxu0
  %v587 = vadd.f32 0.0, %v586
  %v588 = vpop.f32.mrf.mxu0
  %589 = vmatprep.mubr.bf16.mxu0 0
  %590 = vmatmul.mubr.bf16.gmra.mxu0 %v404
  %v591 = vpop.f32.mrf.mxu0
  %v592 = vadd.f32 0.0, %v591
  %v593 = vpop.f32.mrf.mxu0
  %v594 = vpop.f32.mrf.mxu0
  %v595 = vadd.f32 0.0, %v594
  %v596 = vpop.f32.mrf.mxu0
  %597 = vmatprep.mubr.bf16.mxu0 0
  %598 = vmatmul.mubr.bf16.gmra.mxu0 %v407
  %v599 = vpop.f32.mrf.mxu0
  %v600 = vadd.f32 0.0, %v599
  %v601 = vpop.f32.mrf.mxu0
  %v602 = vpop.f32.mrf.mxu0
  %v603 = vadd.f32 0.0, %v602
  %v604 = vpop.f32.mrf.mxu0
  %605 = vmatprep.mubr.bf16.mxu0 0
  %606 = vmatmul.mubr.bf16.gmra.mxu0 %v410
  %v607 = vpop.f32.mrf.mxu0
  %v608 = vadd.f32 0.0, %v607
  %v609 = vpop.f32.mrf.mxu0
  %v610 = vpop.f32.mrf.mxu0
  %v611 = vadd.f32 0.0, %v610
  %v612 = vpop.f32.mrf.mxu0
  %613 = vmatprep.mubr.bf16.mxu0 0
  %614 = vmatmul.mubr.bf16.gmra.mxu0 %v413
  %v615 = vpop.f32.mrf.mxu0
  %v616 = vadd.f32 0.0, %v615
  %v617 = vpop.f32.mrf.mxu0
  %v618 = vpop.f32.mrf.mxu0
  %v619 = vadd.f32 0.0, %v618
  %v620 = vpop.f32.mrf.mxu0
  %621 = vmatprep.mubr.bf16.mxu0 0
  %622 = vmatmul.mubr.bf16.gmra.mxu0 %v416
  %v623 = vpop.f32.mrf.mxu0
  %v624 = vadd.f32 0.0, %v623
  %v625 = vpop.f32.mrf.mxu0
  %v626 = vpop.f32.mrf.mxu0
  %v627 = vadd.f32 0.0, %v626
  %v628 = vpop.f32.mrf.mxu0
  %629 = vmatprep.mubr.bf16.mxu0 0
  %630 = vmatmul.mubr.bf16.gmra.mxu0 %v419
  %v631 = vpop.f32.mrf.mxu0
  %v632 = vadd.f32 0.0, %v631
  %v633 = vpop.f32.mrf.mxu0
  %v634 = vpop.f32.mrf.mxu0
  %v635 = vadd.f32 0.0, %v634
  %v636 = vpop.f32.mrf.mxu0
  %637 = vmatprep.mubr.bf16.mxu0 0
  %638 = vmatmul.mubr.bf16.gmra.mxu0 %v422
  %v639 = vpop.f32.mrf.mxu0
  %v640 = vadd.f32 0.0, %v639
  %v641 = vpop.f32.mrf.mxu0
  %v642 = vpop.f32.mrf.mxu0
  %v643 = vadd.f32 0.0, %v642
  %v644 = vpop.f32.mrf.mxu0
  %645 = vmatprep.mubr.bf16.mxu0 0
  %646 = vmatmul.mubr.bf16.gmra.mxu0 %v425
  %v647 = vpop.f32.mrf.mxu0
  %v648 = vadd.f32 0.0, %v647
  %v649 = vpop.f32.mrf.mxu0
  %v650 = vpop.f32.mrf.mxu0
  %v651 = vadd.f32 0.0, %v650
  %v652 = vpop.f32.mrf.mxu0
  %653 = vmatprep.mubr.bf16.mxu0 0
  %654 = vmatmul.mubr.bf16.gmra.mxu0 %v428
  %v655 = vpop.f32.mrf.mxu0
  %v656 = vadd.f32 0.0, %v655
  %v657 = vpop.f32.mrf.mxu0
  %v658 = vpop.f32.mrf.mxu0
  %v659 = vadd.f32 0.0, %v658
  %v660 = vpop.f32.mrf.mxu0
  %661 = vmatprep.mubr.bf16.mxu0 0
  %662 = vmatmul.mubr.bf16.gmra.mxu0 %v431
  %v663 = vpop.f32.mrf.mxu0
  %v664 = vadd.f32 0.0, %v663
  %v665 = vpop.f32.mrf.mxu0
  %v666 = vpop.f32.mrf.mxu0
  %v667 = vadd.f32 0.0, %v666
  %v668 = vpop.f32.mrf.mxu0
  %669 = vmatprep.mubr.bf16.mxu0 0
  %670 = vmatmul.mubr.bf16.gmra.mxu0 %v434
  %v671 = vpop.f32.mrf.mxu0
  %v672 = vadd.f32 0.0, %v671
  %v673 = vpop.f32.mrf.mxu0
  %v674 = vpop.f32.mrf.mxu0
  %v675 = vadd.f32 0.0, %v674
  %v676 = vpop.f32.mrf.mxu0
  %677 = vmatprep.mubr.bf16.mxu0 0
  %678 = vmatmul.mubr.bf16.gmra.mxu0 %v437
  %v679 = vpop.f32.mrf.mxu0
  %v680 = vadd.f32 0.0, %v679
  %v681 = vpop.f32.mrf.mxu0
  %v682 = vpop.f32.mrf.mxu0
  %v683 = vadd.f32 0.0, %v682
  %v684 = vpop.f32.mrf.mxu0
  %685 = vmatprep.mubr.bf16.mxu0 0
  %686 = vmatmul.mubr.bf16.gmra.mxu0 %v440
  %v687 = vpop.f32.mrf.mxu0
  %v688 = vadd.f32 0.0, %v687
  %v689 = vpop.f32.mrf.mxu0
  %v690 = vpop.f32.mrf.mxu0
  %v691 = vadd.f32 0.0, %v690
  %v692 = vpop.f32.mrf.mxu0
  %693 = vmatprep.mubr.bf16.mxu0 0
  %694 = vmatmul.mubr.bf16.gmra.mxu0 %v443
  %v695 = vpop.f32.mrf.mxu0
  %v696 = vadd.f32 0.0, %v695
  %v697 = vpop.f32.mrf.mxu0
  %v698 = vpop.f32.mrf.mxu0
  %v699 = vadd.f32 0.0, %v698
  %v700 = vpop.f32.mrf.mxu0
  %701 = vmatprep.mubr.bf16.mxu0 0
  %702 = vmatmul.mubr.bf16.gmra.mxu0 %v446
  %v703 = vpop.f32.mrf.mxu0
  %v704 = vadd.f32 0.0, %v703
  %v705 = vpop.f32.mrf.mxu0
  %v706 = vpop.f32.mrf.mxu0
  %v707 = vadd.f32 0.0, %v706
  %v708 = vpop.f32.mrf.mxu0
  %709 = vmatprep.mubr.bf16.mxu0 0
  %710 = vmatmul.mubr.bf16.gmra.mxu0 %v449
  %v711 = vpop.f32.mrf.mxu0
  %v712 = vadd.f32 0.0, %v711
  %v713 = vpop.f32.mrf.mxu0
  %v714 = vpop.f32.mrf.mxu0
  %v715 = vadd.f32 0.0, %v714
  %v716 = vpop.f32.mrf.mxu0
  %717 = vmatprep.mubr.bf16.mxu0 0
  %718 = vmatmul.mubr.bf16.gmra.mxu0 %v452
  %v719 = vpop.f32.mrf.mxu0
  %v720 = vadd.f32 0.0, %v719
  %v721 = vpop.f32.mrf.mxu0
  %v722 = vpop.f32.mrf.mxu0
  %v723 = vadd.f32 0.0, %v722
  %v724 = vpop.f32.mrf.mxu0
  %725 = vmatprep.mubr.bf16.mxu0 0
  %726 = vmatmul.mubr.bf16.gmra.mxu0 %v455
  %v727 = vpop.f32.mrf.mxu0
  %v728 = vadd.f32 0.0, %v727
  %v729 = vpop.f32.mrf.mxu0
  %v730 = vpop.f32.mrf.mxu0
  %v731 = vadd.f32 0.0, %v730
  %v732 = vpop.f32.mrf.mxu0
  %733 = vmatprep.mubr.bf16.mxu0 0
  %734 = vmatmul.mubr.bf16.gmra.mxu0 %v458
  %v735 = vpop.f32.mrf.mxu0
  %v736 = vadd.f32 0.0, %v735
  %v737 = vpop.f32.mrf.mxu0
  %v738 = vpop.f32.mrf.mxu0
  %v739 = vadd.f32 0.0, %v738
  %v740 = vpop.f32.mrf.mxu0
  %741 = vmatprep.mubr.bf16.mxu0 0
  %742 = vmatmul.mubr.bf16.gmra.mxu0 %v461
  %v743 = vpop.f32.mrf.mxu0
  %v744 = vadd.f32 0.0, %v743
  %v745 = vpop.f32.mrf.mxu0
  %v746 = vpop.f32.mrf.mxu0
  %v747 = vadd.f32 0.0, %v746
  %v748 = vpop.f32.mrf.mxu0
  %749 = vmatprep.mubr.bf16.mxu0 0
  %750 = vmatmul.mubr.bf16.gmra.mxu0 %v464
  %v751 = vpop.f32.mrf.mxu0
  %v752 = vadd.f32 0.0, %v751
  %v753 = vpop.f32.mrf.mxu0
  %v754 = vpop.f32.mrf.mxu0
  %v755 = vadd.f32 0.0, %v754
  %v756 = vpop.f32.mrf.mxu0
  %757 = vdwg.mxu0
  %v758 = vadd.f32 %v504, %v115
  %v759 = vadd.f32 %v507, %v118
  %v760 = vadd.f32 %v512, %v123
  %v761 = vadd.f32 %v515, %v126
  %v762 = vadd.f32 %v520, %v131
  %v763 = vadd.f32 %v523, %v134
  %v764 = vadd.f32 %v528, %v139
  %v765 = vadd.f32 %v531, %v142
  %v766 = vadd.f32 %v536, %v115
  %v767 = vadd.f32 %v539, %v118
  %v768 = vadd.f32 %v544, %v123
  %v769 = vadd.f32 %v547, %v126
  %v770 = vadd.f32 %v552, %v131
  %v771 = vadd.f32 %v555, %v134
  %v772 = vadd.f32 %v560, %v139
  %v773 = vadd.f32 %v563, %v142
  %v774 = vadd.f32 %v568, %v115
  %v775 = vadd.f32 %v571, %v118
  %v776 = vadd.f32 %v576, %v123
  %v777 = vadd.f32 %v579, %v126
  %v778 = vadd.f32 %v584, %v131
  %v779 = vadd.f32 %v587, %v134
  %v780 = vadd.f32 %v592, %v139
  %v781 = vadd.f32 %v595, %v142
  %v782 = vadd.f32 %v600, %v115
  %v783 = vadd.f32 %v603, %v118
  %v784 = vadd.f32 %v608, %v123
  %v785 = vadd.f32 %v611, %v126
  %v786 = vadd.f32 %v616, %v131
  %v787 = vadd.f32 %v619, %v134
  %v788 = vadd.f32 %v624, %v139
  %v789 = vadd.f32 %v627, %v142
  %v790 = vadd.f32 %v632, %v115
  %v791 = vadd.f32 %v635, %v118
  %v792 = vadd.f32 %v640, %v123
  %v793 = vadd.f32 %v643, %v126
  %v794 = vadd.f32 %v648, %v131
  %v795 = vadd.f32 %v651, %v134
  %v796 = vadd.f32 %v656, %v139
  %v797 = vadd.f32 %v659, %v142
  %v798 = vadd.f32 %v664, %v115
  %v799 = vadd.f32 %v667, %v118
  %v800 = vadd.f32 %v672, %v123
  %v801 = vadd.f32 %v675, %v126
  %v802 = vadd.f32 %v680, %v131
  %v803 = vadd.f32 %v683, %v134
  %v804 = vadd.f32 %v688, %v139
  %v805 = vadd.f32 %v691, %v142
  %v806 = vadd.f32 %v696, %v115
  %v807 = vadd.f32 %v699, %v118
  %v808 = vadd.f32 %v704, %v123
  %v809 = vadd.f32 %v707, %v126
  %v810 = vadd.f32 %v712, %v131
  %v811 = vadd.f32 %v715, %v134
  %v812 = vadd.f32 %v720, %v139
  %v813 = vadd.f32 %v723, %v142
  %v814 = vadd.f32 %v728, %v115
  %v815 = vadd.f32 %v731, %v118
  %v816 = vadd.f32 %v736, %v123
  %v817 = vadd.f32 %v739, %v126
  %v818 = vadd.f32 %v744, %v131
  %v819 = vadd.f32 %v747, %v134
  %v820 = vadd.f32 %v752, %v139
  %v821 = vadd.f32 %v755, %v142
  %v822 = vmax.f32 %v758, 0.0
  %v823 = vmax.f32 %v759, 0.0
  %v824 = vmax.f32 %v760, 0.0
  %v825 = vmax.f32 %v761, 0.0
  %v826 = vmax.f32 %v762, 0.0
  %v827 = vmax.f32 %v763, 0.0
  %v828 = vmax.f32 %v764, 0.0
  %v829 = vmax.f32 %v765, 0.0
  %v830 = vmax.f32 %v766, 0.0
  %v831 = vmax.f32 %v767, 0.0
  %v832 = vmax.f32 %v768, 0.0
  %v833 = vmax.f32 %v769, 0.0
  %v834 = vmax.f32 %v770, 0.0
  %v835 = vmax.f32 %v771, 0.0
  %v836 = vmax.f32 %v772, 0.0
  %v837 = vmax.f32 %v773, 0.0
  %v838 = vmax.f32 %v774, 0.0
  %v839 = vmax.f32 %v775, 0.0
  %v840 = vmax.f32 %v776, 0.0
  %v841 = vmax.f32 %v777, 0.0
  %v842 = vmax.f32 %v778, 0.0
  %v843 = vmax.f32 %v779, 0.0
  %v844 = vmax.f32 %v780, 0.0
  %v845 = vmax.f32 %v781, 0.0
  %v846 = vmax.f32 %v782, 0.0
  %v847 = vmax.f32 %v783, 0.0
  %v848 = vmax.f32 %v784, 0.0
  %v849 = vmax.f32 %v785, 0.0
  %v850 = vmax.f32 %v786, 0.0
  %v851 = vmax.f32 %v787, 0.0
  %v852 = vmax.f32 %v788, 0.0
  %v853 = vmax.f32 %v789, 0.0
  %v854 = vmax.f32 %v790, 0.0
  %v855 = vmax.f32 %v791, 0.0
  %v856 = vmax.f32 %v792, 0.0
  %v857 = vmax.f32 %v793, 0.0
  %v858 = vmax.f32 %v794, 0.0
  %v859 = vmax.f32 %v795, 0.0
  %v860 = vmax.f32 %v796, 0.0
  %v861 = vmax.f32 %v797, 0.0
  %v862 = vmax.f32 %v798, 0.0
  %v863 = vmax.f32 %v799, 0.0
  %v864 = vmax.f32 %v800, 0.0
  %v865 = vmax.f32 %v801, 0.0
  %v866 = vmax.f32 %v802, 0.0
  %v867 = vmax.f32 %v803, 0.0
  %v868 = vmax.f32 %v804, 0.0
  %v869 = vmax.f32 %v805, 0.0
  %v870 = vmax.f32 %v806, 0.0
  %v871 = vmax.f32 %v807, 0.0
  %v872 = vmax.f32 %v808, 0.0
  %v873 = vmax.f32 %v809, 0.0
  %v874 = vmax.f32 %v810, 0.0
  %v875 = vmax.f32 %v811, 0.0
  %v876 = vmax.f32 %v812, 0.0
  %v877 = vmax.f32 %v813, 0.0
  %v878 = vmax.f32 %v814, 0.0
  %v879 = vmax.f32 %v815, 0.0
  %v880 = vmax.f32 %v816, 0.0
  %v881 = vmax.f32 %v817, 0.0
  %v882 = vmax.f32 %v818, 0.0
  %v883 = vmax.f32 %v819, 0.0
  %v884 = vmax.f32 %v820, 0.0
  %v885 = vmax.f32 %v821, 0.0
  %v886 = vpack.c.bf16 %v823, %v822
  %v887 = vpack.c.bf16 %v825, %v824
  %v888 = vpack.c.bf16 %v827, %v826
  %v889 = vpack.c.bf16 %v829, %v828
  %v890 = vpack.c.bf16 %v831, %v830
  %v891 = vpack.c.bf16 %v833, %v832
  %v892 = vpack.c.bf16 %v835, %v834
  %v893 = vpack.c.bf16 %v837, %v836
  %v894 = vpack.c.bf16 %v839, %v838
  %v895 = vpack.c.bf16 %v841, %v840
  %v896 = vpack.c.bf16 %v843, %v842
  %v897 = vpack.c.bf16 %v845, %v844
  %v898 = vpack.c.bf16 %v847, %v846
  %v899 = vpack.c.bf16 %v849, %v848
  %v900 = vpack.c.bf16 %v851, %v850
  %v901 = vpack.c.bf16 %v853, %v852
  %v902 = vpack.c.bf16 %v855, %v854
  %v903 = vpack.c.bf16 %v857, %v856
  %v904 = vpack.c.bf16 %v859, %v858
  %v905 = vpack.c.bf16 %v861, %v860
  %v906 = vpack.c.bf16 %v863, %v862
  %v907 = vpack.c.bf16 %v865, %v864
  %v908 = vpack.c.bf16 %v867, %v866
  %v909 = vpack.c.bf16 %v869, %v868
  %v910 = vpack.c.bf16 %v871, %v870
  %v911 = vpack.c.bf16 %v873, %v872
  %v912 = vpack.c.bf16 %v875, %v874
  %v913 = vpack.c.bf16 %v877, %v876
  %v914 = vpack.c.bf16 %v879, %v878
  %v915 = vpack.c.bf16 %v881, %v880
  %v916 = vpack.c.bf16 %v883, %v882
  %v917 = vpack.c.bf16 %v885, %v884
  %v918 = vld [vmem:[%s5] sm:$0xf]
  %v919 = vld [vmem:[%s5 + $0x4] sm:$0xf]
  %v920 = vld [vmem:[%s5 + $0x8] sm:$0xf]
  %v921 = vld [vmem:[%s5 + $0xc] sm:$0xf]
  %v922 = vld [vmem:[%s5 + $0x10] sm:$0xf]
  %v923 = vld [vmem:[%s5 + $0x14] sm:$0xf]
  %v924 = vld [vmem:[%s5 + $0x18] sm:$0xf]
  %v925 = vld [vmem:[%s5 + $0x1c] sm:$0xf]
  %v926 = vld [vmem:[%s6] sm:$0x1]
  %v928 = vlaneseq
  %v929 = vshrl.u32 %v928, 7
  %v930 = vsub.s32 0, %v929
  %v931 = vrot.slane %v926, %v930
  %v941 = vunpack.c.l.b16 %v918
  %v942 = vunpack.c.l.b16 %v919
  %v943 = vunpack.c.l.b16 %v920
  %v944 = vunpack.c.l.b16 %v921
  %v945 = vunpack.c.l.b16 %v922
  %v946 = vunpack.c.l.b16 %v923
  %v947 = vunpack.c.l.b16 %v924
  %v948 = vunpack.c.l.b16 %v925
  %v949 = vpack.c.b16 %v942, %v941
  %v950 = vpack.c.b16 %v944, %v943
  %v951 = vpack.c.b16 %v946, %v945
  %v952 = vpack.c.b16 %v948, %v947
  %vm957 = vcmask 523264
  %v959 = vsel %vm957, %v886, 0
  %v962 = vsel %vm957, %v887, 0
  %v965 = vsel %vm957, %v888, 0
  %v968 = vsel %vm957, %v889, 0
  %v971 = vsel %vm957, %v890, 0
  %v974 = vsel %vm957, %v891, 0
  %v977 = vsel %vm957, %v892, 0
  %v980 = vsel %vm957, %v893, 0
  %v983 = vsel %vm957, %v894, 0
  %v986 = vsel %vm957, %v895, 0
  %v989 = vsel %vm957, %v896, 0
  %v992 = vsel %vm957, %v897, 0
  %v995 = vsel %vm957, %v898, 0
  %v998 = vsel %vm957, %v899, 0
  %v1001 = vsel %vm957, %v900, 0
  %v1004 = vsel %vm957, %v901, 0
  %v1007 = vsel %vm957, %v902, 0
  %v1010 = vsel %vm957, %v903, 0
  %v1013 = vsel %vm957, %v904, 0
  %v1016 = vsel %vm957, %v905, 0
  %v1019 = vsel %vm957, %v906, 0
  %v1022 = vsel %vm957, %v907, 0
  %v1025 = vsel %vm957, %v908, 0
  %v1028 = vsel %vm957, %v909, 0
  %v1031 = vsel %vm957, %v910, 0
  %v1034 = vsel %vm957, %v911, 0
  %v1037 = vsel %vm957, %v912, 0
  %v1040 = vsel %vm957, %v913, 0
  %v1043 = vsel %vm957, %v914, 0
  %v1046 = vsel %vm957, %v915, 0
  %v1049 = vsel %vm957, %v916, 0
  %v1052 = vsel %vm957, %v917, 0
  %1054 = vmatprep.subr.bf16.mxu0 0
  %1055 = vmatpush1.bf16.msra.mxu0 0
  %1056 = vmatprep.subr.bf16.mxu0 0
  %1057 = vmatpush1.bf16.msra.mxu0 0
  %1058 = vmatprep.subr.bf16.mxu0 0
  %1059 = vmatpush1.bf16.msra.mxu0 0
  %1060 = vmatprep.subr.bf16.mxu0 0
  %1061 = vmatpush1.bf16.msra.mxu0 0
  %1062 = vmatprep.subr.bf16.mxu0 0
  %1063 = vmatpush1.bf16.msra.mxu0 %v952
  %1064 = vmatprep.subr.bf16.mxu0 0
  %1065 = vmatpush1.bf16.msra.mxu0 %v951
  %1066 = vmatprep.subr.bf16.mxu0 0
  %1067 = vmatpush1.bf16.msra.mxu0 %v950
  %1068 = vmatprep.subr.bf16.mxu0 0
  %1069 = vmatpush1.bf16.msra.mxu0 %v949
  %1070 = vmatprep.subr.bf16.mxu0 0
  %1071 = vmatpush2.bf16.msra.mxu0 0
  %1072 = vmatprep.subr.bf16.mxu0 0
  %1073 = vmatpush2.bf16.msra.mxu0 0
  %1074 = vmatprep.subr.bf16.mxu0 0
  %1075 = vmatpush2.bf16.msra.mxu0 0
  %1076 = vmatprep.subr.bf16.mxu0 0
  %1077 = vmatpush2.bf16.msra.mxu0 0
  %1078 = vmatprep.subr.bf16.mxu0 0
  %1079 = vmatpush2.bf16.msra.mxu0 0
  %1080 = vmatprep.subr.bf16.mxu0 0
  %1081 = vmatpush2.bf16.msra.mxu0 0
  %1082 = vmatprep.subr.bf16.mxu0 0
  %1083 = vmatpush2.bf16.msra.mxu0 0
  %1084 = vmatprep.subr.bf16.mxu0 0
  %1085 = vmatpush2.bf16.msra.mxu0 0
  %1086 = vmatprep.mubr.bf16.mxu0 0
  %1087 = vmatmul.mubr.bf16.gmra.mxu0 %v959
  %v1088 = vpop.f32.mrf.mxu0
  %v1089 = vadd.f32 %v931, %v1088
  %v1090 = vpop.f32.mrf.mxu0
  %v1091 = vpop.f32.mrf.mxu0
  %v1092 = vadd.f32 %v931, %v1091
  %v1093 = vpop.f32.mrf.mxu0
  %1094 = vmatprep.mubr.bf16.mxu0 0
  %1095 = vmatmul.mubr.bf16.gmra.mxu0 %v962
  %v1096 = vpop.f32.mrf.mxu0
  %v1097 = vadd.f32 %v931, %v1096
  %v1098 = vpop.f32.mrf.mxu0
  %v1099 = vpop.f32.mrf.mxu0
  %v1100 = vadd.f32 %v931, %v1099
  %v1101 = vpop.f32.mrf.mxu0
  %1102 = vmatprep.mubr.bf16.mxu0 0
  %1103 = vmatmul.mubr.bf16.gmra.mxu0 %v965
  %v1104 = vpop.f32.mrf.mxu0
  %v1105 = vadd.f32 %v931, %v1104
  %v1106 = vpop.f32.mrf.mxu0
  %v1107 = vpop.f32.mrf.mxu0
  %v1108 = vadd.f32 %v931, %v1107
  %v1109 = vpop.f32.mrf.mxu0
  %1110 = vmatprep.mubr.bf16.mxu0 0
  %1111 = vmatmul.mubr.bf16.gmra.mxu0 %v968
  %v1112 = vpop.f32.mrf.mxu0
  %v1113 = vadd.f32 %v931, %v1112
  %v1114 = vpop.f32.mrf.mxu0
  %v1115 = vpop.f32.mrf.mxu0
  %v1116 = vadd.f32 %v931, %v1115
  %v1117 = vpop.f32.mrf.mxu0
  %1118 = vmatprep.mubr.bf16.mxu0 0
  %1119 = vmatmul.mubr.bf16.gmra.mxu0 %v971
  %v1120 = vpop.f32.mrf.mxu0
  %v1121 = vadd.f32 %v931, %v1120
  %v1122 = vpop.f32.mrf.mxu0
  %v1123 = vpop.f32.mrf.mxu0
  %v1124 = vadd.f32 %v931, %v1123
  %v1125 = vpop.f32.mrf.mxu0
  %1126 = vmatprep.mubr.bf16.mxu0 0
  %1127 = vmatmul.mubr.bf16.gmra.mxu0 %v974
  %v1128 = vpop.f32.mrf.mxu0
  %v1129 = vadd.f32 %v931, %v1128
  %v1130 = vpop.f32.mrf.mxu0
  %v1131 = vpop.f32.mrf.mxu0
  %v1132 = vadd.f32 %v931, %v1131
  %v1133 = vpop.f32.mrf.mxu0
  %1134 = vmatprep.mubr.bf16.mxu0 0
  %1135 = vmatmul.mubr.bf16.gmra.mxu0 %v977
  %v1136 = vpop.f32.mrf.mxu0
  %v1137 = vadd.f32 %v931, %v1136
  %v1138 = vpop.f32.mrf.mxu0
  %v1139 = vpop.f32.mrf.mxu0
  %v1140 = vadd.f32 %v931, %v1139
  %v1141 = vpop.f32.mrf.mxu0
  %1142 = vmatprep.mubr.bf16.mxu0 0
  %1143 = vmatmul.mubr.bf16.gmra.mxu0 %v980
  %v1144 = vpop.f32.mrf.mxu0
  %v1145 = vadd.f32 %v931, %v1144
  %v1146 = vpop.f32.mrf.mxu0
  %v1147 = vpop.f32.mrf.mxu0
  %v1148 = vadd.f32 %v931, %v1147
  %v1149 = vpop.f32.mrf.mxu0
  %1150 = vmatprep.mubr.bf16.mxu0 0
  %1151 = vmatmul.mubr.bf16.gmra.mxu0 %v983
  %v1152 = vpop.f32.mrf.mxu0
  %v1153 = vadd.f32 %v931, %v1152
  %v1154 = vpop.f32.mrf.mxu0
  %v1155 = vpop.f32.mrf.mxu0
  %v1156 = vadd.f32 %v931, %v1155
  %v1157 = vpop.f32.mrf.mxu0
  %1158 = vmatprep.mubr.bf16.mxu0 0
  %1159 = vmatmul.mubr.bf16.gmra.mxu0 %v986
  %v1160 = vpop.f32.mrf.mxu0
  %v1161 = vadd.f32 %v931, %v1160
  %v1162 = vpop.f32.mrf.mxu0
  %v1163 = vpop.f32.mrf.mxu0
  %v1164 = vadd.f32 %v931, %v1163
  %v1165 = vpop.f32.mrf.mxu0
  %1166 = vmatprep.mubr.bf16.mxu0 0
  %1167 = vmatmul.mubr.bf16.gmra.mxu0 %v989
  %v1168 = vpop.f32.mrf.mxu0
  %v1169 = vadd.f32 %v931, %v1168
  %v1170 = vpop.f32.mrf.mxu0
  %v1171 = vpop.f32.mrf.mxu0
  %v1172 = vadd.f32 %v931, %v1171
  %v1173 = vpop.f32.mrf.mxu0
  %1174 = vmatprep.mubr.bf16.mxu0 0
  %1175 = vmatmul.mubr.bf16.gmra.mxu0 %v992
  %v1176 = vpop.f32.mrf.mxu0
  %v1177 = vadd.f32 %v931, %v1176
  %v1178 = vpop.f32.mrf.mxu0
  %v1179 = vpop.f32.mrf.mxu0
  %v1180 = vadd.f32 %v931, %v1179
  %v1181 = vpop.f32.mrf.mxu0
  %1182 = vmatprep.mubr.bf16.mxu0 0
  %1183 = vmatmul.mubr.bf16.gmra.mxu0 %v995
  %v1184 = vpop.f32.mrf.mxu0
  %v1185 = vadd.f32 %v931, %v1184
  %v1186 = vpop.f32.mrf.mxu0
  %v1187 = vpop.f32.mrf.mxu0
  %v1188 = vadd.f32 %v931, %v1187
  %v1189 = vpop.f32.mrf.mxu0
  %1190 = vmatprep.mubr.bf16.mxu0 0
  %1191 = vmatmul.mubr.bf16.gmra.mxu0 %v998
  %v1192 = vpop.f32.mrf.mxu0
  %v1193 = vadd.f32 %v931, %v1192
  %v1194 = vpop.f32.mrf.mxu0
  %v1195 = vpop.f32.mrf.mxu0
  %v1196 = vadd.f32 %v931, %v1195
  %v1197 = vpop.f32.mrf.mxu0
  %1198 = vmatprep.mubr.bf16.mxu0 0
  %1199 = vmatmul.mubr.bf16.gmra.mxu0 %v1001
  %v1200 = vpop.f32.mrf.mxu0
  %v1201 = vadd.f32 %v931, %v1200
  %v1202 = vpop.f32.mrf.mxu0
  %v1203 = vpop.f32.mrf.mxu0
  %v1204 = vadd.f32 %v931, %v1203
  %v1205 = vpop.f32.mrf.mxu0
  %1206 = vmatprep.mubr.bf16.mxu0 0
  %1207 = vmatmul.mubr.bf16.gmra.mxu0 %v1004
  %v1208 = vpop.f32.mrf.mxu0
  %v1209 = vadd.f32 %v931, %v1208
  %v1210 = vpop.f32.mrf.mxu0
  %v1211 = vpop.f32.mrf.mxu0
  %v1212 = vadd.f32 %v931, %v1211
  %v1213 = vpop.f32.mrf.mxu0
  %1214 = vmatprep.mubr.bf16.mxu0 0
  %1215 = vmatmul.mubr.bf16.gmra.mxu0 %v1007
  %v1216 = vpop.f32.mrf.mxu0
  %v1217 = vadd.f32 %v931, %v1216
  %v1218 = vpop.f32.mrf.mxu0
  %v1219 = vpop.f32.mrf.mxu0
  %v1220 = vadd.f32 %v931, %v1219
  %v1221 = vpop.f32.mrf.mxu0
  %1222 = vmatprep.mubr.bf16.mxu0 0
  %1223 = vmatmul.mubr.bf16.gmra.mxu0 %v1010
  %v1224 = vpop.f32.mrf.mxu0
  %v1225 = vadd.f32 %v931, %v1224
  %v1226 = vpop.f32.mrf.mxu0
  %v1227 = vpop.f32.mrf.mxu0
  %v1228 = vadd.f32 %v931, %v1227
  %v1229 = vpop.f32.mrf.mxu0
  %1230 = vmatprep.mubr.bf16.mxu0 0
  %1231 = vmatmul.mubr.bf16.gmra.mxu0 %v1013
  %v1232 = vpop.f32.mrf.mxu0
  %v1233 = vadd.f32 %v931, %v1232
  %v1234 = vpop.f32.mrf.mxu0
  %v1235 = vpop.f32.mrf.mxu0
  %v1236 = vadd.f32 %v931, %v1235
  %v1237 = vpop.f32.mrf.mxu0
  %1238 = vmatprep.mubr.bf16.mxu0 0
  %1239 = vmatmul.mubr.bf16.gmra.mxu0 %v1016
  %v1240 = vpop.f32.mrf.mxu0
  %v1241 = vadd.f32 %v931, %v1240
  %v1242 = vpop.f32.mrf.mxu0
  %v1243 = vpop.f32.mrf.mxu0
  %v1244 = vadd.f32 %v931, %v1243
  %v1245 = vpop.f32.mrf.mxu0
  %1246 = vmatprep.mubr.bf16.mxu0 0
  %1247 = vmatmul.mubr.bf16.gmra.mxu0 %v1019
  %v1248 = vpop.f32.mrf.mxu0
  %v1249 = vadd.f32 %v931, %v1248
  %v1250 = vpop.f32.mrf.mxu0
  %v1251 = vpop.f32.mrf.mxu0
  %v1252 = vadd.f32 %v931, %v1251
  %v1253 = vpop.f32.mrf.mxu0
  %1254 = vmatprep.mubr.bf16.mxu0 0
  %1255 = vmatmul.mubr.bf16.gmra.mxu0 %v1022
  %v1256 = vpop.f32.mrf.mxu0
  %v1257 = vadd.f32 %v931, %v1256
  %v1258 = vpop.f32.mrf.mxu0
  %v1259 = vpop.f32.mrf.mxu0
  %v1260 = vadd.f32 %v931, %v1259
  %v1261 = vpop.f32.mrf.mxu0
  %1262 = vmatprep.mubr.bf16.mxu0 0
  %1263 = vmatmul.mubr.bf16.gmra.mxu0 %v1025
  %v1264 = vpop.f32.mrf.mxu0
  %v1265 = vadd.f32 %v931, %v1264
  %v1266 = vpop.f32.mrf.mxu0
  %v1267 = vpop.f32.mrf.mxu0
  %v1268 = vadd.f32 %v931, %v1267
  %v1269 = vpop.f32.mrf.mxu0
  %1270 = vmatprep.mubr.bf16.mxu0 0
  %1271 = vmatmul.mubr.bf16.gmra.mxu0 %v1028
  %v1272 = vpop.f32.mrf.mxu0
  %v1273 = vadd.f32 %v931, %v1272
  %v1274 = vpop.f32.mrf.mxu0
  %v1275 = vpop.f32.mrf.mxu0
  %v1276 = vadd.f32 %v931, %v1275
  %v1277 = vpop.f32.mrf.mxu0
  %1278 = vmatprep.mubr.bf16.mxu0 0
  %1279 = vmatmul.mubr.bf16.gmra.mxu0 %v1031
  %v1280 = vpop.f32.mrf.mxu0
  %v1281 = vadd.f32 %v931, %v1280
  %v1282 = vpop.f32.mrf.mxu0
  %v1283 = vpop.f32.mrf.mxu0
  %v1284 = vadd.f32 %v931, %v1283
  %v1285 = vpop.f32.mrf.mxu0
  %1286 = vmatprep.mubr.bf16.mxu0 0
  %1287 = vmatmul.mubr.bf16.gmra.mxu0 %v1034
  %v1288 = vpop.f32.mrf.mxu0
  %v1289 = vadd.f32 %v931, %v1288
  %v1290 = vpop.f32.mrf.mxu0
  %v1291 = vpop.f32.mrf.mxu0
  %v1292 = vadd.f32 %v931, %v1291
  %v1293 = vpop.f32.mrf.mxu0
  %1294 = vmatprep.mubr.bf16.mxu0 0
  %1295 = vmatmul.mubr.bf16.gmra.mxu0 %v1037
  %v1296 = vpop.f32.mrf.mxu0
  %v1297 = vadd.f32 %v931, %v1296
  %v1298 = vpop.f32.mrf.mxu0
  %v1299 = vpop.f32.mrf.mxu0
  %v1300 = vadd.f32 %v931, %v1299
  %v1301 = vpop.f32.mrf.mxu0
  %1302 = vmatprep.mubr.bf16.mxu0 0
  %1303 = vmatmul.mubr.bf16.gmra.mxu0 %v1040
  %v1304 = vpop.f32.mrf.mxu0
  %v1305 = vadd.f32 %v931, %v1304
  %v1306 = vpop.f32.mrf.mxu0
  %v1307 = vpop.f32.mrf.mxu0
  %v1308 = vadd.f32 %v931, %v1307
  %v1309 = vpop.f32.mrf.mxu0
  %1310 = vmatprep.mubr.bf16.mxu0 0
  %1311 = vmatmul.mubr.bf16.gmra.mxu0 %v1043
  %v1312 = vpop.f32.mrf.mxu0
  %v1313 = vadd.f32 %v931, %v1312
  %v1314 = vpop.f32.mrf.mxu0
  %v1315 = vpop.f32.mrf.mxu0
  %v1316 = vadd.f32 %v931, %v1315
  %v1317 = vpop.f32.mrf.mxu0
  %1318 = vmatprep.mubr.bf16.mxu0 0
  %1319 = vmatmul.mubr.bf16.gmra.mxu0 %v1046
  %v1320 = vpop.f32.mrf.mxu0
  %v1321 = vadd.f32 %v931, %v1320
  %v1322 = vpop.f32.mrf.mxu0
  %v1323 = vpop.f32.mrf.mxu0
  %v1324 = vadd.f32 %v931, %v1323
  %v1325 = vpop.f32.mrf.mxu0
  %1326 = vmatprep.mubr.bf16.mxu0 0
  %1327 = vmatmul.mubr.bf16.gmra.mxu0 %v1049
  %v1328 = vpop.f32.mrf.mxu0
  %v1329 = vadd.f32 %v931, %v1328
  %v1330 = vpop.f32.mrf.mxu0
  %v1331 = vpop.f32.mrf.mxu0
  %v1332 = vadd.f32 %v931, %v1331
  %v1333 = vpop.f32.mrf.mxu0
  %1334 = vmatprep.mubr.bf16.mxu0 0
  %1335 = vmatmul.mubr.bf16.gmra.mxu0 %v1052
  %v1336 = vpop.f32.mrf.mxu0
  %v1337 = vadd.f32 %v931, %v1336
  %v1338 = vpop.f32.mrf.mxu0
  %v1339 = vpop.f32.mrf.mxu0
  %v1340 = vadd.f32 %v931, %v1339
  %v1341 = vpop.f32.mrf.mxu0
  %1342 = vdwg.mxu0
  %v1343 = vsel %vm957, %v1089, -inf
  %v1344 = vsel %vm957, %v1121, -inf
  %v1345 = vmax.f32 %v1343, %v1344
  %v1346 = vsel %vm957, %v1153, -inf
  %v1347 = vmax.f32 %v1345, %v1346
  %v1348 = vsel %vm957, %v1185, -inf
  %v1349 = vmax.f32 %v1347, %v1348
  %v1350 = vsel %vm957, %v1217, -inf
  %v1351 = vmax.f32 %v1349, %v1350
  %v1352 = vsel %vm957, %v1249, -inf
  %v1353 = vmax.f32 %v1351, %v1352
  %v1354 = vsel %vm957, %v1281, -inf
  %v1355 = vmax.f32 %v1353, %v1354
  %v1356 = vsel %vm957, %v1313, -inf
  %v1357 = vmax.f32 %v1355, %v1356
  %v1358 = vsel %vm957, %v1092, -inf
  %v1359 = vsel %vm957, %v1124, -inf
  %v1360 = vmax.f32 %v1358, %v1359
  %v1361 = vsel %vm957, %v1156, -inf
  %v1362 = vmax.f32 %v1360, %v1361
  %v1363 = vsel %vm957, %v1188, -inf
  %v1364 = vmax.f32 %v1362, %v1363
  %v1365 = vsel %vm957, %v1220, -inf
  %v1366 = vmax.f32 %v1364, %v1365
  %v1367 = vsel %vm957, %v1252, -inf
  %v1368 = vmax.f32 %v1366, %v1367
  %v1369 = vsel %vm957, %v1284, -inf
  %v1370 = vmax.f32 %v1368, %v1369
  %v1371 = vsel %vm957, %v1316, -inf
  %v1372 = vmax.f32 %v1370, %v1371
  %v1373 = vsel %vm957, %v1097, -inf
  %v1374 = vsel %vm957, %v1129, -inf
  %v1375 = vmax.f32 %v1373, %v1374
  %v1376 = vsel %vm957, %v1161, -inf
  %v1377 = vmax.f32 %v1375, %v1376
  %v1378 = vsel %vm957, %v1193, -inf
  %v1379 = vmax.f32 %v1377, %v1378
  %v1380 = vsel %vm957, %v1225, -inf
  %v1381 = vmax.f32 %v1379, %v1380
  %v1382 = vsel %vm957, %v1257, -inf
  %v1383 = vmax.f32 %v1381, %v1382
  %v1384 = vsel %vm957, %v1289, -inf
  %v1385 = vmax.f32 %v1383, %v1384
  %v1386 = vsel %vm957, %v1321, -inf
  %v1387 = vmax.f32 %v1385, %v1386
  %v1388 = vsel %vm957, %v1100, -inf
  %v1389 = vsel %vm957, %v1132, -inf
  %v1390 = vmax.f32 %v1388, %v1389
  %v1391 = vsel %vm957, %v1164, -inf
  %v1392 = vmax.f32 %v1390, %v1391
  %v1393 = vsel %vm957, %v1196, -inf
  %v1394 = vmax.f32 %v1392, %v1393
  %v1395 = vsel %vm957, %v1228, -inf
  %v1396 = vmax.f32 %v1394, %v1395
  %v1397 = vsel %vm957, %v1260, -inf
  %v1398 = vmax.f32 %v1396, %v1397
  %v1399 = vsel %vm957, %v1292, -inf
  %v1400 = vmax.f32 %v1398, %v1399
  %v1401 = vsel %vm957, %v1324, -inf
  %v1402 = vmax.f32 %v1400, %v1401
  %v1403 = vsel %vm957, %v1105, -inf
  %v1404 = vsel %vm957, %v1137, -inf
  %v1405 = vmax.f32 %v1403, %v1404
  %v1406 = vsel %vm957, %v1169, -inf
  %v1407 = vmax.f32 %v1405, %v1406
  %v1408 = vsel %vm957, %v1201, -inf
  %v1409 = vmax.f32 %v1407, %v1408
  %v1410 = vsel %vm957, %v1233, -inf
  %v1411 = vmax.f32 %v1409, %v1410
  %v1412 = vsel %vm957, %v1265, -inf
  %v1413 = vmax.f32 %v1411, %v1412
  %v1414 = vsel %vm957, %v1297, -inf
  %v1415 = vmax.f32 %v1413, %v1414
  %v1416 = vsel %vm957, %v1329, -inf
  %v1417 = vmax.f32 %v1415, %v1416
  %v1418 = vsel %vm957, %v1108, -inf
  %v1419 = vsel %vm957, %v1140, -inf
  %v1420 = vmax.f32 %v1418, %v1419
  %v1421 = vsel %vm957, %v1172, -inf
  %v1422 = vmax.f32 %v1420, %v1421
  %v1423 = vsel %vm957, %v1204, -inf
  %v1424 = vmax.f32 %v1422, %v1423
  %v1425 = vsel %vm957, %v1236, -inf
  %v1426 = vmax.f32 %v1424, %v1425
  %v1427 = vsel %vm957, %v1268, -inf
  %v1428 = vmax.f32 %v1426, %v1427
  %v1429 = vsel %vm957, %v1300, -inf
  %v1430 = vmax.f32 %v1428, %v1429
  %v1431 = vsel %vm957, %v1332, -inf
  %v1432 = vmax.f32 %v1430, %v1431
  %v1433 = vsel %vm957, %v1113, -inf
  %v1434 = vsel %vm957, %v1145, -inf
  %v1435 = vmax.f32 %v1433, %v1434
  %v1436 = vsel %vm957, %v1177, -inf
  %v1437 = vmax.f32 %v1435, %v1436
  %v1438 = vsel %vm957, %v1209, -inf
  %v1439 = vmax.f32 %v1437, %v1438
  %v1440 = vsel %vm957, %v1241, -inf
  %v1441 = vmax.f32 %v1439, %v1440
  %v1442 = vsel %vm957, %v1273, -inf
  %v1443 = vmax.f32 %v1441, %v1442
  %v1444 = vsel %vm957, %v1305, -inf
  %v1445 = vmax.f32 %v1443, %v1444
  %v1446 = vsel %vm957, %v1337, -inf
  %v1447 = vmax.f32 %v1445, %v1446
  %v1448 = vsel %vm957, %v1116, -inf
  %v1449 = vsel %vm957, %v1148, -inf
  %v1450 = vmax.f32 %v1448, %v1449
  %v1451 = vsel %vm957, %v1180, -inf
  %v1452 = vmax.f32 %v1450, %v1451
  %v1453 = vsel %vm957, %v1212, -inf
  %v1454 = vmax.f32 %v1452, %v1453
  %v1455 = vsel %vm957, %v1244, -inf
  %v1456 = vmax.f32 %v1454, %v1455
  %v1457 = vsel %vm957, %v1276, -inf
  %v1458 = vmax.f32 %v1456, %v1457
  %v1459 = vsel %vm957, %v1308, -inf
  %v1460 = vmax.f32 %v1458, %v1459
  %v1461 = vsel %vm957, %v1340, -inf
  %v1462 = vmax.f32 %v1460, %v1461
  %v1463 = vpack.c.bf16 %v1372, %v1357
  %v1464 = vpack.c.bf16 %v1402, %v1387
  %v1465 = vpack.c.bf16 %v1432, %v1417
  %v1466 = vpack.c.bf16 %v1462, %v1447
  %v1471 = vunpack.c.l.b16 %v1463
  %v1472 = vunpack.c.h.b16 %v1463
  %v1473 = vunpack.c.l.b16 %v1464
  %v1474 = vunpack.c.h.b16 %v1464
  %v1475 = vunpack.c.l.b16 %v1465
  %v1476 = vunpack.c.h.b16 %v1465
  %v1477 = vunpack.c.l.b16 %v1466
  %v1478 = vunpack.c.h.b16 %v1466
  %v1479 = vpack.c.b16 %v1471, %v1471
  %v1480 = vpack.c.b16 %v1472, %v1472
  %v1481 = vpack.c.b16 %v1473, %v1473
  %v1482 = vpack.c.b16 %v1474, %v1474
  %v1483 = vpack.c.b16 %v1475, %v1475
  %v1484 = vpack.c.b16 %v1476, %v1476
  %v1485 = vpack.c.b16 %v1477, %v1477
  %v1486 = vpack.c.b16 %v1478, %v1478
  %vm1495 = vcmask 519168
  %1496 = vst.msk [vmem:[%s7] sm:$0xf] %vm1495, %v1479
  %1497 = vst.msk [vmem:[%s7 + $0x4] sm:$0xf] %vm1495, %v1480
  %1498 = vst.msk [vmem:[%s7 + $0x8] sm:$0xf] %vm1495, %v1481
  %1499 = vst.msk [vmem:[%s7 + $0xc] sm:$0xf] %vm1495, %v1482
  %1500 = vst.msk [vmem:[%s7 + $0x10] sm:$0xf] %vm1495, %v1483
  %1501 = vst.msk [vmem:[%s7 + $0x14] sm:$0xf] %vm1495, %v1484
  %1502 = vst.msk [vmem:[%s7 + $0x18] sm:$0xf] %vm1495, %v1485
  %1503 = vst.msk [vmem:[%s7 + $0x1c] sm:$0xf] %vm1495, %v1486
  // Predicated region
  $region30: #{net_forward.8} parent=0 // pred_check
    _
  $region31: #{net_forward.8} parent=0 // pred_check_branch
    %1505 = sbr.rel (0) target = $region33
  $region32: #{net_forward.8} parent=0 // pred_region
    _
  $region33: #{net_forward.8} parent=0 // pred_fallthru
    _
  // Predicated region
  $region34: #{net_forward.8} parent=0 // pred_check
    _
  $region35: #{net_forward.8} parent=0 // pred_check_branch
    %1507 = sbr.rel (0) target = $region37
  $region36: #{net_forward.8} parent=0 // pred_region
    _
  $region37: #{net_forward.8} parent=0 // pred_fallthru
    _

// kernel: net_forward.9
$region0: #{net_forward.9}
  #allocation0 [shape = 'u32[]', space=smem, size = 0x4, offset = 0x4, fixed_abs, tag = 'smem constant byte address 0x4 - core index']
  #allocation1 [shape = 'u32[144,128]{1,0:T(1,128)}', space=vmem, size = 0x12000, scoped, tag = 'internal scratch']
  #allocation2 [shape = 'f32[64,8]{1,0:T(8,128)}', space=vmem, size = 0x8000, scoped, tag = 'scratch operand']
  #allocation3 [shape = 's32[64,8]{1,0:T(8,128)}', space=vmem, size = 0x8000, scoped, tag = 'scratch operand']
  %s0 = inlined_call_operand.vmem [shape: bf16[64,64], index: 0, kind: input, shape index: {}, may-alias: {0,1}]
  %s1 = inlined_call_operand.vmem [shape: bf16[64,64], index: 1, kind: input, shape index: {}, may-alias: {0,1}]
  %s2 = inlined_call_operand.vmem [shape: f32[1,64], index: 2, kind: input, shape index: {}]
  %s3 = inlined_call_operand.vmem [shape: s32[64,1], index: 3, kind: input, shape index: {}]
  %s4 = inlined_call_operand.vmem [shape: s32[1,64], index: 4, kind: input, shape index: {}]
  %s5 = inlined_call_operand.vmem [shape: s32[64,8], index: 5, kind: output, shape index: {}]
  %s6 = sld [smem:[#allocation0]]
  $region38: #{net_forward.9} parent=0
    _
  %s8 = ssub.s32 1, %s6
  %s9 = scalar_select 0, %s8, %s6
  // Predicated region
  $region2: #{net_forward.9} parent=0 // pred_check
    _
  $region3: #{net_forward.9} parent=0 // pred_check_branch
    %11 = sbr.rel (0) target = $region5
  $region4: #{net_forward.9} parent=0 // pred_region
    _
  $region5: #{net_forward.9} parent=0 // pred_fallthru
    _
  // Predicated region
  $region6: #{net_forward.9} parent=0 // pred_check
    _
  $region7: #{net_forward.9} parent=0 // pred_check_branch
    %13 = sbr.rel (0) target = $region9
  $region8: #{net_forward.9} parent=0 // pred_region
    _
  $region9: #{net_forward.9} parent=0 // pred_fallthru
    _
  // Predicated region
  $region10: #{net_forward.9} parent=0 // pred_check
    _
  $region11: #{net_forward.9} parent=0 // pred_check_branch
    %15 = sbr.rel (0) target = $region13
  $region12: #{net_forward.9} parent=0 // pred_region
    _
  $region13: #{net_forward.9} parent=0 // pred_fallthru
    _
  // Predicated region
  $region14: #{net_forward.9} parent=0 // pred_check
    _
  $region15: #{net_forward.9} parent=0 // pred_check_branch
    %17 = sbr.rel (0) target = $region17
  $region16: #{net_forward.9} parent=0 // pred_region
    _
  $region17: #{net_forward.9} parent=0 // pred_fallthru
    _
  // Predicated region
  $region18: #{net_forward.9} parent=0 // pred_check
    _
  $region19: #{net_forward.9} parent=0 // pred_check_branch
    %19 = sbr.rel (0) target = $region21
  $region20: #{net_forward.9} parent=0 // pred_region
    _
  $region21: #{net_forward.9} parent=0 // pred_fallthru
    _
  %p21 = scmp.eq.s32.totalorder 0, 0
  // Predicated region
  $region22: #{net_forward.9} parent=0 // pred_check
    %p22 = pneg %p21
  $region23: #{net_forward.9} parent=0 // pred_check_branch
    %24 = sbr.rel (%p22) target = $region25
  $region24: #{net_forward.9} parent=0 // pred_region
    %vm25 = vcmask 64512
    %26 = vst.msk [vmem:[#allocation2] sm:$0xff] %vm25, 1e+30
    %27 = vst.msk [vmem:[#allocation2 + $0x8] sm:$0xff] %vm25, 1e+30
    %28 = vst.msk [vmem:[#allocation2 + $0x10] sm:$0xff] %vm25, 1e+30
    %29 = vst.msk [vmem:[#allocation2 + $0x18] sm:$0xff] %vm25, 1e+30
    %30 = vst.msk [vmem:[#allocation2 + $0x20] sm:$0xff] %vm25, 1e+30
    %31 = vst.msk [vmem:[#allocation2 + $0x28] sm:$0xff] %vm25, 1e+30
    %32 = vst.msk [vmem:[#allocation2 + $0x30] sm:$0xff] %vm25, 1e+30
    %33 = vst.msk [vmem:[#allocation2 + $0x38] sm:$0xff] %vm25, 1e+30
    %34 = vst.msk [vmem:[#allocation3] sm:$0xff] %vm25, 0
    %35 = vst.msk [vmem:[#allocation3 + $0x8] sm:$0xff] %vm25, 0
    %36 = vst.msk [vmem:[#allocation3 + $0x10] sm:$0xff] %vm25, 0
    %37 = vst.msk [vmem:[#allocation3 + $0x18] sm:$0xff] %vm25, 0
    %38 = vst.msk [vmem:[#allocation3 + $0x20] sm:$0xff] %vm25, 0
    %39 = vst.msk [vmem:[#allocation3 + $0x28] sm:$0xff] %vm25, 0
    %40 = vst.msk [vmem:[#allocation3 + $0x30] sm:$0xff] %vm25, 0
    %41 = vst.msk [vmem:[#allocation3 + $0x38] sm:$0xff] %vm25, 0
  $region25: #{net_forward.9} parent=0 // pred_fallthru
    _
  %v42 = vld [vmem:[%s0] sm:$0xf]
  %v43 = vld [vmem:[%s0 + $0x4] sm:$0xf]
  %v44 = vld [vmem:[%s0 + $0x8] sm:$0xf]
  %v45 = vld [vmem:[%s0 + $0xc] sm:$0xf]
  %v46 = vld [vmem:[%s0 + $0x10] sm:$0xf]
  %v47 = vld [vmem:[%s0 + $0x14] sm:$0xf]
  %v48 = vld [vmem:[%s0 + $0x18] sm:$0xf]
  %v49 = vld [vmem:[%s0 + $0x1c] sm:$0xf]
  %v50 = vld [vmem:[%s1] sm:$0xf]
  %v51 = vld [vmem:[%s1 + $0x4] sm:$0xf]
  %v52 = vld [vmem:[%s1 + $0x8] sm:$0xf]
  %v53 = vld [vmem:[%s1 + $0xc] sm:$0xf]
  %v54 = vld [vmem:[%s1 + $0x10] sm:$0xf]
  %v55 = vld [vmem:[%s1 + $0x14] sm:$0xf]
  %v56 = vld [vmem:[%s1 + $0x18] sm:$0xf]
  %v57 = vld [vmem:[%s1 + $0x1c] sm:$0xf]
  %v66 = vunpack.c.l.b16 %v42
  %v67 = vunpack.c.l.b16 %v43
  %v68 = vunpack.c.l.b16 %v44
  %v69 = vunpack.c.l.b16 %v45
  %v70 = vunpack.c.l.b16 %v46
  %v71 = vunpack.c.l.b16 %v47
  %v72 = vunpack.c.l.b16 %v48
  %v73 = vunpack.c.l.b16 %v49
  %v74 = vpack.c.b16 %v67, %v66
  %v75 = vpack.c.b16 %v69, %v68
  %v76 = vpack.c.b16 %v71, %v70
  %v77 = vpack.c.b16 %v73, %v72
  %v86 = vunpack.c.l.b16 %v50
  %v87 = vunpack.c.l.b16 %v51
  %v88 = vunpack.c.l.b16 %v52
  %v89 = vunpack.c.l.b16 %v53
  %v90 = vunpack.c.l.b16 %v54
  %v91 = vunpack.c.l.b16 %v55
  %v92 = vunpack.c.l.b16 %v56
  %v93 = vunpack.c.l.b16 %v57
  %v94 = vpack.c.b16 %v87, %v86
  %v95 = vpack.c.b16 %v89, %v88
  %v96 = vpack.c.b16 %v91, %v90
  %v97 = vpack.c.b16 %v93, %v92
  %vm98 = vcmask 523264
  %v100 = vsel %vm98, %v74, 0
  %v103 = vsel %vm98, %v75, 0
  %v106 = vsel %vm98, %v76, 0
  %v109 = vsel %vm98, %v77, 0
  %v112 = vsel %vm98, %v94, 0
  %v115 = vsel %vm98, %v95, 0
  %v118 = vsel %vm98, %v96, 0
  %v121 = vsel %vm98, %v97, 0
  %123 = vmatprep.subr.bf16.mxu0 0
  %124 = vmatpush1.bf16.xpose.msra.mxu0 0
  %125 = vmatprep.subr.bf16.mxu0 0
  %126 = vmatpush1.bf16.xpose.msra.mxu0 0
  %127 = vmatprep.subr.bf16.mxu0 0
  %128 = vmatpush1.bf16.xpose.msra.mxu0 0
  %129 = vmatprep.subr.bf16.mxu0 0
  %130 = vmatpush1.bf16.xpose.msra.mxu0 0
  %131 = vmatprep.subr.bf16.mxu0 0
  %132 = vmatpush1.bf16.xpose.msra.mxu0 %v121
  %133 = vmatprep.subr.bf16.mxu0 0
  %134 = vmatpush1.bf16.xpose.msra.mxu0 %v118
  %135 = vmatprep.subr.bf16.mxu0 0
  %136 = vmatpush1.bf16.xpose.msra.mxu0 %v115
  %137 = vmatprep.subr.bf16.mxu0 0
  %138 = vmatpush1.bf16.xpose.msra.mxu0 %v112
  %139 = vmatprep.subr.bf16.mxu0 0
  %140 = vmatpush2.bf16.xpose.msra.mxu0 0
  %141 = vmatprep.subr.bf16.mxu0 0
  %142 = vmatpush2.bf16.xpose.msra.mxu0 0
  %143 = vmatprep.subr.bf16.mxu0 0
  %144 = vmatpush2.bf16.xpose.msra.mxu0 0
  %145 = vmatprep.subr.bf16.mxu0 0
  %146 = vmatpush2.bf16.xpose.msra.mxu0 0
  %147 = vmatprep.subr.bf16.mxu0 0
  %148 = vmatpush2.bf16.xpose.msra.mxu0 0
  %149 = vmatprep.subr.bf16.mxu0 0
  %150 = vmatpush2.bf16.xpose.msra.mxu0 0
  %151 = vmatprep.subr.bf16.mxu0 0
  %152 = vmatpush2.bf16.xpose.msra.mxu0 0
  %153 = vmatprep.subr.bf16.mxu0 0
  %154 = vmatpush2.bf16.xpose.msra.mxu0 0
  %155 = vmatprep.mubr.bf16.mxu0 0
  %156 = vmatmul.mubr.bf16.gmra.mxu0 %v100
  %v157 = vpop.f32.mrf.mxu0
  %v158 = vadd.f32 0.0, %v157
  %v159 = vpop.f32.mrf.mxu0
  %v160 = vpop.f32.mrf.mxu0
  %v161 = vadd.f32 0.0, %v160
  %v162 = vpop.f32.mrf.mxu0
  %163 = vmatprep.mubr.bf16.mxu0 0
  %164 = vmatmul.mubr.bf16.gmra.mxu0 %v103
  %v165 = vpop.f32.mrf.mxu0
  %v166 = vadd.f32 0.0, %v165
  %v167 = vpop.f32.mrf.mxu0
  %v168 = vpop.f32.mrf.mxu0
  %v169 = vadd.f32 0.0, %v168
  %v170 = vpop.f32.mrf.mxu0
  %171 = vmatprep.mubr.bf16.mxu0 0
  %172 = vmatmul.mubr.bf16.gmra.mxu0 %v106
  %v173 = vpop.f32.mrf.mxu0
  %v174 = vadd.f32 0.0, %v173
  %v175 = vpop.f32.mrf.mxu0
  %v176 = vpop.f32.mrf.mxu0
  %v177 = vadd.f32 0.0, %v176
  %v178 = vpop.f32.mrf.mxu0
  %179 = vmatprep.mubr.bf16.mxu0 0
  %180 = vmatmul.mubr.bf16.gmra.mxu0 %v109
  %v181 = vpop.f32.mrf.mxu0
  %v182 = vadd.f32 0.0, %v181
  %v183 = vpop.f32.mrf.mxu0
  %v184 = vpop.f32.mrf.mxu0
  %v185 = vadd.f32 0.0, %v184
  %v186 = vpop.f32.mrf.mxu0
  %187 = vdwg.mxu0
  %v188 = vld [vmem:[%s3] sm:$0xff]
  %v189 = vld [vmem:[%s3 + $0x8] sm:$0xff]
  %v190 = vld [vmem:[%s3 + $0x10] sm:$0xff]
  %v191 = vld [vmem:[%s3 + $0x18] sm:$0xff]
  %v192 = vld [vmem:[%s3 + $0x20] sm:$0xff]
  %v193 = vld [vmem:[%s3 + $0x28] sm:$0xff]
  %v194 = vld [vmem:[%s3 + $0x30] sm:$0xff]
  %v195 = vld [vmem:[%s3 + $0x38] sm:$0xff]
  %v196 = vld [vmem:[%s4] sm:$0x1]
  %197 = vset.pattern.permute.xlu0 0
  %198 = vperm.xlu0 %197, %v188
  %v199 = vpop.permute.xlu0 %198
  %200 = vset.pattern.permute.xlu0 0
  %201 = vperm.xlu0 %200, %v189
  %v202 = vpop.permute.xlu0 %201
  %203 = vset.pattern.permute.xlu0 0
  %204 = vperm.xlu0 %203, %v190
  %v205 = vpop.permute.xlu0 %204
  %206 = vset.pattern.permute.xlu0 0
  %207 = vperm.xlu0 %206, %v191
  %v208 = vpop.permute.xlu0 %207
  %209 = vset.pattern.permute.xlu0 0
  %210 = vperm.xlu0 %209, %v192
  %v211 = vpop.permute.xlu0 %210
  %212 = vset.pattern.permute.xlu0 0
  %213 = vperm.xlu0 %212, %v193
  %v214 = vpop.permute.xlu0 %213
  %215 = vset.pattern.permute.xlu0 0
  %216 = vperm.xlu0 %215, %v194
  %v217 = vpop.permute.xlu0 %216
  %218 = vset.pattern.permute.xlu0 0
  %219 = vperm.xlu0 %218, %v195
  %v220 = vpop.permute.xlu0 %219
  %v221 = vlaneseq
  %v222 = vshrl.u32 %v221, 7
  %v223 = vsub.s32 0, %v222
  %v224 = vrot.slane %v196, %v223
  %vm225 = vcmp.ne.s32.totalorder %v199, %v224
  %vm226 = vcmp.ne.s32.totalorder %v202, %v224
  %vm227 = vcmp.ne.s32.totalorder %v205, %v224
  %vm228 = vcmp.ne.s32.totalorder %v208, %v224
  %vm229 = vcmp.ne.s32.totalorder %v211, %v224
  %vm230 = vcmp.ne.s32.totalorder %v214, %v224
  %vm231 = vcmp.ne.s32.totalorder %v217, %v224
  %vm232 = vcmp.ne.s32.totalorder %v220, %v224
  %v233 = vsel %vm225, 1, 0
  %v234 = vsel %vm226, 1, 0
  %v235 = vsel %vm227, 1, 0
  %v236 = vsel %vm228, 1, 0
  %v237 = vsel %vm229, 1, 0
  %v238 = vsel %vm230, 1, 0
  %v239 = vsel %vm231, 1, 0
  %v240 = vsel %vm232, 1, 0
  %v241 = vcvt.s32.f32 %v233
  %v242 = vcvt.s32.f32 %v234
  %v243 = vcvt.s32.f32 %v235
  %v244 = vcvt.s32.f32 %v236
  %v245 = vcvt.s32.f32 %v237
  %v246 = vcvt.s32.f32 %v238
  %v247 = vcvt.s32.f32 %v239
  %v248 = vcvt.s32.f32 %v240
  %v249 = vld [vmem:[%s2] sm:$0x1]
  %v250 = vmul.f32 %v158, 2.0
  %v251 = vmul.f32 %v161, 2.0
  %v252 = vmul.f32 %v166, 2.0
  %v253 = vmul.f32 %v169, 2.0
  %v254 = vmul.f32 %v174, 2.0
  %v255 = vmul.f32 %v177, 2.0
  %v256 = vmul.f32 %v182, 2.0
  %v257 = vmul.f32 %v185, 2.0
  %v259 = vlaneseq
  %v260 = vshrl.u32 %v259, 7
  %v261 = vsub.s32 0, %v260
  %v262 = vrot.slane %v249, %v261
  %v264 = vsub.f32 %v262, %v250
  %v265 = vsub.f32 %v262, %v251
  %v266 = vsub.f32 %v262, %v252
  %v267 = vsub.f32 %v262, %v253
  %v268 = vsub.f32 %v262, %v254
  %v269 = vsub.f32 %v262, %v255
  %v270 = vsub.f32 %v262, %v256
  %v271 = vsub.f32 %v262, %v257
  %v272 = vmul.f32 %v241, 1e+09
  %v273 = vmul.f32 %v242, 1e+09
  %v274 = vmul.f32 %v243, 1e+09
  %v275 = vmul.f32 %v244, 1e+09
  %v276 = vmul.f32 %v245, 1e+09
  %v277 = vmul.f32 %v246, 1e+09
  %v278 = vmul.f32 %v247, 1e+09
  %v279 = vmul.f32 %v248, 1e+09
  %v280 = vadd.f32 %v264, %v272
  %v281 = vadd.f32 %v265, %v273
  %v282 = vadd.f32 %v266, %v274
  %v283 = vadd.f32 %v267, %v275
  %v284 = vadd.f32 %v268, %v276
  %v285 = vadd.f32 %v269, %v277
  %v286 = vadd.f32 %v270, %v278
  %v287 = vadd.f32 %v271, %v279
  %v288 = vlaneseq
  %v289 = vand.u32 %v288, 127
  %s290 = smul.u32 0, 64
  %v291 = vstv %s290
  %v292 = vadd.s32 %v289, %v291
  %v293 = vld [vmem:[#allocation2] sm:$0xff]
  %v294 = vld [vmem:[#allocation2 + $0x8] sm:$0xff]
  %v295 = vld [vmem:[#allocation2 + $0x10] sm:$0xff]
  %v296 = vld [vmem:[#allocation2 + $0x18] sm:$0xff]
  %v297 = vld [vmem:[#allocation2 + $0x20] sm:$0xff]
  %v298 = vld [vmem:[#allocation2 + $0x28] sm:$0xff]
  %v299 = vld [vmem:[#allocation2 + $0x30] sm:$0xff]
  %v300 = vld [vmem:[#allocation2 + $0x38] sm:$0xff]
  %309 = vrot.lane.b32.xlu0 %v280, 8
  %v310 = vpop.permute.xlu0 %309
  %311 = vrot.lane.b32.xlu0 %v281, 8
  %v312 = vpop.permute.xlu0 %311
  %313 = vrot.lane.b32.xlu0 %v282, 8
  %v314 = vpop.permute.xlu0 %313
  %315 = vrot.lane.b32.xlu0 %v283, 8
  %v316 = vpop.permute.xlu0 %315
  %317 = vrot.lane.b32.xlu0 %v284, 8
  %v318 = vpop.permute.xlu0 %317
  %319 = vrot.lane.b32.xlu0 %v285, 8
  %v320 = vpop.permute.xlu0 %319
  %321 = vrot.lane.b32.xlu0 %v286, 8
  %v322 = vpop.permute.xlu0 %321
  %323 = vrot.lane.b32.xlu0 %v287, 8
  %v324 = vpop.permute.xlu0 %323
  %vm333 = vcmask 64512
  %v334 = vsel %vm333, %v293, %v310
  %v335 = vsel %vm333, %v294, %v312
  %v336 = vsel %vm333, %v295, %v314
  %v337 = vsel %vm333, %v296, %v316
  %v338 = vsel %vm333, %v297, %v318
  %v339 = vsel %vm333, %v298, %v320
  %v340 = vsel %vm333, %v299, %v322
  %v341 = vsel %vm333, %v300, %v324
  %v342 = vld [vmem:[#allocation3] sm:$0xff]
  %v343 = vld [vmem:[#allocation3 + $0x8] sm:$0xff]
  %v344 = vld [vmem:[#allocation3 + $0x10] sm:$0xff]
  %v345 = vld [vmem:[#allocation3 + $0x18] sm:$0xff]
  %v346 = vld [vmem:[#allocation3 + $0x20] sm:$0xff]
  %v347 = vld [vmem:[#allocation3 + $0x28] sm:$0xff]
  %v348 = vld [vmem:[#allocation3 + $0x30] sm:$0xff]
  %v349 = vld [vmem:[#allocation3 + $0x38] sm:$0xff]
  %350 = vrot.lane.b32.xlu0 %v292, 8
  %v351 = vpop.permute.xlu0 %350
  %v352 = vsel %vm333, %v342, %v351
  %v353 = vsel %vm333, %v343, %v351
  %v354 = vsel %vm333, %v344, %v351
  %v355 = vsel %vm333, %v345, %v351
  %v356 = vsel %vm333, %v346, %v351
  %v357 = vsel %vm333, %v347, %v351
  %v358 = vsel %vm333, %v348, %v351
  %v359 = vsel %vm333, %v349, %v351
  %vm360 = vcmask 588800
  %v361 = vsel %vm360, %v334, inf
  %362 = vmin.xlane.f32.xlu0 %v361
  %v363 = vpop.xlane.xlu0 %362
  %v364 = vsel %vm360, %v335, inf
  %365 = vmin.xlane.f32.xlu0 %v364
  %v366 = vpop.xlane.xlu0 %365
  %v367 = vsel %vm360, %v336, inf
  %368 = vmin.xlane.f32.xlu0 %v367
  %v369 = vpop.xlane.xlu0 %368
  %v370 = vsel %vm360, %v337, inf
  %371 = vmin.xlane.f32.xlu0 %v370
  %v372 = vpop.xlane.xlu0 %371
  %v373 = vsel %vm360, %v338, inf
  %374 = vmin.xlane.f32.xlu0 %v373
  %v375 = vpop.xlane.xlu0 %374
  %v376 = vsel %vm360, %v339, inf
  %377 = vmin.xlane.f32.xlu0 %v376
  %v378 = vpop.xlane.xlu0 %377
  %v379 = vsel %vm360, %v340, inf
  %380 = vmin.xlane.f32.xlu0 %v379
  %v381 = vpop.xlane.xlu0 %380
  %v382 = vsel %vm360, %v341, inf
  %383 = vmin.xlane.f32.xlu0 %v382
  %v384 = vpop.xlane.xlu0 %383
  %vm385 = vcmp.eq.f32.partialorder %v334, %v363
  %vm386 = vcmp.eq.f32.partialorder %v335, %v366
  %vm387 = vcmp.eq.f32.partialorder %v336, %v369
  %vm388 = vcmp.eq.f32.partialorder %v337, %v372
  %vm389 = vcmp.eq.f32.partialorder %v338, %v375
  %vm390 = vcmp.eq.f32.partialorder %v339, %v378
  %vm391 = vcmp.eq.f32.partialorder %v340, %v381
  %vm392 = vcmp.eq.f32.partialorder %v341, %v384
  %v393 = vsel %vm385, %v289, 1073741824
  %v394 = vsel %vm386, %v289, 1073741824
  %v395 = vsel %vm387, %v289, 1073741824
  %v396 = vsel %vm388, %v289, 1073741824
  %v397 = vsel %vm389, %v289, 1073741824
  %v398 = vsel %vm390, %v289, 1073741824
  %v399 = vsel %vm391, %v289, 1073741824
  %v400 = vsel %vm392, %v289, 1073741824
  %v401 = vsel %vm360, %v393, 2147483647
  %v402 = vand.u32 %v401, 65535
  %v403 = vshra.s32 %v401, 16
  %v404 = vcvt.s32.f32 %v402
  %v405 = vcvt.s32.f32 %v403
  %406 = vmin.xlane.f32.xlu0 %v405
  %v407 = vpop.xlane.xlu0 %406
  %vm408 = vcmp.eq.f32.partialorder %v405, %v407
  %v409 = vsel %vm408, %v404, inf
  %410 = vmin.xlane.f32.xlu0 %v409
  %v411 = vpop.xlane.xlu0 %410
  %v412 = vcvt.f32.s32 %v411
  %v413 = vcvt.f32.s32 %v407
  %v414 = vshll.u32 %v413, 16
  %v415 = vadd.s32 %v414, %v412
  %v416 = vsel %vm360, %v394, 2147483647
  %v417 = vand.u32 %v416, 65535
  %v418 = vshra.s32 %v416, 16
  %v419 = vcvt.s32.f32 %v417
  %v420 = vcvt.s32.f32 %v418
  %421 = vmin.xlane.f32.xlu0 %v420
  %v422 = vpop.xlane.xlu0 %421
  %vm423 = vcmp.eq.f32.partialorder %v420, %v422
  %v424 = vsel %vm423, %v419, inf
  %425 = vmin.xlane.f32.xlu0 %v424
  %v426 = vpop.xlane.xlu0 %425
  %v427 = vcvt.f32.s32 %v426
  %v428 = vcvt.f32.s32 %v422
  %v429 = vshll.u32 %v428, 16
  %v430 = vadd.s32 %v429, %v427
  %v431 = vsel %vm360, %v395, 2147483647
  %v432 = vand.u32 %v431, 65535
  %v433 = vshra.s32 %v431, 16
  %v434 = vcvt.s32.f32 %v432
  %v435 = vcvt.s32.f32 %v433
  %436 = vmin.xlane.f32.xlu0 %v435
  %v437 = vpop.xlane.xlu0 %436
  %vm438 = vcmp.eq.f32.partialorder %v435, %v437
  %v439 = vsel %vm438, %v434, inf
  %440 = vmin.xlane.f32.xlu0 %v439
  %v441 = vpop.xlane.xlu0 %440
  %v442 = vcvt.f32.s32 %v441
  %v443 = vcvt.f32.s32 %v437
  %v444 = vshll.u32 %v443, 16
  %v445 = vadd.s32 %v444, %v442
  %v446 = vsel %vm360, %v396, 2147483647
  %v447 = vand.u32 %v446, 65535
  %v448 = vshra.s32 %v446, 16
  %v449 = vcvt.s32.f32 %v447
  %v450 = vcvt.s32.f32 %v448
  %451 = vmin.xlane.f32.xlu0 %v450
  %v452 = vpop.xlane.xlu0 %451
  %vm453 = vcmp.eq.f32.partialorder %v450, %v452
  %v454 = vsel %vm453, %v449, inf
  %455 = vmin.xlane.f32.xlu0 %v454
  %v456 = vpop.xlane.xlu0 %455
  %v457 = vcvt.f32.s32 %v456
  %v458 = vcvt.f32.s32 %v452
  %v459 = vshll.u32 %v458, 16
  %v460 = vadd.s32 %v459, %v457
  %v461 = vsel %vm360, %v397, 2147483647
  %v462 = vand.u32 %v461, 65535
  %v463 = vshra.s32 %v461, 16
  %v464 = vcvt.s32.f32 %v462
  %v465 = vcvt.s32.f32 %v463
  %466 = vmin.xlane.f32.xlu0 %v465
  %v467 = vpop.xlane.xlu0 %466
  %vm468 = vcmp.eq.f32.partialorder %v465, %v467
  %v469 = vsel %vm468, %v464, inf
  %470 = vmin.xlane.f32.xlu0 %v469
  %v471 = vpop.xlane.xlu0 %470
  %v472 = vcvt.f32.s32 %v471
  %v473 = vcvt.f32.s32 %v467
  %v474 = vshll.u32 %v473, 16
  %v475 = vadd.s32 %v474, %v472
  %v476 = vsel %vm360, %v398, 2147483647
  %v477 = vand.u32 %v476, 65535
  %v478 = vshra.s32 %v476, 16
  %v479 = vcvt.s32.f32 %v477
  %v480 = vcvt.s32.f32 %v478
  %481 = vmin.xlane.f32.xlu0 %v480
  %v482 = vpop.xlane.xlu0 %481
  %vm483 = vcmp.eq.f32.partialorder %v480, %v482
  %v484 = vsel %vm483, %v479, inf
  %485 = vmin.xlane.f32.xlu0 %v484
  %v486 = vpop.xlane.xlu0 %485
  %v487 = vcvt.f32.s32 %v486
  %v488 = vcvt.f32.s32 %v482
  %v489 = vshll.u32 %v488, 16
  %v490 = vadd.s32 %v489, %v487
  %v491 = vsel %vm360, %v399, 2147483647
  %v492 = vand.u32 %v491, 65535
  %v493 = vshra.s32 %v491, 16
  %v494 = vcvt.s32.f32 %v492
  %v495 = vcvt.s32.f32 %v493
  %496 = vmin.xlane.f32.xlu0 %v495
  %v497 = vpop.xlane.xlu0 %496
  %vm498 = vcmp.eq.f32.partialorder %v495, %v497
  %v499 = vsel %vm498, %v494, inf
  %500 = vmin.xlane.f32.xlu0 %v499
  %v501 = vpop.xlane.xlu0 %500
  %v502 = vcvt.f32.s32 %v501
  %v503 = vcvt.f32.s32 %v497
  %v504 = vshll.u32 %v503, 16
  %v505 = vadd.s32 %v504, %v502
  %v506 = vsel %vm360, %v400, 2147483647
  %v507 = vand.u32 %v506, 65535
  %v508 = vshra.s32 %v506, 16
  %v509 = vcvt.s32.f32 %v507
  %v510 = vcvt.s32.f32 %v508
  %511 = vmin.xlane.f32.xlu0 %v510
  %v512 = vpop.xlane.xlu0 %511
  %vm513 = vcmp.eq.f32.partialorder %v510, %v512
  %v514 = vsel %vm513, %v509, inf
  %515 = vmin.xlane.f32.xlu0 %v514
  %v516 = vpop.xlane.xlu0 %515
  %v517 = vcvt.f32.s32 %v516
  %v518 = vcvt.f32.s32 %v512
  %v519 = vshll.u32 %v518, 16
  %v520 = vadd.s32 %v519, %v517
  %vm521 = vcmp.eq.s32.totalorder %v289, %v415
  %vm522 = vcmp.eq.s32.totalorder %v289, %v430
  %vm523 = vcmp.eq.s32.totalorder %v289, %v445
  %vm524 = vcmp.eq.s32.totalorder %v289, %v460
  %vm525 = vcmp.eq.s32.totalorder %v289, %v475
  %vm526 = vcmp.eq.s32.totalorder %v289, %v490
  %vm527 = vcmp.eq.s32.totalorder %v289, %v505
  %vm528 = vcmp.eq.s32.totalorder %v289, %v520
  %v529 = vsel %vm521, %v352, 0
  %v530 = vsel %vm522, %v353, 0
  %v531 = vsel %vm523, %v354, 0
  %v532 = vsel %vm524, %v355, 0
  %v533 = vsel %vm525, %v356, 0
  %v534 = vsel %vm526, %v357, 0
  %v535 = vsel %vm527, %v358, 0
  %v536 = vsel %vm528, %v359, 0
  %v537 = vsel %vm360, %v529, 2147483648
  %v538 = vand.u32 %v537, 65535
  %v539 = vshra.s32 %v537, 16
  %v540 = vcvt.s32.f32 %v538
  %v541 = vcvt.s32.f32 %v539
  %542 = vmax.xlane.f32.xlu0 %v541
  %v543 = vpop.xlane.xlu0 %542
  %vm544 = vcmp.eq.f32.partialorder %v541, %v543
  %v545 = vsel %vm544, %v540, -inf
  %546 = vmax.xlane.f32.xlu0 %v545
  %v547 = vpop.xlane.xlu0 %546
  %v548 = vcvt.f32.s32 %v547
  %v549 = vcvt.f32.s32 %v543
  %v550 = vshll.u32 %v549, 16
  %v551 = vadd.s32 %v550, %v548
  %v552 = vsel %vm360, %v530, 2147483648
  %v553 = vand.u32 %v552, 65535
  %v554 = vshra.s32 %v552, 16
  %v555 = vcvt.s32.f32 %v553
  %v556 = vcvt.s32.f32 %v554
  %557 = vmax.xlane.f32.xlu0 %v556
  %v558 = vpop.xlane.xlu0 %557
  %vm559 = vcmp.eq.f32.partialorder %v556, %v558
  %v560 = vsel %vm559, %v555, -inf
  %561 = vmax.xlane.f32.xlu0 %v560
  %v562 = vpop.xlane.xlu0 %561
  %v563 = vcvt.f32.s32 %v562
  %v564 = vcvt.f32.s32 %v558
  %v565 = vshll.u32 %v564, 16
  %v566 = vadd.s32 %v565, %v563
  %v567 = vsel %vm360, %v531, 2147483648
  %v568 = vand.u32 %v567, 65535
  %v569 = vshra.s32 %v567, 16
  %v570 = vcvt.s32.f32 %v568
  %v571 = vcvt.s32.f32 %v569
  %572 = vmax.xlane.f32.xlu0 %v571
  %v573 = vpop.xlane.xlu0 %572
  %vm574 = vcmp.eq.f32.partialorder %v571, %v573
  %v575 = vsel %vm574, %v570, -inf
  %576 = vmax.xlane.f32.xlu0 %v575
  %v577 = vpop.xlane.xlu0 %576
  %v578 = vcvt.f32.s32 %v577
  %v579 = vcvt.f32.s32 %v573
  %v580 = vshll.u32 %v579, 16
  %v581 = vadd.s32 %v580, %v578
  %v582 = vsel %vm360, %v532, 2147483648
  %v583 = vand.u32 %v582, 65535
  %v584 = vshra.s32 %v582, 16
  %v585 = vcvt.s32.f32 %v583
  %v586 = vcvt.s32.f32 %v584
  %587 = vmax.xlane.f32.xlu0 %v586
  %v588 = vpop.xlane.xlu0 %587
  %vm589 = vcmp.eq.f32.partialorder %v586, %v588
  %v590 = vsel %vm589, %v585, -inf
  %591 = vmax.xlane.f32.xlu0 %v590
  %v592 = vpop.xlane.xlu0 %591
  %v593 = vcvt.f32.s32 %v592
  %v594 = vcvt.f32.s32 %v588
  %v595 = vshll.u32 %v594, 16
  %v596 = vadd.s32 %v595, %v593
  %v597 = vsel %vm360, %v533, 2147483648
  %v598 = vand.u32 %v597, 65535
  %v599 = vshra.s32 %v597, 16
  %v600 = vcvt.s32.f32 %v598
  %v601 = vcvt.s32.f32 %v599
  %602 = vmax.xlane.f32.xlu0 %v601
  %v603 = vpop.xlane.xlu0 %602
  %vm604 = vcmp.eq.f32.partialorder %v601, %v603
  %v605 = vsel %vm604, %v600, -inf
  %606 = vmax.xlane.f32.xlu0 %v605
  %v607 = vpop.xlane.xlu0 %606
  %v608 = vcvt.f32.s32 %v607
  %v609 = vcvt.f32.s32 %v603
  %v610 = vshll.u32 %v609, 16
  %v611 = vadd.s32 %v610, %v608
  %v612 = vsel %vm360, %v534, 2147483648
  %v613 = vand.u32 %v612, 65535
  %v614 = vshra.s32 %v612, 16
  %v615 = vcvt.s32.f32 %v613
  %v616 = vcvt.s32.f32 %v614
  %617 = vmax.xlane.f32.xlu0 %v616
  %v618 = vpop.xlane.xlu0 %617
  %vm619 = vcmp.eq.f32.partialorder %v616, %v618
  %v620 = vsel %vm619, %v615, -inf
  %621 = vmax.xlane.f32.xlu0 %v620
  %v622 = vpop.xlane.xlu0 %621
  %v623 = vcvt.f32.s32 %v622
  %v624 = vcvt.f32.s32 %v618
  %v625 = vshll.u32 %v624, 16
  %v626 = vadd.s32 %v625, %v623
  %v627 = vsel %vm360, %v535, 2147483648
  %v628 = vand.u32 %v627, 65535
  %v629 = vshra.s32 %v627, 16
  %v630 = vcvt.s32.f32 %v628
  %v631 = vcvt.s32.f32 %v629
  %632 = vmax.xlane.f32.xlu0 %v631
  %v633 = vpop.xlane.xlu0 %632
  %vm634 = vcmp.eq.f32.partialorder %v631, %v633
  %v635 = vsel %vm634, %v630, -inf
  %636 = vmax.xlane.f32.xlu0 %v635
  %v637 = vpop.xlane.xlu0 %636
  %v638 = vcvt.f32.s32 %v637
  %v639 = vcvt.f32.s32 %v633
  %v640 = vshll.u32 %v639, 16
  %v641 = vadd.s32 %v640, %v638
  %v642 = vsel %vm360, %v536, 2147483648
  %v643 = vand.u32 %v642, 65535
  %v644 = vshra.s32 %v642, 16
  %v645 = vcvt.s32.f32 %v643
  %v646 = vcvt.s32.f32 %v644
  %647 = vmax.xlane.f32.xlu0 %v646
  %v648 = vpop.xlane.xlu0 %647
  %vm649 = vcmp.eq.f32.partialorder %v646, %v648
  %v650 = vsel %vm649, %v645, -inf
  %651 = vmax.xlane.f32.xlu0 %v650
  %v652 = vpop.xlane.xlu0 %651
  %v653 = vcvt.f32.s32 %v652
  %v654 = vcvt.f32.s32 %v648
  %v655 = vshll.u32 %v654, 16
  %v656 = vadd.s32 %v655, %v653
  %v657 = vsel %vm521, 1e+30, %v334
  %v658 = vsel %vm522, 1e+30, %v335
  %v659 = vsel %vm523, 1e+30, %v336
  %v660 = vsel %vm524, 1e+30, %v337
  %v661 = vsel %vm525, 1e+30, %v338
  %v662 = vsel %vm526, 1e+30, %v339
  %v663 = vsel %vm527, 1e+30, %v340
  %v664 = vsel %vm528, 1e+30, %v341
  %v665 = vsel %vm360, %v657, inf
  %666 = vmin.xlane.f32.xlu0 %v665
  %v667 = vpop.xlane.xlu0 %666
  %v668 = vsel %vm360, %v658, inf
  %669 = vmin.xlane.f32.xlu0 %v668
  %v670 = vpop.xlane.xlu0 %669
  %v671 = vsel %vm360, %v659, inf
  %672 = vmin.xlane.f32.xlu0 %v671
  %v673 = vpop.xlane.xlu0 %672
  %v674 = vsel %vm360, %v660, inf
  %675 = vmin.xlane.f32.xlu0 %v674
  %v676 = vpop.xlane.xlu0 %675
  %v677 = vsel %vm360, %v661, inf
  %678 = vmin.xlane.f32.xlu0 %v677
  %v679 = vpop.xlane.xlu0 %678
  %v680 = vsel %vm360, %v662, inf
  %681 = vmin.xlane.f32.xlu0 %v680
  %v682 = vpop.xlane.xlu0 %681
  %v683 = vsel %vm360, %v663, inf
  %684 = vmin.xlane.f32.xlu0 %v683
  %v685 = vpop.xlane.xlu0 %684
  %v686 = vsel %vm360, %v664, inf
  %687 = vmin.xlane.f32.xlu0 %v686
  %v688 = vpop.xlane.xlu0 %687
  %vm689 = vcmp.eq.f32.partialorder %v657, %v667
  %vm690 = vcmp.eq.f32.partialorder %v658, %v670
  %vm691 = vcmp.eq.f32.partialorder %v659, %v673
  %vm692 = vcmp.eq.f32.partialorder %v660, %v676
  %vm693 = vcmp.eq.f32.partialorder %v661, %v679
  %vm694 = vcmp.eq.f32.partialorder %v662, %v682
  %vm695 = vcmp.eq.f32.partialorder %v663, %v685
  %vm696 = vcmp.eq.f32.partialorder %v664, %v688
  %v697 = vsel %vm689, %v289, 1073741824
  %v698 = vsel %vm690, %v289, 1073741824
  %v699 = vsel %vm691, %v289, 1073741824
  %v700 = vsel %vm692, %v289, 1073741824
  %v701 = vsel %vm693, %v289, 1073741824
  %v702 = vsel %vm694, %v289, 1073741824
  %v703 = vsel %vm695, %v289, 1073741824
  %v704 = vsel %vm696, %v289, 1073741824
  %v705 = vsel %vm360, %v697, 2147483647
  %v706 = vand.u32 %v705, 65535
  %v707 = vshra.s32 %v705, 16
  %v708 = vcvt.s32.f32 %v706
  %v709 = vcvt.s32.f32 %v707
  %710 = vmin.xlane.f32.xlu0 %v709
  %v711 = vpop.xlane.xlu0 %710
  %vm712 = vcmp.eq.f32.partialorder %v709, %v711
  %v713 = vsel %vm712, %v708, inf
  %714 = vmin.xlane.f32.xlu0 %v713
  %v715 = vpop.xlane.xlu0 %714
  %v716 = vcvt.f32.s32 %v715
  %v717 = vcvt.f32.s32 %v711
  %v718 = vshll.u32 %v717, 16
  %v719 = vadd.s32 %v718, %v716
  %v720 = vsel %vm360, %v698, 2147483647
  %v721 = vand.u32 %v720, 65535
  %v722 = vshra.s32 %v720, 16
  %v723 = vcvt.s32.f32 %v721
  %v724 = vcvt.s32.f32 %v722
  %725 = vmin.xlane.f32.xlu0 %v724
  %v726 = vpop.xlane.xlu0 %725
  %vm727 = vcmp.eq.f32.partialorder %v724, %v726
  %v728 = vsel %vm727, %v723, inf
  %729 = vmin.xlane.f32.xlu0 %v728
  %v730 = vpop.xlane.xlu0 %729
  %v731 = vcvt.f32.s32 %v730
  %v732 = vcvt.f32.s32 %v726
  %v733 = vshll.u32 %v732, 16
  %v734 = vadd.s32 %v733, %v731
  %v735 = vsel %vm360, %v699, 2147483647
  %v736 = vand.u32 %v735, 65535
  %v737 = vshra.s32 %v735, 16
  %v738 = vcvt.s32.f32 %v736
  %v739 = vcvt.s32.f32 %v737
  %740 = vmin.xlane.f32.xlu0 %v739
  %v741 = vpop.xlane.xlu0 %740
  %vm742 = vcmp.eq.f32.partialorder %v739, %v741
  %v743 = vsel %vm742, %v738, inf
  %744 = vmin.xlane.f32.xlu0 %v743
  %v745 = vpop.xlane.xlu0 %744
  %v746 = vcvt.f32.s32 %v745
  %v747 = vcvt.f32.s32 %v741
  %v748 = vshll.u32 %v747, 16
  %v749 = vadd.s32 %v748, %v746
  %v750 = vsel %vm360, %v700, 2147483647
  %v751 = vand.u32 %v750, 65535
  %v752 = vshra.s32 %v750, 16
  %v753 = vcvt.s32.f32 %v751
  %v754 = vcvt.s32.f32 %v752
  %755 = vmin.xlane.f32.xlu0 %v754
  %v756 = vpop.xlane.xlu0 %755
  %vm757 = vcmp.eq.f32.partialorder %v754, %v756
  %v758 = vsel %vm757, %v753, inf
  %759 = vmin.xlane.f32.xlu0 %v758
  %v760 = vpop.xlane.xlu0 %759
  %v761 = vcvt.f32.s32 %v760
  %v762 = vcvt.f32.s32 %v756
  %v763 = vshll.u32 %v762, 16
  %v764 = vadd.s32 %v763, %v761
  %v765 = vsel %vm360, %v701, 2147483647
  %v766 = vand.u32 %v765, 65535
  %v767 = vshra.s32 %v765, 16
  %v768 = vcvt.s32.f32 %v766
  %v769 = vcvt.s32.f32 %v767
  %770 = vmin.xlane.f32.xlu0 %v769
  %v771 = vpop.xlane.xlu0 %770
  %vm772 = vcmp.eq.f32.partialorder %v769, %v771
  %v773 = vsel %vm772, %v768, inf
  %774 = vmin.xlane.f32.xlu0 %v773
  %v775 = vpop.xlane.xlu0 %774
  %v776 = vcvt.f32.s32 %v775
  %v777 = vcvt.f32.s32 %v771
  %v778 = vshll.u32 %v777, 16
  %v779 = vadd.s32 %v778, %v776
  %v780 = vsel %vm360, %v702, 2147483647
  %v781 = vand.u32 %v780, 65535
  %v782 = vshra.s32 %v780, 16
  %v783 = vcvt.s32.f32 %v781
  %v784 = vcvt.s32.f32 %v782
  %785 = vmin.xlane.f32.xlu0 %v784
  %v786 = vpop.xlane.xlu0 %785
  %vm787 = vcmp.eq.f32.partialorder %v784, %v786
  %v788 = vsel %vm787, %v783, inf
  %789 = vmin.xlane.f32.xlu0 %v788
  %v790 = vpop.xlane.xlu0 %789
  %v791 = vcvt.f32.s32 %v790
  %v792 = vcvt.f32.s32 %v786
  %v793 = vshll.u32 %v792, 16
  %v794 = vadd.s32 %v793, %v791
  %v795 = vsel %vm360, %v703, 2147483647
  %v796 = vand.u32 %v795, 65535
  %v797 = vshra.s32 %v795, 16
  %v798 = vcvt.s32.f32 %v796
  %v799 = vcvt.s32.f32 %v797
  %800 = vmin.xlane.f32.xlu0 %v799
  %v801 = vpop.xlane.xlu0 %800
  %vm802 = vcmp.eq.f32.partialorder %v799, %v801
  %v803 = vsel %vm802, %v798, inf
  %804 = vmin.xlane.f32.xlu0 %v803
  %v805 = vpop.xlane.xlu0 %804
  %v806 = vcvt.f32.s32 %v805
  %v807 = vcvt.f32.s32 %v801
  %v808 = vshll.u32 %v807, 16
  %v809 = vadd.s32 %v808, %v806
  %v810 = vsel %vm360, %v704, 2147483647
  %v811 = vand.u32 %v810, 65535
  %v812 = vshra.s32 %v810, 16
  %v813 = vcvt.s32.f32 %v811
  %v814 = vcvt.s32.f32 %v812
  %815 = vmin.xlane.f32.xlu0 %v814
  %v816 = vpop.xlane.xlu0 %815
  %vm817 = vcmp.eq.f32.partialorder %v814, %v816
  %v818 = vsel %vm817, %v813, inf
  %819 = vmin.xlane.f32.xlu0 %v818
  %v820 = vpop.xlane.xlu0 %819
  %v821 = vcvt.f32.s32 %v820
  %v822 = vcvt.f32.s32 %v816
  %v823 = vshll.u32 %v822, 16
  %v824 = vadd.s32 %v823, %v821
  %vm825 = vcmp.eq.s32.totalorder %v289, %v719
  %vm826 = vcmp.eq.s32.totalorder %v289, %v734
  %vm827 = vcmp.eq.s32.totalorder %v289, %v749
  %vm828 = vcmp.eq.s32.totalorder %v289, %v764
  %vm829 = vcmp.eq.s32.totalorder %v289, %v779
  %vm830 = vcmp.eq.s32.totalorder %v289, %v794
  %vm831 = vcmp.eq.s32.totalorder %v289, %v809
  %vm832 = vcmp.eq.s32.totalorder %v289, %v824
  %v833 = vsel %vm825, %v352, 0
  %v834 = vsel %vm826, %v353, 0
  %v835 = vsel %vm827, %v354, 0
  %v836 = vsel %vm828, %v355, 0
  %v837 = vsel %vm829, %v356, 0
  %v838 = vsel %vm830, %v357, 0
  %v839 = vsel %vm831, %v358, 0
  %v840 = vsel %vm832, %v359, 0
  %v841 = vsel %vm360, %v833, 2147483648
  %v842 = vand.u32 %v841, 65535
  %v843 = vshra.s32 %v841, 16
  %v844 = vcvt.s32.f32 %v842
  %v845 = vcvt.s32.f32 %v843
  %846 = vmax.xlane.f32.xlu0 %v845
  %v847 = vpop.xlane.xlu0 %846
  %vm848 = vcmp.eq.f32.partialorder %v845, %v847
  %v849 = vsel %vm848, %v844, -inf
  %850 = vmax.xlane.f32.xlu0 %v849
  %v851 = vpop.xlane.xlu0 %850
  %v852 = vcvt.f32.s32 %v851
  %v853 = vcvt.f32.s32 %v847
  %v854 = vshll.u32 %v853, 16
  %v855 = vadd.s32 %v854, %v852
  %v856 = vsel %vm360, %v834, 2147483648
  %v857 = vand.u32 %v856, 65535
  %v858 = vshra.s32 %v856, 16
  %v859 = vcvt.s32.f32 %v857
  %v860 = vcvt.s32.f32 %v858
  %861 = vmax.xlane.f32.xlu0 %v860
  %v862 = vpop.xlane.xlu0 %861
  %vm863 = vcmp.eq.f32.partialorder %v860, %v862
  %v864 = vsel %vm863, %v859, -inf
  %865 = vmax.xlane.f32.xlu0 %v864
  %v866 = vpop.xlane.xlu0 %865
  %v867 = vcvt.f32.s32 %v866
  %v868 = vcvt.f32.s32 %v862
  %v869 = vshll.u32 %v868, 16
  %v870 = vadd.s32 %v869, %v867
  %v871 = vsel %vm360, %v835, 2147483648
  %v872 = vand.u32 %v871, 65535
  %v873 = vshra.s32 %v871, 16
  %v874 = vcvt.s32.f32 %v872
  %v875 = vcvt.s32.f32 %v873
  %876 = vmax.xlane.f32.xlu0 %v875
  %v877 = vpop.xlane.xlu0 %876
  %vm878 = vcmp.eq.f32.partialorder %v875, %v877
  %v879 = vsel %vm878, %v874, -inf
  %880 = vmax.xlane.f32.xlu0 %v879
  %v881 = vpop.xlane.xlu0 %880
  %v882 = vcvt.f32.s32 %v881
  %v883 = vcvt.f32.s32 %v877
  %v884 = vshll.u32 %v883, 16
  %v885 = vadd.s32 %v884, %v882
  %v886 = vsel %vm360, %v836, 2147483648
  %v887 = vand.u32 %v886, 65535
  %v888 = vshra.s32 %v886, 16
  %v889 = vcvt.s32.f32 %v887
  %v890 = vcvt.s32.f32 %v888
  %891 = vmax.xlane.f32.xlu0 %v890
  %v892 = vpop.xlane.xlu0 %891
  %vm893 = vcmp.eq.f32.partialorder %v890, %v892
  %v894 = vsel %vm893, %v889, -inf
  %895 = vmax.xlane.f32.xlu0 %v894
  %v896 = vpop.xlane.xlu0 %895
  %v897 = vcvt.f32.s32 %v896
  %v898 = vcvt.f32.s32 %v892
  %v899 = vshll.u32 %v898, 16
  %v900 = vadd.s32 %v899, %v897
  %v901 = vsel %vm360, %v837, 2147483648
  %v902 = vand.u32 %v901, 65535
  %v903 = vshra.s32 %v901, 16
  %v904 = vcvt.s32.f32 %v902
  %v905 = vcvt.s32.f32 %v903
  %906 = vmax.xlane.f32.xlu0 %v905
  %v907 = vpop.xlane.xlu0 %906
  %vm908 = vcmp.eq.f32.partialorder %v905, %v907
  %v909 = vsel %vm908, %v904, -inf
  %910 = vmax.xlane.f32.xlu0 %v909
  %v911 = vpop.xlane.xlu0 %910
  %v912 = vcvt.f32.s32 %v911
  %v913 = vcvt.f32.s32 %v907
  %v914 = vshll.u32 %v913, 16
  %v915 = vadd.s32 %v914, %v912
  %v916 = vsel %vm360, %v838, 2147483648
  %v917 = vand.u32 %v916, 65535
  %v918 = vshra.s32 %v916, 16
  %v919 = vcvt.s32.f32 %v917
  %v920 = vcvt.s32.f32 %v918
  %921 = vmax.xlane.f32.xlu0 %v920
  %v922 = vpop.xlane.xlu0 %921
  %vm923 = vcmp.eq.f32.partialorder %v920, %v922
  %v924 = vsel %vm923, %v919, -inf
  %925 = vmax.xlane.f32.xlu0 %v924
  %v926 = vpop.xlane.xlu0 %925
  %v927 = vcvt.f32.s32 %v926
  %v928 = vcvt.f32.s32 %v922
  %v929 = vshll.u32 %v928, 16
  %v930 = vadd.s32 %v929, %v927
  %v931 = vsel %vm360, %v839, 2147483648
  %v932 = vand.u32 %v931, 65535
  %v933 = vshra.s32 %v931, 16
  %v934 = vcvt.s32.f32 %v932
  %v935 = vcvt.s32.f32 %v933
  %936 = vmax.xlane.f32.xlu0 %v935
  %v937 = vpop.xlane.xlu0 %936
  %vm938 = vcmp.eq.f32.partialorder %v935, %v937
  %v939 = vsel %vm938, %v934, -inf
  %940 = vmax.xlane.f32.xlu0 %v939
  %v941 = vpop.xlane.xlu0 %940
  %v942 = vcvt.f32.s32 %v941
  %v943 = vcvt.f32.s32 %v937
  %v944 = vshll.u32 %v943, 16
  %v945 = vadd.s32 %v944, %v942
  %v946 = vsel %vm360, %v840, 2147483648
  %v947 = vand.u32 %v946, 65535
  %v948 = vshra.s32 %v946, 16
  %v949 = vcvt.s32.f32 %v947
  %v950 = vcvt.s32.f32 %v948
  %951 = vmax.xlane.f32.xlu0 %v950
  %v952 = vpop.xlane.xlu0 %951
  %vm953 = vcmp.eq.f32.partialorder %v950, %v952
  %v954 = vsel %vm953, %v949, -inf
  %955 = vmax.xlane.f32.xlu0 %v954
  %v956 = vpop.xlane.xlu0 %955
  %v957 = vcvt.f32.s32 %v956
  %v958 = vcvt.f32.s32 %v952
  %v959 = vshll.u32 %v958, 16
  %v960 = vadd.s32 %v959, %v957
  %v961 = vsel %vm825, 1e+30, %v657
  %v962 = vsel %vm826, 1e+30, %v658
  %v963 = vsel %vm827, 1e+30, %v659
  %v964 = vsel %vm828, 1e+30, %v660
  %v965 = vsel %vm829, 1e+30, %v661
  %v966 = vsel %vm830, 1e+30, %v662
  %v967 = vsel %vm831, 1e+30, %v663
  %v968 = vsel %vm832, 1e+30, %v664
  %v969 = vsel %vm360, %v961, inf
  %970 = vmin.xlane.f32.xlu0 %v969
  %v971 = vpop.xlane.xlu0 %970
  %v972 = vsel %vm360, %v962, inf
  %973 = vmin.xlane.f32.xlu0 %v972
  %v974 = vpop.xlane.xlu0 %973
  %v975 = vsel %vm360, %v963, inf
  %976 = vmin.xlane.f32.xlu0 %v975
  %v977 = vpop.xlane.xlu0 %976
  %v978 = vsel %vm360, %v964, inf
  %979 = vmin.xlane.f32.xlu0 %v978
  %v980 = vpop.xlane.xlu0 %979
  %v981 = vsel %vm360, %v965, inf
  %982 = vmin.xlane.f32.xlu0 %v981
  %v983 = vpop.xlane.xlu0 %982
  %v984 = vsel %vm360, %v966, inf
  %985 = vmin.xlane.f32.xlu0 %v984
  %v986 = vpop.xlane.xlu0 %985
  %v987 = vsel %vm360, %v967, inf
  %988 = vmin.xlane.f32.xlu0 %v987
  %v989 = vpop.xlane.xlu0 %988
  %v990 = vsel %vm360, %v968, inf
  %991 = vmin.xlane.f32.xlu0 %v990
  %v992 = vpop.xlane.xlu0 %991
  %vm993 = vcmp.eq.f32.partialorder %v961, %v971
  %vm994 = vcmp.eq.f32.partialorder %v962, %v974
  %vm995 = vcmp.eq.f32.partialorder %v963, %v977
  %vm996 = vcmp.eq.f32.partialorder %v964, %v980
  %vm997 = vcmp.eq.f32.partialorder %v965, %v983
  %vm998 = vcmp.eq.f32.partialorder %v966, %v986
  %vm999 = vcmp.eq.f32.partialorder %v967, %v989
  %vm1000 = vcmp.eq.f32.partialorder %v968, %v992
  %v1001 = vsel %vm993, %v289, 1073741824
  %v1002 = vsel %vm994, %v289, 1073741824
  %v1003 = vsel %vm995, %v289, 1073741824
  %v1004 = vsel %vm996, %v289, 1073741824
  %v1005 = vsel %vm997, %v289, 1073741824
  %v1006 = vsel %vm998, %v289, 1073741824
  %v1007 = vsel %vm999, %v289, 1073741824
  %v1008 = vsel %vm1000, %v289, 1073741824
  %v1009 = vsel %vm360, %v1001, 2147483647
  %v1010 = vand.u32 %v1009, 65535
  %v1011 = vshra.s32 %v1009, 16
  %v1012 = vcvt.s32.f32 %v1010
  %v1013 = vcvt.s32.f32 %v1011
  %1014 = vmin.xlane.f32.xlu0 %v1013
  %v1015 = vpop.xlane.xlu0 %1014
  %vm1016 = vcmp.eq.f32.partialorder %v1013, %v1015
  %v1017 = vsel %vm1016, %v1012, inf
  %1018 = vmin.xlane.f32.xlu0 %v1017
  %v1019 = vpop.xlane.xlu0 %1018
  %v1020 = vcvt.f32.s32 %v1019
  %v1021 = vcvt.f32.s32 %v1015
  %v1022 = vshll.u32 %v1021, 16
  %v1023 = vadd.s32 %v1022, %v1020
  %v1024 = vsel %vm360, %v1002, 2147483647
  %v1025 = vand.u32 %v1024, 65535
  %v1026 = vshra.s32 %v1024, 16
  %v1027 = vcvt.s32.f32 %v1025
  %v1028 = vcvt.s32.f32 %v1026
  %1029 = vmin.xlane.f32.xlu0 %v1028
  %v1030 = vpop.xlane.xlu0 %1029
  %vm1031 = vcmp.eq.f32.partialorder %v1028, %v1030
  %v1032 = vsel %vm1031, %v1027, inf
  %1033 = vmin.xlane.f32.xlu0 %v1032
  %v1034 = vpop.xlane.xlu0 %1033
  %v1035 = vcvt.f32.s32 %v1034
  %v1036 = vcvt.f32.s32 %v1030
  %v1037 = vshll.u32 %v1036, 16
  %v1038 = vadd.s32 %v1037, %v1035
  %v1039 = vsel %vm360, %v1003, 2147483647
  %v1040 = vand.u32 %v1039, 65535
  %v1041 = vshra.s32 %v1039, 16
  %v1042 = vcvt.s32.f32 %v1040
  %v1043 = vcvt.s32.f32 %v1041
  %1044 = vmin.xlane.f32.xlu0 %v1043
  %v1045 = vpop.xlane.xlu0 %1044
  %vm1046 = vcmp.eq.f32.partialorder %v1043, %v1045
  %v1047 = vsel %vm1046, %v1042, inf
  %1048 = vmin.xlane.f32.xlu0 %v1047
  %v1049 = vpop.xlane.xlu0 %1048
  %v1050 = vcvt.f32.s32 %v1049
  %v1051 = vcvt.f32.s32 %v1045
  %v1052 = vshll.u32 %v1051, 16
  %v1053 = vadd.s32 %v1052, %v1050
  %v1054 = vsel %vm360, %v1004, 2147483647
  %v1055 = vand.u32 %v1054, 65535
  %v1056 = vshra.s32 %v1054, 16
  %v1057 = vcvt.s32.f32 %v1055
  %v1058 = vcvt.s32.f32 %v1056
  %1059 = vmin.xlane.f32.xlu0 %v1058
  %v1060 = vpop.xlane.xlu0 %1059
  %vm1061 = vcmp.eq.f32.partialorder %v1058, %v1060
  %v1062 = vsel %vm1061, %v1057, inf
  %1063 = vmin.xlane.f32.xlu0 %v1062
  %v1064 = vpop.xlane.xlu0 %1063
  %v1065 = vcvt.f32.s32 %v1064
  %v1066 = vcvt.f32.s32 %v1060
  %v1067 = vshll.u32 %v1066, 16
  %v1068 = vadd.s32 %v1067, %v1065
  %v1069 = vsel %vm360, %v1005, 2147483647
  %v1070 = vand.u32 %v1069, 65535
  %v1071 = vshra.s32 %v1069, 16
  %v1072 = vcvt.s32.f32 %v1070
  %v1073 = vcvt.s32.f32 %v1071
  %1074 = vmin.xlane.f32.xlu0 %v1073
  %v1075 = vpop.xlane.xlu0 %1074
  %vm1076 = vcmp.eq.f32.partialorder %v1073, %v1075
  %v1077 = vsel %vm1076, %v1072, inf
  %1078 = vmin.xlane.f32.xlu0 %v1077
  %v1079 = vpop.xlane.xlu0 %1078
  %v1080 = vcvt.f32.s32 %v1079
  %v1081 = vcvt.f32.s32 %v1075
  %v1082 = vshll.u32 %v1081, 16
  %v1083 = vadd.s32 %v1082, %v1080
  %v1084 = vsel %vm360, %v1006, 2147483647
  %v1085 = vand.u32 %v1084, 65535
  %v1086 = vshra.s32 %v1084, 16
  %v1087 = vcvt.s32.f32 %v1085
  %v1088 = vcvt.s32.f32 %v1086
  %1089 = vmin.xlane.f32.xlu0 %v1088
  %v1090 = vpop.xlane.xlu0 %1089
  %vm1091 = vcmp.eq.f32.partialorder %v1088, %v1090
  %v1092 = vsel %vm1091, %v1087, inf
  %1093 = vmin.xlane.f32.xlu0 %v1092
  %v1094 = vpop.xlane.xlu0 %1093
  %v1095 = vcvt.f32.s32 %v1094
  %v1096 = vcvt.f32.s32 %v1090
  %v1097 = vshll.u32 %v1096, 16
  %v1098 = vadd.s32 %v1097, %v1095
  %v1099 = vsel %vm360, %v1007, 2147483647
  %v1100 = vand.u32 %v1099, 65535
  %v1101 = vshra.s32 %v1099, 16
  %v1102 = vcvt.s32.f32 %v1100
  %v1103 = vcvt.s32.f32 %v1101
  %1104 = vmin.xlane.f32.xlu0 %v1103
  %v1105 = vpop.xlane.xlu0 %1104
  %vm1106 = vcmp.eq.f32.partialorder %v1103, %v1105
  %v1107 = vsel %vm1106, %v1102, inf
  %1108 = vmin.xlane.f32.xlu0 %v1107
  %v1109 = vpop.xlane.xlu0 %1108
  %v1110 = vcvt.f32.s32 %v1109
  %v1111 = vcvt.f32.s32 %v1105
  %v1112 = vshll.u32 %v1111, 16
  %v1113 = vadd.s32 %v1112, %v1110
  %v1114 = vsel %vm360, %v1008, 2147483647
  %v1115 = vand.u32 %v1114, 65535
  %v1116 = vshra.s32 %v1114, 16
  %v1117 = vcvt.s32.f32 %v1115
  %v1118 = vcvt.s32.f32 %v1116
  %1119 = vmin.xlane.f32.xlu0 %v1118
  %v1120 = vpop.xlane.xlu0 %1119
  %vm1121 = vcmp.eq.f32.partialorder %v1118, %v1120
  %v1122 = vsel %vm1121, %v1117, inf
  %1123 = vmin.xlane.f32.xlu0 %v1122
  %v1124 = vpop.xlane.xlu0 %1123
  %v1125 = vcvt.f32.s32 %v1124
  %v1126 = vcvt.f32.s32 %v1120
  %v1127 = vshll.u32 %v1126, 16
  %v1128 = vadd.s32 %v1127, %v1125
  %vm1129 = vcmp.eq.s32.totalorder %v289, %v1023
  %vm1130 = vcmp.eq.s32.totalorder %v289, %v1038
  %vm1131 = vcmp.eq.s32.totalorder %v289, %v1053
  %vm1132 = vcmp.eq.s32.totalorder %v289, %v1068
  %vm1133 = vcmp.eq.s32.totalorder %v289, %v1083
  %vm1134 = vcmp.eq.s32.totalorder %v289, %v1098
  %vm1135 = vcmp.eq.s32.totalorder %v289, %v1113
  %vm1136 = vcmp.eq.s32.totalorder %v289, %v1128
  %v1137 = vsel %vm1129, %v352, 0
  %v1138 = vsel %vm1130, %v353, 0
  %v1139 = vsel %vm1131, %v354, 0
  %v1140 = vsel %vm1132, %v355, 0
  %v1141 = vsel %vm1133, %v356, 0
  %v1142 = vsel %vm1134, %v357, 0
  %v1143 = vsel %vm1135, %v358, 0
  %v1144 = vsel %vm1136, %v359, 0
  %v1145 = vsel %vm360, %v1137, 2147483648
  %v1146 = vand.u32 %v1145, 65535
  %v1147 = vshra.s32 %v1145, 16
  %v1148 = vcvt.s32.f32 %v1146
  %v1149 = vcvt.s32.f32 %v1147
  %1150 = vmax.xlane.f32.xlu0 %v1149
  %v1151 = vpop.xlane.xlu0 %1150
  %vm1152 = vcmp.eq.f32.partialorder %v1149, %v1151
  %v1153 = vsel %vm1152, %v1148, -inf
  %1154 = vmax.xlane.f32.xlu0 %v1153
  %v1155 = vpop.xlane.xlu0 %1154
  %v1156 = vcvt.f32.s32 %v1155
  %v1157 = vcvt.f32.s32 %v1151
  %v1158 = vshll.u32 %v1157, 16
  %v1159 = vadd.s32 %v1158, %v1156
  %v1160 = vsel %vm360, %v1138, 2147483648
  %v1161 = vand.u32 %v1160, 65535
  %v1162 = vshra.s32 %v1160, 16
  %v1163 = vcvt.s32.f32 %v1161
  %v1164 = vcvt.s32.f32 %v1162
  %1165 = vmax.xlane.f32.xlu0 %v1164
  %v1166 = vpop.xlane.xlu0 %1165
  %vm1167 = vcmp.eq.f32.partialorder %v1164, %v1166
  %v1168 = vsel %vm1167, %v1163, -inf
  %1169 = vmax.xlane.f32.xlu0 %v1168
  %v1170 = vpop.xlane.xlu0 %1169
  %v1171 = vcvt.f32.s32 %v1170
  %v1172 = vcvt.f32.s32 %v1166
  %v1173 = vshll.u32 %v1172, 16
  %v1174 = vadd.s32 %v1173, %v1171
  %v1175 = vsel %vm360, %v1139, 2147483648
  %v1176 = vand.u32 %v1175, 65535
  %v1177 = vshra.s32 %v1175, 16
  %v1178 = vcvt.s32.f32 %v1176
  %v1179 = vcvt.s32.f32 %v1177
  %1180 = vmax.xlane.f32.xlu0 %v1179
  %v1181 = vpop.xlane.xlu0 %1180
  %vm1182 = vcmp.eq.f32.partialorder %v1179, %v1181
  %v1183 = vsel %vm1182, %v1178, -inf
  %1184 = vmax.xlane.f32.xlu0 %v1183
  %v1185 = vpop.xlane.xlu0 %1184
  %v1186 = vcvt.f32.s32 %v1185
  %v1187 = vcvt.f32.s32 %v1181
  %v1188 = vshll.u32 %v1187, 16
  %v1189 = vadd.s32 %v1188, %v1186
  %v1190 = vsel %vm360, %v1140, 2147483648
  %v1191 = vand.u32 %v1190, 65535
  %v1192 = vshra.s32 %v1190, 16
  %v1193 = vcvt.s32.f32 %v1191
  %v1194 = vcvt.s32.f32 %v1192
  %1195 = vmax.xlane.f32.xlu0 %v1194
  %v1196 = vpop.xlane.xlu0 %1195
  %vm1197 = vcmp.eq.f32.partialorder %v1194, %v1196
  %v1198 = vsel %vm1197, %v1193, -inf
  %1199 = vmax.xlane.f32.xlu0 %v1198
  %v1200 = vpop.xlane.xlu0 %1199
  %v1201 = vcvt.f32.s32 %v1200
  %v1202 = vcvt.f32.s32 %v1196
  %v1203 = vshll.u32 %v1202, 16
  %v1204 = vadd.s32 %v1203, %v1201
  %v1205 = vsel %vm360, %v1141, 2147483648
  %v1206 = vand.u32 %v1205, 65535
  %v1207 = vshra.s32 %v1205, 16
  %v1208 = vcvt.s32.f32 %v1206
  %v1209 = vcvt.s32.f32 %v1207
  %1210 = vmax.xlane.f32.xlu0 %v1209
  %v1211 = vpop.xlane.xlu0 %1210
  %vm1212 = vcmp.eq.f32.partialorder %v1209, %v1211
  %v1213 = vsel %vm1212, %v1208, -inf
  %1214 = vmax.xlane.f32.xlu0 %v1213
  %v1215 = vpop.xlane.xlu0 %1214
  %v1216 = vcvt.f32.s32 %v1215
  %v1217 = vcvt.f32.s32 %v1211
  %v1218 = vshll.u32 %v1217, 16
  %v1219 = vadd.s32 %v1218, %v1216
  %v1220 = vsel %vm360, %v1142, 2147483648
  %v1221 = vand.u32 %v1220, 65535
  %v1222 = vshra.s32 %v1220, 16
  %v1223 = vcvt.s32.f32 %v1221
  %v1224 = vcvt.s32.f32 %v1222
  %1225 = vmax.xlane.f32.xlu0 %v1224
  %v1226 = vpop.xlane.xlu0 %1225
  %vm1227 = vcmp.eq.f32.partialorder %v1224, %v1226
  %v1228 = vsel %vm1227, %v1223, -inf
  %1229 = vmax.xlane.f32.xlu0 %v1228
  %v1230 = vpop.xlane.xlu0 %1229
  %v1231 = vcvt.f32.s32 %v1230
  %v1232 = vcvt.f32.s32 %v1226
  %v1233 = vshll.u32 %v1232, 16
  %v1234 = vadd.s32 %v1233, %v1231
  %v1235 = vsel %vm360, %v1143, 2147483648
  %v1236 = vand.u32 %v1235, 65535
  %v1237 = vshra.s32 %v1235, 16
  %v1238 = vcvt.s32.f32 %v1236
  %v1239 = vcvt.s32.f32 %v1237
  %1240 = vmax.xlane.f32.xlu0 %v1239
  %v1241 = vpop.xlane.xlu0 %1240
  %vm1242 = vcmp.eq.f32.partialorder %v1239, %v1241
  %v1243 = vsel %vm1242, %v1238, -inf
  %1244 = vmax.xlane.f32.xlu0 %v1243
  %v1245 = vpop.xlane.xlu0 %1244
  %v1246 = vcvt.f32.s32 %v1245
  %v1247 = vcvt.f32.s32 %v1241
  %v1248 = vshll.u32 %v1247, 16
  %v1249 = vadd.s32 %v1248, %v1246
  %v1250 = vsel %vm360, %v1144, 2147483648
  %v1251 = vand.u32 %v1250, 65535
  %v1252 = vshra.s32 %v1250, 16
  %v1253 = vcvt.s32.f32 %v1251
  %v1254 = vcvt.s32.f32 %v1252
  %1255 = vmax.xlane.f32.xlu0 %v1254
  %v1256 = vpop.xlane.xlu0 %1255
  %vm1257 = vcmp.eq.f32.partialorder %v1254, %v1256
  %v1258 = vsel %vm1257, %v1253, -inf
  %1259 = vmax.xlane.f32.xlu0 %v1258
  %v1260 = vpop.xlane.xlu0 %1259
  %v1261 = vcvt.f32.s32 %v1260
  %v1262 = vcvt.f32.s32 %v1256
  %v1263 = vshll.u32 %v1262, 16
  %v1264 = vadd.s32 %v1263, %v1261
  %v1265 = vsel %vm1129, 1e+30, %v961
  %v1266 = vsel %vm1130, 1e+30, %v962
  %v1267 = vsel %vm1131, 1e+30, %v963
  %v1268 = vsel %vm1132, 1e+30, %v964
  %v1269 = vsel %vm1133, 1e+30, %v965
  %v1270 = vsel %vm1134, 1e+30, %v966
  %v1271 = vsel %vm1135, 1e+30, %v967
  %v1272 = vsel %vm1136, 1e+30, %v968
  %v1273 = vsel %vm360, %v1265, inf
  %1274 = vmin.xlane.f32.xlu0 %v1273
  %v1275 = vpop.xlane.xlu0 %1274
  %v1276 = vsel %vm360, %v1266, inf
  %1277 = vmin.xlane.f32.xlu0 %v1276
  %v1278 = vpop.xlane.xlu0 %1277
  %v1279 = vsel %vm360, %v1267, inf
  %1280 = vmin.xlane.f32.xlu0 %v1279
  %v1281 = vpop.xlane.xlu0 %1280
  %v1282 = vsel %vm360, %v1268, inf
  %1283 = vmin.xlane.f32.xlu0 %v1282
  %v1284 = vpop.xlane.xlu0 %1283
  %v1285 = vsel %vm360, %v1269, inf
  %1286 = vmin.xlane.f32.xlu0 %v1285
  %v1287 = vpop.xlane.xlu0 %1286
  %v1288 = vsel %vm360, %v1270, inf
  %1289 = vmin.xlane.f32.xlu0 %v1288
  %v1290 = vpop.xlane.xlu0 %1289
  %v1291 = vsel %vm360, %v1271, inf
  %1292 = vmin.xlane.f32.xlu0 %v1291
  %v1293 = vpop.xlane.xlu0 %1292
  %v1294 = vsel %vm360, %v1272, inf
  %1295 = vmin.xlane.f32.xlu0 %v1294
  %v1296 = vpop.xlane.xlu0 %1295
  %vm1297 = vcmp.eq.f32.partialorder %v1265, %v1275
  %vm1298 = vcmp.eq.f32.partialorder %v1266, %v1278
  %vm1299 = vcmp.eq.f32.partialorder %v1267, %v1281
  %vm1300 = vcmp.eq.f32.partialorder %v1268, %v1284
  %vm1301 = vcmp.eq.f32.partialorder %v1269, %v1287
  %vm1302 = vcmp.eq.f32.partialorder %v1270, %v1290
  %vm1303 = vcmp.eq.f32.partialorder %v1271, %v1293
  %vm1304 = vcmp.eq.f32.partialorder %v1272, %v1296
  %v1305 = vsel %vm1297, %v289, 1073741824
  %v1306 = vsel %vm1298, %v289, 1073741824
  %v1307 = vsel %vm1299, %v289, 1073741824
  %v1308 = vsel %vm1300, %v289, 1073741824
  %v1309 = vsel %vm1301, %v289, 1073741824
  %v1310 = vsel %vm1302, %v289, 1073741824
  %v1311 = vsel %vm1303, %v289, 1073741824
  %v1312 = vsel %vm1304, %v289, 1073741824
  %v1313 = vsel %vm360, %v1305, 2147483647
  %v1314 = vand.u32 %v1313, 65535
  %v1315 = vshra.s32 %v1313, 16
  %v1316 = vcvt.s32.f32 %v1314
  %v1317 = vcvt.s32.f32 %v1315
  %1318 = vmin.xlane.f32.xlu0 %v1317
  %v1319 = vpop.xlane.xlu0 %1318
  %vm1320 = vcmp.eq.f32.partialorder %v1317, %v1319
  %v1321 = vsel %vm1320, %v1316, inf
  %1322 = vmin.xlane.f32.xlu0 %v1321
  %v1323 = vpop.xlane.xlu0 %1322
  %v1324 = vcvt.f32.s32 %v1323
  %v1325 = vcvt.f32.s32 %v1319
  %v1326 = vshll.u32 %v1325, 16
  %v1327 = vadd.s32 %v1326, %v1324
  %v1328 = vsel %vm360, %v1306, 2147483647
  %v1329 = vand.u32 %v1328, 65535
  %v1330 = vshra.s32 %v1328, 16
  %v1331 = vcvt.s32.f32 %v1329
  %v1332 = vcvt.s32.f32 %v1330
  %1333 = vmin.xlane.f32.xlu0 %v1332
  %v1334 = vpop.xlane.xlu0 %1333
  %vm1335 = vcmp.eq.f32.partialorder %v1332, %v1334
  %v1336 = vsel %vm1335, %v1331, inf
  %1337 = vmin.xlane.f32.xlu0 %v1336
  %v1338 = vpop.xlane.xlu0 %1337
  %v1339 = vcvt.f32.s32 %v1338
  %v1340 = vcvt.f32.s32 %v1334
  %v1341 = vshll.u32 %v1340, 16
  %v1342 = vadd.s32 %v1341, %v1339
  %v1343 = vsel %vm360, %v1307, 2147483647
  %v1344 = vand.u32 %v1343, 65535
  %v1345 = vshra.s32 %v1343, 16
  %v1346 = vcvt.s32.f32 %v1344
  %v1347 = vcvt.s32.f32 %v1345
  %1348 = vmin.xlane.f32.xlu0 %v1347
  %v1349 = vpop.xlane.xlu0 %1348
  %vm1350 = vcmp.eq.f32.partialorder %v1347, %v1349
  %v1351 = vsel %vm1350, %v1346, inf
  %1352 = vmin.xlane.f32.xlu0 %v1351
  %v1353 = vpop.xlane.xlu0 %1352
  %v1354 = vcvt.f32.s32 %v1353
  %v1355 = vcvt.f32.s32 %v1349
  %v1356 = vshll.u32 %v1355, 16
  %v1357 = vadd.s32 %v1356, %v1354
  %v1358 = vsel %vm360, %v1308, 2147483647
  %v1359 = vand.u32 %v1358, 65535
  %v1360 = vshra.s32 %v1358, 16
  %v1361 = vcvt.s32.f32 %v1359
  %v1362 = vcvt.s32.f32 %v1360
  %1363 = vmin.xlane.f32.xlu0 %v1362
  %v1364 = vpop.xlane.xlu0 %1363
  %vm1365 = vcmp.eq.f32.partialorder %v1362, %v1364
  %v1366 = vsel %vm1365, %v1361, inf
  %1367 = vmin.xlane.f32.xlu0 %v1366
  %v1368 = vpop.xlane.xlu0 %1367
  %v1369 = vcvt.f32.s32 %v1368
  %v1370 = vcvt.f32.s32 %v1364
  %v1371 = vshll.u32 %v1370, 16
  %v1372 = vadd.s32 %v1371, %v1369
  %v1373 = vsel %vm360, %v1309, 2147483647
  %v1374 = vand.u32 %v1373, 65535
  %v1375 = vshra.s32 %v1373, 16
  %v1376 = vcvt.s32.f32 %v1374
  %v1377 = vcvt.s32.f32 %v1375
  %1378 = vmin.xlane.f32.xlu0 %v1377
  %v1379 = vpop.xlane.xlu0 %1378
  %vm1380 = vcmp.eq.f32.partialorder %v1377, %v1379
  %v1381 = vsel %vm1380, %v1376, inf
  %1382 = vmin.xlane.f32.xlu0 %v1381
  %v1383 = vpop.xlane.xlu0 %1382
  %v1384 = vcvt.f32.s32 %v1383
  %v1385 = vcvt.f32.s32 %v1379
  %v1386 = vshll.u32 %v1385, 16
  %v1387 = vadd.s32 %v1386, %v1384
  %v1388 = vsel %vm360, %v1310, 2147483647
  %v1389 = vand.u32 %v1388, 65535
  %v1390 = vshra.s32 %v1388, 16
  %v1391 = vcvt.s32.f32 %v1389
  %v1392 = vcvt.s32.f32 %v1390
  %1393 = vmin.xlane.f32.xlu0 %v1392
  %v1394 = vpop.xlane.xlu0 %1393
  %vm1395 = vcmp.eq.f32.partialorder %v1392, %v1394
  %v1396 = vsel %vm1395, %v1391, inf
  %1397 = vmin.xlane.f32.xlu0 %v1396
  %v1398 = vpop.xlane.xlu0 %1397
  %v1399 = vcvt.f32.s32 %v1398
  %v1400 = vcvt.f32.s32 %v1394
  %v1401 = vshll.u32 %v1400, 16
  %v1402 = vadd.s32 %v1401, %v1399
  %v1403 = vsel %vm360, %v1311, 2147483647
  %v1404 = vand.u32 %v1403, 65535
  %v1405 = vshra.s32 %v1403, 16
  %v1406 = vcvt.s32.f32 %v1404
  %v1407 = vcvt.s32.f32 %v1405
  %1408 = vmin.xlane.f32.xlu0 %v1407
  %v1409 = vpop.xlane.xlu0 %1408
  %vm1410 = vcmp.eq.f32.partialorder %v1407, %v1409
  %v1411 = vsel %vm1410, %v1406, inf
  %1412 = vmin.xlane.f32.xlu0 %v1411
  %v1413 = vpop.xlane.xlu0 %1412
  %v1414 = vcvt.f32.s32 %v1413
  %v1415 = vcvt.f32.s32 %v1409
  %v1416 = vshll.u32 %v1415, 16
  %v1417 = vadd.s32 %v1416, %v1414
  %v1418 = vsel %vm360, %v1312, 2147483647
  %v1419 = vand.u32 %v1418, 65535
  %v1420 = vshra.s32 %v1418, 16
  %v1421 = vcvt.s32.f32 %v1419
  %v1422 = vcvt.s32.f32 %v1420
  %1423 = vmin.xlane.f32.xlu0 %v1422
  %v1424 = vpop.xlane.xlu0 %1423
  %vm1425 = vcmp.eq.f32.partialorder %v1422, %v1424
  %v1426 = vsel %vm1425, %v1421, inf
  %1427 = vmin.xlane.f32.xlu0 %v1426
  %v1428 = vpop.xlane.xlu0 %1427
  %v1429 = vcvt.f32.s32 %v1428
  %v1430 = vcvt.f32.s32 %v1424
  %v1431 = vshll.u32 %v1430, 16
  %v1432 = vadd.s32 %v1431, %v1429
  %vm1433 = vcmp.eq.s32.totalorder %v289, %v1327
  %vm1434 = vcmp.eq.s32.totalorder %v289, %v1342
  %vm1435 = vcmp.eq.s32.totalorder %v289, %v1357
  %vm1436 = vcmp.eq.s32.totalorder %v289, %v1372
  %vm1437 = vcmp.eq.s32.totalorder %v289, %v1387
  %vm1438 = vcmp.eq.s32.totalorder %v289, %v1402
  %vm1439 = vcmp.eq.s32.totalorder %v289, %v1417
  %vm1440 = vcmp.eq.s32.totalorder %v289, %v1432
  %v1441 = vsel %vm1433, %v352, 0
  %v1442 = vsel %vm1434, %v353, 0
  %v1443 = vsel %vm1435, %v354, 0
  %v1444 = vsel %vm1436, %v355, 0
  %v1445 = vsel %vm1437, %v356, 0
  %v1446 = vsel %vm1438, %v357, 0
  %v1447 = vsel %vm1439, %v358, 0
  %v1448 = vsel %vm1440, %v359, 0
  %v1449 = vsel %vm360, %v1441, 2147483648
  %v1450 = vand.u32 %v1449, 65535
  %v1451 = vshra.s32 %v1449, 16
  %v1452 = vcvt.s32.f32 %v1450
  %v1453 = vcvt.s32.f32 %v1451
  %1454 = vmax.xlane.f32.xlu0 %v1453
  %v1455 = vpop.xlane.xlu0 %1454
  %vm1456 = vcmp.eq.f32.partialorder %v1453, %v1455
  %v1457 = vsel %vm1456, %v1452, -inf
  %1458 = vmax.xlane.f32.xlu0 %v1457
  %v1459 = vpop.xlane.xlu0 %1458
  %v1460 = vcvt.f32.s32 %v1459
  %v1461 = vcvt.f32.s32 %v1455
  %v1462 = vshll.u32 %v1461, 16
  %v1463 = vadd.s32 %v1462, %v1460
  %v1464 = vsel %vm360, %v1442, 2147483648
  %v1465 = vand.u32 %v1464, 65535
  %v1466 = vshra.s32 %v1464, 16
  %v1467 = vcvt.s32.f32 %v1465
  %v1468 = vcvt.s32.f32 %v1466
  %1469 = vmax.xlane.f32.xlu0 %v1468
  %v1470 = vpop.xlane.xlu0 %1469
  %vm1471 = vcmp.eq.f32.partialorder %v1468, %v1470
  %v1472 = vsel %vm1471, %v1467, -inf
  %1473 = vmax.xlane.f32.xlu0 %v1472
  %v1474 = vpop.xlane.xlu0 %1473
  %v1475 = vcvt.f32.s32 %v1474
  %v1476 = vcvt.f32.s32 %v1470
  %v1477 = vshll.u32 %v1476, 16
  %v1478 = vadd.s32 %v1477, %v1475
  %v1479 = vsel %vm360, %v1443, 2147483648
  %v1480 = vand.u32 %v1479, 65535
  %v1481 = vshra.s32 %v1479, 16
  %v1482 = vcvt.s32.f32 %v1480
  %v1483 = vcvt.s32.f32 %v1481
  %1484 = vmax.xlane.f32.xlu0 %v1483
  %v1485 = vpop.xlane.xlu0 %1484
  %vm1486 = vcmp.eq.f32.partialorder %v1483, %v1485
  %v1487 = vsel %vm1486, %v1482, -inf
  %1488 = vmax.xlane.f32.xlu0 %v1487
  %v1489 = vpop.xlane.xlu0 %1488
  %v1490 = vcvt.f32.s32 %v1489
  %v1491 = vcvt.f32.s32 %v1485
  %v1492 = vshll.u32 %v1491, 16
  %v1493 = vadd.s32 %v1492, %v1490
  %v1494 = vsel %vm360, %v1444, 2147483648
  %v1495 = vand.u32 %v1494, 65535
  %v1496 = vshra.s32 %v1494, 16
  %v1497 = vcvt.s32.f32 %v1495
  %v1498 = vcvt.s32.f32 %v1496
  %1499 = vmax.xlane.f32.xlu0 %v1498
  %v1500 = vpop.xlane.xlu0 %1499
  %vm1501 = vcmp.eq.f32.partialorder %v1498, %v1500
  %v1502 = vsel %vm1501, %v1497, -inf
  %1503 = vmax.xlane.f32.xlu0 %v1502
  %v1504 = vpop.xlane.xlu0 %1503
  %v1505 = vcvt.f32.s32 %v1504
  %v1506 = vcvt.f32.s32 %v1500
  %v1507 = vshll.u32 %v1506, 16
  %v1508 = vadd.s32 %v1507, %v1505
  %v1509 = vsel %vm360, %v1445, 2147483648
  %v1510 = vand.u32 %v1509, 65535
  %v1511 = vshra.s32 %v1509, 16
  %v1512 = vcvt.s32.f32 %v1510
  %v1513 = vcvt.s32.f32 %v1511
  %1514 = vmax.xlane.f32.xlu0 %v1513
  %v1515 = vpop.xlane.xlu0 %1514
  %vm1516 = vcmp.eq.f32.partialorder %v1513, %v1515
  %v1517 = vsel %vm1516, %v1512, -inf
  %1518 = vmax.xlane.f32.xlu0 %v1517
  %v1519 = vpop.xlane.xlu0 %1518
  %v1520 = vcvt.f32.s32 %v1519
  %v1521 = vcvt.f32.s32 %v1515
  %v1522 = vshll.u32 %v1521, 16
  %v1523 = vadd.s32 %v1522, %v1520
  %v1524 = vsel %vm360, %v1446, 2147483648
  %v1525 = vand.u32 %v1524, 65535
  %v1526 = vshra.s32 %v1524, 16
  %v1527 = vcvt.s32.f32 %v1525
  %v1528 = vcvt.s32.f32 %v1526
  %1529 = vmax.xlane.f32.xlu0 %v1528
  %v1530 = vpop.xlane.xlu0 %1529
  %vm1531 = vcmp.eq.f32.partialorder %v1528, %v1530
  %v1532 = vsel %vm1531, %v1527, -inf
  %1533 = vmax.xlane.f32.xlu0 %v1532
  %v1534 = vpop.xlane.xlu0 %1533
  %v1535 = vcvt.f32.s32 %v1534
  %v1536 = vcvt.f32.s32 %v1530
  %v1537 = vshll.u32 %v1536, 16
  %v1538 = vadd.s32 %v1537, %v1535
  %v1539 = vsel %vm360, %v1447, 2147483648
  %v1540 = vand.u32 %v1539, 65535
  %v1541 = vshra.s32 %v1539, 16
  %v1542 = vcvt.s32.f32 %v1540
  %v1543 = vcvt.s32.f32 %v1541
  %1544 = vmax.xlane.f32.xlu0 %v1543
  %v1545 = vpop.xlane.xlu0 %1544
  %vm1546 = vcmp.eq.f32.partialorder %v1543, %v1545
  %v1547 = vsel %vm1546, %v1542, -inf
  %1548 = vmax.xlane.f32.xlu0 %v1547
  %v1549 = vpop.xlane.xlu0 %1548
  %v1550 = vcvt.f32.s32 %v1549
  %v1551 = vcvt.f32.s32 %v1545
  %v1552 = vshll.u32 %v1551, 16
  %v1553 = vadd.s32 %v1552, %v1550
  %v1554 = vsel %vm360, %v1448, 2147483648
  %v1555 = vand.u32 %v1554, 65535
  %v1556 = vshra.s32 %v1554, 16
  %v1557 = vcvt.s32.f32 %v1555
  %v1558 = vcvt.s32.f32 %v1556
  %1559 = vmax.xlane.f32.xlu0 %v1558
  %v1560 = vpop.xlane.xlu0 %1559
  %vm1561 = vcmp.eq.f32.partialorder %v1558, %v1560
  %v1562 = vsel %vm1561, %v1557, -inf
  %1563 = vmax.xlane.f32.xlu0 %v1562
  %v1564 = vpop.xlane.xlu0 %1563
  %v1565 = vcvt.f32.s32 %v1564
  %v1566 = vcvt.f32.s32 %v1560
  %v1567 = vshll.u32 %v1566, 16
  %v1568 = vadd.s32 %v1567, %v1565
  %v1569 = vsel %vm1433, 1e+30, %v1265
  %v1570 = vsel %vm1434, 1e+30, %v1266
  %v1571 = vsel %vm1435, 1e+30, %v1267
  %v1572 = vsel %vm1436, 1e+30, %v1268
  %v1573 = vsel %vm1437, 1e+30, %v1269
  %v1574 = vsel %vm1438, 1e+30, %v1270
  %v1575 = vsel %vm1439, 1e+30, %v1271
  %v1576 = vsel %vm1440, 1e+30, %v1272
  %v1577 = vsel %vm360, %v1569, inf
  %1578 = vmin.xlane.f32.xlu0 %v1577
  %v1579 = vpop.xlane.xlu0 %1578
  %v1580 = vsel %vm360, %v1570, inf
  %1581 = vmin.xlane.f32.xlu0 %v1580
  %v1582 = vpop.xlane.xlu0 %1581
  %v1583 = vsel %vm360, %v1571, inf
  %1584 = vmin.xlane.f32.xlu0 %v1583
  %v1585 = vpop.xlane.xlu0 %1584
  %v1586 = vsel %vm360, %v1572, inf
  %1587 = vmin.xlane.f32.xlu0 %v1586
  %v1588 = vpop.xlane.xlu0 %1587
  %v1589 = vsel %vm360, %v1573, inf
  %1590 = vmin.xlane.f32.xlu0 %v1589
  %v1591 = vpop.xlane.xlu0 %1590
  %v1592 = vsel %vm360, %v1574, inf
  %1593 = vmin.xlane.f32.xlu0 %v1592
  %v1594 = vpop.xlane.xlu0 %1593
  %v1595 = vsel %vm360, %v1575, inf
  %1596 = vmin.xlane.f32.xlu0 %v1595
  %v1597 = vpop.xlane.xlu0 %1596
  %v1598 = vsel %vm360, %v1576, inf
  %1599 = vmin.xlane.f32.xlu0 %v1598
  %v1600 = vpop.xlane.xlu0 %1599
  %vm1601 = vcmp.eq.f32.partialorder %v1569, %v1579
  %vm1602 = vcmp.eq.f32.partialorder %v1570, %v1582
  %vm1603 = vcmp.eq.f32.partialorder %v1571, %v1585
  %vm1604 = vcmp.eq.f32.partialorder %v1572, %v1588
  %vm1605 = vcmp.eq.f32.partialorder %v1573, %v1591
  %vm1606 = vcmp.eq.f32.partialorder %v1574, %v1594
  %vm1607 = vcmp.eq.f32.partialorder %v1575, %v1597
  %vm1608 = vcmp.eq.f32.partialorder %v1576, %v1600
  %v1609 = vsel %vm1601, %v289, 1073741824
  %v1610 = vsel %vm1602, %v289, 1073741824
  %v1611 = vsel %vm1603, %v289, 1073741824
  %v1612 = vsel %vm1604, %v289, 1073741824
  %v1613 = vsel %vm1605, %v289, 1073741824
  %v1614 = vsel %vm1606, %v289, 1073741824
  %v1615 = vsel %vm1607, %v289, 1073741824
  %v1616 = vsel %vm1608, %v289, 1073741824
  %v1617 = vsel %vm360, %v1609, 2147483647
  %v1618 = vand.u32 %v1617, 65535
  %v1619 = vshra.s32 %v1617, 16
  %v1620 = vcvt.s32.f32 %v1618
  %v1621 = vcvt.s32.f32 %v1619
  %1622 = vmin.xlane.f32.xlu0 %v1621
  %v1623 = vpop.xlane.xlu0 %1622
  %vm1624 = vcmp.eq.f32.partialorder %v1621, %v1623
  %v1625 = vsel %vm1624, %v1620, inf
  %1626 = vmin.xlane.f32.xlu0 %v1625
  %v1627 = vpop.xlane.xlu0 %1626
  %v1628 = vcvt.f32.s32 %v1627
  %v1629 = vcvt.f32.s32 %v1623
  %v1630 = vshll.u32 %v1629, 16
  %v1631 = vadd.s32 %v1630, %v1628
  %v1632 = vsel %vm360, %v1610, 2147483647
  %v1633 = vand.u32 %v1632, 65535
  %v1634 = vshra.s32 %v1632, 16
  %v1635 = vcvt.s32.f32 %v1633
  %v1636 = vcvt.s32.f32 %v1634
  %1637 = vmin.xlane.f32.xlu0 %v1636
  %v1638 = vpop.xlane.xlu0 %1637
  %vm1639 = vcmp.eq.f32.partialorder %v1636, %v1638
  %v1640 = vsel %vm1639, %v1635, inf
  %1641 = vmin.xlane.f32.xlu0 %v1640
  %v1642 = vpop.xlane.xlu0 %1641
  %v1643 = vcvt.f32.s32 %v1642
  %v1644 = vcvt.f32.s32 %v1638
  %v1645 = vshll.u32 %v1644, 16
  %v1646 = vadd.s32 %v1645, %v1643
  %v1647 = vsel %vm360, %v1611, 2147483647
  %v1648 = vand.u32 %v1647, 65535
  %v1649 = vshra.s32 %v1647, 16
  %v1650 = vcvt.s32.f32 %v1648
  %v1651 = vcvt.s32.f32 %v1649
  %1652 = vmin.xlane.f32.xlu0 %v1651
  %v1653 = vpop.xlane.xlu0 %1652
  %vm1654 = vcmp.eq.f32.partialorder %v1651, %v1653
  %v1655 = vsel %vm1654, %v1650, inf
  %1656 = vmin.xlane.f32.xlu0 %v1655
  %v1657 = vpop.xlane.xlu0 %1656
  %v1658 = vcvt.f32.s32 %v1657
  %v1659 = vcvt.f32.s32 %v1653
  %v1660 = vshll.u32 %v1659, 16
  %v1661 = vadd.s32 %v1660, %v1658
  %v1662 = vsel %vm360, %v1612, 2147483647
  %v1663 = vand.u32 %v1662, 65535
  %v1664 = vshra.s32 %v1662, 16
  %v1665 = vcvt.s32.f32 %v1663
  %v1666 = vcvt.s32.f32 %v1664
  %1667 = vmin.xlane.f32.xlu0 %v1666
  %v1668 = vpop.xlane.xlu0 %1667
  %vm1669 = vcmp.eq.f32.partialorder %v1666, %v1668
  %v1670 = vsel %vm1669, %v1665, inf
  %1671 = vmin.xlane.f32.xlu0 %v1670
  %v1672 = vpop.xlane.xlu0 %1671
  %v1673 = vcvt.f32.s32 %v1672
  %v1674 = vcvt.f32.s32 %v1668
  %v1675 = vshll.u32 %v1674, 16
  %v1676 = vadd.s32 %v1675, %v1673
  %v1677 = vsel %vm360, %v1613, 2147483647
  %v1678 = vand.u32 %v1677, 65535
  %v1679 = vshra.s32 %v1677, 16
  %v1680 = vcvt.s32.f32 %v1678
  %v1681 = vcvt.s32.f32 %v1679
  %1682 = vmin.xlane.f32.xlu0 %v1681
  %v1683 = vpop.xlane.xlu0 %1682
  %vm1684 = vcmp.eq.f32.partialorder %v1681, %v1683
  %v1685 = vsel %vm1684, %v1680, inf
  %1686 = vmin.xlane.f32.xlu0 %v1685
  %v1687 = vpop.xlane.xlu0 %1686
  %v1688 = vcvt.f32.s32 %v1687
  %v1689 = vcvt.f32.s32 %v1683
  %v1690 = vshll.u32 %v1689, 16
  %v1691 = vadd.s32 %v1690, %v1688
  %v1692 = vsel %vm360, %v1614, 2147483647
  %v1693 = vand.u32 %v1692, 65535
  %v1694 = vshra.s32 %v1692, 16
  %v1695 = vcvt.s32.f32 %v1693
  %v1696 = vcvt.s32.f32 %v1694
  %1697 = vmin.xlane.f32.xlu0 %v1696
  %v1698 = vpop.xlane.xlu0 %1697
  %vm1699 = vcmp.eq.f32.partialorder %v1696, %v1698
  %v1700 = vsel %vm1699, %v1695, inf
  %1701 = vmin.xlane.f32.xlu0 %v1700
  %v1702 = vpop.xlane.xlu0 %1701
  %v1703 = vcvt.f32.s32 %v1702
  %v1704 = vcvt.f32.s32 %v1698
  %v1705 = vshll.u32 %v1704, 16
  %v1706 = vadd.s32 %v1705, %v1703
  %v1707 = vsel %vm360, %v1615, 2147483647
  %v1708 = vand.u32 %v1707, 65535
  %v1709 = vshra.s32 %v1707, 16
  %v1710 = vcvt.s32.f32 %v1708
  %v1711 = vcvt.s32.f32 %v1709
  %1712 = vmin.xlane.f32.xlu0 %v1711
  %v1713 = vpop.xlane.xlu0 %1712
  %vm1714 = vcmp.eq.f32.partialorder %v1711, %v1713
  %v1715 = vsel %vm1714, %v1710, inf
  %1716 = vmin.xlane.f32.xlu0 %v1715
  %v1717 = vpop.xlane.xlu0 %1716
  %v1718 = vcvt.f32.s32 %v1717
  %v1719 = vcvt.f32.s32 %v1713
  %v1720 = vshll.u32 %v1719, 16
  %v1721 = vadd.s32 %v1720, %v1718
  %v1722 = vsel %vm360, %v1616, 2147483647
  %v1723 = vand.u32 %v1722, 65535
  %v1724 = vshra.s32 %v1722, 16
  %v1725 = vcvt.s32.f32 %v1723
  %v1726 = vcvt.s32.f32 %v1724
  %1727 = vmin.xlane.f32.xlu0 %v1726
  %v1728 = vpop.xlane.xlu0 %1727
  %vm1729 = vcmp.eq.f32.partialorder %v1726, %v1728
  %v1730 = vsel %vm1729, %v1725, inf
  %1731 = vmin.xlane.f32.xlu0 %v1730
  %v1732 = vpop.xlane.xlu0 %1731
  %v1733 = vcvt.f32.s32 %v1732
  %v1734 = vcvt.f32.s32 %v1728
  %v1735 = vshll.u32 %v1734, 16
  %v1736 = vadd.s32 %v1735, %v1733
  %vm1737 = vcmp.eq.s32.totalorder %v289, %v1631
  %vm1738 = vcmp.eq.s32.totalorder %v289, %v1646
  %vm1739 = vcmp.eq.s32.totalorder %v289, %v1661
  %vm1740 = vcmp.eq.s32.totalorder %v289, %v1676
  %vm1741 = vcmp.eq.s32.totalorder %v289, %v1691
  %vm1742 = vcmp.eq.s32.totalorder %v289, %v1706
  %vm1743 = vcmp.eq.s32.totalorder %v289, %v1721
  %vm1744 = vcmp.eq.s32.totalorder %v289, %v1736
  %v1745 = vsel %vm1737, %v352, 0
  %v1746 = vsel %vm1738, %v353, 0
  %v1747 = vsel %vm1739, %v354, 0
  %v1748 = vsel %vm1740, %v355, 0
  %v1749 = vsel %vm1741, %v356, 0
  %v1750 = vsel %vm1742, %v357, 0
  %v1751 = vsel %vm1743, %v358, 0
  %v1752 = vsel %vm1744, %v359, 0
  %v1753 = vsel %vm360, %v1745, 2147483648
  %v1754 = vand.u32 %v1753, 65535
  %v1755 = vshra.s32 %v1753, 16
  %v1756 = vcvt.s32.f32 %v1754
  %v1757 = vcvt.s32.f32 %v1755
  %1758 = vmax.xlane.f32.xlu0 %v1757
  %v1759 = vpop.xlane.xlu0 %1758
  %vm1760 = vcmp.eq.f32.partialorder %v1757, %v1759
  %v1761 = vsel %vm1760, %v1756, -inf
  %1762 = vmax.xlane.f32.xlu0 %v1761
  %v1763 = vpop.xlane.xlu0 %1762
  %v1764 = vcvt.f32.s32 %v1763
  %v1765 = vcvt.f32.s32 %v1759
  %v1766 = vshll.u32 %v1765, 16
  %v1767 = vadd.s32 %v1766, %v1764
  %v1768 = vsel %vm360, %v1746, 2147483648
  %v1769 = vand.u32 %v1768, 65535
  %v1770 = vshra.s32 %v1768, 16
  %v1771 = vcvt.s32.f32 %v1769
  %v1772 = vcvt.s32.f32 %v1770
  %1773 = vmax.xlane.f32.xlu0 %v1772
  %v1774 = vpop.xlane.xlu0 %1773
  %vm1775 = vcmp.eq.f32.partialorder %v1772, %v1774
  %v1776 = vsel %vm1775, %v1771, -inf
  %1777 = vmax.xlane.f32.xlu0 %v1776
  %v1778 = vpop.xlane.xlu0 %1777
  %v1779 = vcvt.f32.s32 %v1778
  %v1780 = vcvt.f32.s32 %v1774
  %v1781 = vshll.u32 %v1780, 16
  %v1782 = vadd.s32 %v1781, %v1779
  %v1783 = vsel %vm360, %v1747, 2147483648
  %v1784 = vand.u32 %v1783, 65535
  %v1785 = vshra.s32 %v1783, 16
  %v1786 = vcvt.s32.f32 %v1784
  %v1787 = vcvt.s32.f32 %v1785
  %1788 = vmax.xlane.f32.xlu0 %v1787
  %v1789 = vpop.xlane.xlu0 %1788
  %vm1790 = vcmp.eq.f32.partialorder %v1787, %v1789
  %v1791 = vsel %vm1790, %v1786, -inf
  %1792 = vmax.xlane.f32.xlu0 %v1791
  %v1793 = vpop.xlane.xlu0 %1792
  %v1794 = vcvt.f32.s32 %v1793
  %v1795 = vcvt.f32.s32 %v1789
  %v1796 = vshll.u32 %v1795, 16
  %v1797 = vadd.s32 %v1796, %v1794
  %v1798 = vsel %vm360, %v1748, 2147483648
  %v1799 = vand.u32 %v1798, 65535
  %v1800 = vshra.s32 %v1798, 16
  %v1801 = vcvt.s32.f32 %v1799
  %v1802 = vcvt.s32.f32 %v1800
  %1803 = vmax.xlane.f32.xlu0 %v1802
  %v1804 = vpop.xlane.xlu0 %1803
  %vm1805 = vcmp.eq.f32.partialorder %v1802, %v1804
  %v1806 = vsel %vm1805, %v1801, -inf
  %1807 = vmax.xlane.f32.xlu0 %v1806
  %v1808 = vpop.xlane.xlu0 %1807
  %v1809 = vcvt.f32.s32 %v1808
  %v1810 = vcvt.f32.s32 %v1804
  %v1811 = vshll.u32 %v1810, 16
  %v1812 = vadd.s32 %v1811, %v1809
  %v1813 = vsel %vm360, %v1749, 2147483648
  %v1814 = vand.u32 %v1813, 65535
  %v1815 = vshra.s32 %v1813, 16
  %v1816 = vcvt.s32.f32 %v1814
  %v1817 = vcvt.s32.f32 %v1815
  %1818 = vmax.xlane.f32.xlu0 %v1817
  %v1819 = vpop.xlane.xlu0 %1818
  %vm1820 = vcmp.eq.f32.partialorder %v1817, %v1819
  %v1821 = vsel %vm1820, %v1816, -inf
  %1822 = vmax.xlane.f32.xlu0 %v1821
  %v1823 = vpop.xlane.xlu0 %1822
  %v1824 = vcvt.f32.s32 %v1823
  %v1825 = vcvt.f32.s32 %v1819
  %v1826 = vshll.u32 %v1825, 16
  %v1827 = vadd.s32 %v1826, %v1824
  %v1828 = vsel %vm360, %v1750, 2147483648
  %v1829 = vand.u32 %v1828, 65535
  %v1830 = vshra.s32 %v1828, 16
  %v1831 = vcvt.s32.f32 %v1829
  %v1832 = vcvt.s32.f32 %v1830
  %1833 = vmax.xlane.f32.xlu0 %v1832
  %v1834 = vpop.xlane.xlu0 %1833
  %vm1835 = vcmp.eq.f32.partialorder %v1832, %v1834
  %v1836 = vsel %vm1835, %v1831, -inf
  %1837 = vmax.xlane.f32.xlu0 %v1836
  %v1838 = vpop.xlane.xlu0 %1837
  %v1839 = vcvt.f32.s32 %v1838
  %v1840 = vcvt.f32.s32 %v1834
  %v1841 = vshll.u32 %v1840, 16
  %v1842 = vadd.s32 %v1841, %v1839
  %v1843 = vsel %vm360, %v1751, 2147483648
  %v1844 = vand.u32 %v1843, 65535
  %v1845 = vshra.s32 %v1843, 16
  %v1846 = vcvt.s32.f32 %v1844
  %v1847 = vcvt.s32.f32 %v1845
  %1848 = vmax.xlane.f32.xlu0 %v1847
  %v1849 = vpop.xlane.xlu0 %1848
  %vm1850 = vcmp.eq.f32.partialorder %v1847, %v1849
  %v1851 = vsel %vm1850, %v1846, -inf
  %1852 = vmax.xlane.f32.xlu0 %v1851
  %v1853 = vpop.xlane.xlu0 %1852
  %v1854 = vcvt.f32.s32 %v1853
  %v1855 = vcvt.f32.s32 %v1849
  %v1856 = vshll.u32 %v1855, 16
  %v1857 = vadd.s32 %v1856, %v1854
  %v1858 = vsel %vm360, %v1752, 2147483648
  %v1859 = vand.u32 %v1858, 65535
  %v1860 = vshra.s32 %v1858, 16
  %v1861 = vcvt.s32.f32 %v1859
  %v1862 = vcvt.s32.f32 %v1860
  %1863 = vmax.xlane.f32.xlu0 %v1862
  %v1864 = vpop.xlane.xlu0 %1863
  %vm1865 = vcmp.eq.f32.partialorder %v1862, %v1864
  %v1866 = vsel %vm1865, %v1861, -inf
  %1867 = vmax.xlane.f32.xlu0 %v1866
  %v1868 = vpop.xlane.xlu0 %1867
  %v1869 = vcvt.f32.s32 %v1868
  %v1870 = vcvt.f32.s32 %v1864
  %v1871 = vshll.u32 %v1870, 16
  %v1872 = vadd.s32 %v1871, %v1869
  %v1873 = vsel %vm1737, 1e+30, %v1569
  %v1874 = vsel %vm1738, 1e+30, %v1570
  %v1875 = vsel %vm1739, 1e+30, %v1571
  %v1876 = vsel %vm1740, 1e+30, %v1572
  %v1877 = vsel %vm1741, 1e+30, %v1573
  %v1878 = vsel %vm1742, 1e+30, %v1574
  %v1879 = vsel %vm1743, 1e+30, %v1575
  %v1880 = vsel %vm1744, 1e+30, %v1576
  %v1881 = vsel %vm360, %v1873, inf
  %1882 = vmin.xlane.f32.xlu0 %v1881
  %v1883 = vpop.xlane.xlu0 %1882
  %v1884 = vsel %vm360, %v1874, inf
  %1885 = vmin.xlane.f32.xlu0 %v1884
  %v1886 = vpop.xlane.xlu0 %1885
  %v1887 = vsel %vm360, %v1875, inf
  %1888 = vmin.xlane.f32.xlu0 %v1887
  %v1889 = vpop.xlane.xlu0 %1888
  %v1890 = vsel %vm360, %v1876, inf
  %1891 = vmin.xlane.f32.xlu0 %v1890
  %v1892 = vpop.xlane.xlu0 %1891
  %v1893 = vsel %vm360, %v1877, inf
  %1894 = vmin.xlane.f32.xlu0 %v1893
  %v1895 = vpop.xlane.xlu0 %1894
  %v1896 = vsel %vm360, %v1878, inf
  %1897 = vmin.xlane.f32.xlu0 %v1896
  %v1898 = vpop.xlane.xlu0 %1897
  %v1899 = vsel %vm360, %v1879, inf
  %1900 = vmin.xlane.f32.xlu0 %v1899
  %v1901 = vpop.xlane.xlu0 %1900
  %v1902 = vsel %vm360, %v1880, inf
  %1903 = vmin.xlane.f32.xlu0 %v1902
  %v1904 = vpop.xlane.xlu0 %1903
  %vm1905 = vcmp.eq.f32.partialorder %v1873, %v1883
  %vm1906 = vcmp.eq.f32.partialorder %v1874, %v1886
  %vm1907 = vcmp.eq.f32.partialorder %v1875, %v1889
  %vm1908 = vcmp.eq.f32.partialorder %v1876, %v1892
  %vm1909 = vcmp.eq.f32.partialorder %v1877, %v1895
  %vm1910 = vcmp.eq.f32.partialorder %v1878, %v1898
  %vm1911 = vcmp.eq.f32.partialorder %v1879, %v1901
  %vm1912 = vcmp.eq.f32.partialorder %v1880, %v1904
  %v1913 = vsel %vm1905, %v289, 1073741824
  %v1914 = vsel %vm1906, %v289, 1073741824
  %v1915 = vsel %vm1907, %v289, 1073741824
  %v1916 = vsel %vm1908, %v289, 1073741824
  %v1917 = vsel %vm1909, %v289, 1073741824
  %v1918 = vsel %vm1910, %v289, 1073741824
  %v1919 = vsel %vm1911, %v289, 1073741824
  %v1920 = vsel %vm1912, %v289, 1073741824
  %v1921 = vsel %vm360, %v1913, 2147483647
  %v1922 = vand.u32 %v1921, 65535
  %v1923 = vshra.s32 %v1921, 16
  %v1924 = vcvt.s32.f32 %v1922
  %v1925 = vcvt.s32.f32 %v1923
  %1926 = vmin.xlane.f32.xlu0 %v1925
  %v1927 = vpop.xlane.xlu0 %1926
  %vm1928 = vcmp.eq.f32.partialorder %v1925, %v1927
  %v1929 = vsel %vm1928, %v1924, inf
  %1930 = vmin.xlane.f32.xlu0 %v1929
  %v1931 = vpop.xlane.xlu0 %1930
  %v1932 = vcvt.f32.s32 %v1931
  %v1933 = vcvt.f32.s32 %v1927
  %v1934 = vshll.u32 %v1933, 16
  %v1935 = vadd.s32 %v1934, %v1932
  %v1936 = vsel %vm360, %v1914, 2147483647
  %v1937 = vand.u32 %v1936, 65535
  %v1938 = vshra.s32 %v1936, 16
  %v1939 = vcvt.s32.f32 %v1937
  %v1940 = vcvt.s32.f32 %v1938
  %1941 = vmin.xlane.f32.xlu0 %v1940
  %v1942 = vpop.xlane.xlu0 %1941
  %vm1943 = vcmp.eq.f32.partialorder %v1940, %v1942
  %v1944 = vsel %vm1943, %v1939, inf
  %1945 = vmin.xlane.f32.xlu0 %v1944
  %v1946 = vpop.xlane.xlu0 %1945
  %v1947 = vcvt.f32.s32 %v1946
  %v1948 = vcvt.f32.s32 %v1942
  %v1949 = vshll.u32 %v1948, 16
  %v1950 = vadd.s32 %v1949, %v1947
  %v1951 = vsel %vm360, %v1915, 2147483647
  %v1952 = vand.u32 %v1951, 65535
  %v1953 = vshra.s32 %v1951, 16
  %v1954 = vcvt.s32.f32 %v1952
  %v1955 = vcvt.s32.f32 %v1953
  %1956 = vmin.xlane.f32.xlu0 %v1955
  %v1957 = vpop.xlane.xlu0 %1956
  %vm1958 = vcmp.eq.f32.partialorder %v1955, %v1957
  %v1959 = vsel %vm1958, %v1954, inf
  %1960 = vmin.xlane.f32.xlu0 %v1959
  %v1961 = vpop.xlane.xlu0 %1960
  %v1962 = vcvt.f32.s32 %v1961
  %v1963 = vcvt.f32.s32 %v1957
  %v1964 = vshll.u32 %v1963, 16
  %v1965 = vadd.s32 %v1964, %v1962
  %v1966 = vsel %vm360, %v1916, 2147483647
  %v1967 = vand.u32 %v1966, 65535
  %v1968 = vshra.s32 %v1966, 16
  %v1969 = vcvt.s32.f32 %v1967
  %v1970 = vcvt.s32.f32 %v1968
  %1971 = vmin.xlane.f32.xlu0 %v1970
  %v1972 = vpop.xlane.xlu0 %1971
  %vm1973 = vcmp.eq.f32.partialorder %v1970, %v1972
  %v1974 = vsel %vm1973, %v1969, inf
  %1975 = vmin.xlane.f32.xlu0 %v1974
  %v1976 = vpop.xlane.xlu0 %1975
  %v1977 = vcvt.f32.s32 %v1976
  %v1978 = vcvt.f32.s32 %v1972
  %v1979 = vshll.u32 %v1978, 16
  %v1980 = vadd.s32 %v1979, %v1977
  %v1981 = vsel %vm360, %v1917, 2147483647
  %v1982 = vand.u32 %v1981, 65535
  %v1983 = vshra.s32 %v1981, 16
  %v1984 = vcvt.s32.f32 %v1982
  %v1985 = vcvt.s32.f32 %v1983
  %1986 = vmin.xlane.f32.xlu0 %v1985
  %v1987 = vpop.xlane.xlu0 %1986
  %vm1988 = vcmp.eq.f32.partialorder %v1985, %v1987
  %v1989 = vsel %vm1988, %v1984, inf
  %1990 = vmin.xlane.f32.xlu0 %v1989
  %v1991 = vpop.xlane.xlu0 %1990
  %v1992 = vcvt.f32.s32 %v1991
  %v1993 = vcvt.f32.s32 %v1987
  %v1994 = vshll.u32 %v1993, 16
  %v1995 = vadd.s32 %v1994, %v1992
  %v1996 = vsel %vm360, %v1918, 2147483647
  %v1997 = vand.u32 %v1996, 65535
  %v1998 = vshra.s32 %v1996, 16
  %v1999 = vcvt.s32.f32 %v1997
  %v2000 = vcvt.s32.f32 %v1998
  %2001 = vmin.xlane.f32.xlu0 %v2000
  %v2002 = vpop.xlane.xlu0 %2001
  %vm2003 = vcmp.eq.f32.partialorder %v2000, %v2002
  %v2004 = vsel %vm2003, %v1999, inf
  %2005 = vmin.xlane.f32.xlu0 %v2004
  %v2006 = vpop.xlane.xlu0 %2005
  %v2007 = vcvt.f32.s32 %v2006
  %v2008 = vcvt.f32.s32 %v2002
  %v2009 = vshll.u32 %v2008, 16
  %v2010 = vadd.s32 %v2009, %v2007
  %v2011 = vsel %vm360, %v1919, 2147483647
  %v2012 = vand.u32 %v2011, 65535
  %v2013 = vshra.s32 %v2011, 16
  %v2014 = vcvt.s32.f32 %v2012
  %v2015 = vcvt.s32.f32 %v2013
  %2016 = vmin.xlane.f32.xlu0 %v2015
  %v2017 = vpop.xlane.xlu0 %2016
  %vm2018 = vcmp.eq.f32.partialorder %v2015, %v2017
  %v2019 = vsel %vm2018, %v2014, inf
  %2020 = vmin.xlane.f32.xlu0 %v2019
  %v2021 = vpop.xlane.xlu0 %2020
  %v2022 = vcvt.f32.s32 %v2021
  %v2023 = vcvt.f32.s32 %v2017
  %v2024 = vshll.u32 %v2023, 16
  %v2025 = vadd.s32 %v2024, %v2022
  %v2026 = vsel %vm360, %v1920, 2147483647
  %v2027 = vand.u32 %v2026, 65535
  %v2028 = vshra.s32 %v2026, 16
  %v2029 = vcvt.s32.f32 %v2027
  %v2030 = vcvt.s32.f32 %v2028
  %2031 = vmin.xlane.f32.xlu0 %v2030
  %v2032 = vpop.xlane.xlu0 %2031
  %vm2033 = vcmp.eq.f32.partialorder %v2030, %v2032
  %v2034 = vsel %vm2033, %v2029, inf
  %2035 = vmin.xlane.f32.xlu0 %v2034
  %v2036 = vpop.xlane.xlu0 %2035
  %v2037 = vcvt.f32.s32 %v2036
  %v2038 = vcvt.f32.s32 %v2032
  %v2039 = vshll.u32 %v2038, 16
  %v2040 = vadd.s32 %v2039, %v2037
  %vm2041 = vcmp.eq.s32.totalorder %v289, %v1935
  %vm2042 = vcmp.eq.s32.totalorder %v289, %v1950
  %vm2043 = vcmp.eq.s32.totalorder %v289, %v1965
  %vm2044 = vcmp.eq.s32.totalorder %v289, %v1980
  %vm2045 = vcmp.eq.s32.totalorder %v289, %v1995
  %vm2046 = vcmp.eq.s32.totalorder %v289, %v2010
  %vm2047 = vcmp.eq.s32.totalorder %v289, %v2025
  %vm2048 = vcmp.eq.s32.totalorder %v289, %v2040
  %v2049 = vsel %vm2041, %v352, 0
  %v2050 = vsel %vm2042, %v353, 0
  %v2051 = vsel %vm2043, %v354, 0
  %v2052 = vsel %vm2044, %v355, 0
  %v2053 = vsel %vm2045, %v356, 0
  %v2054 = vsel %vm2046, %v357, 0
  %v2055 = vsel %vm2047, %v358, 0
  %v2056 = vsel %vm2048, %v359, 0
  %v2057 = vsel %vm360, %v2049, 2147483648
  %v2058 = vand.u32 %v2057, 65535
  %v2059 = vshra.s32 %v2057, 16
  %v2060 = vcvt.s32.f32 %v2058
  %v2061 = vcvt.s32.f32 %v2059
  %2062 = vmax.xlane.f32.xlu0 %v2061
  %v2063 = vpop.xlane.xlu0 %2062
  %vm2064 = vcmp.eq.f32.partialorder %v2061, %v2063
  %v2065 = vsel %vm2064, %v2060, -inf
  %2066 = vmax.xlane.f32.xlu0 %v2065
  %v2067 = vpop.xlane.xlu0 %2066
  %v2068 = vcvt.f32.s32 %v2067
  %v2069 = vcvt.f32.s32 %v2063
  %v2070 = vshll.u32 %v2069, 16
  %v2071 = vadd.s32 %v2070, %v2068
  %v2072 = vsel %vm360, %v2050, 2147483648
  %v2073 = vand.u32 %v2072, 65535
  %v2074 = vshra.s32 %v2072, 16
  %v2075 = vcvt.s32.f32 %v2073
  %v2076 = vcvt.s32.f32 %v2074
  %2077 = vmax.xlane.f32.xlu0 %v2076
  %v2078 = vpop.xlane.xlu0 %2077
  %vm2079 = vcmp.eq.f32.partialorder %v2076, %v2078
  %v2080 = vsel %vm2079, %v2075, -inf
  %2081 = vmax.xlane.f32.xlu0 %v2080
  %v2082 = vpop.xlane.xlu0 %2081
  %v2083 = vcvt.f32.s32 %v2082
  %v2084 = vcvt.f32.s32 %v2078
  %v2085 = vshll.u32 %v2084, 16
  %v2086 = vadd.s32 %v2085, %v2083
  %v2087 = vsel %vm360, %v2051, 2147483648
  %v2088 = vand.u32 %v2087, 65535
  %v2089 = vshra.s32 %v2087, 16
  %v2090 = vcvt.s32.f32 %v2088
  %v2091 = vcvt.s32.f32 %v2089
  %2092 = vmax.xlane.f32.xlu0 %v2091
  %v2093 = vpop.xlane.xlu0 %2092
  %vm2094 = vcmp.eq.f32.partialorder %v2091, %v2093
  %v2095 = vsel %vm2094, %v2090, -inf
  %2096 = vmax.xlane.f32.xlu0 %v2095
  %v2097 = vpop.xlane.xlu0 %2096
  %v2098 = vcvt.f32.s32 %v2097
  %v2099 = vcvt.f32.s32 %v2093
  %v2100 = vshll.u32 %v2099, 16
  %v2101 = vadd.s32 %v2100, %v2098
  %v2102 = vsel %vm360, %v2052, 2147483648
  %v2103 = vand.u32 %v2102, 65535
  %v2104 = vshra.s32 %v2102, 16
  %v2105 = vcvt.s32.f32 %v2103
  %v2106 = vcvt.s32.f32 %v2104
  %2107 = vmax.xlane.f32.xlu0 %v2106
  %v2108 = vpop.xlane.xlu0 %2107
  %vm2109 = vcmp.eq.f32.partialorder %v2106, %v2108
  %v2110 = vsel %vm2109, %v2105, -inf
  %2111 = vmax.xlane.f32.xlu0 %v2110
  %v2112 = vpop.xlane.xlu0 %2111
  %v2113 = vcvt.f32.s32 %v2112
  %v2114 = vcvt.f32.s32 %v2108
  %v2115 = vshll.u32 %v2114, 16
  %v2116 = vadd.s32 %v2115, %v2113
  %v2117 = vsel %vm360, %v2053, 2147483648
  %v2118 = vand.u32 %v2117, 65535
  %v2119 = vshra.s32 %v2117, 16
  %v2120 = vcvt.s32.f32 %v2118
  %v2121 = vcvt.s32.f32 %v2119
  %2122 = vmax.xlane.f32.xlu0 %v2121
  %v2123 = vpop.xlane.xlu0 %2122
  %vm2124 = vcmp.eq.f32.partialorder %v2121, %v2123
  %v2125 = vsel %vm2124, %v2120, -inf
  %2126 = vmax.xlane.f32.xlu0 %v2125
  %v2127 = vpop.xlane.xlu0 %2126
  %v2128 = vcvt.f32.s32 %v2127
  %v2129 = vcvt.f32.s32 %v2123
  %v2130 = vshll.u32 %v2129, 16
  %v2131 = vadd.s32 %v2130, %v2128
  %v2132 = vsel %vm360, %v2054, 2147483648
  %v2133 = vand.u32 %v2132, 65535
  %v2134 = vshra.s32 %v2132, 16
  %v2135 = vcvt.s32.f32 %v2133
  %v2136 = vcvt.s32.f32 %v2134
  %2137 = vmax.xlane.f32.xlu0 %v2136
  %v2138 = vpop.xlane.xlu0 %2137
  %vm2139 = vcmp.eq.f32.partialorder %v2136, %v2138
  %v2140 = vsel %vm2139, %v2135, -inf
  %2141 = vmax.xlane.f32.xlu0 %v2140
  %v2142 = vpop.xlane.xlu0 %2141
  %v2143 = vcvt.f32.s32 %v2142
  %v2144 = vcvt.f32.s32 %v2138
  %v2145 = vshll.u32 %v2144, 16
  %v2146 = vadd.s32 %v2145, %v2143
  %v2147 = vsel %vm360, %v2055, 2147483648
  %v2148 = vand.u32 %v2147, 65535
  %v2149 = vshra.s32 %v2147, 16
  %v2150 = vcvt.s32.f32 %v2148
  %v2151 = vcvt.s32.f32 %v2149
  %2152 = vmax.xlane.f32.xlu0 %v2151
  %v2153 = vpop.xlane.xlu0 %2152
  %vm2154 = vcmp.eq.f32.partialorder %v2151, %v2153
  %v2155 = vsel %vm2154, %v2150, -inf
  %2156 = vmax.xlane.f32.xlu0 %v2155
  %v2157 = vpop.xlane.xlu0 %2156
  %v2158 = vcvt.f32.s32 %v2157
  %v2159 = vcvt.f32.s32 %v2153
  %v2160 = vshll.u32 %v2159, 16
  %v2161 = vadd.s32 %v2160, %v2158
  %v2162 = vsel %vm360, %v2056, 2147483648
  %v2163 = vand.u32 %v2162, 65535
  %v2164 = vshra.s32 %v2162, 16
  %v2165 = vcvt.s32.f32 %v2163
  %v2166 = vcvt.s32.f32 %v2164
  %2167 = vmax.xlane.f32.xlu0 %v2166
  %v2168 = vpop.xlane.xlu0 %2167
  %vm2169 = vcmp.eq.f32.partialorder %v2166, %v2168
  %v2170 = vsel %vm2169, %v2165, -inf
  %2171 = vmax.xlane.f32.xlu0 %v2170
  %v2172 = vpop.xlane.xlu0 %2171
  %v2173 = vcvt.f32.s32 %v2172
  %v2174 = vcvt.f32.s32 %v2168
  %v2175 = vshll.u32 %v2174, 16
  %v2176 = vadd.s32 %v2175, %v2173
  %v2177 = vsel %vm2041, 1e+30, %v1873
  %v2178 = vsel %vm2042, 1e+30, %v1874
  %v2179 = vsel %vm2043, 1e+30, %v1875
  %v2180 = vsel %vm2044, 1e+30, %v1876
  %v2181 = vsel %vm2045, 1e+30, %v1877
  %v2182 = vsel %vm2046, 1e+30, %v1878
  %v2183 = vsel %vm2047, 1e+30, %v1879
  %v2184 = vsel %vm2048, 1e+30, %v1880
  %v2185 = vsel %vm360, %v2177, inf
  %2186 = vmin.xlane.f32.xlu0 %v2185
  %v2187 = vpop.xlane.xlu0 %2186
  %v2188 = vsel %vm360, %v2178, inf
  %2189 = vmin.xlane.f32.xlu0 %v2188
  %v2190 = vpop.xlane.xlu0 %2189
  %v2191 = vsel %vm360, %v2179, inf
  %2192 = vmin.xlane.f32.xlu0 %v2191
  %v2193 = vpop.xlane.xlu0 %2192
  %v2194 = vsel %vm360, %v2180, inf
  %2195 = vmin.xlane.f32.xlu0 %v2194
  %v2196 = vpop.xlane.xlu0 %2195
  %v2197 = vsel %vm360, %v2181, inf
  %2198 = vmin.xlane.f32.xlu0 %v2197
  %v2199 = vpop.xlane.xlu0 %2198
  %v2200 = vsel %vm360, %v2182, inf
  %2201 = vmin.xlane.f32.xlu0 %v2200
  %v2202 = vpop.xlane.xlu0 %2201
  %v2203 = vsel %vm360, %v2183, inf
  %2204 = vmin.xlane.f32.xlu0 %v2203
  %v2205 = vpop.xlane.xlu0 %2204
  %v2206 = vsel %vm360, %v2184, inf
  %2207 = vmin.xlane.f32.xlu0 %v2206
  %v2208 = vpop.xlane.xlu0 %2207
  %vm2209 = vcmp.eq.f32.partialorder %v2177, %v2187
  %vm2210 = vcmp.eq.f32.partialorder %v2178, %v2190
  %vm2211 = vcmp.eq.f32.partialorder %v2179, %v2193
  %vm2212 = vcmp.eq.f32.partialorder %v2180, %v2196
  %vm2213 = vcmp.eq.f32.partialorder %v2181, %v2199
  %vm2214 = vcmp.eq.f32.partialorder %v2182, %v2202
  %vm2215 = vcmp.eq.f32.partialorder %v2183, %v2205
  %vm2216 = vcmp.eq.f32.partialorder %v2184, %v2208
  %v2217 = vsel %vm2209, %v289, 1073741824
  %v2218 = vsel %vm2210, %v289, 1073741824
  %v2219 = vsel %vm2211, %v289, 1073741824
  %v2220 = vsel %vm2212, %v289, 1073741824
  %v2221 = vsel %vm2213, %v289, 1073741824
  %v2222 = vsel %vm2214, %v289, 1073741824
  %v2223 = vsel %vm2215, %v289, 1073741824
  %v2224 = vsel %vm2216, %v289, 1073741824
  %v2225 = vsel %vm360, %v2217, 2147483647
  %v2226 = vand.u32 %v2225, 65535
  %v2227 = vshra.s32 %v2225, 16
  %v2228 = vcvt.s32.f32 %v2226
  %v2229 = vcvt.s32.f32 %v2227
  %2230 = vmin.xlane.f32.xlu0 %v2229
  %v2231 = vpop.xlane.xlu0 %2230
  %vm2232 = vcmp.eq.f32.partialorder %v2229, %v2231
  %v2233 = vsel %vm2232, %v2228, inf
  %2234 = vmin.xlane.f32.xlu0 %v2233
  %v2235 = vpop.xlane.xlu0 %2234
  %v2236 = vcvt.f32.s32 %v2235
  %v2237 = vcvt.f32.s32 %v2231
  %v2238 = vshll.u32 %v2237, 16
  %v2239 = vadd.s32 %v2238, %v2236
  %v2240 = vsel %vm360, %v2218, 2147483647
  %v2241 = vand.u32 %v2240, 65535
  %v2242 = vshra.s32 %v2240, 16
  %v2243 = vcvt.s32.f32 %v2241
  %v2244 = vcvt.s32.f32 %v2242
  %2245 = vmin.xlane.f32.xlu0 %v2244
  %v2246 = vpop.xlane.xlu0 %2245
  %vm2247 = vcmp.eq.f32.partialorder %v2244, %v2246
  %v2248 = vsel %vm2247, %v2243, inf
  %2249 = vmin.xlane.f32.xlu0 %v2248
  %v2250 = vpop.xlane.xlu0 %2249
  %v2251 = vcvt.f32.s32 %v2250
  %v2252 = vcvt.f32.s32 %v2246
  %v2253 = vshll.u32 %v2252, 16
  %v2254 = vadd.s32 %v2253, %v2251
  %v2255 = vsel %vm360, %v2219, 2147483647
  %v2256 = vand.u32 %v2255, 65535
  %v2257 = vshra.s32 %v2255, 16
  %v2258 = vcvt.s32.f32 %v2256
  %v2259 = vcvt.s32.f32 %v2257
  %2260 = vmin.xlane.f32.xlu0 %v2259
  %v2261 = vpop.xlane.xlu0 %2260
  %vm2262 = vcmp.eq.f32.partialorder %v2259, %v2261
  %v2263 = vsel %vm2262, %v2258, inf
  %2264 = vmin.xlane.f32.xlu0 %v2263
  %v2265 = vpop.xlane.xlu0 %2264
  %v2266 = vcvt.f32.s32 %v2265
  %v2267 = vcvt.f32.s32 %v2261
  %v2268 = vshll.u32 %v2267, 16
  %v2269 = vadd.s32 %v2268, %v2266
  %v2270 = vsel %vm360, %v2220, 2147483647
  %v2271 = vand.u32 %v2270, 65535
  %v2272 = vshra.s32 %v2270, 16
  %v2273 = vcvt.s32.f32 %v2271
  %v2274 = vcvt.s32.f32 %v2272
  %2275 = vmin.xlane.f32.xlu0 %v2274
  %v2276 = vpop.xlane.xlu0 %2275
  %vm2277 = vcmp.eq.f32.partialorder %v2274, %v2276
  %v2278 = vsel %vm2277, %v2273, inf
  %2279 = vmin.xlane.f32.xlu0 %v2278
  %v2280 = vpop.xlane.xlu0 %2279
  %v2281 = vcvt.f32.s32 %v2280
  %v2282 = vcvt.f32.s32 %v2276
  %v2283 = vshll.u32 %v2282, 16
  %v2284 = vadd.s32 %v2283, %v2281
  %v2285 = vsel %vm360, %v2221, 2147483647
  %v2286 = vand.u32 %v2285, 65535
  %v2287 = vshra.s32 %v2285, 16
  %v2288 = vcvt.s32.f32 %v2286
  %v2289 = vcvt.s32.f32 %v2287
  %2290 = vmin.xlane.f32.xlu0 %v2289
  %v2291 = vpop.xlane.xlu0 %2290
  %vm2292 = vcmp.eq.f32.partialorder %v2289, %v2291
  %v2293 = vsel %vm2292, %v2288, inf
  %2294 = vmin.xlane.f32.xlu0 %v2293
  %v2295 = vpop.xlane.xlu0 %2294
  %v2296 = vcvt.f32.s32 %v2295
  %v2297 = vcvt.f32.s32 %v2291
  %v2298 = vshll.u32 %v2297, 16
  %v2299 = vadd.s32 %v2298, %v2296
  %v2300 = vsel %vm360, %v2222, 2147483647
  %v2301 = vand.u32 %v2300, 65535
  %v2302 = vshra.s32 %v2300, 16
  %v2303 = vcvt.s32.f32 %v2301
  %v2304 = vcvt.s32.f32 %v2302
  %2305 = vmin.xlane.f32.xlu0 %v2304
  %v2306 = vpop.xlane.xlu0 %2305
  %vm2307 = vcmp.eq.f32.partialorder %v2304, %v2306
  %v2308 = vsel %vm2307, %v2303, inf
  %2309 = vmin.xlane.f32.xlu0 %v2308
  %v2310 = vpop.xlane.xlu0 %2309
  %v2311 = vcvt.f32.s32 %v2310
  %v2312 = vcvt.f32.s32 %v2306
  %v2313 = vshll.u32 %v2312, 16
  %v2314 = vadd.s32 %v2313, %v2311
  %v2315 = vsel %vm360, %v2223, 2147483647
  %v2316 = vand.u32 %v2315, 65535
  %v2317 = vshra.s32 %v2315, 16
  %v2318 = vcvt.s32.f32 %v2316
  %v2319 = vcvt.s32.f32 %v2317
  %2320 = vmin.xlane.f32.xlu0 %v2319
  %v2321 = vpop.xlane.xlu0 %2320
  %vm2322 = vcmp.eq.f32.partialorder %v2319, %v2321
  %v2323 = vsel %vm2322, %v2318, inf
  %2324 = vmin.xlane.f32.xlu0 %v2323
  %v2325 = vpop.xlane.xlu0 %2324
  %v2326 = vcvt.f32.s32 %v2325
  %v2327 = vcvt.f32.s32 %v2321
  %v2328 = vshll.u32 %v2327, 16
  %v2329 = vadd.s32 %v2328, %v2326
  %v2330 = vsel %vm360, %v2224, 2147483647
  %v2331 = vand.u32 %v2330, 65535
  %v2332 = vshra.s32 %v2330, 16
  %v2333 = vcvt.s32.f32 %v2331
  %v2334 = vcvt.s32.f32 %v2332
  %2335 = vmin.xlane.f32.xlu0 %v2334
  %v2336 = vpop.xlane.xlu0 %2335
  %vm2337 = vcmp.eq.f32.partialorder %v2334, %v2336
  %v2338 = vsel %vm2337, %v2333, inf
  %2339 = vmin.xlane.f32.xlu0 %v2338
  %v2340 = vpop.xlane.xlu0 %2339
  %v2341 = vcvt.f32.s32 %v2340
  %v2342 = vcvt.f32.s32 %v2336
  %v2343 = vshll.u32 %v2342, 16
  %v2344 = vadd.s32 %v2343, %v2341
  %vm2345 = vcmp.eq.s32.totalorder %v289, %v2239
  %vm2346 = vcmp.eq.s32.totalorder %v289, %v2254
  %vm2347 = vcmp.eq.s32.totalorder %v289, %v2269
  %vm2348 = vcmp.eq.s32.totalorder %v289, %v2284
  %vm2349 = vcmp.eq.s32.totalorder %v289, %v2299
  %vm2350 = vcmp.eq.s32.totalorder %v289, %v2314
  %vm2351 = vcmp.eq.s32.totalorder %v289, %v2329
  %vm2352 = vcmp.eq.s32.totalorder %v289, %v2344
  %v2353 = vsel %vm2345, %v352, 0
  %v2354 = vsel %vm2346, %v353, 0
  %v2355 = vsel %vm2347, %v354, 0
  %v2356 = vsel %vm2348, %v355, 0
  %v2357 = vsel %vm2349, %v356, 0
  %v2358 = vsel %vm2350, %v357, 0
  %v2359 = vsel %vm2351, %v358, 0
  %v2360 = vsel %vm2352, %v359, 0
  %v2361 = vsel %vm360, %v2353, 2147483648
  %v2362 = vand.u32 %v2361, 65535
  %v2363 = vshra.s32 %v2361, 16
  %v2364 = vcvt.s32.f32 %v2362
  %v2365 = vcvt.s32.f32 %v2363
  %2366 = vmax.xlane.f32.xlu0 %v2365
  %v2367 = vpop.xlane.xlu0 %2366
  %vm2368 = vcmp.eq.f32.partialorder %v2365, %v2367
  %v2369 = vsel %vm2368, %v2364, -inf
  %2370 = vmax.xlane.f32.xlu0 %v2369
  %v2371 = vpop.xlane.xlu0 %2370
  %v2372 = vcvt.f32.s32 %v2371
  %v2373 = vcvt.f32.s32 %v2367
  %v2374 = vshll.u32 %v2373, 16
  %v2375 = vadd.s32 %v2374, %v2372
  %v2376 = vsel %vm360, %v2354, 2147483648
  %v2377 = vand.u32 %v2376, 65535
  %v2378 = vshra.s32 %v2376, 16
  %v2379 = vcvt.s32.f32 %v2377
  %v2380 = vcvt.s32.f32 %v2378
  %2381 = vmax.xlane.f32.xlu0 %v2380
  %v2382 = vpop.xlane.xlu0 %2381
  %vm2383 = vcmp.eq.f32.partialorder %v2380, %v2382
  %v2384 = vsel %vm2383, %v2379, -inf
  %2385 = vmax.xlane.f32.xlu0 %v2384
  %v2386 = vpop.xlane.xlu0 %2385
  %v2387 = vcvt.f32.s32 %v2386
  %v2388 = vcvt.f32.s32 %v2382
  %v2389 = vshll.u32 %v2388, 16
  %v2390 = vadd.s32 %v2389, %v2387
  %v2391 = vsel %vm360, %v2355, 2147483648
  %v2392 = vand.u32 %v2391, 65535
  %v2393 = vshra.s32 %v2391, 16
  %v2394 = vcvt.s32.f32 %v2392
  %v2395 = vcvt.s32.f32 %v2393
  %2396 = vmax.xlane.f32.xlu0 %v2395
  %v2397 = vpop.xlane.xlu0 %2396
  %vm2398 = vcmp.eq.f32.partialorder %v2395, %v2397
  %v2399 = vsel %vm2398, %v2394, -inf
  %2400 = vmax.xlane.f32.xlu0 %v2399
  %v2401 = vpop.xlane.xlu0 %2400
  %v2402 = vcvt.f32.s32 %v2401
  %v2403 = vcvt.f32.s32 %v2397
  %v2404 = vshll.u32 %v2403, 16
  %v2405 = vadd.s32 %v2404, %v2402
  %v2406 = vsel %vm360, %v2356, 2147483648
  %v2407 = vand.u32 %v2406, 65535
  %v2408 = vshra.s32 %v2406, 16
  %v2409 = vcvt.s32.f32 %v2407
  %v2410 = vcvt.s32.f32 %v2408
  %2411 = vmax.xlane.f32.xlu0 %v2410
  %v2412 = vpop.xlane.xlu0 %2411
  %vm2413 = vcmp.eq.f32.partialorder %v2410, %v2412
  %v2414 = vsel %vm2413, %v2409, -inf
  %2415 = vmax.xlane.f32.xlu0 %v2414
  %v2416 = vpop.xlane.xlu0 %2415
  %v2417 = vcvt.f32.s32 %v2416
  %v2418 = vcvt.f32.s32 %v2412
  %v2419 = vshll.u32 %v2418, 16
  %v2420 = vadd.s32 %v2419, %v2417
  %v2421 = vsel %vm360, %v2357, 2147483648
  %v2422 = vand.u32 %v2421, 65535
  %v2423 = vshra.s32 %v2421, 16
  %v2424 = vcvt.s32.f32 %v2422
  %v2425 = vcvt.s32.f32 %v2423
  %2426 = vmax.xlane.f32.xlu0 %v2425
  %v2427 = vpop.xlane.xlu0 %2426
  %vm2428 = vcmp.eq.f32.partialorder %v2425, %v2427
  %v2429 = vsel %vm2428, %v2424, -inf
  %2430 = vmax.xlane.f32.xlu0 %v2429
  %v2431 = vpop.xlane.xlu0 %2430
  %v2432 = vcvt.f32.s32 %v2431
  %v2433 = vcvt.f32.s32 %v2427
  %v2434 = vshll.u32 %v2433, 16
  %v2435 = vadd.s32 %v2434, %v2432
  %v2436 = vsel %vm360, %v2358, 2147483648
  %v2437 = vand.u32 %v2436, 65535
  %v2438 = vshra.s32 %v2436, 16
  %v2439 = vcvt.s32.f32 %v2437
  %v2440 = vcvt.s32.f32 %v2438
  %2441 = vmax.xlane.f32.xlu0 %v2440
  %v2442 = vpop.xlane.xlu0 %2441
  %vm2443 = vcmp.eq.f32.partialorder %v2440, %v2442
  %v2444 = vsel %vm2443, %v2439, -inf
  %2445 = vmax.xlane.f32.xlu0 %v2444
  %v2446 = vpop.xlane.xlu0 %2445
  %v2447 = vcvt.f32.s32 %v2446
  %v2448 = vcvt.f32.s32 %v2442
  %v2449 = vshll.u32 %v2448, 16
  %v2450 = vadd.s32 %v2449, %v2447
  %v2451 = vsel %vm360, %v2359, 2147483648
  %v2452 = vand.u32 %v2451, 65535
  %v2453 = vshra.s32 %v2451, 16
  %v2454 = vcvt.s32.f32 %v2452
  %v2455 = vcvt.s32.f32 %v2453
  %2456 = vmax.xlane.f32.xlu0 %v2455
  %v2457 = vpop.xlane.xlu0 %2456
  %vm2458 = vcmp.eq.f32.partialorder %v2455, %v2457
  %v2459 = vsel %vm2458, %v2454, -inf
  %2460 = vmax.xlane.f32.xlu0 %v2459
  %v2461 = vpop.xlane.xlu0 %2460
  %v2462 = vcvt.f32.s32 %v2461
  %v2463 = vcvt.f32.s32 %v2457
  %v2464 = vshll.u32 %v2463, 16
  %v2465 = vadd.s32 %v2464, %v2462
  %v2466 = vsel %vm360, %v2360, 2147483648
  %v2467 = vand.u32 %v2466, 65535
  %v2468 = vshra.s32 %v2466, 16
  %v2469 = vcvt.s32.f32 %v2467
  %v2470 = vcvt.s32.f32 %v2468
  %2471 = vmax.xlane.f32.xlu0 %v2470
  %v2472 = vpop.xlane.xlu0 %2471
  %vm2473 = vcmp.eq.f32.partialorder %v2470, %v2472
  %v2474 = vsel %vm2473, %v2469, -inf
  %2475 = vmax.xlane.f32.xlu0 %v2474
  %v2476 = vpop.xlane.xlu0 %2475
  %v2477 = vcvt.f32.s32 %v2476
  %v2478 = vcvt.f32.s32 %v2472
  %v2479 = vshll.u32 %v2478, 16
  %v2480 = vadd.s32 %v2479, %v2477
  %v2481 = vsel %vm2345, 1e+30, %v2177
  %v2482 = vsel %vm2346, 1e+30, %v2178
  %v2483 = vsel %vm2347, 1e+30, %v2179
  %v2484 = vsel %vm2348, 1e+30, %v2180
  %v2485 = vsel %vm2349, 1e+30, %v2181
  %v2486 = vsel %vm2350, 1e+30, %v2182
  %v2487 = vsel %vm2351, 1e+30, %v2183
  %v2488 = vsel %vm2352, 1e+30, %v2184
  %v2489 = vsel %vm360, %v2481, inf
  %2490 = vmin.xlane.f32.xlu0 %v2489
  %v2491 = vpop.xlane.xlu0 %2490
  %v2492 = vsel %vm360, %v2482, inf
  %2493 = vmin.xlane.f32.xlu0 %v2492
  %v2494 = vpop.xlane.xlu0 %2493
  %v2495 = vsel %vm360, %v2483, inf
  %2496 = vmin.xlane.f32.xlu0 %v2495
  %v2497 = vpop.xlane.xlu0 %2496
  %v2498 = vsel %vm360, %v2484, inf
  %2499 = vmin.xlane.f32.xlu0 %v2498
  %v2500 = vpop.xlane.xlu0 %2499
  %v2501 = vsel %vm360, %v2485, inf
  %2502 = vmin.xlane.f32.xlu0 %v2501
  %v2503 = vpop.xlane.xlu0 %2502
  %v2504 = vsel %vm360, %v2486, inf
  %2505 = vmin.xlane.f32.xlu0 %v2504
  %v2506 = vpop.xlane.xlu0 %2505
  %v2507 = vsel %vm360, %v2487, inf
  %2508 = vmin.xlane.f32.xlu0 %v2507
  %v2509 = vpop.xlane.xlu0 %2508
  %v2510 = vsel %vm360, %v2488, inf
  %2511 = vmin.xlane.f32.xlu0 %v2510
  %v2512 = vpop.xlane.xlu0 %2511
  %vm2513 = vcmp.eq.f32.partialorder %v2481, %v2491
  %vm2514 = vcmp.eq.f32.partialorder %v2482, %v2494
  %vm2515 = vcmp.eq.f32.partialorder %v2483, %v2497
  %vm2516 = vcmp.eq.f32.partialorder %v2484, %v2500
  %vm2517 = vcmp.eq.f32.partialorder %v2485, %v2503
  %vm2518 = vcmp.eq.f32.partialorder %v2486, %v2506
  %vm2519 = vcmp.eq.f32.partialorder %v2487, %v2509
  %vm2520 = vcmp.eq.f32.partialorder %v2488, %v2512
  %v2521 = vsel %vm2513, %v289, 1073741824
  %v2522 = vsel %vm2514, %v289, 1073741824
  %v2523 = vsel %vm2515, %v289, 1073741824
  %v2524 = vsel %vm2516, %v289, 1073741824
  %v2525 = vsel %vm2517, %v289, 1073741824
  %v2526 = vsel %vm2518, %v289, 1073741824
  %v2527 = vsel %vm2519, %v289, 1073741824
  %v2528 = vsel %vm2520, %v289, 1073741824
  %v2529 = vsel %vm360, %v2521, 2147483647
  %v2530 = vand.u32 %v2529, 65535
  %v2531 = vshra.s32 %v2529, 16
  %v2532 = vcvt.s32.f32 %v2530
  %v2533 = vcvt.s32.f32 %v2531
  %2534 = vmin.xlane.f32.xlu0 %v2533
  %v2535 = vpop.xlane.xlu0 %2534
  %vm2536 = vcmp.eq.f32.partialorder %v2533, %v2535
  %v2537 = vsel %vm2536, %v2532, inf
  %2538 = vmin.xlane.f32.xlu0 %v2537
  %v2539 = vpop.xlane.xlu0 %2538
  %v2540 = vcvt.f32.s32 %v2539
  %v2541 = vcvt.f32.s32 %v2535
  %v2542 = vshll.u32 %v2541, 16
  %v2543 = vadd.s32 %v2542, %v2540
  %v2544 = vsel %vm360, %v2522, 2147483647
  %v2545 = vand.u32 %v2544, 65535
  %v2546 = vshra.s32 %v2544, 16
  %v2547 = vcvt.s32.f32 %v2545
  %v2548 = vcvt.s32.f32 %v2546
  %2549 = vmin.xlane.f32.xlu0 %v2548
  %v2550 = vpop.xlane.xlu0 %2549
  %vm2551 = vcmp.eq.f32.partialorder %v2548, %v2550
  %v2552 = vsel %vm2551, %v2547, inf
  %2553 = vmin.xlane.f32.xlu0 %v2552
  %v2554 = vpop.xlane.xlu0 %2553
  %v2555 = vcvt.f32.s32 %v2554
  %v2556 = vcvt.f32.s32 %v2550
  %v2557 = vshll.u32 %v2556, 16
  %v2558 = vadd.s32 %v2557, %v2555
  %v2559 = vsel %vm360, %v2523, 2147483647
  %v2560 = vand.u32 %v2559, 65535
  %v2561 = vshra.s32 %v2559, 16
  %v2562 = vcvt.s32.f32 %v2560
  %v2563 = vcvt.s32.f32 %v2561
  %2564 = vmin.xlane.f32.xlu0 %v2563
  %v2565 = vpop.xlane.xlu0 %2564
  %vm2566 = vcmp.eq.f32.partialorder %v2563, %v2565
  %v2567 = vsel %vm2566, %v2562, inf
  %2568 = vmin.xlane.f32.xlu0 %v2567
  %v2569 = vpop.xlane.xlu0 %2568
  %v2570 = vcvt.f32.s32 %v2569
  %v2571 = vcvt.f32.s32 %v2565
  %v2572 = vshll.u32 %v2571, 16
  %v2573 = vadd.s32 %v2572, %v2570
  %v2574 = vsel %vm360, %v2524, 2147483647
  %v2575 = vand.u32 %v2574, 65535
  %v2576 = vshra.s32 %v2574, 16
  %v2577 = vcvt.s32.f32 %v2575
  %v2578 = vcvt.s32.f32 %v2576
  %2579 = vmin.xlane.f32.xlu0 %v2578
  %v2580 = vpop.xlane.xlu0 %2579
  %vm2581 = vcmp.eq.f32.partialorder %v2578, %v2580
  %v2582 = vsel %vm2581, %v2577, inf
  %2583 = vmin.xlane.f32.xlu0 %v2582
  %v2584 = vpop.xlane.xlu0 %2583
  %v2585 = vcvt.f32.s32 %v2584
  %v2586 = vcvt.f32.s32 %v2580
  %v2587 = vshll.u32 %v2586, 16
  %v2588 = vadd.s32 %v2587, %v2585
  %v2589 = vsel %vm360, %v2525, 2147483647
  %v2590 = vand.u32 %v2589, 65535
  %v2591 = vshra.s32 %v2589, 16
  %v2592 = vcvt.s32.f32 %v2590
  %v2593 = vcvt.s32.f32 %v2591
  %2594 = vmin.xlane.f32.xlu0 %v2593
  %v2595 = vpop.xlane.xlu0 %2594
  %vm2596 = vcmp.eq.f32.partialorder %v2593, %v2595
  %v2597 = vsel %vm2596, %v2592, inf
  %2598 = vmin.xlane.f32.xlu0 %v2597
  %v2599 = vpop.xlane.xlu0 %2598
  %v2600 = vcvt.f32.s32 %v2599
  %v2601 = vcvt.f32.s32 %v2595
  %v2602 = vshll.u32 %v2601, 16
  %v2603 = vadd.s32 %v2602, %v2600
  %v2604 = vsel %vm360, %v2526, 2147483647
  %v2605 = vand.u32 %v2604, 65535
  %v2606 = vshra.s32 %v2604, 16
  %v2607 = vcvt.s32.f32 %v2605
  %v2608 = vcvt.s32.f32 %v2606
  %2609 = vmin.xlane.f32.xlu0 %v2608
  %v2610 = vpop.xlane.xlu0 %2609
  %vm2611 = vcmp.eq.f32.partialorder %v2608, %v2610
  %v2612 = vsel %vm2611, %v2607, inf
  %2613 = vmin.xlane.f32.xlu0 %v2612
  %v2614 = vpop.xlane.xlu0 %2613
  %v2615 = vcvt.f32.s32 %v2614
  %v2616 = vcvt.f32.s32 %v2610
  %v2617 = vshll.u32 %v2616, 16
  %v2618 = vadd.s32 %v2617, %v2615
  %v2619 = vsel %vm360, %v2527, 2147483647
  %v2620 = vand.u32 %v2619, 65535
  %v2621 = vshra.s32 %v2619, 16
  %v2622 = vcvt.s32.f32 %v2620
  %v2623 = vcvt.s32.f32 %v2621
  %2624 = vmin.xlane.f32.xlu0 %v2623
  %v2625 = vpop.xlane.xlu0 %2624
  %vm2626 = vcmp.eq.f32.partialorder %v2623, %v2625
  %v2627 = vsel %vm2626, %v2622, inf
  %2628 = vmin.xlane.f32.xlu0 %v2627
  %v2629 = vpop.xlane.xlu0 %2628
  %v2630 = vcvt.f32.s32 %v2629
  %v2631 = vcvt.f32.s32 %v2625
  %v2632 = vshll.u32 %v2631, 16
  %v2633 = vadd.s32 %v2632, %v2630
  %v2634 = vsel %vm360, %v2528, 2147483647
  %v2635 = vand.u32 %v2634, 65535
  %v2636 = vshra.s32 %v2634, 16
  %v2637 = vcvt.s32.f32 %v2635
  %v2638 = vcvt.s32.f32 %v2636
  %2639 = vmin.xlane.f32.xlu0 %v2638
  %v2640 = vpop.xlane.xlu0 %2639
  %vm2641 = vcmp.eq.f32.partialorder %v2638, %v2640
  %v2642 = vsel %vm2641, %v2637, inf
  %2643 = vmin.xlane.f32.xlu0 %v2642
  %v2644 = vpop.xlane.xlu0 %2643
  %v2645 = vcvt.f32.s32 %v2644
  %v2646 = vcvt.f32.s32 %v2640
  %v2647 = vshll.u32 %v2646, 16
  %v2648 = vadd.s32 %v2647, %v2645
  %vm2649 = vcmp.eq.s32.totalorder %v289, %v2543
  %vm2650 = vcmp.eq.s32.totalorder %v289, %v2558
  %vm2651 = vcmp.eq.s32.totalorder %v289, %v2573
  %vm2652 = vcmp.eq.s32.totalorder %v289, %v2588
  %vm2653 = vcmp.eq.s32.totalorder %v289, %v2603
  %vm2654 = vcmp.eq.s32.totalorder %v289, %v2618
  %vm2655 = vcmp.eq.s32.totalorder %v289, %v2633
  %vm2656 = vcmp.eq.s32.totalorder %v289, %v2648
  %v2657 = vsel %vm2649, %v352, 0
  %v2658 = vsel %vm2650, %v353, 0
  %v2659 = vsel %vm2651, %v354, 0
  %v2660 = vsel %vm2652, %v355, 0
  %v2661 = vsel %vm2653, %v356, 0
  %v2662 = vsel %vm2654, %v357, 0
  %v2663 = vsel %vm2655, %v358, 0
  %v2664 = vsel %vm2656, %v359, 0
  %v2665 = vsel %vm360, %v2657, 2147483648
  %v2666 = vand.u32 %v2665, 65535
  %v2667 = vshra.s32 %v2665, 16
  %v2668 = vcvt.s32.f32 %v2666
  %v2669 = vcvt.s32.f32 %v2667
  %2670 = vmax.xlane.f32.xlu0 %v2669
  %v2671 = vpop.xlane.xlu0 %2670
  %vm2672 = vcmp.eq.f32.partialorder %v2669, %v2671
  %v2673 = vsel %vm2672, %v2668, -inf
  %2674 = vmax.xlane.f32.xlu0 %v2673
  %v2675 = vpop.xlane.xlu0 %2674
  %v2676 = vcvt.f32.s32 %v2675
  %v2677 = vcvt.f32.s32 %v2671
  %v2678 = vshll.u32 %v2677, 16
  %v2679 = vadd.s32 %v2678, %v2676
  %v2680 = vsel %vm360, %v2658, 2147483648
  %v2681 = vand.u32 %v2680, 65535
  %v2682 = vshra.s32 %v2680, 16
  %v2683 = vcvt.s32.f32 %v2681
  %v2684 = vcvt.s32.f32 %v2682
  %2685 = vmax.xlane.f32.xlu0 %v2684
  %v2686 = vpop.xlane.xlu0 %2685
  %vm2687 = vcmp.eq.f32.partialorder %v2684, %v2686
  %v2688 = vsel %vm2687, %v2683, -inf
  %2689 = vmax.xlane.f32.xlu0 %v2688
  %v2690 = vpop.xlane.xlu0 %2689
  %v2691 = vcvt.f32.s32 %v2690
  %v2692 = vcvt.f32.s32 %v2686
  %v2693 = vshll.u32 %v2692, 16
  %v2694 = vadd.s32 %v2693, %v2691
  %v2695 = vsel %vm360, %v2659, 2147483648
  %v2696 = vand.u32 %v2695, 65535
  %v2697 = vshra.s32 %v2695, 16
  %v2698 = vcvt.s32.f32 %v2696
  %v2699 = vcvt.s32.f32 %v2697
  %2700 = vmax.xlane.f32.xlu0 %v2699
  %v2701 = vpop.xlane.xlu0 %2700
  %vm2702 = vcmp.eq.f32.partialorder %v2699, %v2701
  %v2703 = vsel %vm2702, %v2698, -inf
  %2704 = vmax.xlane.f32.xlu0 %v2703
  %v2705 = vpop.xlane.xlu0 %2704
  %v2706 = vcvt.f32.s32 %v2705
  %v2707 = vcvt.f32.s32 %v2701
  %v2708 = vshll.u32 %v2707, 16
  %v2709 = vadd.s32 %v2708, %v2706
  %v2710 = vsel %vm360, %v2660, 2147483648
  %v2711 = vand.u32 %v2710, 65535
  %v2712 = vshra.s32 %v2710, 16
  %v2713 = vcvt.s32.f32 %v2711
  %v2714 = vcvt.s32.f32 %v2712
  %2715 = vmax.xlane.f32.xlu0 %v2714
  %v2716 = vpop.xlane.xlu0 %2715
  %vm2717 = vcmp.eq.f32.partialorder %v2714, %v2716
  %v2718 = vsel %vm2717, %v2713, -inf
  %2719 = vmax.xlane.f32.xlu0 %v2718
  %v2720 = vpop.xlane.xlu0 %2719
  %v2721 = vcvt.f32.s32 %v2720
  %v2722 = vcvt.f32.s32 %v2716
  %v2723 = vshll.u32 %v2722, 16
  %v2724 = vadd.s32 %v2723, %v2721
  %v2725 = vsel %vm360, %v2661, 2147483648
  %v2726 = vand.u32 %v2725, 65535
  %v2727 = vshra.s32 %v2725, 16
  %v2728 = vcvt.s32.f32 %v2726
  %v2729 = vcvt.s32.f32 %v2727
  %2730 = vmax.xlane.f32.xlu0 %v2729
  %v2731 = vpop.xlane.xlu0 %2730
  %vm2732 = vcmp.eq.f32.partialorder %v2729, %v2731
  %v2733 = vsel %vm2732, %v2728, -inf
  %2734 = vmax.xlane.f32.xlu0 %v2733
  %v2735 = vpop.xlane.xlu0 %2734
  %v2736 = vcvt.f32.s32 %v2735
  %v2737 = vcvt.f32.s32 %v2731
  %v2738 = vshll.u32 %v2737, 16
  %v2739 = vadd.s32 %v2738, %v2736
  %v2740 = vsel %vm360, %v2662, 2147483648
  %v2741 = vand.u32 %v2740, 65535
  %v2742 = vshra.s32 %v2740, 16
  %v2743 = vcvt.s32.f32 %v2741
  %v2744 = vcvt.s32.f32 %v2742
  %2745 = vmax.xlane.f32.xlu0 %v2744
  %v2746 = vpop.xlane.xlu0 %2745
  %vm2747 = vcmp.eq.f32.partialorder %v2744, %v2746
  %v2748 = vsel %vm2747, %v2743, -inf
  %2749 = vmax.xlane.f32.xlu0 %v2748
  %v2750 = vpop.xlane.xlu0 %2749
  %v2751 = vcvt.f32.s32 %v2750
  %v2752 = vcvt.f32.s32 %v2746
  %v2753 = vshll.u32 %v2752, 16
  %v2754 = vadd.s32 %v2753, %v2751
  %v2755 = vsel %vm360, %v2663, 2147483648
  %v2756 = vand.u32 %v2755, 65535
  %v2757 = vshra.s32 %v2755, 16
  %v2758 = vcvt.s32.f32 %v2756
  %v2759 = vcvt.s32.f32 %v2757
  %2760 = vmax.xlane.f32.xlu0 %v2759
  %v2761 = vpop.xlane.xlu0 %2760
  %vm2762 = vcmp.eq.f32.partialorder %v2759, %v2761
  %v2763 = vsel %vm2762, %v2758, -inf
  %2764 = vmax.xlane.f32.xlu0 %v2763
  %v2765 = vpop.xlane.xlu0 %2764
  %v2766 = vcvt.f32.s32 %v2765
  %v2767 = vcvt.f32.s32 %v2761
  %v2768 = vshll.u32 %v2767, 16
  %v2769 = vadd.s32 %v2768, %v2766
  %v2770 = vsel %vm360, %v2664, 2147483648
  %v2771 = vand.u32 %v2770, 65535
  %v2772 = vshra.s32 %v2770, 16
  %v2773 = vcvt.s32.f32 %v2771
  %v2774 = vcvt.s32.f32 %v2772
  %2775 = vmax.xlane.f32.xlu0 %v2774
  %v2776 = vpop.xlane.xlu0 %2775
  %vm2777 = vcmp.eq.f32.partialorder %v2774, %v2776
  %v2778 = vsel %vm2777, %v2773, -inf
  %2779 = vmax.xlane.f32.xlu0 %v2778
  %v2780 = vpop.xlane.xlu0 %2779
  %v2781 = vcvt.f32.s32 %v2780
  %v2782 = vcvt.f32.s32 %v2776
  %v2783 = vshll.u32 %v2782, 16
  %v2784 = vadd.s32 %v2783, %v2781
  %vm2785 = vcmask 7168
  %v2786 = vsel %vm2785, %v363, %v667
  %v2787 = vsel %vm2785, %v366, %v670
  %v2788 = vsel %vm2785, %v369, %v673
  %v2789 = vsel %vm2785, %v372, %v676
  %v2790 = vsel %vm2785, %v375, %v679
  %v2791 = vsel %vm2785, %v378, %v682
  %v2792 = vsel %vm2785, %v381, %v685
  %v2793 = vsel %vm2785, %v384, %v688
  %vm2794 = vcmask 15360
  %v2795 = vsel %vm2794, %v2786, %v971
  %v2796 = vsel %vm2794, %v2787, %v974
  %v2797 = vsel %vm2794, %v2788, %v977
  %v2798 = vsel %vm2794, %v2789, %v980
  %v2799 = vsel %vm2794, %v2790, %v983
  %v2800 = vsel %vm2794, %v2791, %v986
  %v2801 = vsel %vm2794, %v2792, %v989
  %v2802 = vsel %vm2794, %v2793, %v992
  %vm2803 = vcmask 23552
  %v2804 = vsel %vm2803, %v2795, %v1275
  %v2805 = vsel %vm2803, %v2796, %v1278
  %v2806 = vsel %vm2803, %v2797, %v1281
  %v2807 = vsel %vm2803, %v2798, %v1284
  %v2808 = vsel %vm2803, %v2799, %v1287
  %v2809 = vsel %vm2803, %v2800, %v1290
  %v2810 = vsel %vm2803, %v2801, %v1293
  %v2811 = vsel %vm2803, %v2802, %v1296
  %vm2812 = vcmask 31744
  %v2813 = vsel %vm2812, %v2804, %v1579
  %v2814 = vsel %vm2812, %v2805, %v1582
  %v2815 = vsel %vm2812, %v2806, %v1585
  %v2816 = vsel %vm2812, %v2807, %v1588
  %v2817 = vsel %vm2812, %v2808, %v1591
  %v2818 = vsel %vm2812, %v2809, %v1594
  %v2819 = vsel %vm2812, %v2810, %v1597
  %v2820 = vsel %vm2812, %v2811, %v1600
  %vm2821 = vcmask 39936
  %v2822 = vsel %vm2821, %v2813, %v1883
  %v2823 = vsel %vm2821, %v2814, %v1886
  %v2824 = vsel %vm2821, %v2815, %v1889
  %v2825 = vsel %vm2821, %v2816, %v1892
  %v2826 = vsel %vm2821, %v2817, %v1895
  %v2827 = vsel %vm2821, %v2818, %v1898
  %v2828 = vsel %vm2821, %v2819, %v1901
  %v2829 = vsel %vm2821, %v2820, %v1904
  %vm2830 = vcmask 48128
  %v2831 = vsel %vm2830, %v2822, %v2187
  %v2832 = vsel %vm2830, %v2823, %v2190
  %v2833 = vsel %vm2830, %v2824, %v2193
  %v2834 = vsel %vm2830, %v2825, %v2196
  %v2835 = vsel %vm2830, %v2826, %v2199
  %v2836 = vsel %vm2830, %v2827, %v2202
  %v2837 = vsel %vm2830, %v2828, %v2205
  %v2838 = vsel %vm2830, %v2829, %v2208
  %vm2839 = vcmask 56320
  %v2840 = vsel %vm2839, %v2831, %v2491
  %v2841 = vsel %vm2839, %v2832, %v2494
  %v2842 = vsel %vm2839, %v2833, %v2497
  %v2843 = vsel %vm2839, %v2834, %v2500
  %v2844 = vsel %vm2839, %v2835, %v2503
  %v2845 = vsel %vm2839, %v2836, %v2506
  %v2846 = vsel %vm2839, %v2837, %v2509
  %v2847 = vsel %vm2839, %v2838, %v2512
  %2848 = vst.msk [vmem:[#allocation2] sm:$0xff] %vm333, %v2840
  %2849 = vst.msk [vmem:[#allocation2 + $0x8] sm:$0xff] %vm333, %v2841
  %2850 = vst.msk [vmem:[#allocation2 + $0x10] sm:$0xff] %vm333, %v2842
  %2851 = vst.msk [vmem:[#allocation2 + $0x18] sm:$0xff] %vm333, %v2843
  %2852 = vst.msk [vmem:[#allocation2 + $0x20] sm:$0xff] %vm333, %v2844
  %2853 = vst.msk [vmem:[#allocation2 + $0x28] sm:$0xff] %vm333, %v2845
  %2854 = vst.msk [vmem:[#allocation2 + $0x30] sm:$0xff] %vm333, %v2846
  %2855 = vst.msk [vmem:[#allocation2 + $0x38] sm:$0xff] %vm333, %v2847
  %v2856 = vsel %vm2785, %v551, %v855
  %v2857 = vsel %vm2785, %v566, %v870
  %v2858 = vsel %vm2785, %v581, %v885
  %v2859 = vsel %vm2785, %v596, %v900
  %v2860 = vsel %vm2785, %v611, %v915
  %v2861 = vsel %vm2785, %v626, %v930
  %v2862 = vsel %vm2785, %v641, %v945
  %v2863 = vsel %vm2785, %v656, %v960
  %v2864 = vsel %vm2794, %v2856, %v1159
  %v2865 = vsel %vm2794, %v2857, %v1174
  %v2866 = vsel %vm2794, %v2858, %v1189
  %v2867 = vsel %vm2794, %v2859, %v1204
  %v2868 = vsel %vm2794, %v2860, %v1219
  %v2869 = vsel %vm2794, %v2861, %v1234
  %v2870 = vsel %vm2794, %v2862, %v1249
  %v2871 = vsel %vm2794, %v2863, %v1264
  %v2872 = vsel %vm2803, %v2864, %v1463
  %v2873 = vsel %vm2803, %v2865, %v1478
  %v2874 = vsel %vm2803, %v2866, %v1493
  %v2875 = vsel %vm2803, %v2867, %v1508
  %v2876 = vsel %vm2803, %v2868, %v1523
  %v2877 = vsel %vm2803, %v2869, %v1538
  %v2878 = vsel %vm2803, %v2870, %v1553
  %v2879 = vsel %vm2803, %v2871, %v1568
  %v2880 = vsel %vm2812, %v2872, %v1767
  %v2881 = vsel %vm2812, %v2873, %v1782
  %v2882 = vsel %vm2812, %v2874, %v1797
  %v2883 = vsel %vm2812, %v2875, %v1812
  %v2884 = vsel %vm2812, %v2876, %v1827
  %v2885 = vsel %vm2812, %v2877, %v1842
  %v2886 = vsel %vm2812, %v2878, %v1857
  %v2887 = vsel %vm2812, %v2879, %v1872
  %v2888 = vsel %vm2821, %v2880, %v2071
  %v2889 = vsel %vm2821, %v2881, %v2086
  %v2890 = vsel %vm2821, %v2882, %v2101
  %v2891 = vsel %vm2821, %v2883, %v2116
  %v2892 = vsel %vm2821, %v2884, %v2131
  %v2893 = vsel %vm2821, %v2885, %v2146
  %v2894 = vsel %vm2821, %v2886, %v2161
  %v2895 = vsel %vm2821, %v2887, %v2176
  %v2896 = vsel %vm2830, %v2888, %v2375
  %v2897 = vsel %vm2830, %v2889, %v2390
  %v2898 = vsel %vm2830, %v2890, %v2405
  %v2899 = vsel %vm2830, %v2891, %v2420
  %v2900 = vsel %vm2830, %v2892, %v2435
  %v2901 = vsel %vm2830, %v2893, %v2450
  %v2902 = vsel %vm2830, %v2894, %v2465
  %v2903 = vsel %vm2830, %v2895, %v2480
  %v2904 = vsel %vm2839, %v2896, %v2679
  %v2905 = vsel %vm2839, %v2897, %v2694
  %v2906 = vsel %vm2839, %v2898, %v2709
  %v2907 = vsel %vm2839, %v2899, %v2724
  %v2908 = vsel %vm2839, %v2900, %v2739
  %v2909 = vsel %vm2839, %v2901, %v2754
  %v2910 = vsel %vm2839, %v2902, %v2769
  %v2911 = vsel %vm2839, %v2903, %v2784
  %2912 = vst.msk [vmem:[#allocation3] sm:$0xff] %vm333, %v2904
  %2913 = vst.msk [vmem:[#allocation3 + $0x8] sm:$0xff] %vm333, %v2905
  %2914 = vst.msk [vmem:[#allocation3 + $0x10] sm:$0xff] %vm333, %v2906
  %2915 = vst.msk [vmem:[#allocation3 + $0x18] sm:$0xff] %vm333, %v2907
  %2916 = vst.msk [vmem:[#allocation3 + $0x20] sm:$0xff] %vm333, %v2908
  %2917 = vst.msk [vmem:[#allocation3 + $0x28] sm:$0xff] %vm333, %v2909
  %2918 = vst.msk [vmem:[#allocation3 + $0x30] sm:$0xff] %vm333, %v2910
  %2919 = vst.msk [vmem:[#allocation3 + $0x38] sm:$0xff] %vm333, %v2911
  // Predicated region
  $region26: #{net_forward.9} parent=0 // pred_check
    %p2920 = pneg %p21
  $region27: #{net_forward.9} parent=0 // pred_check_branch
    %2922 = sbr.rel (%p2920) target = $region29
  $region28: #{net_forward.9} parent=0 // pred_region
    %v2923 = vld [vmem:[#allocation3] sm:$0xff]
    %v2924 = vld [vmem:[#allocation3 + $0x8] sm:$0xff]
    %v2925 = vld [vmem:[#allocation3 + $0x10] sm:$0xff]
    %v2926 = vld [vmem:[#allocation3 + $0x18] sm:$0xff]
    %v2927 = vld [vmem:[#allocation3 + $0x20] sm:$0xff]
    %v2928 = vld [vmem:[#allocation3 + $0x28] sm:$0xff]
    %v2929 = vld [vmem:[#allocation3 + $0x30] sm:$0xff]
    %v2930 = vld [vmem:[#allocation3 + $0x38] sm:$0xff]
    %2931 = vst.msk [vmem:[%s5] sm:$0xff] %vm333, %v2923
    %2932 = vst.msk [vmem:[%s5 + $0x8] sm:$0xff] %vm333, %v2924
    %2933 = vst.msk [vmem:[%s5 + $0x10] sm:$0xff] %vm333, %v2925
    %2934 = vst.msk [vmem:[%s5 + $0x18] sm:$0xff] %vm333, %v2926
    %2935 = vst.msk [vmem:[%s5 + $0x20] sm:$0xff] %vm333, %v2927
    %2936 = vst.msk [vmem:[%s5 + $0x28] sm:$0xff] %vm333, %v2928
    %2937 = vst.msk [vmem:[%s5 + $0x30] sm:$0xff] %vm333, %v2929
    %2938 = vst.msk [vmem:[%s5 + $0x38] sm:$0xff] %vm333, %v2930
  $region29: #{net_forward.9} parent=0 // pred_fallthru
    _
  // Predicated region
  $region30: #{net_forward.9} parent=0 // pred_check
    _
  $region31: #{net_forward.9} parent=0 // pred_check_branch
    %2940 = sbr.rel (0) target = $region33
  $region32: #{net_forward.9} parent=0 // pred_region
    _
  $region33: #{net_forward.9} parent=0 // pred_fallthru
    _
  // Predicated region
  $region34: #{net_forward.9} parent=0 // pred_check
    _
  $region35: #{net_forward.9} parent=0 // pred_check_branch
    %2942 = sbr.rel (0) target = $region37
  $region36: #{net_forward.9} parent=0 // pred_region
    _
  $region37: #{net_forward.9} parent=0 // pred_fallthru
    _

// kernel: net_forward.7
$region0: #{net_forward.7}
  #allocation0 [shape = 'u32[]', space=smem, size = 0x4, offset = 0x4, fixed_abs, tag = 'smem constant byte address 0x4 - core index']
  #allocation1 [shape = 'u32[144,128]{1,0:T(1,128)}', space=vmem, size = 0x12000, scoped, tag = 'internal scratch']
  #allocation2 [shape = 'f32[64,8]{1,0:T(8,128)}', space=vmem, size = 0x8000, scoped, tag = 'scratch operand']
  #allocation3 [shape = 's32[64,8]{1,0:T(8,128)}', space=vmem, size = 0x8000, scoped, tag = 'scratch operand']
  %s0 = inlined_call_operand.vmem [shape: bf16[64,6], index: 0, kind: input, shape index: {}, may-alias: {0,1}]
  %s1 = inlined_call_operand.vmem [shape: bf16[64,6], index: 1, kind: input, shape index: {}, may-alias: {0,1}]
  %s2 = inlined_call_operand.vmem [shape: f32[1,64], index: 2, kind: input, shape index: {}]
  %s3 = inlined_call_operand.vmem [shape: s32[64,1], index: 3, kind: input, shape index: {}]
  %s4 = inlined_call_operand.vmem [shape: s32[1,64], index: 4, kind: input, shape index: {}]
  %s5 = inlined_call_operand.vmem [shape: s32[64,8], index: 5, kind: output, shape index: {}]
  %s6 = sld [smem:[#allocation0]]
  $region38: #{net_forward.7} parent=0
    _
  %s8 = ssub.s32 1, %s6
  %s9 = scalar_select 0, %s8, %s6
  // Predicated region
  $region2: #{net_forward.7} parent=0 // pred_check
    _
  $region3: #{net_forward.7} parent=0 // pred_check_branch
    %11 = sbr.rel (0) target = $region5
  $region4: #{net_forward.7} parent=0 // pred_region
    _
  $region5: #{net_forward.7} parent=0 // pred_fallthru
    _
  // Predicated region
  $region6: #{net_forward.7} parent=0 // pred_check
    _
  $region7: #{net_forward.7} parent=0 // pred_check_branch
    %13 = sbr.rel (0) target = $region9
  $region8: #{net_forward.7} parent=0 // pred_region
    _
  $region9: #{net_forward.7} parent=0 // pred_fallthru
    _
  // Predicated region
  $region10: #{net_forward.7} parent=0 // pred_check
    _
  $region11: #{net_forward.7} parent=0 // pred_check_branch
    %15 = sbr.rel (0) target = $region13
  $region12: #{net_forward.7} parent=0 // pred_region
    _
  $region13: #{net_forward.7} parent=0 // pred_fallthru
    _
  // Predicated region
  $region14: #{net_forward.7} parent=0 // pred_check
    _
  $region15: #{net_forward.7} parent=0 // pred_check_branch
    %17 = sbr.rel (0) target = $region17
  $region16: #{net_forward.7} parent=0 // pred_region
    _
  $region17: #{net_forward.7} parent=0 // pred_fallthru
    _
  // Predicated region
  $region18: #{net_forward.7} parent=0 // pred_check
    _
  $region19: #{net_forward.7} parent=0 // pred_check_branch
    %19 = sbr.rel (0) target = $region21
  $region20: #{net_forward.7} parent=0 // pred_region
    _
  $region21: #{net_forward.7} parent=0 // pred_fallthru
    _
  %p21 = scmp.eq.s32.totalorder 0, 0
  // Predicated region
  $region22: #{net_forward.7} parent=0 // pred_check
    %p22 = pneg %p21
  $region23: #{net_forward.7} parent=0 // pred_check_branch
    %24 = sbr.rel (%p22) target = $region25
  $region24: #{net_forward.7} parent=0 // pred_region
    %vm25 = vcmask 64512
    %26 = vst.msk [vmem:[#allocation2] sm:$0xff] %vm25, 1e+30
    %27 = vst.msk [vmem:[#allocation2 + $0x8] sm:$0xff] %vm25, 1e+30
    %28 = vst.msk [vmem:[#allocation2 + $0x10] sm:$0xff] %vm25, 1e+30
    %29 = vst.msk [vmem:[#allocation2 + $0x18] sm:$0xff] %vm25, 1e+30
    %30 = vst.msk [vmem:[#allocation2 + $0x20] sm:$0xff] %vm25, 1e+30
    %31 = vst.msk [vmem:[#allocation2 + $0x28] sm:$0xff] %vm25, 1e+30
    %32 = vst.msk [vmem:[#allocation2 + $0x30] sm:$0xff] %vm25, 1e+30
    %33 = vst.msk [vmem:[#allocation2 + $0x38] sm:$0xff] %vm25, 1e+30
    %34 = vst.msk [vmem:[#allocation3] sm:$0xff] %vm25, 0
    %35 = vst.msk [vmem:[#allocation3 + $0x8] sm:$0xff] %vm25, 0
    %36 = vst.msk [vmem:[#allocation3 + $0x10] sm:$0xff] %vm25, 0
    %37 = vst.msk [vmem:[#allocation3 + $0x18] sm:$0xff] %vm25, 0
    %38 = vst.msk [vmem:[#allocation3 + $0x20] sm:$0xff] %vm25, 0
    %39 = vst.msk [vmem:[#allocation3 + $0x28] sm:$0xff] %vm25, 0
    %40 = vst.msk [vmem:[#allocation3 + $0x30] sm:$0xff] %vm25, 0
    %41 = vst.msk [vmem:[#allocation3 + $0x38] sm:$0xff] %vm25, 0
  $region25: #{net_forward.7} parent=0 // pred_fallthru
    _
  %v42 = vld [vmem:[%s0] sm:$0xf]
  %v43 = vld [vmem:[%s0 + $0x4] sm:$0xf]
  %v44 = vld [vmem:[%s0 + $0x8] sm:$0xf]
  %v45 = vld [vmem:[%s0 + $0xc] sm:$0xf]
  %v46 = vld [vmem:[%s0 + $0x10] sm:$0xf]
  %v47 = vld [vmem:[%s0 + $0x14] sm:$0xf]
  %v48 = vld [vmem:[%s0 + $0x18] sm:$0xf]
  %v49 = vld [vmem:[%s0 + $0x1c] sm:$0xf]
  %v50 = vld [vmem:[%s1] sm:$0xf]
  %v51 = vld [vmem:[%s1 + $0x4] sm:$0xf]
  %v52 = vld [vmem:[%s1 + $0x8] sm:$0xf]
  %v53 = vld [vmem:[%s1 + $0xc] sm:$0xf]
  %v54 = vld [vmem:[%s1 + $0x10] sm:$0xf]
  %v55 = vld [vmem:[%s1 + $0x14] sm:$0xf]
  %v56 = vld [vmem:[%s1 + $0x18] sm:$0xf]
  %v57 = vld [vmem:[%s1 + $0x1c] sm:$0xf]
  %v66 = vunpack.c.l.b16 %v42
  %v67 = vunpack.c.l.b16 %v43
  %v68 = vunpack.c.l.b16 %v44
  %v69 = vunpack.c.l.b16 %v45
  %v70 = vunpack.c.l.b16 %v46
  %v71 = vunpack.c.l.b16 %v47
  %v72 = vunpack.c.l.b16 %v48
  %v73 = vunpack.c.l.b16 %v49
  %v74 = vpack.c.b16 %v67, %v66
  %v75 = vpack.c.b16 %v69, %v68
  %v76 = vpack.c.b16 %v71, %v70
  %v77 = vpack.c.b16 %v73, %v72
  %v86 = vunpack.c.l.b16 %v50
  %v87 = vunpack.c.l.b16 %v51
  %v88 = vunpack.c.l.b16 %v52
  %v89 = vunpack.c.l.b16 %v53
  %v90 = vunpack.c.l.b16 %v54
  %v91 = vunpack.c.l.b16 %v55
  %v92 = vunpack.c.l.b16 %v56
  %v93 = vunpack.c.l.b16 %v57
  %v94 = vpack.c.b16 %v87, %v86
  %v95 = vpack.c.b16 %v89, %v88
  %v96 = vpack.c.b16 %v91, %v90
  %v97 = vpack.c.b16 %v93, %v92
  %vm98 = vcmask 48128
  %v100 = vsel %vm98, %v74, 0
  %v103 = vsel %vm98, %v75, 0
  %v106 = vsel %vm98, %v76, 0
  %v109 = vsel %vm98, %v77, 0
  %v112 = vsel %vm98, %v94, 0
  %v115 = vsel %vm98, %v95, 0
  %v118 = vsel %vm98, %v96, 0
  %v121 = vsel %vm98, %v97, 0
  %123 = vmatprep.subr.bf16.mxu0 0
  %124 = vmatpush1.bf16.xpose.msra.mxu0 0
  %125 = vmatprep.subr.bf16.mxu0 0
  %126 = vmatpush1.bf16.xpose.msra.mxu0 0
  %127 = vmatprep.subr.bf16.mxu0 0
  %128 = vmatpush1.bf16.xpose.msra.mxu0 0
  %129 = vmatprep.subr.bf16.mxu0 0
  %130 = vmatpush1.bf16.xpose.msra.mxu0 0
  %131 = vmatprep.subr.bf16.mxu0 0
  %132 = vmatpush1.bf16.xpose.msra.mxu0 %v121
  %133 = vmatprep.subr.bf16.mxu0 0
  %134 = vmatpush1.bf16.xpose.msra.mxu0 %v118
  %135 = vmatprep.subr.bf16.mxu0 0
  %136 = vmatpush1.bf16.xpose.msra.mxu0 %v115
  %137 = vmatprep.subr.bf16.mxu0 0
  %138 = vmatpush1.bf16.xpose.msra.mxu0 %v112
  %139 = vmatprep.subr.bf16.mxu0 0
  %140 = vmatpush2.bf16.xpose.msra.mxu0 0
  %141 = vmatprep.subr.bf16.mxu0 0
  %142 = vmatpush2.bf16.xpose.msra.mxu0 0
  %143 = vmatprep.subr.bf16.mxu0 0
  %144 = vmatpush2.bf16.xpose.msra.mxu0 0
  %145 = vmatprep.subr.bf16.mxu0 0
  %146 = vmatpush2.bf16.xpose.msra.mxu0 0
  %147 = vmatprep.subr.bf16.mxu0 0
  %148 = vmatpush2.bf16.xpose.msra.mxu0 0
  %149 = vmatprep.subr.bf16.mxu0 0
  %150 = vmatpush2.bf16.xpose.msra.mxu0 0
  %151 = vmatprep.subr.bf16.mxu0 0
  %152 = vmatpush2.bf16.xpose.msra.mxu0 0
  %153 = vmatprep.subr.bf16.mxu0 0
  %154 = vmatpush2.bf16.xpose.msra.mxu0 0
  %155 = vmatprep.mubr.bf16.mxu0 0
  %156 = vmatmul.mubr.bf16.gmra.mxu0 %v100
  %v157 = vpop.f32.mrf.mxu0
  %v158 = vadd.f32 0.0, %v157
  %v159 = vpop.f32.mrf.mxu0
  %v160 = vpop.f32.mrf.mxu0
  %v161 = vadd.f32 0.0, %v160
  %v162 = vpop.f32.mrf.mxu0
  %163 = vmatprep.mubr.bf16.mxu0 0
  %164 = vmatmul.mubr.bf16.gmra.mxu0 %v103
  %v165 = vpop.f32.mrf.mxu0
  %v166 = vadd.f32 0.0, %v165
  %v167 = vpop.f32.mrf.mxu0
  %v168 = vpop.f32.mrf.mxu0
  %v169 = vadd.f32 0.0, %v168
  %v170 = vpop.f32.mrf.mxu0
  %171 = vmatprep.mubr.bf16.mxu0 0
  %172 = vmatmul.mubr.bf16.gmra.mxu0 %v106
  %v173 = vpop.f32.mrf.mxu0
  %v174 = vadd.f32 0.0, %v173
  %v175 = vpop.f32.mrf.mxu0
  %v176 = vpop.f32.mrf.mxu0
  %v177 = vadd.f32 0.0, %v176
  %v178 = vpop.f32.mrf.mxu0
  %179 = vmatprep.mubr.bf16.mxu0 0
  %180 = vmatmul.mubr.bf16.gmra.mxu0 %v109
  %v181 = vpop.f32.mrf.mxu0
  %v182 = vadd.f32 0.0, %v181
  %v183 = vpop.f32.mrf.mxu0
  %v184 = vpop.f32.mrf.mxu0
  %v185 = vadd.f32 0.0, %v184
  %v186 = vpop.f32.mrf.mxu0
  %187 = vdwg.mxu0
  %v188 = vld [vmem:[%s3] sm:$0xff]
  %v189 = vld [vmem:[%s3 + $0x8] sm:$0xff]
  %v190 = vld [vmem:[%s3 + $0x10] sm:$0xff]
  %v191 = vld [vmem:[%s3 + $0x18] sm:$0xff]
  %v192 = vld [vmem:[%s3 + $0x20] sm:$0xff]
  %v193 = vld [vmem:[%s3 + $0x28] sm:$0xff]
  %v194 = vld [vmem:[%s3 + $0x30] sm:$0xff]
  %v195 = vld [vmem:[%s3 + $0x38] sm:$0xff]
  %v196 = vld [vmem:[%s4] sm:$0x1]
  %197 = vset.pattern.permute.xlu0 0
  %198 = vperm.xlu0 %197, %v188
  %v199 = vpop.permute.xlu0 %198
  %200 = vset.pattern.permute.xlu0 0
  %201 = vperm.xlu0 %200, %v189
  %v202 = vpop.permute.xlu0 %201
  %203 = vset.pattern.permute.xlu0 0
  %204 = vperm.xlu0 %203, %v190
  %v205 = vpop.permute.xlu0 %204
  %206 = vset.pattern.permute.xlu0 0
  %207 = vperm.xlu0 %206, %v191
  %v208 = vpop.permute.xlu0 %207
  %209 = vset.pattern.permute.xlu0 0
  %210 = vperm.xlu0 %209, %v192
  %v211 = vpop.permute.xlu0 %210
  %212 = vset.pattern.permute.xlu0 0
  %213 = vperm.xlu0 %212, %v193
  %v214 = vpop.permute.xlu0 %213
  %215 = vset.pattern.permute.xlu0 0
  %216 = vperm.xlu0 %215, %v194
  %v217 = vpop.permute.xlu0 %216
  %218 = vset.pattern.permute.xlu0 0
  %219 = vperm.xlu0 %218, %v195
  %v220 = vpop.permute.xlu0 %219
  %v221 = vlaneseq
  %v222 = vshrl.u32 %v221, 7
  %v223 = vsub.s32 0, %v222
  %v224 = vrot.slane %v196, %v223
  %vm225 = vcmp.ne.s32.totalorder %v199, %v224
  %vm226 = vcmp.ne.s32.totalorder %v202, %v224
  %vm227 = vcmp.ne.s32.totalorder %v205, %v224
  %vm228 = vcmp.ne.s32.totalorder %v208, %v224
  %vm229 = vcmp.ne.s32.totalorder %v211, %v224
  %vm230 = vcmp.ne.s32.totalorder %v214, %v224
  %vm231 = vcmp.ne.s32.totalorder %v217, %v224
  %vm232 = vcmp.ne.s32.totalorder %v220, %v224
  %v233 = vsel %vm225, 1, 0
  %v234 = vsel %vm226, 1, 0
  %v235 = vsel %vm227, 1, 0
  %v236 = vsel %vm228, 1, 0
  %v237 = vsel %vm229, 1, 0
  %v238 = vsel %vm230, 1, 0
  %v239 = vsel %vm231, 1, 0
  %v240 = vsel %vm232, 1, 0
  %v241 = vcvt.s32.f32 %v233
  %v242 = vcvt.s32.f32 %v234
  %v243 = vcvt.s32.f32 %v235
  %v244 = vcvt.s32.f32 %v236
  %v245 = vcvt.s32.f32 %v237
  %v246 = vcvt.s32.f32 %v238
  %v247 = vcvt.s32.f32 %v239
  %v248 = vcvt.s32.f32 %v240
  %v249 = vld [vmem:[%s2] sm:$0x1]
  %v250 = vmul.f32 %v158, 2.0
  %v251 = vmul.f32 %v161, 2.0
  %v252 = vmul.f32 %v166, 2.0
  %v253 = vmul.f32 %v169, 2.0
  %v254 = vmul.f32 %v174, 2.0
  %v255 = vmul.f32 %v177, 2.0
  %v256 = vmul.f32 %v182, 2.0
  %v257 = vmul.f32 %v185, 2.0
  %v259 = vlaneseq
  %v260 = vshrl.u32 %v259, 7
  %v261 = vsub.s32 0, %v260
  %v262 = vrot.slane %v249, %v261
  %v264 = vsub.f32 %v262, %v250
  %v265 = vsub.f32 %v262, %v251
  %v266 = vsub.f32 %v262, %v252
  %v267 = vsub.f32 %v262, %v253
  %v268 = vsub.f32 %v262, %v254
  %v269 = vsub.f32 %v262, %v255
  %v270 = vsub.f32 %v262, %v256
  %v271 = vsub.f32 %v262, %v257
  %v272 = vmul.f32 %v241, 1e+09
  %v273 = vmul.f32 %v242, 1e+09
  %v274 = vmul.f32 %v243, 1e+09
  %v275 = vmul.f32 %v244, 1e+09
  %v276 = vmul.f32 %v245, 1e+09
  %v277 = vmul.f32 %v246, 1e+09
  %v278 = vmul.f32 %v247, 1e+09
  %v279 = vmul.f32 %v248, 1e+09
  %v280 = vadd.f32 %v264, %v272
  %v281 = vadd.f32 %v265, %v273
  %v282 = vadd.f32 %v266, %v274
  %v283 = vadd.f32 %v267, %v275
  %v284 = vadd.f32 %v268, %v276
  %v285 = vadd.f32 %v269, %v277
  %v286 = vadd.f32 %v270, %v278
  %v287 = vadd.f32 %v271, %v279
  %v288 = vlaneseq
  %v289 = vand.u32 %v288, 127
  %s290 = smul.u32 0, 64
  %v291 = vstv %s290
  %v292 = vadd.s32 %v289, %v291
  %v293 = vld [vmem:[#allocation2] sm:$0xff]
  %v294 = vld [vmem:[#allocation2 + $0x8] sm:$0xff]
  %v295 = vld [vmem:[#allocation2 + $0x10] sm:$0xff]
  %v296 = vld [vmem:[#allocation2 + $0x18] sm:$0xff]
  %v297 = vld [vmem:[#allocation2 + $0x20] sm:$0xff]
  %v298 = vld [vmem:[#allocation2 + $0x28] sm:$0xff]
  %v299 = vld [vmem:[#allocation2 + $0x30] sm:$0xff]
  %v300 = vld [vmem:[#allocation2 + $0x38] sm:$0xff]
  %309 = vrot.lane.b32.xlu0 %v280, 8
  %v310 = vpop.permute.xlu0 %309
  %311 = vrot.lane.b32.xlu0 %v281, 8
  %v312 = vpop.permute.xlu0 %311
  %313 = vrot.lane.b32.xlu0 %v282, 8
  %v314 = vpop.permute.xlu0 %313
  %315 = vrot.lane.b32.xlu0 %v283, 8
  %v316 = vpop.permute.xlu0 %315
  %317 = vrot.lane.b32.xlu0 %v284, 8
  %v318 = vpop.permute.xlu0 %317
  %319 = vrot.lane.b32.xlu0 %v285, 8
  %v320 = vpop.permute.xlu0 %319
  %321 = vrot.lane.b32.xlu0 %v286, 8
  %v322 = vpop.permute.xlu0 %321
  %323 = vrot.lane.b32.xlu0 %v287, 8
  %v324 = vpop.permute.xlu0 %323
  %vm333 = vcmask 64512
  %v334 = vsel %vm333, %v293, %v310
  %v335 = vsel %vm333, %v294, %v312
  %v336 = vsel %vm333, %v295, %v314
  %v337 = vsel %vm333, %v296, %v316
  %v338 = vsel %vm333, %v297, %v318
  %v339 = vsel %vm333, %v298, %v320
  %v340 = vsel %vm333, %v299, %v322
  %v341 = vsel %vm333, %v300, %v324
  %v342 = vld [vmem:[#allocation3] sm:$0xff]
  %v343 = vld [vmem:[#allocation3 + $0x8] sm:$0xff]
  %v344 = vld [vmem:[#allocation3 + $0x10] sm:$0xff]
  %v345 = vld [vmem:[#allocation3 + $0x18] sm:$0xff]
  %v346 = vld [vmem:[#allocation3 + $0x20] sm:$0xff]
  %v347 = vld [vmem:[#allocation3 + $0x28] sm:$0xff]
  %v348 = vld [vmem:[#allocation3 + $0x30] sm:$0xff]
  %v349 = vld [vmem:[#allocation3 + $0x38] sm:$0xff]
  %350 = vrot.lane.b32.xlu0 %v292, 8
  %v351 = vpop.permute.xlu0 %350
  %v352 = vsel %vm333, %v342, %v351
  %v353 = vsel %vm333, %v343, %v351
  %v354 = vsel %vm333, %v344, %v351
  %v355 = vsel %vm333, %v345, %v351
  %v356 = vsel %vm333, %v346, %v351
  %v357 = vsel %vm333, %v347, %v351
  %v358 = vsel %vm333, %v348, %v351
  %v359 = vsel %vm333, %v349, %v351
  %vm360 = vcmask 588800
  %v361 = vsel %vm360, %v334, inf
  %362 = vmin.xlane.f32.xlu0 %v361
  %v363 = vpop.xlane.xlu0 %362
  %v364 = vsel %vm360, %v335, inf
  %365 = vmin.xlane.f32.xlu0 %v364
  %v366 = vpop.xlane.xlu0 %365
  %v367 = vsel %vm360, %v336, inf
  %368 = vmin.xlane.f32.xlu0 %v367
  %v369 = vpop.xlane.xlu0 %368
  %v370 = vsel %vm360, %v337, inf
  %371 = vmin.xlane.f32.xlu0 %v370
  %v372 = vpop.xlane.xlu0 %371
  %v373 = vsel %vm360, %v338, inf
  %374 = vmin.xlane.f32.xlu0 %v373
  %v375 = vpop.xlane.xlu0 %374
  %v376 = vsel %vm360, %v339, inf
  %377 = vmin.xlane.f32.xlu0 %v376
  %v378 = vpop.xlane.xlu0 %377
  %v379 = vsel %vm360, %v340, inf
  %380 = vmin.xlane.f32.xlu0 %v379
  %v381 = vpop.xlane.xlu0 %380
  %v382 = vsel %vm360, %v341, inf
  %383 = vmin.xlane.f32.xlu0 %v382
  %v384 = vpop.xlane.xlu0 %383
  %vm385 = vcmp.eq.f32.partialorder %v334, %v363
  %vm386 = vcmp.eq.f32.partialorder %v335, %v366
  %vm387 = vcmp.eq.f32.partialorder %v336, %v369
  %vm388 = vcmp.eq.f32.partialorder %v337, %v372
  %vm389 = vcmp.eq.f32.partialorder %v338, %v375
  %vm390 = vcmp.eq.f32.partialorder %v339, %v378
  %vm391 = vcmp.eq.f32.partialorder %v340, %v381
  %vm392 = vcmp.eq.f32.partialorder %v341, %v384
  %v393 = vsel %vm385, %v289, 1073741824
  %v394 = vsel %vm386, %v289, 1073741824
  %v395 = vsel %vm387, %v289, 1073741824
  %v396 = vsel %vm388, %v289, 1073741824
  %v397 = vsel %vm389, %v289, 1073741824
  %v398 = vsel %vm390, %v289, 1073741824
  %v399 = vsel %vm391, %v289, 1073741824
  %v400 = vsel %vm392, %v289, 1073741824
  %v401 = vsel %vm360, %v393, 2147483647
  %v402 = vand.u32 %v401, 65535
  %v403 = vshra.s32 %v401, 16
  %v404 = vcvt.s32.f32 %v402
  %v405 = vcvt.s32.f32 %v403
  %406 = vmin.xlane.f32.xlu0 %v405
  %v407 = vpop.xlane.xlu0 %406
  %vm408 = vcmp.eq.f32.partialorder %v405, %v407
  %v409 = vsel %vm408, %v404, inf
  %410 = vmin.xlane.f32.xlu0 %v409
  %v411 = vpop.xlane.xlu0 %410
  %v412 = vcvt.f32.s32 %v411
  %v413 = vcvt.f32.s32 %v407
  %v414 = vshll.u32 %v413, 16
  %v415 = vadd.s32 %v414, %v412
  %v416 = vsel %vm360, %v394, 2147483647
  %v417 = vand.u32 %v416, 65535
  %v418 = vshra.s32 %v416, 16
  %v419 = vcvt.s32.f32 %v417
  %v420 = vcvt.s32.f32 %v418
  %421 = vmin.xlane.f32.xlu0 %v420
  %v422 = vpop.xlane.xlu0 %421
  %vm423 = vcmp.eq.f32.partialorder %v420, %v422
  %v424 = vsel %vm423, %v419, inf
  %425 = vmin.xlane.f32.xlu0 %v424
  %v426 = vpop.xlane.xlu0 %425
  %v427 = vcvt.f32.s32 %v426
  %v428 = vcvt.f32.s32 %v422
  %v429 = vshll.u32 %v428, 16
  %v430 = vadd.s32 %v429, %v427
  %v431 = vsel %vm360, %v395, 2147483647
  %v432 = vand.u32 %v431, 65535
  %v433 = vshra.s32 %v431, 16
  %v434 = vcvt.s32.f32 %v432
  %v435 = vcvt.s32.f32 %v433
  %436 = vmin.xlane.f32.xlu0 %v435
  %v437 = vpop.xlane.xlu0 %436
  %vm438 = vcmp.eq.f32.partialorder %v435, %v437
  %v439 = vsel %vm438, %v434, inf
  %440 = vmin.xlane.f32.xlu0 %v439
  %v441 = vpop.xlane.xlu0 %440
  %v442 = vcvt.f32.s32 %v441
  %v443 = vcvt.f32.s32 %v437
  %v444 = vshll.u32 %v443, 16
  %v445 = vadd.s32 %v444, %v442
  %v446 = vsel %vm360, %v396, 2147483647
  %v447 = vand.u32 %v446, 65535
  %v448 = vshra.s32 %v446, 16
  %v449 = vcvt.s32.f32 %v447
  %v450 = vcvt.s32.f32 %v448
  %451 = vmin.xlane.f32.xlu0 %v450
  %v452 = vpop.xlane.xlu0 %451
  %vm453 = vcmp.eq.f32.partialorder %v450, %v452
  %v454 = vsel %vm453, %v449, inf
  %455 = vmin.xlane.f32.xlu0 %v454
  %v456 = vpop.xlane.xlu0 %455
  %v457 = vcvt.f32.s32 %v456
  %v458 = vcvt.f32.s32 %v452
  %v459 = vshll.u32 %v458, 16
  %v460 = vadd.s32 %v459, %v457
  %v461 = vsel %vm360, %v397, 2147483647
  %v462 = vand.u32 %v461, 65535
  %v463 = vshra.s32 %v461, 16
  %v464 = vcvt.s32.f32 %v462
  %v465 = vcvt.s32.f32 %v463
  %466 = vmin.xlane.f32.xlu0 %v465
  %v467 = vpop.xlane.xlu0 %466
  %vm468 = vcmp.eq.f32.partialorder %v465, %v467
  %v469 = vsel %vm468, %v464, inf
  %470 = vmin.xlane.f32.xlu0 %v469
  %v471 = vpop.xlane.xlu0 %470
  %v472 = vcvt.f32.s32 %v471
  %v473 = vcvt.f32.s32 %v467
  %v474 = vshll.u32 %v473, 16
  %v475 = vadd.s32 %v474, %v472
  %v476 = vsel %vm360, %v398, 2147483647
  %v477 = vand.u32 %v476, 65535
  %v478 = vshra.s32 %v476, 16
  %v479 = vcvt.s32.f32 %v477
  %v480 = vcvt.s32.f32 %v478
  %481 = vmin.xlane.f32.xlu0 %v480
  %v482 = vpop.xlane.xlu0 %481
  %vm483 = vcmp.eq.f32.partialorder %v480, %v482
  %v484 = vsel %vm483, %v479, inf
  %485 = vmin.xlane.f32.xlu0 %v484
  %v486 = vpop.xlane.xlu0 %485
  %v487 = vcvt.f32.s32 %v486
  %v488 = vcvt.f32.s32 %v482
  %v489 = vshll.u32 %v488, 16
  %v490 = vadd.s32 %v489, %v487
  %v491 = vsel %vm360, %v399, 2147483647
  %v492 = vand.u32 %v491, 65535
  %v493 = vshra.s32 %v491, 16
  %v494 = vcvt.s32.f32 %v492
  %v495 = vcvt.s32.f32 %v493
  %496 = vmin.xlane.f32.xlu0 %v495
  %v497 = vpop.xlane.xlu0 %496
  %vm498 = vcmp.eq.f32.partialorder %v495, %v497
  %v499 = vsel %vm498, %v494, inf
  %500 = vmin.xlane.f32.xlu0 %v499
  %v501 = vpop.xlane.xlu0 %500
  %v502 = vcvt.f32.s32 %v501
  %v503 = vcvt.f32.s32 %v497
  %v504 = vshll.u32 %v503, 16
  %v505 = vadd.s32 %v504, %v502
  %v506 = vsel %vm360, %v400, 2147483647
  %v507 = vand.u32 %v506, 65535
  %v508 = vshra.s32 %v506, 16
  %v509 = vcvt.s32.f32 %v507
  %v510 = vcvt.s32.f32 %v508
  %511 = vmin.xlane.f32.xlu0 %v510
  %v512 = vpop.xlane.xlu0 %511
  %vm513 = vcmp.eq.f32.partialorder %v510, %v512
  %v514 = vsel %vm513, %v509, inf
  %515 = vmin.xlane.f32.xlu0 %v514
  %v516 = vpop.xlane.xlu0 %515
  %v517 = vcvt.f32.s32 %v516
  %v518 = vcvt.f32.s32 %v512
  %v519 = vshll.u32 %v518, 16
  %v520 = vadd.s32 %v519, %v517
  %vm521 = vcmp.eq.s32.totalorder %v289, %v415
  %vm522 = vcmp.eq.s32.totalorder %v289, %v430
  %vm523 = vcmp.eq.s32.totalorder %v289, %v445
  %vm524 = vcmp.eq.s32.totalorder %v289, %v460
  %vm525 = vcmp.eq.s32.totalorder %v289, %v475
  %vm526 = vcmp.eq.s32.totalorder %v289, %v490
  %vm527 = vcmp.eq.s32.totalorder %v289, %v505
  %vm528 = vcmp.eq.s32.totalorder %v289, %v520
  %v529 = vsel %vm521, %v352, 0
  %v530 = vsel %vm522, %v353, 0
  %v531 = vsel %vm523, %v354, 0
  %v532 = vsel %vm524, %v355, 0
  %v533 = vsel %vm525, %v356, 0
  %v534 = vsel %vm526, %v357, 0
  %v535 = vsel %vm527, %v358, 0
  %v536 = vsel %vm528, %v359, 0
  %v537 = vsel %vm360, %v529, 2147483648
  %v538 = vand.u32 %v537, 65535
  %v539 = vshra.s32 %v537, 16
  %v540 = vcvt.s32.f32 %v538
  %v541 = vcvt.s32.f32 %v539
  %542 = vmax.xlane.f32.xlu0 %v541
  %v543 = vpop.xlane.xlu0 %542
  %vm544 = vcmp.eq.f32.partialorder %v541, %v543
  %v545 = vsel %vm544, %v540, -inf
  %546 = vmax.xlane.f32.xlu0 %v545
  %v547 = vpop.xlane.xlu0 %546
  %v548 = vcvt.f32.s32 %v547
  %v549 = vcvt.f32.s32 %v543
  %v550 = vshll.u32 %v549, 16
  %v551 = vadd.s32 %v550, %v548
  %v552 = vsel %vm360, %v530, 2147483648
  %v553 = vand.u32 %v552, 65535
  %v554 = vshra.s32 %v552, 16
  %v555 = vcvt.s32.f32 %v553
  %v556 = vcvt.s32.f32 %v554
  %557 = vmax.xlane.f32.xlu0 %v556
  %v558 = vpop.xlane.xlu0 %557
  %vm559 = vcmp.eq.f32.partialorder %v556, %v558
  %v560 = vsel %vm559, %v555, -inf
  %561 = vmax.xlane.f32.xlu0 %v560
  %v562 = vpop.xlane.xlu0 %561
  %v563 = vcvt.f32.s32 %v562
  %v564 = vcvt.f32.s32 %v558
  %v565 = vshll.u32 %v564, 16
  %v566 = vadd.s32 %v565, %v563
  %v567 = vsel %vm360, %v531, 2147483648
  %v568 = vand.u32 %v567, 65535
  %v569 = vshra.s32 %v567, 16
  %v570 = vcvt.s32.f32 %v568
  %v571 = vcvt.s32.f32 %v569
  %572 = vmax.xlane.f32.xlu0 %v571
  %v573 = vpop.xlane.xlu0 %572
  %vm574 = vcmp.eq.f32.partialorder %v571, %v573
  %v575 = vsel %vm574, %v570, -inf
  %576 = vmax.xlane.f32.xlu0 %v575
  %v577 = vpop.xlane.xlu0 %576
  %v578 = vcvt.f32.s32 %v577
  %v579 = vcvt.f32.s32 %v573
  %v580 = vshll.u32 %v579, 16
  %v581 = vadd.s32 %v580, %v578
  %v582 = vsel %vm360, %v532, 2147483648
  %v583 = vand.u32 %v582, 65535
  %v584 = vshra.s32 %v582, 16
  %v585 = vcvt.s32.f32 %v583
  %v586 = vcvt.s32.f32 %v584
  %587 = vmax.xlane.f32.xlu0 %v586
  %v588 = vpop.xlane.xlu0 %587
  %vm589 = vcmp.eq.f32.partialorder %v586, %v588
  %v590 = vsel %vm589, %v585, -inf
  %591 = vmax.xlane.f32.xlu0 %v590
  %v592 = vpop.xlane.xlu0 %591
  %v593 = vcvt.f32.s32 %v592
  %v594 = vcvt.f32.s32 %v588
  %v595 = vshll.u32 %v594, 16
  %v596 = vadd.s32 %v595, %v593
  %v597 = vsel %vm360, %v533, 2147483648
  %v598 = vand.u32 %v597, 65535
  %v599 = vshra.s32 %v597, 16
  %v600 = vcvt.s32.f32 %v598
  %v601 = vcvt.s32.f32 %v599
  %602 = vmax.xlane.f32.xlu0 %v601
  %v603 = vpop.xlane.xlu0 %602
  %vm604 = vcmp.eq.f32.partialorder %v601, %v603
  %v605 = vsel %vm604, %v600, -inf
  %606 = vmax.xlane.f32.xlu0 %v605
  %v607 = vpop.xlane.xlu0 %606
  %v608 = vcvt.f32.s32 %v607
  %v609 = vcvt.f32.s32 %v603
  %v610 = vshll.u32 %v609, 16
  %v611 = vadd.s32 %v610, %v608
  %v612 = vsel %vm360, %v534, 2147483648
  %v613 = vand.u32 %v612, 65535
  %v614 = vshra.s32 %v612, 16
  %v615 = vcvt.s32.f32 %v613
  %v616 = vcvt.s32.f32 %v614
  %617 = vmax.xlane.f32.xlu0 %v616
  %v618 = vpop.xlane.xlu0 %617
  %vm619 = vcmp.eq.f32.partialorder %v616, %v618
  %v620 = vsel %vm619, %v615, -inf
  %621 = vmax.xlane.f32.xlu0 %v620
  %v622 = vpop.xlane.xlu0 %621
  %v623 = vcvt.f32.s32 %v622
  %v624 = vcvt.f32.s32 %v618
  %v625 = vshll.u32 %v624, 16
  %v626 = vadd.s32 %v625, %v623
  %v627 = vsel %vm360, %v535, 2147483648
  %v628 = vand.u32 %v627, 65535
  %v629 = vshra.s32 %v627, 16
  %v630 = vcvt.s32.f32 %v628
  %v631 = vcvt.s32.f32 %v629
  %632 = vmax.xlane.f32.xlu0 %v631
  %v633 = vpop.xlane.xlu0 %632
  %vm634 = vcmp.eq.f32.partialorder %v631, %v633
  %v635 = vsel %vm634, %v630, -inf
  %636 = vmax.xlane.f32.xlu0 %v635
  %v637 = vpop.xlane.xlu0 %636
  %v638 = vcvt.f32.s32 %v637
  %v639 = vcvt.f32.s32 %v633
  %v640 = vshll.u32 %v639, 16
  %v641 = vadd.s32 %v640, %v638
  %v642 = vsel %vm360, %v536, 2147483648
  %v643 = vand.u32 %v642, 65535
  %v644 = vshra.s32 %v642, 16
  %v645 = vcvt.s32.f32 %v643
  %v646 = vcvt.s32.f32 %v644
  %647 = vmax.xlane.f32.xlu0 %v646
  %v648 = vpop.xlane.xlu0 %647
  %vm649 = vcmp.eq.f32.partialorder %v646, %v648
  %v650 = vsel %vm649, %v645, -inf
  %651 = vmax.xlane.f32.xlu0 %v650
  %v652 = vpop.xlane.xlu0 %651
  %v653 = vcvt.f32.s32 %v652
  %v654 = vcvt.f32.s32 %v648
  %v655 = vshll.u32 %v654, 16
  %v656 = vadd.s32 %v655, %v653
  %v657 = vsel %vm521, 1e+30, %v334
  %v658 = vsel %vm522, 1e+30, %v335
  %v659 = vsel %vm523, 1e+30, %v336
  %v660 = vsel %vm524, 1e+30, %v337
  %v661 = vsel %vm525, 1e+30, %v338
  %v662 = vsel %vm526, 1e+30, %v339
  %v663 = vsel %vm527, 1e+30, %v340
  %v664 = vsel %vm528, 1e+30, %v341
  %v665 = vsel %vm360, %v657, inf
  %666 = vmin.xlane.f32.xlu0 %v665
  %v667 = vpop.xlane.xlu0 %666
  %v668 = vsel %vm360, %v658, inf
  %669 = vmin.xlane.f32.xlu0 %v668
  %v670 = vpop.xlane.xlu0 %669
  %v671 = vsel %vm360, %v659, inf
  %672 = vmin.xlane.f32.xlu0 %v671
  %v673 = vpop.xlane.xlu0 %672
  %v674 = vsel %vm360, %v660, inf
  %675 = vmin.xlane.f32.xlu0 %v674
  %v676 = vpop.xlane.xlu0 %675
  %v677 = vsel %vm360, %v661, inf
  %678 = vmin.xlane.f32.xlu0 %v677
  %v679 = vpop.xlane.xlu0 %678
  %v680 = vsel %vm360, %v662, inf
  %681 = vmin.xlane.f32.xlu0 %v680
  %v682 = vpop.xlane.xlu0 %681
  %v683 = vsel %vm360, %v663, inf
  %684 = vmin.xlane.f32.xlu0 %v683
  %v685 = vpop.xlane.xlu0 %684
  %v686 = vsel %vm360, %v664, inf
  %687 = vmin.xlane.f32.xlu0 %v686
  %v688 = vpop.xlane.xlu0 %687
  %vm689 = vcmp.eq.f32.partialorder %v657, %v667
  %vm690 = vcmp.eq.f32.partialorder %v658, %v670
  %vm691 = vcmp.eq.f32.partialorder %v659, %v673
  %vm692 = vcmp.eq.f32.partialorder %v660, %v676
  %vm693 = vcmp.eq.f32.partialorder %v661, %v679
  %vm694 = vcmp.eq.f32.partialorder %v662, %v682
  %vm695 = vcmp.eq.f32.partialorder %v663, %v685
  %vm696 = vcmp.eq.f32.partialorder %v664, %v688
  %v697 = vsel %vm689, %v289, 1073741824
  %v698 = vsel %vm690, %v289, 1073741824
  %v699 = vsel %vm691, %v289, 1073741824
  %v700 = vsel %vm692, %v289, 1073741824
  %v701 = vsel %vm693, %v289, 1073741824
  %v702 = vsel %vm694, %v289, 1073741824
  %v703 = vsel %vm695, %v289, 1073741824
  %v704 = vsel %vm696, %v289, 1073741824
  %v705 = vsel %vm360, %v697, 2147483647
  %v706 = vand.u32 %v705, 65535
  %v707 = vshra.s32 %v705, 16
  %v708 = vcvt.s32.f32 %v706
  %v709 = vcvt.s32.f32 %v707
  %710 = vmin.xlane.f32.xlu0 %v709
  %v711 = vpop.xlane.xlu0 %710
  %vm712 = vcmp.eq.f32.partialorder %v709, %v711
  %v713 = vsel %vm712, %v708, inf
  %714 = vmin.xlane.f32.xlu0 %v713
  %v715 = vpop.xlane.xlu0 %714
  %v716 = vcvt.f32.s32 %v715
  %v717 = vcvt.f32.s32 %v711
  %v718 = vshll.u32 %v717, 16
  %v719 = vadd.s32 %v718, %v716
  %v720 = vsel %vm360, %v698, 2147483647
  %v721 = vand.u32 %v720, 65535
  %v722 = vshra.s32 %v720, 16
  %v723 = vcvt.s32.f32 %v721
  %v724 = vcvt.s32.f32 %v722
  %725 = vmin.xlane.f32.xlu0 %v724
  %v726 = vpop.xlane.xlu0 %725
  %vm727 = vcmp.eq.f32.partialorder %v724, %v726
  %v728 = vsel %vm727, %v723, inf
  %729 = vmin.xlane.f32.xlu0 %v728
  %v730 = vpop.xlane.xlu0 %729
  %v731 = vcvt.f32.s32 %v730
  %v732 = vcvt.f32.s32 %v726
  %v733 = vshll.u32 %v732, 16
  %v734 = vadd.s32 %v733, %v731
  %v735 = vsel %vm360, %v699, 2147483647
  %v736 = vand.u32 %v735, 65535
  %v737 = vshra.s32 %v735, 16
  %v738 = vcvt.s32.f32 %v736
  %v739 = vcvt.s32.f32 %v737
  %740 = vmin.xlane.f32.xlu0 %v739
  %v741 = vpop.xlane.xlu0 %740
  %vm742 = vcmp.eq.f32.partialorder %v739, %v741
  %v743 = vsel %vm742, %v738, inf
  %744 = vmin.xlane.f32.xlu0 %v743
  %v745 = vpop.xlane.xlu0 %744
  %v746 = vcvt.f32.s32 %v745
  %v747 = vcvt.f32.s32 %v741
  %v748 = vshll.u32 %v747, 16
  %v749 = vadd.s32 %v748, %v746
  %v750 = vsel %vm360, %v700, 2147483647
  %v751 = vand.u32 %v750, 65535
  %v752 = vshra.s32 %v750, 16
  %v753 = vcvt.s32.f32 %v751
  %v754 = vcvt.s32.f32 %v752
  %755 = vmin.xlane.f32.xlu0 %v754
  %v756 = vpop.xlane.xlu0 %755
  %vm757 = vcmp.eq.f32.partialorder %v754, %v756
  %v758 = vsel %vm757, %v753, inf
  %759 = vmin.xlane.f32.xlu0 %v758
  %v760 = vpop.xlane.xlu0 %759
  %v761 = vcvt.f32.s32 %v760
  %v762 = vcvt.f32.s32 %v756
  %v763 = vshll.u32 %v762, 16
  %v764 = vadd.s32 %v763, %v761
  %v765 = vsel %vm360, %v701, 2147483647
  %v766 = vand.u32 %v765, 65535
  %v767 = vshra.s32 %v765, 16
  %v768 = vcvt.s32.f32 %v766
  %v769 = vcvt.s32.f32 %v767
  %770 = vmin.xlane.f32.xlu0 %v769
  %v771 = vpop.xlane.xlu0 %770
  %vm772 = vcmp.eq.f32.partialorder %v769, %v771
  %v773 = vsel %vm772, %v768, inf
  %774 = vmin.xlane.f32.xlu0 %v773
  %v775 = vpop.xlane.xlu0 %774
  %v776 = vcvt.f32.s32 %v775
  %v777 = vcvt.f32.s32 %v771
  %v778 = vshll.u32 %v777, 16
  %v779 = vadd.s32 %v778, %v776
  %v780 = vsel %vm360, %v702, 2147483647
  %v781 = vand.u32 %v780, 65535
  %v782 = vshra.s32 %v780, 16
  %v783 = vcvt.s32.f32 %v781
  %v784 = vcvt.s32.f32 %v782
  %785 = vmin.xlane.f32.xlu0 %v784
  %v786 = vpop.xlane.xlu0 %785
  %vm787 = vcmp.eq.f32.partialorder %v784, %v786
  %v788 = vsel %vm787, %v783, inf
  %789 = vmin.xlane.f32.xlu0 %v788
  %v790 = vpop.xlane.xlu0 %789
  %v791 = vcvt.f32.s32 %v790
  %v792 = vcvt.f32.s32 %v786
  %v793 = vshll.u32 %v792, 16
  %v794 = vadd.s32 %v793, %v791
  %v795 = vsel %vm360, %v703, 2147483647
  %v796 = vand.u32 %v795, 65535
  %v797 = vshra.s32 %v795, 16
  %v798 = vcvt.s32.f32 %v796
  %v799 = vcvt.s32.f32 %v797
  %800 = vmin.xlane.f32.xlu0 %v799
  %v801 = vpop.xlane.xlu0 %800
  %vm802 = vcmp.eq.f32.partialorder %v799, %v801
  %v803 = vsel %vm802, %v798, inf
  %804 = vmin.xlane.f32.xlu0 %v803
  %v805 = vpop.xlane.xlu0 %804
  %v806 = vcvt.f32.s32 %v805
  %v807 = vcvt.f32.s32 %v801
  %v808 = vshll.u32 %v807, 16
  %v809 = vadd.s32 %v808, %v806
  %v810 = vsel %vm360, %v704, 2147483647
  %v811 = vand.u32 %v810, 65535
  %v812 = vshra.s32 %v810, 16
  %v813 = vcvt.s32.f32 %v811
  %v814 = vcvt.s32.f32 %v812
  %815 = vmin.xlane.f32.xlu0 %v814
  %v816 = vpop.xlane.xlu0 %815
  %vm817 = vcmp.eq.f32.partialorder %v814, %v816
  %v818 = vsel %vm817, %v813, inf
  %819 = vmin.xlane.f32.xlu0 %v818
  %v820 = vpop.xlane.xlu0 %819
  %v821 = vcvt.f32.s32 %v820
  %v822 = vcvt.f32.s32 %v816
  %v823 = vshll.u32 %v822, 16
  %v824 = vadd.s32 %v823, %v821
  %vm825 = vcmp.eq.s32.totalorder %v289, %v719
  %vm826 = vcmp.eq.s32.totalorder %v289, %v734
  %vm827 = vcmp.eq.s32.totalorder %v289, %v749
  %vm828 = vcmp.eq.s32.totalorder %v289, %v764
  %vm829 = vcmp.eq.s32.totalorder %v289, %v779
  %vm830 = vcmp.eq.s32.totalorder %v289, %v794
  %vm831 = vcmp.eq.s32.totalorder %v289, %v809
  %vm832 = vcmp.eq.s32.totalorder %v289, %v824
  %v833 = vsel %vm825, %v352, 0
  %v834 = vsel %vm826, %v353, 0
  %v835 = vsel %vm827, %v354, 0
  %v836 = vsel %vm828, %v355, 0
  %v837 = vsel %vm829, %v356, 0
  %v838 = vsel %vm830, %v357, 0
  %v839 = vsel %vm831, %v358, 0
  %v840 = vsel %vm832, %v359, 0
  %v841 = vsel %vm360, %v833, 2147483648
  %v842 = vand.u32 %v841, 65535
  %v843 = vshra.s32 %v841, 16
  %v844 = vcvt.s32.f32 %v842
  %v845 = vcvt.s32.f32 %v843
  %846 = vmax.xlane.f32.xlu0 %v845
  %v847 = vpop.xlane.xlu0 %846
  %vm848 = vcmp.eq.f32.partialorder %v845, %v847
  %v849 = vsel %vm848, %v844, -inf
  %850 = vmax.xlane.f32.xlu0 %v849
  %v851 = vpop.xlane.xlu0 %850
  %v852 = vcvt.f32.s32 %v851
  %v853 = vcvt.f32.s32 %v847
  %v854 = vshll.u32 %v853, 16
  %v855 = vadd.s32 %v854, %v852
  %v856 = vsel %vm360, %v834, 2147483648
  %v857 = vand.u32 %v856, 65535
  %v858 = vshra.s32 %v856, 16
  %v859 = vcvt.s32.f32 %v857
  %v860 = vcvt.s32.f32 %v858
  %861 = vmax.xlane.f32.xlu0 %v860
  %v862 = vpop.xlane.xlu0 %861
  %vm863 = vcmp.eq.f32.partialorder %v860, %v862
  %v864 = vsel %vm863, %v859, -inf
  %865 = vmax.xlane.f32.xlu0 %v864
  %v866 = vpop.xlane.xlu0 %865
  %v867 = vcvt.f32.s32 %v866
  %v868 = vcvt.f32.s32 %v862
  %v869 = vshll.u32 %v868, 16
  %v870 = vadd.s32 %v869, %v867
  %v871 = vsel %vm360, %v835, 2147483648
  %v872 = vand.u32 %v871, 65535
  %v873 = vshra.s32 %v871, 16
  %v874 = vcvt.s32.f32 %v872
  %v875 = vcvt.s32.f32 %v873
  %876 = vmax.xlane.f32.xlu0 %v875
  %v877 = vpop.xlane.xlu0 %876
  %vm878 = vcmp.eq.f32.partialorder %v875, %v877
  %v879 = vsel %vm878, %v874, -inf
  %880 = vmax.xlane.f32.xlu0 %v879
  %v881 = vpop.xlane.xlu0 %880
  %v882 = vcvt.f32.s32 %v881
  %v883 = vcvt.f32.s32 %v877
  %v884 = vshll.u32 %v883, 16
  %v885 = vadd.s32 %v884, %v882
  %v886 = vsel %vm360, %v836, 2147483648
  %v887 = vand.u32 %v886, 65535
  %v888 = vshra.s32 %v886, 16
  %v889 = vcvt.s32.f32 %v887
  %v890 = vcvt.s32.f32 %v888
  %891 = vmax.xlane.f32.xlu0 %v890
  %v892 = vpop.xlane.xlu0 %891
  %vm893 = vcmp.eq.f32.partialorder %v890, %v892
  %v894 = vsel %vm893, %v889, -inf
  %895 = vmax.xlane.f32.xlu0 %v894
  %v896 = vpop.xlane.xlu0 %895
  %v897 = vcvt.f32.s32 %v896
  %v898 = vcvt.f32.s32 %v892
  %v899 = vshll.u32 %v898, 16
  %v900 = vadd.s32 %v899, %v897
  %v901 = vsel %vm360, %v837, 2147483648
  %v902 = vand.u32 %v901, 65535
  %v903 = vshra.s32 %v901, 16
  %v904 = vcvt.s32.f32 %v902
  %v905 = vcvt.s32.f32 %v903
  %906 = vmax.xlane.f32.xlu0 %v905
  %v907 = vpop.xlane.xlu0 %906
  %vm908 = vcmp.eq.f32.partialorder %v905, %v907
  %v909 = vsel %vm908, %v904, -inf
  %910 = vmax.xlane.f32.xlu0 %v909
  %v911 = vpop.xlane.xlu0 %910
  %v912 = vcvt.f32.s32 %v911
  %v913 = vcvt.f32.s32 %v907
  %v914 = vshll.u32 %v913, 16
  %v915 = vadd.s32 %v914, %v912
  %v916 = vsel %vm360, %v838, 2147483648
  %v917 = vand.u32 %v916, 65535
  %v918 = vshra.s32 %v916, 16
  %v919 = vcvt.s32.f32 %v917
  %v920 = vcvt.s32.f32 %v918
  %921 = vmax.xlane.f32.xlu0 %v920
  %v922 = vpop.xlane.xlu0 %921
  %vm923 = vcmp.eq.f32.partialorder %v920, %v922
  %v924 = vsel %vm923, %v919, -inf
  %925 = vmax.xlane.f32.xlu0 %v924
  %v926 = vpop.xlane.xlu0 %925
  %v927 = vcvt.f32.s32 %v926
  %v928 = vcvt.f32.s32 %v922
  %v929 = vshll.u32 %v928, 16
  %v930 = vadd.s32 %v929, %v927
  %v931 = vsel %vm360, %v839, 2147483648
  %v932 = vand.u32 %v931, 65535
  %v933 = vshra.s32 %v931, 16
  %v934 = vcvt.s32.f32 %v932
  %v935 = vcvt.s32.f32 %v933
  %936 = vmax.xlane.f32.xlu0 %v935
  %v937 = vpop.xlane.xlu0 %936
  %vm938 = vcmp.eq.f32.partialorder %v935, %v937
  %v939 = vsel %vm938, %v934, -inf
  %940 = vmax.xlane.f32.xlu0 %v939
  %v941 = vpop.xlane.xlu0 %940
  %v942 = vcvt.f32.s32 %v941
  %v943 = vcvt.f32.s32 %v937
  %v944 = vshll.u32 %v943, 16
  %v945 = vadd.s32 %v944, %v942
  %v946 = vsel %vm360, %v840, 2147483648
  %v947 = vand.u32 %v946, 65535
  %v948 = vshra.s32 %v946, 16
  %v949 = vcvt.s32.f32 %v947
  %v950 = vcvt.s32.f32 %v948
  %951 = vmax.xlane.f32.xlu0 %v950
  %v952 = vpop.xlane.xlu0 %951
  %vm953 = vcmp.eq.f32.partialorder %v950, %v952
  %v954 = vsel %vm953, %v949, -inf
  %955 = vmax.xlane.f32.xlu0 %v954
  %v956 = vpop.xlane.xlu0 %955
  %v957 = vcvt.f32.s32 %v956
  %v958 = vcvt.f32.s32 %v952
  %v959 = vshll.u32 %v958, 16
  %v960 = vadd.s32 %v959, %v957
  %v961 = vsel %vm825, 1e+30, %v657
  %v962 = vsel %vm826, 1e+30, %v658
  %v963 = vsel %vm827, 1e+30, %v659
  %v964 = vsel %vm828, 1e+30, %v660
  %v965 = vsel %vm829, 1e+30, %v661
  %v966 = vsel %vm830, 1e+30, %v662
  %v967 = vsel %vm831, 1e+30, %v663
  %v968 = vsel %vm832, 1e+30, %v664
  %v969 = vsel %vm360, %v961, inf
  %970 = vmin.xlane.f32.xlu0 %v969
  %v971 = vpop.xlane.xlu0 %970
  %v972 = vsel %vm360, %v962, inf
  %973 = vmin.xlane.f32.xlu0 %v972
  %v974 = vpop.xlane.xlu0 %973
  %v975 = vsel %vm360, %v963, inf
  %976 = vmin.xlane.f32.xlu0 %v975
  %v977 = vpop.xlane.xlu0 %976
  %v978 = vsel %vm360, %v964, inf
  %979 = vmin.xlane.f32.xlu0 %v978
  %v980 = vpop.xlane.xlu0 %979
  %v981 = vsel %vm360, %v965, inf
  %982 = vmin.xlane.f32.xlu0 %v981
  %v983 = vpop.xlane.xlu0 %982
  %v984 = vsel %vm360, %v966, inf
  %985 = vmin.xlane.f32.xlu0 %v984
  %v986 = vpop.xlane.xlu0 %985
  %v987 = vsel %vm360, %v967, inf
  %988 = vmin.xlane.f32.xlu0 %v987
  %v989 = vpop.xlane.xlu0 %988
  %v990 = vsel %vm360, %v968, inf
  %991 = vmin.xlane.f32.xlu0 %v990
  %v992 = vpop.xlane.xlu0 %991
  %vm993 = vcmp.eq.f32.partialorder %v961, %v971
  %vm994 = vcmp.eq.f32.partialorder %v962, %v974
  %vm995 = vcmp.eq.f32.partialorder %v963, %v977
  %vm996 = vcmp.eq.f32.partialorder %v964, %v980
  %vm997 = vcmp.eq.f32.partialorder %v965, %v983
  %vm998 = vcmp.eq.f32.partialorder %v966, %v986
  %vm999 = vcmp.eq.f32.partialorder %v967, %v989
  %vm1000 = vcmp.eq.f32.partialorder %v968, %v992
  %v1001 = vsel %vm993, %v289, 1073741824
  %v1002 = vsel %vm994, %v289, 1073741824
  %v1003 = vsel %vm995, %v289, 1073741824
  %v1004 = vsel %vm996, %v289, 1073741824
  %v1005 = vsel %vm997, %v289, 1073741824
  %v1006 = vsel %vm998, %v289, 1073741824
  %v1007 = vsel %vm999, %v289, 1073741824
  %v1008 = vsel %vm1000, %v289, 1073741824
  %v1009 = vsel %vm360, %v1001, 2147483647
  %v1010 = vand.u32 %v1009, 65535
  %v1011 = vshra.s32 %v1009, 16
  %v1012 = vcvt.s32.f32 %v1010
  %v1013 = vcvt.s32.f32 %v1011
  %1014 = vmin.xlane.f32.xlu0 %v1013
  %v1015 = vpop.xlane.xlu0 %1014
  %vm1016 = vcmp.eq.f32.partialorder %v1013, %v1015
  %v1017 = vsel %vm1016, %v1012, inf
  %1018 = vmin.xlane.f32.xlu0 %v1017
  %v1019 = vpop.xlane.xlu0 %1018
  %v1020 = vcvt.f32.s32 %v1019
  %v1021 = vcvt.f32.s32 %v1015
  %v1022 = vshll.u32 %v1021, 16
  %v1023 = vadd.s32 %v1022, %v1020
  %v1024 = vsel %vm360, %v1002, 2147483647
  %v1025 = vand.u32 %v1024, 65535
  %v1026 = vshra.s32 %v1024, 16
  %v1027 = vcvt.s32.f32 %v1025
  %v1028 = vcvt.s32.f32 %v1026
  %1029 = vmin.xlane.f32.xlu0 %v1028
  %v1030 = vpop.xlane.xlu0 %1029
  %vm1031 = vcmp.eq.f32.partialorder %v1028, %v1030
  %v1032 = vsel %vm1031, %v1027, inf
  %1033 = vmin.xlane.f32.xlu0 %v1032
  %v1034 = vpop.xlane.xlu0 %1033
  %v1035 = vcvt.f32.s32 %v1034
  %v1036 = vcvt.f32.s32 %v1030
  %v1037 = vshll.u32 %v1036, 16
  %v1038 = vadd.s32 %v1037, %v1035
  %v1039 = vsel %vm360, %v1003, 2147483647
  %v1040 = vand.u32 %v1039, 65535
  %v1041 = vshra.s32 %v1039, 16
  %v1042 = vcvt.s32.f32 %v1040
  %v1043 = vcvt.s32.f32 %v1041
  %1044 = vmin.xlane.f32.xlu0 %v1043
  %v1045 = vpop.xlane.xlu0 %1044
  %vm1046 = vcmp.eq.f32.partialorder %v1043, %v1045
  %v1047 = vsel %vm1046, %v1042, inf
  %1048 = vmin.xlane.f32.xlu0 %v1047
  %v1049 = vpop.xlane.xlu0 %1048
  %v1050 = vcvt.f32.s32 %v1049
  %v1051 = vcvt.f32.s32 %v1045
  %v1052 = vshll.u32 %v1051, 16
  %v1053 = vadd.s32 %v1052, %v1050
  %v1054 = vsel %vm360, %v1004, 2147483647
  %v1055 = vand.u32 %v1054, 65535
  %v1056 = vshra.s32 %v1054, 16
  %v1057 = vcvt.s32.f32 %v1055
  %v1058 = vcvt.s32.f32 %v1056
  %1059 = vmin.xlane.f32.xlu0 %v1058
  %v1060 = vpop.xlane.xlu0 %1059
  %vm1061 = vcmp.eq.f32.partialorder %v1058, %v1060
  %v1062 = vsel %vm1061, %v1057, inf
  %1063 = vmin.xlane.f32.xlu0 %v1062
  %v1064 = vpop.xlane.xlu0 %1063
  %v1065 = vcvt.f32.s32 %v1064
  %v1066 = vcvt.f32.s32 %v1060
  %v1067 = vshll.u32 %v1066, 16
  %v1068 = vadd.s32 %v1067, %v1065
  %v1069 = vsel %vm360, %v1005, 2147483647
  %v1070 = vand.u32 %v1069, 65535
  %v1071 = vshra.s32 %v1069, 16
  %v1072 = vcvt.s32.f32 %v1070
  %v1073 = vcvt.s32.f32 %v1071
  %1074 = vmin.xlane.f32.xlu0 %v1073
  %v1075 = vpop.xlane.xlu0 %1074
  %vm1076 = vcmp.eq.f32.partialorder %v1073, %v1075
  %v1077 = vsel %vm1076, %v1072, inf
  %1078 = vmin.xlane.f32.xlu0 %v1077
  %v1079 = vpop.xlane.xlu0 %1078
  %v1080 = vcvt.f32.s32 %v1079
  %v1081 = vcvt.f32.s32 %v1075
  %v1082 = vshll.u32 %v1081, 16
  %v1083 = vadd.s32 %v1082, %v1080
  %v1084 = vsel %vm360, %v1006, 2147483647
  %v1085 = vand.u32 %v1084, 65535
  %v1086 = vshra.s32 %v1084, 16
  %v1087 = vcvt.s32.f32 %v1085
  %v1088 = vcvt.s32.f32 %v1086
  %1089 = vmin.xlane.f32.xlu0 %v1088
  %v1090 = vpop.xlane.xlu0 %1089
  %vm1091 = vcmp.eq.f32.partialorder %v1088, %v1090
  %v1092 = vsel %vm1091, %v1087, inf
  %1093 = vmin.xlane.f32.xlu0 %v1092
  %v1094 = vpop.xlane.xlu0 %1093
  %v1095 = vcvt.f32.s32 %v1094
  %v1096 = vcvt.f32.s32 %v1090
  %v1097 = vshll.u32 %v1096, 16
  %v1098 = vadd.s32 %v1097, %v1095
  %v1099 = vsel %vm360, %v1007, 2147483647
  %v1100 = vand.u32 %v1099, 65535
  %v1101 = vshra.s32 %v1099, 16
  %v1102 = vcvt.s32.f32 %v1100
  %v1103 = vcvt.s32.f32 %v1101
  %1104 = vmin.xlane.f32.xlu0 %v1103
  %v1105 = vpop.xlane.xlu0 %1104
  %vm1106 = vcmp.eq.f32.partialorder %v1103, %v1105
  %v1107 = vsel %vm1106, %v1102, inf
  %1108 = vmin.xlane.f32.xlu0 %v1107
  %v1109 = vpop.xlane.xlu0 %1108
  %v1110 = vcvt.f32.s32 %v1109
  %v1111 = vcvt.f32.s32 %v1105
  %v1112 = vshll.u32 %v1111, 16
  %v1113 = vadd.s32 %v1112, %v1110
  %v1114 = vsel %vm360, %v1008, 2147483647
  %v1115 = vand.u32 %v1114, 65535
  %v1116 = vshra.s32 %v1114, 16
  %v1117 = vcvt.s32.f32 %v1115
  %v1118 = vcvt.s32.f32 %v1116
  %1119 = vmin.xlane.f32.xlu0 %v1118
  %v1120 = vpop.xlane.xlu0 %1119
  %vm1121 = vcmp.eq.f32.partialorder %v1118, %v1120
  %v1122 = vsel %vm1121, %v1117, inf
  %1123 = vmin.xlane.f32.xlu0 %v1122
  %v1124 = vpop.xlane.xlu0 %1123
  %v1125 = vcvt.f32.s32 %v1124
  %v1126 = vcvt.f32.s32 %v1120
  %v1127 = vshll.u32 %v1126, 16
  %v1128 = vadd.s32 %v1127, %v1125
  %vm1129 = vcmp.eq.s32.totalorder %v289, %v1023
  %vm1130 = vcmp.eq.s32.totalorder %v289, %v1038
  %vm1131 = vcmp.eq.s32.totalorder %v289, %v1053
  %vm1132 = vcmp.eq.s32.totalorder %v289, %v1068
  %vm1133 = vcmp.eq.s32.totalorder %v289, %v1083
  %vm1134 = vcmp.eq.s32.totalorder %v289, %v1098
  %vm1135 = vcmp.eq.s32.totalorder %v289, %v1113
  %vm1136 = vcmp.eq.s32.totalorder %v289, %v1128
  %v1137 = vsel %vm1129, %v352, 0
  %v1138 = vsel %vm1130, %v353, 0
  %v1139 = vsel %vm1131, %v354, 0
  %v1140 = vsel %vm1132, %v355, 0
  %v1141 = vsel %vm1133, %v356, 0
  %v1142 = vsel %vm1134, %v357, 0
  %v1143 = vsel %vm1135, %v358, 0
  %v1144 = vsel %vm1136, %v359, 0
  %v1145 = vsel %vm360, %v1137, 2147483648
  %v1146 = vand.u32 %v1145, 65535
  %v1147 = vshra.s32 %v1145, 16
  %v1148 = vcvt.s32.f32 %v1146
  %v1149 = vcvt.s32.f32 %v1147
  %1150 = vmax.xlane.f32.xlu0 %v1149
  %v1151 = vpop.xlane.xlu0 %1150
  %vm1152 = vcmp.eq.f32.partialorder %v1149, %v1151
  %v1153 = vsel %vm1152, %v1148, -inf
  %1154 = vmax.xlane.f32.xlu0 %v1153
  %v1155 = vpop.xlane.xlu0 %1154
  %v1156 = vcvt.f32.s32 %v1155
  %v1157 = vcvt.f32.s32 %v1151
  %v1158 = vshll.u32 %v1157, 16
  %v1159 = vadd.s32 %v1158, %v1156
  %v1160 = vsel %vm360, %v1138, 2147483648
  %v1161 = vand.u32 %v1160, 65535
  %v1162 = vshra.s32 %v1160, 16
  %v1163 = vcvt.s32.f32 %v1161
  %v1164 = vcvt.s32.f32 %v1162
  %1165 = vmax.xlane.f32.xlu0 %v1164
  %v1166 = vpop.xlane.xlu0 %1165
  %vm1167 = vcmp.eq.f32.partialorder %v1164, %v1166
  %v1168 = vsel %vm1167, %v1163, -inf
  %1169 = vmax.xlane.f32.xlu0 %v1168
  %v1170 = vpop.xlane.xlu0 %1169
  %v1171 = vcvt.f32.s32 %v1170
  %v1172 = vcvt.f32.s32 %v1166
  %v1173 = vshll.u32 %v1172, 16
  %v1174 = vadd.s32 %v1173, %v1171
  %v1175 = vsel %vm360, %v1139, 2147483648
  %v1176 = vand.u32 %v1175, 65535
  %v1177 = vshra.s32 %v1175, 16
  %v1178 = vcvt.s32.f32 %v1176
  %v1179 = vcvt.s32.f32 %v1177
  %1180 = vmax.xlane.f32.xlu0 %v1179
  %v1181 = vpop.xlane.xlu0 %1180
  %vm1182 = vcmp.eq.f32.partialorder %v1179, %v1181
  %v1183 = vsel %vm1182, %v1178, -inf
  %1184 = vmax.xlane.f32.xlu0 %v1183
  %v1185 = vpop.xlane.xlu0 %1184
  %v1186 = vcvt.f32.s32 %v1185
  %v1187 = vcvt.f32.s32 %v1181
  %v1188 = vshll.u32 %v1187, 16
  %v1189 = vadd.s32 %v1188, %v1186
  %v1190 = vsel %vm360, %v1140, 2147483648
  %v1191 = vand.u32 %v1190, 65535
  %v1192 = vshra.s32 %v1190, 16
  %v1193 = vcvt.s32.f32 %v1191
  %v1194 = vcvt.s32.f32 %v1192
  %1195 = vmax.xlane.f32.xlu0 %v1194
  %v1196 = vpop.xlane.xlu0 %1195
  %vm1197 = vcmp.eq.f32.partialorder %v1194, %v1196
  %v1198 = vsel %vm1197, %v1193, -inf
  %1199 = vmax.xlane.f32.xlu0 %v1198
  %v1200 = vpop.xlane.xlu0 %1199
  %v1201 = vcvt.f32.s32 %v1200
  %v1202 = vcvt.f32.s32 %v1196
  %v1203 = vshll.u32 %v1202, 16
  %v1204 = vadd.s32 %v1203, %v1201
  %v1205 = vsel %vm360, %v1141, 2147483648
  %v1206 = vand.u32 %v1205, 65535
  %v1207 = vshra.s32 %v1205, 16
  %v1208 = vcvt.s32.f32 %v1206
  %v1209 = vcvt.s32.f32 %v1207
  %1210 = vmax.xlane.f32.xlu0 %v1209
  %v1211 = vpop.xlane.xlu0 %1210
  %vm1212 = vcmp.eq.f32.partialorder %v1209, %v1211
  %v1213 = vsel %vm1212, %v1208, -inf
  %1214 = vmax.xlane.f32.xlu0 %v1213
  %v1215 = vpop.xlane.xlu0 %1214
  %v1216 = vcvt.f32.s32 %v1215
  %v1217 = vcvt.f32.s32 %v1211
  %v1218 = vshll.u32 %v1217, 16
  %v1219 = vadd.s32 %v1218, %v1216
  %v1220 = vsel %vm360, %v1142, 2147483648
  %v1221 = vand.u32 %v1220, 65535
  %v1222 = vshra.s32 %v1220, 16
  %v1223 = vcvt.s32.f32 %v1221
  %v1224 = vcvt.s32.f32 %v1222
  %1225 = vmax.xlane.f32.xlu0 %v1224
  %v1226 = vpop.xlane.xlu0 %1225
  %vm1227 = vcmp.eq.f32.partialorder %v1224, %v1226
  %v1228 = vsel %vm1227, %v1223, -inf
  %1229 = vmax.xlane.f32.xlu0 %v1228
  %v1230 = vpop.xlane.xlu0 %1229
  %v1231 = vcvt.f32.s32 %v1230
  %v1232 = vcvt.f32.s32 %v1226
  %v1233 = vshll.u32 %v1232, 16
  %v1234 = vadd.s32 %v1233, %v1231
  %v1235 = vsel %vm360, %v1143, 2147483648
  %v1236 = vand.u32 %v1235, 65535
  %v1237 = vshra.s32 %v1235, 16
  %v1238 = vcvt.s32.f32 %v1236
  %v1239 = vcvt.s32.f32 %v1237
  %1240 = vmax.xlane.f32.xlu0 %v1239
  %v1241 = vpop.xlane.xlu0 %1240
  %vm1242 = vcmp.eq.f32.partialorder %v1239, %v1241
  %v1243 = vsel %vm1242, %v1238, -inf
  %1244 = vmax.xlane.f32.xlu0 %v1243
  %v1245 = vpop.xlane.xlu0 %1244
  %v1246 = vcvt.f32.s32 %v1245
  %v1247 = vcvt.f32.s32 %v1241
  %v1248 = vshll.u32 %v1247, 16
  %v1249 = vadd.s32 %v1248, %v1246
  %v1250 = vsel %vm360, %v1144, 2147483648
  %v1251 = vand.u32 %v1250, 65535
  %v1252 = vshra.s32 %v1250, 16
  %v1253 = vcvt.s32.f32 %v1251
  %v1254 = vcvt.s32.f32 %v1252
  %1255 = vmax.xlane.f32.xlu0 %v1254
  %v1256 = vpop.xlane.xlu0 %1255
  %vm1257 = vcmp.eq.f32.partialorder %v1254, %v1256
  %v1258 = vsel %vm1257, %v1253, -inf
  %1259 = vmax.xlane.f32.xlu0 %v1258
  %v1260 = vpop.xlane.xlu0 %1259
  %v1261 = vcvt.f32.s32 %v1260
  %v1262 = vcvt.f32.s32 %v1256
  %v1263 = vshll.u32 %v1262, 16
  %v1264 = vadd.s32 %v1263, %v1261
  %v1265 = vsel %vm1129, 1e+30, %v961
  %v1266 = vsel %vm1130, 1e+30, %v962
  %v1267 = vsel %vm1131, 1e+30, %v963
  %v1268 = vsel %vm1132, 1e+30, %v964
  %v1269 = vsel %vm1133, 1e+30, %v965
  %v1270 = vsel %vm1134, 1e+30, %v966
  %v1271 = vsel %vm1135, 1e+30, %v967
  %v1272 = vsel %vm1136, 1e+30, %v968
  %v1273 = vsel %vm360, %v1265, inf
  %1274 = vmin.xlane.f32.xlu0 %v1273
  %v1275 = vpop.xlane.xlu0 %1274
  %v1276 = vsel %vm360, %v1266, inf
  %1277 = vmin.xlane.f32.xlu0 %v1276
  %v1278 = vpop.xlane.xlu0 %1277
  %v1279 = vsel %vm360, %v1267, inf
  %1280 = vmin.xlane.f32.xlu0 %v1279
  %v1281 = vpop.xlane.xlu0 %1280
  %v1282 = vsel %vm360, %v1268, inf
  %1283 = vmin.xlane.f32.xlu0 %v1282
  %v1284 = vpop.xlane.xlu0 %1283
  %v1285 = vsel %vm360, %v1269, inf
  %1286 = vmin.xlane.f32.xlu0 %v1285
  %v1287 = vpop.xlane.xlu0 %1286
  %v1288 = vsel %vm360, %v1270, inf
  %1289 = vmin.xlane.f32.xlu0 %v1288
  %v1290 = vpop.xlane.xlu0 %1289
  %v1291 = vsel %vm360, %v1271, inf
  %1292 = vmin.xlane.f32.xlu0 %v1291
  %v1293 = vpop.xlane.xlu0 %1292
  %v1294 = vsel %vm360, %v1272, inf
  %1295 = vmin.xlane.f32.xlu0 %v1294
  %v1296 = vpop.xlane.xlu0 %1295
  %vm1297 = vcmp.eq.f32.partialorder %v1265, %v1275
  %vm1298 = vcmp.eq.f32.partialorder %v1266, %v1278
  %vm1299 = vcmp.eq.f32.partialorder %v1267, %v1281
  %vm1300 = vcmp.eq.f32.partialorder %v1268, %v1284
  %vm1301 = vcmp.eq.f32.partialorder %v1269, %v1287
  %vm1302 = vcmp.eq.f32.partialorder %v1270, %v1290
  %vm1303 = vcmp.eq.f32.partialorder %v1271, %v1293
  %vm1304 = vcmp.eq.f32.partialorder %v1272, %v1296
  %v1305 = vsel %vm1297, %v289, 1073741824
  %v1306 = vsel %vm1298, %v289, 1073741824
  %v1307 = vsel %vm1299, %v289, 1073741824
  %v1308 = vsel %vm1300, %v289, 1073741824
  %v1309 = vsel %vm1301, %v289, 1073741824
  %v1310 = vsel %vm1302, %v289, 1073741824
  %v1311 = vsel %vm1303, %v289, 1073741824
  %v1312 = vsel %vm1304, %v289, 1073741824
  %v1313 = vsel %vm360, %v1305, 2147483647
  %v1314 = vand.u32 %v1313, 65535
  %v1315 = vshra.s32 %v1313, 16
  %v1316 = vcvt.s32.f32 %v1314
  %v1317 = vcvt.s32.f32 %v1315
  %1318 = vmin.xlane.f32.xlu0 %v1317
  %v1319 = vpop.xlane.xlu0 %1318
  %vm1320 = vcmp.eq.f32.partialorder %v1317, %v1319
  %v1321 = vsel %vm1320, %v1316, inf
  %1322 = vmin.xlane.f32.xlu0 %v1321
  %v1323 = vpop.xlane.xlu0 %1322
  %v1324 = vcvt.f32.s32 %v1323
  %v1325 = vcvt.f32.s32 %v1319
  %v1326 = vshll.u32 %v1325, 16
  %v1327 = vadd.s32 %v1326, %v1324
  %v1328 = vsel %vm360, %v1306, 2147483647
  %v1329 = vand.u32 %v1328, 65535
  %v1330 = vshra.s32 %v1328, 16
  %v1331 = vcvt.s32.f32 %v1329
  %v1332 = vcvt.s32.f32 %v1330
  %1333 = vmin.xlane.f32.xlu0 %v1332
  %v1334 = vpop.xlane.xlu0 %1333
  %vm1335 = vcmp.eq.f32.partialorder %v1332, %v1334
  %v1336 = vsel %vm1335, %v1331, inf
  %1337 = vmin.xlane.f32.xlu0 %v1336
  %v1338 = vpop.xlane.xlu0 %1337
  %v1339 = vcvt.f32.s32 %v1338
  %v1340 = vcvt.f32.s32 %v1334
  %v1341 = vshll.u32 %v1340, 16
  %v1342 = vadd.s32 %v1341, %v1339
  %v1343 = vsel %vm360, %v1307, 2147483647
  %v1344 = vand.u32 %v1343, 65535
  %v1345 = vshra.s32 %v1343, 16
  %v1346 = vcvt.s32.f32 %v1344
  %v1347 = vcvt.s32.f32 %v1345
  %1348 = vmin.xlane.f32.xlu0 %v1347
  %v1349 = vpop.xlane.xlu0 %1348
  %vm1350 = vcmp.eq.f32.partialorder %v1347, %v1349
  %v1351 = vsel %vm1350, %v1346, inf
  %1352 = vmin.xlane.f32.xlu0 %v1351
  %v1353 = vpop.xlane.xlu0 %1352
  %v1354 = vcvt.f32.s32 %v1353
  %v1355 = vcvt.f32.s32 %v1349
  %v1356 = vshll.u32 %v1355, 16
  %v1357 = vadd.s32 %v1356, %v1354
  %v1358 = vsel %vm360, %v1308, 2147483647
  %v1359 = vand.u32 %v1358, 65535
  %v1360 = vshra.s32 %v1358, 16
  %v1361 = vcvt.s32.f32 %v1359
  %v1362 = vcvt.s32.f32 %v1360
  %1363 = vmin.xlane.f32.xlu0 %v1362
  %v1364 = vpop.xlane.xlu0 %1363
  %vm1365 = vcmp.eq.f32.partialorder %v1362, %v1364
  %v1366 = vsel %vm1365, %v1361, inf
  %1367 = vmin.xlane.f32.xlu0 %v1366
  %v1368 = vpop.xlane.xlu0 %1367
  %v1369 = vcvt.f32.s32 %v1368
  %v1370 = vcvt.f32.s32 %v1364
  %v1371 = vshll.u32 %v1370, 16
  %v1372 = vadd.s32 %v1371, %v1369
  %v1373 = vsel %vm360, %v1309, 2147483647
  %v1374 = vand.u32 %v1373, 65535
  %v1375 = vshra.s32 %v1373, 16
  %v1376 = vcvt.s32.f32 %v1374
  %v1377 = vcvt.s32.f32 %v1375
  %1378 = vmin.xlane.f32.xlu0 %v1377
  %v1379 = vpop.xlane.xlu0 %1378
  %vm1380 = vcmp.eq.f32.partialorder %v1377, %v1379
  %v1381 = vsel %vm1380, %v1376, inf
  %1382 = vmin.xlane.f32.xlu0 %v1381
  %v1383 = vpop.xlane.xlu0 %1382
  %v1384 = vcvt.f32.s32 %v1383
  %v1385 = vcvt.f32.s32 %v1379
  %v1386 = vshll.u32 %v1385, 16
  %v1387 = vadd.s32 %v1386, %v1384
  %v1388 = vsel %vm360, %v1310, 2147483647
  %v1389 = vand.u32 %v1388, 65535
  %v1390 = vshra.s32 %v1388, 16
  %v1391 = vcvt.s32.f32 %v1389
  %v1392 = vcvt.s32.f32 %v1390
  %1393 = vmin.xlane.f32.xlu0 %v1392
  %v1394 = vpop.xlane.xlu0 %1393
  %vm1395 = vcmp.eq.f32.partialorder %v1392, %v1394
  %v1396 = vsel %vm1395, %v1391, inf
  %1397 = vmin.xlane.f32.xlu0 %v1396
  %v1398 = vpop.xlane.xlu0 %1397
  %v1399 = vcvt.f32.s32 %v1398
  %v1400 = vcvt.f32.s32 %v1394
  %v1401 = vshll.u32 %v1400, 16
  %v1402 = vadd.s32 %v1401, %v1399
  %v1403 = vsel %vm360, %v1311, 2147483647
  %v1404 = vand.u32 %v1403, 65535
  %v1405 = vshra.s32 %v1403, 16
  %v1406 = vcvt.s32.f32 %v1404
  %v1407 = vcvt.s32.f32 %v1405
  %1408 = vmin.xlane.f32.xlu0 %v1407
  %v1409 = vpop.xlane.xlu0 %1408
  %vm1410 = vcmp.eq.f32.partialorder %v1407, %v1409
  %v1411 = vsel %vm1410, %v1406, inf
  %1412 = vmin.xlane.f32.xlu0 %v1411
  %v1413 = vpop.xlane.xlu0 %1412
  %v1414 = vcvt.f32.s32 %v1413
  %v1415 = vcvt.f32.s32 %v1409
  %v1416 = vshll.u32 %v1415, 16
  %v1417 = vadd.s32 %v1416, %v1414
  %v1418 = vsel %vm360, %v1312, 2147483647
  %v1419 = vand.u32 %v1418, 65535
  %v1420 = vshra.s32 %v1418, 16
  %v1421 = vcvt.s32.f32 %v1419
  %v1422 = vcvt.s32.f32 %v1420
  %1423 = vmin.xlane.f32.xlu0 %v1422
  %v1424 = vpop.xlane.xlu0 %1423
  %vm1425 = vcmp.eq.f32.partialorder %v1422, %v1424
  %v1426 = vsel %vm1425, %v1421, inf
  %1427 = vmin.xlane.f32.xlu0 %v1426
  %v1428 = vpop.xlane.xlu0 %1427
  %v1429 = vcvt.f32.s32 %v1428
  %v1430 = vcvt.f32.s32 %v1424
  %v1431 = vshll.u32 %v1430, 16
  %v1432 = vadd.s32 %v1431, %v1429
  %vm1433 = vcmp.eq.s32.totalorder %v289, %v1327
  %vm1434 = vcmp.eq.s32.totalorder %v289, %v1342
  %vm1435 = vcmp.eq.s32.totalorder %v289, %v1357
  %vm1436 = vcmp.eq.s32.totalorder %v289, %v1372
  %vm1437 = vcmp.eq.s32.totalorder %v289, %v1387
  %vm1438 = vcmp.eq.s32.totalorder %v289, %v1402
  %vm1439 = vcmp.eq.s32.totalorder %v289, %v1417
  %vm1440 = vcmp.eq.s32.totalorder %v289, %v1432
  %v1441 = vsel %vm1433, %v352, 0
  %v1442 = vsel %vm1434, %v353, 0
  %v1443 = vsel %vm1435, %v354, 0
  %v1444 = vsel %vm1436, %v355, 0
  %v1445 = vsel %vm1437, %v356, 0
  %v1446 = vsel %vm1438, %v357, 0
  %v1447 = vsel %vm1439, %v358, 0
  %v1448 = vsel %vm1440, %v359, 0
  %v1449 = vsel %vm360, %v1441, 2147483648
  %v1450 = vand.u32 %v1449, 65535
  %v1451 = vshra.s32 %v1449, 16
  %v1452 = vcvt.s32.f32 %v1450
  %v1453 = vcvt.s32.f32 %v1451
  %1454 = vmax.xlane.f32.xlu0 %v1453
  %v1455 = vpop.xlane.xlu0 %1454
  %vm1456 = vcmp.eq.f32.partialorder %v1453, %v1455
  %v1457 = vsel %vm1456, %v1452, -inf
  %1458 = vmax.xlane.f32.xlu0 %v1457
  %v1459 = vpop.xlane.xlu0 %1458
  %v1460 = vcvt.f32.s32 %v1459
  %v1461 = vcvt.f32.s32 %v1455
  %v1462 = vshll.u32 %v1461, 16
  %v1463 = vadd.s32 %v1462, %v1460
  %v1464 = vsel %vm360, %v1442, 2147483648
  %v1465 = vand.u32 %v1464, 65535
  %v1466 = vshra.s32 %v1464, 16
  %v1467 = vcvt.s32.f32 %v1465
  %v1468 = vcvt.s32.f32 %v1466
  %1469 = vmax.xlane.f32.xlu0 %v1468
  %v1470 = vpop.xlane.xlu0 %1469
  %vm1471 = vcmp.eq.f32.partialorder %v1468, %v1470
  %v1472 = vsel %vm1471, %v1467, -inf
  %1473 = vmax.xlane.f32.xlu0 %v1472
  %v1474 = vpop.xlane.xlu0 %1473
  %v1475 = vcvt.f32.s32 %v1474
  %v1476 = vcvt.f32.s32 %v1470
  %v1477 = vshll.u32 %v1476, 16
  %v1478 = vadd.s32 %v1477, %v1475
  %v1479 = vsel %vm360, %v1443, 2147483648
  %v1480 = vand.u32 %v1479, 65535
  %v1481 = vshra.s32 %v1479, 16
  %v1482 = vcvt.s32.f32 %v1480
  %v1483 = vcvt.s32.f32 %v1481
  %1484 = vmax.xlane.f32.xlu0 %v1483
  %v1485 = vpop.xlane.xlu0 %1484
  %vm1486 = vcmp.eq.f32.partialorder %v1483, %v1485
  %v1487 = vsel %vm1486, %v1482, -inf
  %1488 = vmax.xlane.f32.xlu0 %v1487
  %v1489 = vpop.xlane.xlu0 %1488
  %v1490 = vcvt.f32.s32 %v1489
  %v1491 = vcvt.f32.s32 %v1485
  %v1492 = vshll.u32 %v1491, 16
  %v1493 = vadd.s32 %v1492, %v1490
  %v1494 = vsel %vm360, %v1444, 2147483648
  %v1495 = vand.u32 %v1494, 65535
  %v1496 = vshra.s32 %v1494, 16
  %v1497 = vcvt.s32.f32 %v1495
  %v1498 = vcvt.s32.f32 %v1496
  %1499 = vmax.xlane.f32.xlu0 %v1498
  %v1500 = vpop.xlane.xlu0 %1499
  %vm1501 = vcmp.eq.f32.partialorder %v1498, %v1500
  %v1502 = vsel %vm1501, %v1497, -inf
  %1503 = vmax.xlane.f32.xlu0 %v1502
  %v1504 = vpop.xlane.xlu0 %1503
  %v1505 = vcvt.f32.s32 %v1504
  %v1506 = vcvt.f32.s32 %v1500
  %v1507 = vshll.u32 %v1506, 16
  %v1508 = vadd.s32 %v1507, %v1505
  %v1509 = vsel %vm360, %v1445, 2147483648
  %v1510 = vand.u32 %v1509, 65535
  %v1511 = vshra.s32 %v1509, 16
  %v1512 = vcvt.s32.f32 %v1510
  %v1513 = vcvt.s32.f32 %v1511
  %1514 = vmax.xlane.f32.xlu0 %v1513
  %v1515 = vpop.xlane.xlu0 %1514
  %vm1516 = vcmp.eq.f32.partialorder %v1513, %v1515
  %v1517 = vsel %vm1516, %v1512, -inf
  %1518 = vmax.xlane.f32.xlu0 %v1517
  %v1519 = vpop.xlane.xlu0 %1518
  %v1520 = vcvt.f32.s32 %v1519
  %v1521 = vcvt.f32.s32 %v1515
  %v1522 = vshll.u32 %v1521, 16
  %v1523 = vadd.s32 %v1522, %v1520
  %v1524 = vsel %vm360, %v1446, 2147483648
  %v1525 = vand.u32 %v1524, 65535
  %v1526 = vshra.s32 %v1524, 16
  %v1527 = vcvt.s32.f32 %v1525
  %v1528 = vcvt.s32.f32 %v1526
  %1529 = vmax.xlane.f32.xlu0 %v1528
  %v1530 = vpop.xlane.xlu0 %1529
  %vm1531 = vcmp.eq.f32.partialorder %v1528, %v1530
  %v1532 = vsel %vm1531, %v1527, -inf
  %1533 = vmax.xlane.f32.xlu0 %v1532
  %v1534 = vpop.xlane.xlu0 %1533
  %v1535 = vcvt.f32.s32 %v1534
  %v1536 = vcvt.f32.s32 %v1530
  %v1537 = vshll.u32 %v1536, 16
  %v1538 = vadd.s32 %v1537, %v1535
  %v1539 = vsel %vm360, %v1447, 2147483648
  %v1540 = vand.u32 %v1539, 65535
  %v1541 = vshra.s32 %v1539, 16
  %v1542 = vcvt.s32.f32 %v1540
  %v1543 = vcvt.s32.f32 %v1541
  %1544 = vmax.xlane.f32.xlu0 %v1543
  %v1545 = vpop.xlane.xlu0 %1544
  %vm1546 = vcmp.eq.f32.partialorder %v1543, %v1545
  %v1547 = vsel %vm1546, %v1542, -inf
  %1548 = vmax.xlane.f32.xlu0 %v1547
  %v1549 = vpop.xlane.xlu0 %1548
  %v1550 = vcvt.f32.s32 %v1549
  %v1551 = vcvt.f32.s32 %v1545
  %v1552 = vshll.u32 %v1551, 16
  %v1553 = vadd.s32 %v1552, %v1550
  %v1554 = vsel %vm360, %v1448, 2147483648
  %v1555 = vand.u32 %v1554, 65535
  %v1556 = vshra.s32 %v1554, 16
  %v1557 = vcvt.s32.f32 %v1555
  %v1558 = vcvt.s32.f32 %v1556
  %1559 = vmax.xlane.f32.xlu0 %v1558
  %v1560 = vpop.xlane.xlu0 %1559
  %vm1561 = vcmp.eq.f32.partialorder %v1558, %v1560
  %v1562 = vsel %vm1561, %v1557, -inf
  %1563 = vmax.xlane.f32.xlu0 %v1562
  %v1564 = vpop.xlane.xlu0 %1563
  %v1565 = vcvt.f32.s32 %v1564
  %v1566 = vcvt.f32.s32 %v1560
  %v1567 = vshll.u32 %v1566, 16
  %v1568 = vadd.s32 %v1567, %v1565
  %v1569 = vsel %vm1433, 1e+30, %v1265
  %v1570 = vsel %vm1434, 1e+30, %v1266
  %v1571 = vsel %vm1435, 1e+30, %v1267
  %v1572 = vsel %vm1436, 1e+30, %v1268
  %v1573 = vsel %vm1437, 1e+30, %v1269
  %v1574 = vsel %vm1438, 1e+30, %v1270
  %v1575 = vsel %vm1439, 1e+30, %v1271
  %v1576 = vsel %vm1440, 1e+30, %v1272
  %v1577 = vsel %vm360, %v1569, inf
  %1578 = vmin.xlane.f32.xlu0 %v1577
  %v1579 = vpop.xlane.xlu0 %1578
  %v1580 = vsel %vm360, %v1570, inf
  %1581 = vmin.xlane.f32.xlu0 %v1580
  %v1582 = vpop.xlane.xlu0 %1581
  %v1583 = vsel %vm360, %v1571, inf
  %1584 = vmin.xlane.f32.xlu0 %v1583
  %v1585 = vpop.xlane.xlu0 %1584
  %v1586 = vsel %vm360, %v1572, inf
  %1587 = vmin.xlane.f32.xlu0 %v1586
  %v1588 = vpop.xlane.xlu0 %1587
  %v1589 = vsel %vm360, %v1573, inf
  %1590 = vmin.xlane.f32.xlu0 %v1589
  %v1591 = vpop.xlane.xlu0 %1590
  %v1592 = vsel %vm360, %v1574, inf
  %1593 = vmin.xlane.f32.xlu0 %v1592
  %v1594 = vpop.xlane.xlu0 %1593
  %v1595 = vsel %vm360, %v1575, inf
  %1596 = vmin.xlane.f32.xlu0 %v1595
  %v1597 = vpop.xlane.xlu0 %1596
  %v1598 = vsel %vm360, %v1576, inf
  %1599 = vmin.xlane.f32.xlu0 %v1598
  %v1600 = vpop.xlane.xlu0 %1599
  %vm1601 = vcmp.eq.f32.partialorder %v1569, %v1579
  %vm1602 = vcmp.eq.f32.partialorder %v1570, %v1582
  %vm1603 = vcmp.eq.f32.partialorder %v1571, %v1585
  %vm1604 = vcmp.eq.f32.partialorder %v1572, %v1588
  %vm1605 = vcmp.eq.f32.partialorder %v1573, %v1591
  %vm1606 = vcmp.eq.f32.partialorder %v1574, %v1594
  %vm1607 = vcmp.eq.f32.partialorder %v1575, %v1597
  %vm1608 = vcmp.eq.f32.partialorder %v1576, %v1600
  %v1609 = vsel %vm1601, %v289, 1073741824
  %v1610 = vsel %vm1602, %v289, 1073741824
  %v1611 = vsel %vm1603, %v289, 1073741824
  %v1612 = vsel %vm1604, %v289, 1073741824
  %v1613 = vsel %vm1605, %v289, 1073741824
  %v1614 = vsel %vm1606, %v289, 1073741824
  %v1615 = vsel %vm1607, %v289, 1073741824
  %v1616 = vsel %vm1608, %v289, 1073741824
  %v1617 = vsel %vm360, %v1609, 2147483647
  %v1618 = vand.u32 %v1617, 65535
  %v1619 = vshra.s32 %v1617, 16
  %v1620 = vcvt.s32.f32 %v1618
  %v1621 = vcvt.s32.f32 %v1619
  %1622 = vmin.xlane.f32.xlu0 %v1621
  %v1623 = vpop.xlane.xlu0 %1622
  %vm1624 = vcmp.eq.f32.partialorder %v1621, %v1623
  %v1625 = vsel %vm1624, %v1620, inf
  %1626 = vmin.xlane.f32.xlu0 %v1625
  %v1627 = vpop.xlane.xlu0 %1626
  %v1628 = vcvt.f32.s32 %v1627
  %v1629 = vcvt.f32.s32 %v1623
  %v1630 = vshll.u32 %v1629, 16
  %v1631 = vadd.s32 %v1630, %v1628
  %v1632 = vsel %vm360, %v1610, 2147483647
  %v1633 = vand.u32 %v1632, 65535
  %v1634 = vshra.s32 %v1632, 16
  %v1635 = vcvt.s32.f32 %v1633
  %v1636 = vcvt.s32.f32 %v1634
  %1637 = vmin.xlane.f32.xlu0 %v1636
  %v1638 = vpop.xlane.xlu0 %1637
  %vm1639 = vcmp.eq.f32.partialorder %v1636, %v1638
  %v1640 = vsel %vm1639, %v1635, inf
  %1641 = vmin.xlane.f32.xlu0 %v1640
  %v1642 = vpop.xlane.xlu0 %1641
  %v1643 = vcvt.f32.s32 %v1642
  %v1644 = vcvt.f32.s32 %v1638
  %v1645 = vshll.u32 %v1644, 16
  %v1646 = vadd.s32 %v1645, %v1643
  %v1647 = vsel %vm360, %v1611, 2147483647
  %v1648 = vand.u32 %v1647, 65535
  %v1649 = vshra.s32 %v1647, 16
  %v1650 = vcvt.s32.f32 %v1648
  %v1651 = vcvt.s32.f32 %v1649
  %1652 = vmin.xlane.f32.xlu0 %v1651
  %v1653 = vpop.xlane.xlu0 %1652
  %vm1654 = vcmp.eq.f32.partialorder %v1651, %v1653
  %v1655 = vsel %vm1654, %v1650, inf
  %1656 = vmin.xlane.f32.xlu0 %v1655
  %v1657 = vpop.xlane.xlu0 %1656
  %v1658 = vcvt.f32.s32 %v1657
  %v1659 = vcvt.f32.s32 %v1653
  %v1660 = vshll.u32 %v1659, 16
  %v1661 = vadd.s32 %v1660, %v1658
  %v1662 = vsel %vm360, %v1612, 2147483647
  %v1663 = vand.u32 %v1662, 65535
  %v1664 = vshra.s32 %v1662, 16
  %v1665 = vcvt.s32.f32 %v1663
  %v1666 = vcvt.s32.f32 %v1664
  %1667 = vmin.xlane.f32.xlu0 %v1666
  %v1668 = vpop.xlane.xlu0 %1667
  %vm1669 = vcmp.eq.f32.partialorder %v1666, %v1668
  %v1670 = vsel %vm1669, %v1665, inf
  %1671 = vmin.xlane.f32.xlu0 %v1670
  %v1672 = vpop.xlane.xlu0 %1671
  %v1673 = vcvt.f32.s32 %v1672
  %v1674 = vcvt.f32.s32 %v1668
  %v1675 = vshll.u32 %v1674, 16
  %v1676 = vadd.s32 %v1675, %v1673
  %v1677 = vsel %vm360, %v1613, 2147483647
  %v1678 = vand.u32 %v1677, 65535
  %v1679 = vshra.s32 %v1677, 16
  %v1680 = vcvt.s32.f32 %v1678
  %v1681 = vcvt.s32.f32 %v1679
  %1682 = vmin.xlane.f32.xlu0 %v1681
  %v1683 = vpop.xlane.xlu0 %1682
  %vm1684 = vcmp.eq.f32.partialorder %v1681, %v1683
  %v1685 = vsel %vm1684, %v1680, inf
  %1686 = vmin.xlane.f32.xlu0 %v1685
  %v1687 = vpop.xlane.xlu0 %1686
  %v1688 = vcvt.f32.s32 %v1687
  %v1689 = vcvt.f32.s32 %v1683
  %v1690 = vshll.u32 %v1689, 16
  %v1691 = vadd.s32 %v1690, %v1688
  %v1692 = vsel %vm360, %v1614, 2147483647
  %v1693 = vand.u32 %v1692, 65535
  %v1694 = vshra.s32 %v1692, 16
  %v1695 = vcvt.s32.f32 %v1693
  %v1696 = vcvt.s32.f32 %v1694
  %1697 = vmin.xlane.f32.xlu0 %v1696
  %v1698 = vpop.xlane.xlu0 %1697
  %vm1699 = vcmp.eq.f32.partialorder %v1696, %v1698
  %v1700 = vsel %vm1699, %v1695, inf
  %1701 = vmin.xlane.f32.xlu0 %v1700
  %v1702 = vpop.xlane.xlu0 %1701
  %v1703 = vcvt.f32.s32 %v1702
  %v1704 = vcvt.f32.s32 %v1698
  %v1705 = vshll.u32 %v1704, 16
  %v1706 = vadd.s32 %v1705, %v1703
  %v1707 = vsel %vm360, %v1615, 2147483647
  %v1708 = vand.u32 %v1707, 65535
  %v1709 = vshra.s32 %v1707, 16
  %v1710 = vcvt.s32.f32 %v1708
  %v1711 = vcvt.s32.f32 %v1709
  %1712 = vmin.xlane.f32.xlu0 %v1711
  %v1713 = vpop.xlane.xlu0 %1712
  %vm1714 = vcmp.eq.f32.partialorder %v1711, %v1713
  %v1715 = vsel %vm1714, %v1710, inf
  %1716 = vmin.xlane.f32.xlu0 %v1715
  %v1717 = vpop.xlane.xlu0 %1716
  %v1718 = vcvt.f32.s32 %v1717
  %v1719 = vcvt.f32.s32 %v1713
  %v1720 = vshll.u32 %v1719, 16
  %v1721 = vadd.s32 %v1720, %v1718
  %v1722 = vsel %vm360, %v1616, 2147483647
  %v1723 = vand.u32 %v1722, 65535
  %v1724 = vshra.s32 %v1722, 16
  %v1725 = vcvt.s32.f32 %v1723
  %v1726 = vcvt.s32.f32 %v1724
  %1727 = vmin.xlane.f32.xlu0 %v1726
  %v1728 = vpop.xlane.xlu0 %1727
  %vm1729 = vcmp.eq.f32.partialorder %v1726, %v1728
  %v1730 = vsel %vm1729, %v1725, inf
  %1731 = vmin.xlane.f32.xlu0 %v1730
  %v1732 = vpop.xlane.xlu0 %1731
  %v1733 = vcvt.f32.s32 %v1732
  %v1734 = vcvt.f32.s32 %v1728
  %v1735 = vshll.u32 %v1734, 16
  %v1736 = vadd.s32 %v1735, %v1733
  %vm1737 = vcmp.eq.s32.totalorder %v289, %v1631
  %vm1738 = vcmp.eq.s32.totalorder %v289, %v1646
  %vm1739 = vcmp.eq.s32.totalorder %v289, %v1661
  %vm1740 = vcmp.eq.s32.totalorder %v289, %v1676
  %vm1741 = vcmp.eq.s32.totalorder %v289, %v1691
  %vm1742 = vcmp.eq.s32.totalorder %v289, %v1706
  %vm1743 = vcmp.eq.s32.totalorder %v289, %v1721
  %vm1744 = vcmp.eq.s32.totalorder %v289, %v1736
  %v1745 = vsel %vm1737, %v352, 0
  %v1746 = vsel %vm1738, %v353, 0
  %v1747 = vsel %vm1739, %v354, 0
  %v1748 = vsel %vm1740, %v355, 0
  %v1749 = vsel %vm1741, %v356, 0
  %v1750 = vsel %vm1742, %v357, 0
  %v1751 = vsel %vm1743, %v358, 0
  %v1752 = vsel %vm1744, %v359, 0
  %v1753 = vsel %vm360, %v1745, 2147483648
  %v1754 = vand.u32 %v1753, 65535
  %v1755 = vshra.s32 %v1753, 16
  %v1756 = vcvt.s32.f32 %v1754
  %v1757 = vcvt.s32.f32 %v1755
  %1758 = vmax.xlane.f32.xlu0 %v1757
  %v1759 = vpop.xlane.xlu0 %1758
  %vm1760 = vcmp.eq.f32.partialorder %v1757, %v1759
  %v1761 = vsel %vm1760, %v1756, -inf
  %1762 = vmax.xlane.f32.xlu0 %v1761
  %v1763 = vpop.xlane.xlu0 %1762
  %v1764 = vcvt.f32.s32 %v1763
  %v1765 = vcvt.f32.s32 %v1759
  %v1766 = vshll.u32 %v1765, 16
  %v1767 = vadd.s32 %v1766, %v1764
  %v1768 = vsel %vm360, %v1746, 2147483648
  %v1769 = vand.u32 %v1768, 65535
  %v1770 = vshra.s32 %v1768, 16
  %v1771 = vcvt.s32.f32 %v1769
  %v1772 = vcvt.s32.f32 %v1770
  %1773 = vmax.xlane.f32.xlu0 %v1772
  %v1774 = vpop.xlane.xlu0 %1773
  %vm1775 = vcmp.eq.f32.partialorder %v1772, %v1774
  %v1776 = vsel %vm1775, %v1771, -inf
  %1777 = vmax.xlane.f32.xlu0 %v1776
  %v1778 = vpop.xlane.xlu0 %1777
  %v1779 = vcvt.f32.s32 %v1778
  %v1780 = vcvt.f32.s32 %v1774
  %v1781 = vshll.u32 %v1780, 16
  %v1782 = vadd.s32 %v1781, %v1779
  %v1783 = vsel %vm360, %v1747, 2147483648
  %v1784 = vand.u32 %v1783, 65535
  %v1785 = vshra.s32 %v1783, 16
  %v1786 = vcvt.s32.f32 %v1784
  %v1787 = vcvt.s32.f32 %v1785
  %1788 = vmax.xlane.f32.xlu0 %v1787
  %v1789 = vpop.xlane.xlu0 %1788
  %vm1790 = vcmp.eq.f32.partialorder %v1787, %v1789
  %v1791 = vsel %vm1790, %v1786, -inf
  %1792 = vmax.xlane.f32.xlu0 %v1791
  %v1793 = vpop.xlane.xlu0 %1792
  %v1794 = vcvt.f32.s32 %v1793
  %v1795 = vcvt.f32.s32 %v1789
  %v1796 = vshll.u32 %v1795, 16
  %v1797 = vadd.s32 %v1796, %v1794
  %v1798 = vsel %vm360, %v1748, 2147483648
  %v1799 = vand.u32 %v1798, 65535
  %v1800 = vshra.s32 %v1798, 16
  %v1801 = vcvt.s32.f32 %v1799
  %v1802 = vcvt.s32.f32 %v1800
  %1803 = vmax.xlane.f32.xlu0 %v1802
  %v1804 = vpop.xlane.xlu0 %1803
  %vm1805 = vcmp.eq.f32.partialorder %v1802, %v1804
  %v1806 = vsel %vm1805, %v1801, -inf
  %1807 = vmax.xlane.f32.xlu0 %v1806
  %v1808 = vpop.xlane.xlu0 %1807
  %v1809 = vcvt.f32.s32 %v1808
  %v1810 = vcvt.f32.s32 %v1804
  %v1811 = vshll.u32 %v1810, 16
  %v1812 = vadd.s32 %v1811, %v1809
  %v1813 = vsel %vm360, %v1749, 2147483648
  %v1814 = vand.u32 %v1813, 65535
  %v1815 = vshra.s32 %v1813, 16
  %v1816 = vcvt.s32.f32 %v1814
  %v1817 = vcvt.s32.f32 %v1815
  %1818 = vmax.xlane.f32.xlu0 %v1817
  %v1819 = vpop.xlane.xlu0 %1818
  %vm1820 = vcmp.eq.f32.partialorder %v1817, %v1819
  %v1821 = vsel %vm1820, %v1816, -inf
  %1822 = vmax.xlane.f32.xlu0 %v1821
  %v1823 = vpop.xlane.xlu0 %1822
  %v1824 = vcvt.f32.s32 %v1823
  %v1825 = vcvt.f32.s32 %v1819
  %v1826 = vshll.u32 %v1825, 16
  %v1827 = vadd.s32 %v1826, %v1824
  %v1828 = vsel %vm360, %v1750, 2147483648
  %v1829 = vand.u32 %v1828, 65535
  %v1830 = vshra.s32 %v1828, 16
  %v1831 = vcvt.s32.f32 %v1829
  %v1832 = vcvt.s32.f32 %v1830
  %1833 = vmax.xlane.f32.xlu0 %v1832
  %v1834 = vpop.xlane.xlu0 %1833
  %vm1835 = vcmp.eq.f32.partialorder %v1832, %v1834
  %v1836 = vsel %vm1835, %v1831, -inf
  %1837 = vmax.xlane.f32.xlu0 %v1836
  %v1838 = vpop.xlane.xlu0 %1837
  %v1839 = vcvt.f32.s32 %v1838
  %v1840 = vcvt.f32.s32 %v1834
  %v1841 = vshll.u32 %v1840, 16
  %v1842 = vadd.s32 %v1841, %v1839
  %v1843 = vsel %vm360, %v1751, 2147483648
  %v1844 = vand.u32 %v1843, 65535
  %v1845 = vshra.s32 %v1843, 16
  %v1846 = vcvt.s32.f32 %v1844
  %v1847 = vcvt.s32.f32 %v1845
  %1848 = vmax.xlane.f32.xlu0 %v1847
  %v1849 = vpop.xlane.xlu0 %1848
  %vm1850 = vcmp.eq.f32.partialorder %v1847, %v1849
  %v1851 = vsel %vm1850, %v1846, -inf
  %1852 = vmax.xlane.f32.xlu0 %v1851
  %v1853 = vpop.xlane.xlu0 %1852
  %v1854 = vcvt.f32.s32 %v1853
  %v1855 = vcvt.f32.s32 %v1849
  %v1856 = vshll.u32 %v1855, 16
  %v1857 = vadd.s32 %v1856, %v1854
  %v1858 = vsel %vm360, %v1752, 2147483648
  %v1859 = vand.u32 %v1858, 65535
  %v1860 = vshra.s32 %v1858, 16
  %v1861 = vcvt.s32.f32 %v1859
  %v1862 = vcvt.s32.f32 %v1860
  %1863 = vmax.xlane.f32.xlu0 %v1862
  %v1864 = vpop.xlane.xlu0 %1863
  %vm1865 = vcmp.eq.f32.partialorder %v1862, %v1864
  %v1866 = vsel %vm1865, %v1861, -inf
  %1867 = vmax.xlane.f32.xlu0 %v1866
  %v1868 = vpop.xlane.xlu0 %1867
  %v1869 = vcvt.f32.s32 %v1868
  %v1870 = vcvt.f32.s32 %v1864
  %v1871 = vshll.u32 %v1870, 16
  %v1872 = vadd.s32 %v1871, %v1869
  %v1873 = vsel %vm1737, 1e+30, %v1569
  %v1874 = vsel %vm1738, 1e+30, %v1570
  %v1875 = vsel %vm1739, 1e+30, %v1571
  %v1876 = vsel %vm1740, 1e+30, %v1572
  %v1877 = vsel %vm1741, 1e+30, %v1573
  %v1878 = vsel %vm1742, 1e+30, %v1574
  %v1879 = vsel %vm1743, 1e+30, %v1575
  %v1880 = vsel %vm1744, 1e+30, %v1576
  %v1881 = vsel %vm360, %v1873, inf
  %1882 = vmin.xlane.f32.xlu0 %v1881
  %v1883 = vpop.xlane.xlu0 %1882
  %v1884 = vsel %vm360, %v1874, inf
  %1885 = vmin.xlane.f32.xlu0 %v1884
  %v1886 = vpop.xlane.xlu0 %1885
  %v1887 = vsel %vm360, %v1875, inf
  %1888 = vmin.xlane.f32.xlu0 %v1887
  %v1889 = vpop.xlane.xlu0 %1888
  %v1890 = vsel %vm360, %v1876, inf
  %1891 = vmin.xlane.f32.xlu0 %v1890
  %v1892 = vpop.xlane.xlu0 %1891
  %v1893 = vsel %vm360, %v1877, inf
  %1894 = vmin.xlane.f32.xlu0 %v1893
  %v1895 = vpop.xlane.xlu0 %1894
  %v1896 = vsel %vm360, %v1878, inf
  %1897 = vmin.xlane.f32.xlu0 %v1896
  %v1898 = vpop.xlane.xlu0 %1897
  %v1899 = vsel %vm360, %v1879, inf
  %1900 = vmin.xlane.f32.xlu0 %v1899
  %v1901 = vpop.xlane.xlu0 %1900
  %v1902 = vsel %vm360, %v1880, inf
  %1903 = vmin.xlane.f32.xlu0 %v1902
  %v1904 = vpop.xlane.xlu0 %1903
  %vm1905 = vcmp.eq.f32.partialorder %v1873, %v1883
  %vm1906 = vcmp.eq.f32.partialorder %v1874, %v1886
  %vm1907 = vcmp.eq.f32.partialorder %v1875, %v1889
  %vm1908 = vcmp.eq.f32.partialorder %v1876, %v1892
  %vm1909 = vcmp.eq.f32.partialorder %v1877, %v1895
  %vm1910 = vcmp.eq.f32.partialorder %v1878, %v1898
  %vm1911 = vcmp.eq.f32.partialorder %v1879, %v1901
  %vm1912 = vcmp.eq.f32.partialorder %v1880, %v1904
  %v1913 = vsel %vm1905, %v289, 1073741824
  %v1914 = vsel %vm1906, %v289, 1073741824
  %v1915 = vsel %vm1907, %v289, 1073741824
  %v1916 = vsel %vm1908, %v289, 1073741824
  %v1917 = vsel %vm1909, %v289, 1073741824
  %v1918 = vsel %vm1910, %v289, 1073741824
  %v1919 = vsel %vm1911, %v289, 1073741824
  %v1920 = vsel %vm1912, %v289, 1073741824
  %v1921 = vsel %vm360, %v1913, 2147483647
  %v1922 = vand.u32 %v1921, 65535
  %v1923 = vshra.s32 %v1921, 16
  %v1924 = vcvt.s32.f32 %v1922
  %v1925 = vcvt.s32.f32 %v1923
  %1926 = vmin.xlane.f32.xlu0 %v1925
  %v1927 = vpop.xlane.xlu0 %1926
  %vm1928 = vcmp.eq.f32.partialorder %v1925, %v1927
  %v1929 = vsel %vm1928, %v1924, inf
  %1930 = vmin.xlane.f32.xlu0 %v1929
  %v1931 = vpop.xlane.xlu0 %1930
  %v1932 = vcvt.f32.s32 %v1931
  %v1933 = vcvt.f32.s32 %v1927
  %v1934 = vshll.u32 %v1933, 16
  %v1935 = vadd.s32 %v1934, %v1932
  %v1936 = vsel %vm360, %v1914, 2147483647
  %v1937 = vand.u32 %v1936, 65535
  %v1938 = vshra.s32 %v1936, 16
  %v1939 = vcvt.s32.f32 %v1937
  %v1940 = vcvt.s32.f32 %v1938
  %1941 = vmin.xlane.f32.xlu0 %v1940
  %v1942 = vpop.xlane.xlu0 %1941
  %vm1943 = vcmp.eq.f32.partialorder %v1940, %v1942
  %v1944 = vsel %vm1943, %v1939, inf
  %1945 = vmin.xlane.f32.xlu0 %v1944
  %v1946 = vpop.xlane.xlu0 %1945
  %v1947 = vcvt.f32.s32 %v1946
  %v1948 = vcvt.f32.s32 %v1942
  %v1949 = vshll.u32 %v1948, 16
  %v1950 = vadd.s32 %v1949, %v1947
  %v1951 = vsel %vm360, %v1915, 2147483647
  %v1952 = vand.u32 %v1951, 65535
  %v1953 = vshra.s32 %v1951, 16
  %v1954 = vcvt.s32.f32 %v1952
  %v1955 = vcvt.s32.f32 %v1953
  %1956 = vmin.xlane.f32.xlu0 %v1955
  %v1957 = vpop.xlane.xlu0 %1956
  %vm1958 = vcmp.eq.f32.partialorder %v1955, %v1957
  %v1959 = vsel %vm1958, %v1954, inf
  %1960 = vmin.xlane.f32.xlu0 %v1959
  %v1961 = vpop.xlane.xlu0 %1960
  %v1962 = vcvt.f32.s32 %v1961
  %v1963 = vcvt.f32.s32 %v1957
  %v1964 = vshll.u32 %v1963, 16
  %v1965 = vadd.s32 %v1964, %v1962
  %v1966 = vsel %vm360, %v1916, 2147483647
  %v1967 = vand.u32 %v1966, 65535
  %v1968 = vshra.s32 %v1966, 16
  %v1969 = vcvt.s32.f32 %v1967
  %v1970 = vcvt.s32.f32 %v1968
  %1971 = vmin.xlane.f32.xlu0 %v1970
  %v1972 = vpop.xlane.xlu0 %1971
  %vm1973 = vcmp.eq.f32.partialorder %v1970, %v1972
  %v1974 = vsel %vm1973, %v1969, inf
  %1975 = vmin.xlane.f32.xlu0 %v1974
  %v1976 = vpop.xlane.xlu0 %1975
  %v1977 = vcvt.f32.s32 %v1976
  %v1978 = vcvt.f32.s32 %v1972
  %v1979 = vshll.u32 %v1978, 16
  %v1980 = vadd.s32 %v1979, %v1977
  %v1981 = vsel %vm360, %v1917, 2147483647
  %v1982 = vand.u32 %v1981, 65535
  %v1983 = vshra.s32 %v1981, 16
  %v1984 = vcvt.s32.f32 %v1982
  %v1985 = vcvt.s32.f32 %v1983
  %1986 = vmin.xlane.f32.xlu0 %v1985
  %v1987 = vpop.xlane.xlu0 %1986
  %vm1988 = vcmp.eq.f32.partialorder %v1985, %v1987
  %v1989 = vsel %vm1988, %v1984, inf
  %1990 = vmin.xlane.f32.xlu0 %v1989
  %v1991 = vpop.xlane.xlu0 %1990
  %v1992 = vcvt.f32.s32 %v1991
  %v1993 = vcvt.f32.s32 %v1987
  %v1994 = vshll.u32 %v1993, 16
  %v1995 = vadd.s32 %v1994, %v1992
  %v1996 = vsel %vm360, %v1918, 2147483647
  %v1997 = vand.u32 %v1996, 65535
  %v1998 = vshra.s32 %v1996, 16
  %v1999 = vcvt.s32.f32 %v1997
  %v2000 = vcvt.s32.f32 %v1998
  %2001 = vmin.xlane.f32.xlu0 %v2000
  %v2002 = vpop.xlane.xlu0 %2001
  %vm2003 = vcmp.eq.f32.partialorder %v2000, %v2002
  %v2004 = vsel %vm2003, %v1999, inf
  %2005 = vmin.xlane.f32.xlu0 %v2004
  %v2006 = vpop.xlane.xlu0 %2005
  %v2007 = vcvt.f32.s32 %v2006
  %v2008 = vcvt.f32.s32 %v2002
  %v2009 = vshll.u32 %v2008, 16
  %v2010 = vadd.s32 %v2009, %v2007
  %v2011 = vsel %vm360, %v1919, 2147483647
  %v2012 = vand.u32 %v2011, 65535
  %v2013 = vshra.s32 %v2011, 16
  %v2014 = vcvt.s32.f32 %v2012
  %v2015 = vcvt.s32.f32 %v2013
  %2016 = vmin.xlane.f32.xlu0 %v2015
  %v2017 = vpop.xlane.xlu0 %2016
  %vm2018 = vcmp.eq.f32.partialorder %v2015, %v2017
  %v2019 = vsel %vm2018, %v2014, inf
  %2020 = vmin.xlane.f32.xlu0 %v2019
  %v2021 = vpop.xlane.xlu0 %2020
  %v2022 = vcvt.f32.s32 %v2021
  %v2023 = vcvt.f32.s32 %v2017
  %v2024 = vshll.u32 %v2023, 16
  %v2025 = vadd.s32 %v2024, %v2022
  %v2026 = vsel %vm360, %v1920, 2147483647
  %v2027 = vand.u32 %v2026, 65535
  %v2028 = vshra.s32 %v2026, 16
  %v2029 = vcvt.s32.f32 %v2027
  %v2030 = vcvt.s32.f32 %v2028
  %2031 = vmin.xlane.f32.xlu0 %v2030
  %v2032 = vpop.xlane.xlu0 %2031
  %vm2033 = vcmp.eq.f32.partialorder %v2030, %v2032
  %v2034 = vsel %vm2033, %v2029, inf
  %2035 = vmin.xlane.f32.xlu0 %v2034
  %v2036 = vpop.xlane.xlu0 %2035
  %v2037 = vcvt.f32.s32 %v2036
  %v2038 = vcvt.f32.s32 %v2032
  %v2039 = vshll.u32 %v2038, 16
  %v2040 = vadd.s32 %v2039, %v2037
  %vm2041 = vcmp.eq.s32.totalorder %v289, %v1935
  %vm2042 = vcmp.eq.s32.totalorder %v289, %v1950
  %vm2043 = vcmp.eq.s32.totalorder %v289, %v1965
  %vm2044 = vcmp.eq.s32.totalorder %v289, %v1980
  %vm2045 = vcmp.eq.s32.totalorder %v289, %v1995
  %vm2046 = vcmp.eq.s32.totalorder %v289, %v2010
  %vm2047 = vcmp.eq.s32.totalorder %v289, %v2025
  %vm2048 = vcmp.eq.s32.totalorder %v289, %v2040
  %v2049 = vsel %vm2041, %v352, 0
  %v2050 = vsel %vm2042, %v353, 0
  %v2051 = vsel %vm2043, %v354, 0
  %v2052 = vsel %vm2044, %v355, 0
  %v2053 = vsel %vm2045, %v356, 0
  %v2054 = vsel %vm2046, %v357, 0
  %v2055 = vsel %vm2047, %v358, 0
  %v2056 = vsel %vm2048, %v359, 0
  %v2057 = vsel %vm360, %v2049, 2147483648
  %v2058 = vand.u32 %v2057, 65535
  %v2059 = vshra.s32 %v2057, 16
  %v2060 = vcvt.s32.f32 %v2058
  %v2061 = vcvt.s32.f32 %v2059
  %2062 = vmax.xlane.f32.xlu0 %v2061
  %v2063 = vpop.xlane.xlu0 %2062
  %vm2064 = vcmp.eq.f32.partialorder %v2061, %v2063
  %v2065 = vsel %vm2064, %v2060, -inf
  %2066 = vmax.xlane.f32.xlu0 %v2065
  %v2067 = vpop.xlane.xlu0 %2066
  %v2068 = vcvt.f32.s32 %v2067
  %v2069 = vcvt.f32.s32 %v2063
  %v2070 = vshll.u32 %v2069, 16
  %v2071 = vadd.s32 %v2070, %v2068
  %v2072 = vsel %vm360, %v2050, 2147483648
  %v2073 = vand.u32 %v2072, 65535
  %v2074 = vshra.s32 %v2072, 16
  %v2075 = vcvt.s32.f32 %v2073
  %v2076 = vcvt.s32.f32 %v2074
  %2077 = vmax.xlane.f32.xlu0 %v2076
  %v2078 = vpop.xlane.xlu0 %2077
  %vm2079 = vcmp.eq.f32.partialorder %v2076, %v2078
  %v2080 = vsel %vm2079, %v2075, -inf
  %2081 = vmax.xlane.f32.xlu0 %v2080
  %v2082 = vpop.xlane.xlu0 %2081
  %v2083 = vcvt.f32.s32 %v2082
  %v2084 = vcvt.f32.s32 %v2078
  %v2085 = vshll.u32 %v2084, 16
  %v2086 = vadd.s32 %v2085, %v2083
  %v2087 = vsel %vm360, %v2051, 2147483648
  %v2088 = vand.u32 %v2087, 65535
  %v2089 = vshra.s32 %v2087, 16
  %v2090 = vcvt.s32.f32 %v2088
  %v2091 = vcvt.s32.f32 %v2089
  %2092 = vmax.xlane.f32.xlu0 %v2091
  %v2093 = vpop.xlane.xlu0 %2092
  %vm2094 = vcmp.eq.f32.partialorder %v2091, %v2093
  %v2095 = vsel %vm2094, %v2090, -inf
  %2096 = vmax.xlane.f32.xlu0 %v2095
  %v2097 = vpop.xlane.xlu0 %2096
  %v2098 = vcvt.f32.s32 %v2097
  %v2099 = vcvt.f32.s32 %v2093
  %v2100 = vshll.u32 %v2099, 16
  %v2101 = vadd.s32 %v2100, %v2098
  %v2102 = vsel %vm360, %v2052, 2147483648
  %v2103 = vand.u32 %v2102, 65535
  %v2104 = vshra.s32 %v2102, 16
  %v2105 = vcvt.s32.f32 %v2103
  %v2106 = vcvt.s32.f32 %v2104
  %2107 = vmax.xlane.f32.xlu0 %v2106
  %v2108 = vpop.xlane.xlu0 %2107
  %vm2109 = vcmp.eq.f32.partialorder %v2106, %v2108
  %v2110 = vsel %vm2109, %v2105, -inf
  %2111 = vmax.xlane.f32.xlu0 %v2110
  %v2112 = vpop.xlane.xlu0 %2111
  %v2113 = vcvt.f32.s32 %v2112
  %v2114 = vcvt.f32.s32 %v2108
  %v2115 = vshll.u32 %v2114, 16
  %v2116 = vadd.s32 %v2115, %v2113
  %v2117 = vsel %vm360, %v2053, 2147483648
  %v2118 = vand.u32 %v2117, 65535
  %v2119 = vshra.s32 %v2117, 16
  %v2120 = vcvt.s32.f32 %v2118
  %v2121 = vcvt.s32.f32 %v2119
  %2122 = vmax.xlane.f32.xlu0 %v2121
  %v2123 = vpop.xlane.xlu0 %2122
  %vm2124 = vcmp.eq.f32.partialorder %v2121, %v2123
  %v2125 = vsel %vm2124, %v2120, -inf
  %2126 = vmax.xlane.f32.xlu0 %v2125
  %v2127 = vpop.xlane.xlu0 %2126
  %v2128 = vcvt.f32.s32 %v2127
  %v2129 = vcvt.f32.s32 %v2123
  %v2130 = vshll.u32 %v2129, 16
  %v2131 = vadd.s32 %v2130, %v2128
  %v2132 = vsel %vm360, %v2054, 2147483648
  %v2133 = vand.u32 %v2132, 65535
  %v2134 = vshra.s32 %v2132, 16
  %v2135 = vcvt.s32.f32 %v2133
  %v2136 = vcvt.s32.f32 %v2134
  %2137 = vmax.xlane.f32.xlu0 %v2136
  %v2138 = vpop.xlane.xlu0 %2137
  %vm2139 = vcmp.eq.f32.partialorder %v2136, %v2138
  %v2140 = vsel %vm2139, %v2135, -inf
  %2141 = vmax.xlane.f32.xlu0 %v2140
  %v2142 = vpop.xlane.xlu0 %2141
  %v2143 = vcvt.f32.s32 %v2142
  %v2144 = vcvt.f32.s32 %v2138
  %v2145 = vshll.u32 %v2144, 16
  %v2146 = vadd.s32 %v2145, %v2143
  %v2147 = vsel %vm360, %v2055, 2147483648
  %v2148 = vand.u32 %v2147, 65535
  %v2149 = vshra.s32 %v2147, 16
  %v2150 = vcvt.s32.f32 %v2148
  %v2151 = vcvt.s32.f32 %v2149
  %2152 = vmax.xlane.f32.xlu0 %v2151
  %v2153 = vpop.xlane.xlu0 %2152
  %vm2154 = vcmp.eq.f32.partialorder %v2151, %v2153
  %v2155 = vsel %vm2154, %v2150, -inf
  %2156 = vmax.xlane.f32.xlu0 %v2155
  %v2157 = vpop.xlane.xlu0 %2156
  %v2158 = vcvt.f32.s32 %v2157
  %v2159 = vcvt.f32.s32 %v2153
  %v2160 = vshll.u32 %v2159, 16
  %v2161 = vadd.s32 %v2160, %v2158
  %v2162 = vsel %vm360, %v2056, 2147483648
  %v2163 = vand.u32 %v2162, 65535
  %v2164 = vshra.s32 %v2162, 16
  %v2165 = vcvt.s32.f32 %v2163
  %v2166 = vcvt.s32.f32 %v2164
  %2167 = vmax.xlane.f32.xlu0 %v2166
  %v2168 = vpop.xlane.xlu0 %2167
  %vm2169 = vcmp.eq.f32.partialorder %v2166, %v2168
  %v2170 = vsel %vm2169, %v2165, -inf
  %2171 = vmax.xlane.f32.xlu0 %v2170
  %v2172 = vpop.xlane.xlu0 %2171
  %v2173 = vcvt.f32.s32 %v2172
  %v2174 = vcvt.f32.s32 %v2168
  %v2175 = vshll.u32 %v2174, 16
  %v2176 = vadd.s32 %v2175, %v2173
  %v2177 = vsel %vm2041, 1e+30, %v1873
  %v2178 = vsel %vm2042, 1e+30, %v1874
  %v2179 = vsel %vm2043, 1e+30, %v1875
  %v2180 = vsel %vm2044, 1e+30, %v1876
  %v2181 = vsel %vm2045, 1e+30, %v1877
  %v2182 = vsel %vm2046, 1e+30, %v1878
  %v2183 = vsel %vm2047, 1e+30, %v1879
  %v2184 = vsel %vm2048, 1e+30, %v1880
  %v2185 = vsel %vm360, %v2177, inf
  %2186 = vmin.xlane.f32.xlu0 %v2185
  %v2187 = vpop.xlane.xlu0 %2186
  %v2188 = vsel %vm360, %v2178, inf
  %2189 = vmin.xlane.f32.xlu0 %v2188
  %v2190 = vpop.xlane.xlu0 %2189
  %v2191 = vsel %vm360, %v2179, inf
  %2192 = vmin.xlane.f32.xlu0 %v2191
  %v2193 = vpop.xlane.xlu0 %2192
  %v2194 = vsel %vm360, %v2180, inf
  %2195 = vmin.xlane.f32.xlu0 %v2194
  %v2196 = vpop.xlane.xlu0 %2195
  %v2197 = vsel %vm360, %v2181, inf
  %2198 = vmin.xlane.f32.xlu0 %v2197
  %v2199 = vpop.xlane.xlu0 %2198
  %v2200 = vsel %vm360, %v2182, inf
  %2201 = vmin.xlane.f32.xlu0 %v2200
  %v2202 = vpop.xlane.xlu0 %2201
  %v2203 = vsel %vm360, %v2183, inf
  %2204 = vmin.xlane.f32.xlu0 %v2203
  %v2205 = vpop.xlane.xlu0 %2204
  %v2206 = vsel %vm360, %v2184, inf
  %2207 = vmin.xlane.f32.xlu0 %v2206
  %v2208 = vpop.xlane.xlu0 %2207
  %vm2209 = vcmp.eq.f32.partialorder %v2177, %v2187
  %vm2210 = vcmp.eq.f32.partialorder %v2178, %v2190
  %vm2211 = vcmp.eq.f32.partialorder %v2179, %v2193
  %vm2212 = vcmp.eq.f32.partialorder %v2180, %v2196
  %vm2213 = vcmp.eq.f32.partialorder %v2181, %v2199
  %vm2214 = vcmp.eq.f32.partialorder %v2182, %v2202
  %vm2215 = vcmp.eq.f32.partialorder %v2183, %v2205
  %vm2216 = vcmp.eq.f32.partialorder %v2184, %v2208
  %v2217 = vsel %vm2209, %v289, 1073741824
  %v2218 = vsel %vm2210, %v289, 1073741824
  %v2219 = vsel %vm2211, %v289, 1073741824
  %v2220 = vsel %vm2212, %v289, 1073741824
  %v2221 = vsel %vm2213, %v289, 1073741824
  %v2222 = vsel %vm2214, %v289, 1073741824
  %v2223 = vsel %vm2215, %v289, 1073741824
  %v2224 = vsel %vm2216, %v289, 1073741824
  %v2225 = vsel %vm360, %v2217, 2147483647
  %v2226 = vand.u32 %v2225, 65535
  %v2227 = vshra.s32 %v2225, 16
  %v2228 = vcvt.s32.f32 %v2226
  %v2229 = vcvt.s32.f32 %v2227
  %2230 = vmin.xlane.f32.xlu0 %v2229
  %v2231 = vpop.xlane.xlu0 %2230
  %vm2232 = vcmp.eq.f32.partialorder %v2229, %v2231
  %v2233 = vsel %vm2232, %v2228, inf
  %2234 = vmin.xlane.f32.xlu0 %v2233
  %v2235 = vpop.xlane.xlu0 %2234
  %v2236 = vcvt.f32.s32 %v2235
  %v2237 = vcvt.f32.s32 %v2231
  %v2238 = vshll.u32 %v2237, 16
  %v2239 = vadd.s32 %v2238, %v2236
  %v2240 = vsel %vm360, %v2218, 2147483647
  %v2241 = vand.u32 %v2240, 65535
  %v2242 = vshra.s32 %v2240, 16
  %v2243 = vcvt.s32.f32 %v2241
  %v2244 = vcvt.s32.f32 %v2242
  %2245 = vmin.xlane.f32.xlu0 %v2244
  %v2246 = vpop.xlane.xlu0 %2245
  %vm2247 = vcmp.eq.f32.partialorder %v2244, %v2246
  %v2248 = vsel %vm2247, %v2243, inf
  %2249 = vmin.xlane.f32.xlu0 %v2248
  %v2250 = vpop.xlane.xlu0 %2249
  %v2251 = vcvt.f32.s32 %v2250
  %v2252 = vcvt.f32.s32 %v2246
  %v2253 = vshll.u32 %v2252, 16
  %v2254 = vadd.s32 %v2253, %v2251
  %v2255 = vsel %vm360, %v2219, 2147483647
  %v2256 = vand.u32 %v2255, 65535
  %v2257 = vshra.s32 %v2255, 16
  %v2258 = vcvt.s32.f32 %v2256
  %v2259 = vcvt.s32.f32 %v2257
  %2260 = vmin.xlane.f32.xlu0 %v2259
  %v2261 = vpop.xlane.xlu0 %2260
  %vm2262 = vcmp.eq.f32.partialorder %v2259, %v2261
  %v2263 = vsel %vm2262, %v2258, inf
  %2264 = vmin.xlane.f32.xlu0 %v2263
  %v2265 = vpop.xlane.xlu0 %2264
  %v2266 = vcvt.f32.s32 %v2265
  %v2267 = vcvt.f32.s32 %v2261
  %v2268 = vshll.u32 %v2267, 16
  %v2269 = vadd.s32 %v2268, %v2266
  %v2270 = vsel %vm360, %v2220, 2147483647
  %v2271 = vand.u32 %v2270, 65535
  %v2272 = vshra.s32 %v2270, 16
  %v2273 = vcvt.s32.f32 %v2271
  %v2274 = vcvt.s32.f32 %v2272
  %2275 = vmin.xlane.f32.xlu0 %v2274
  %v2276 = vpop.xlane.xlu0 %2275
  %vm2277 = vcmp.eq.f32.partialorder %v2274, %v2276
  %v2278 = vsel %vm2277, %v2273, inf
  %2279 = vmin.xlane.f32.xlu0 %v2278
  %v2280 = vpop.xlane.xlu0 %2279
  %v2281 = vcvt.f32.s32 %v2280
  %v2282 = vcvt.f32.s32 %v2276
  %v2283 = vshll.u32 %v2282, 16
  %v2284 = vadd.s32 %v2283, %v2281
  %v2285 = vsel %vm360, %v2221, 2147483647
  %v2286 = vand.u32 %v2285, 65535
  %v2287 = vshra.s32 %v2285, 16
  %v2288 = vcvt.s32.f32 %v2286
  %v2289 = vcvt.s32.f32 %v2287
  %2290 = vmin.xlane.f32.xlu0 %v2289
  %v2291 = vpop.xlane.xlu0 %2290
  %vm2292 = vcmp.eq.f32.partialorder %v2289, %v2291
  %v2293 = vsel %vm2292, %v2288, inf
  %2294 = vmin.xlane.f32.xlu0 %v2293
  %v2295 = vpop.xlane.xlu0 %2294
  %v2296 = vcvt.f32.s32 %v2295
  %v2297 = vcvt.f32.s32 %v2291
  %v2298 = vshll.u32 %v2297, 16
  %v2299 = vadd.s32 %v2298, %v2296
  %v2300 = vsel %vm360, %v2222, 2147483647
  %v2301 = vand.u32 %v2300, 65535
  %v2302 = vshra.s32 %v2300, 16
  %v2303 = vcvt.s32.f32 %v2301
  %v2304 = vcvt.s32.f32 %v2302
  %2305 = vmin.xlane.f32.xlu0 %v2304
  %v2306 = vpop.xlane.xlu0 %2305
  %vm2307 = vcmp.eq.f32.partialorder %v2304, %v2306
  %v2308 = vsel %vm2307, %v2303, inf
  %2309 = vmin.xlane.f32.xlu0 %v2308
  %v2310 = vpop.xlane.xlu0 %2309
  %v2311 = vcvt.f32.s32 %v2310
  %v2312 = vcvt.f32.s32 %v2306
  %v2313 = vshll.u32 %v2312, 16
  %v2314 = vadd.s32 %v2313, %v2311
  %v2315 = vsel %vm360, %v2223, 2147483647
  %v2316 = vand.u32 %v2315, 65535
  %v2317 = vshra.s32 %v2315, 16
  %v2318 = vcvt.s32.f32 %v2316
  %v2319 = vcvt.s32.f32 %v2317
  %2320 = vmin.xlane.f32.xlu0 %v2319
  %v2321 = vpop.xlane.xlu0 %2320
  %vm2322 = vcmp.eq.f32.partialorder %v2319, %v2321
  %v2323 = vsel %vm2322, %v2318, inf
  %2324 = vmin.xlane.f32.xlu0 %v2323
  %v2325 = vpop.xlane.xlu0 %2324
  %v2326 = vcvt.f32.s32 %v2325
  %v2327 = vcvt.f32.s32 %v2321
  %v2328 = vshll.u32 %v2327, 16
  %v2329 = vadd.s32 %v2328, %v2326
  %v2330 = vsel %vm360, %v2224, 2147483647
  %v2331 = vand.u32 %v2330, 65535
  %v2332 = vshra.s32 %v2330, 16
  %v2333 = vcvt.s32.f32 %v2331
  %v2334 = vcvt.s32.f32 %v2332
  %2335 = vmin.xlane.f32.xlu0 %v2334
  %v2336 = vpop.xlane.xlu0 %2335
  %vm2337 = vcmp.eq.f32.partialorder %v2334, %v2336
  %v2338 = vsel %vm2337, %v2333, inf
  %2339 = vmin.xlane.f32.xlu0 %v2338
  %v2340 = vpop.xlane.xlu0 %2339
  %v2341 = vcvt.f32.s32 %v2340
  %v2342 = vcvt.f32.s32 %v2336
  %v2343 = vshll.u32 %v2342, 16
  %v2344 = vadd.s32 %v2343, %v2341
  %vm2345 = vcmp.eq.s32.totalorder %v289, %v2239
  %vm2346 = vcmp.eq.s32.totalorder %v289, %v2254
  %vm2347 = vcmp.eq.s32.totalorder %v289, %v2269
  %vm2348 = vcmp.eq.s32.totalorder %v289, %v2284
  %vm2349 = vcmp.eq.s32.totalorder %v289, %v2299
  %vm2350 = vcmp.eq.s32.totalorder %v289, %v2314
  %vm2351 = vcmp.eq.s32.totalorder %v289, %v2329
  %vm2352 = vcmp.eq.s32.totalorder %v289, %v2344
  %v2353 = vsel %vm2345, %v352, 0
  %v2354 = vsel %vm2346, %v353, 0
  %v2355 = vsel %vm2347, %v354, 0
  %v2356 = vsel %vm2348, %v355, 0
  %v2357 = vsel %vm2349, %v356, 0
  %v2358 = vsel %vm2350, %v357, 0
  %v2359 = vsel %vm2351, %v358, 0
  %v2360 = vsel %vm2352, %v359, 0
  %v2361 = vsel %vm360, %v2353, 2147483648
  %v2362 = vand.u32 %v2361, 65535
  %v2363 = vshra.s32 %v2361, 16
  %v2364 = vcvt.s32.f32 %v2362
  %v2365 = vcvt.s32.f32 %v2363
  %2366 = vmax.xlane.f32.xlu0 %v2365
  %v2367 = vpop.xlane.xlu0 %2366
  %vm2368 = vcmp.eq.f32.partialorder %v2365, %v2367
  %v2369 = vsel %vm2368, %v2364, -inf
  %2370 = vmax.xlane.f32.xlu0 %v2369
  %v2371 = vpop.xlane.xlu0 %2370
  %v2372 = vcvt.f32.s32 %v2371
  %v2373 = vcvt.f32.s32 %v2367
  %v2374 = vshll.u32 %v2373, 16
  %v2375 = vadd.s32 %v2374, %v2372
  %v2376 = vsel %vm360, %v2354, 2147483648
  %v2377 = vand.u32 %v2376, 65535
  %v2378 = vshra.s32 %v2376, 16
  %v2379 = vcvt.s32.f32 %v2377
  %v2380 = vcvt.s32.f32 %v2378
  %2381 = vmax.xlane.f32.xlu0 %v2380
  %v2382 = vpop.xlane.xlu0 %2381
  %vm2383 = vcmp.eq.f32.partialorder %v2380, %v2382
  %v2384 = vsel %vm2383, %v2379, -inf
  %2385 = vmax.xlane.f32.xlu0 %v2384
  %v2386 = vpop.xlane.xlu0 %2385
  %v2387 = vcvt.f32.s32 %v2386
  %v2388 = vcvt.f32.s32 %v2382
  %v2389 = vshll.u32 %v2388, 16
  %v2390 = vadd.s32 %v2389, %v2387
  %v2391 = vsel %vm360, %v2355, 2147483648
  %v2392 = vand.u32 %v2391, 65535
  %v2393 = vshra.s32 %v2391, 16
  %v2394 = vcvt.s32.f32 %v2392
  %v2395 = vcvt.s32.f32 %v2393
  %2396 = vmax.xlane.f32.xlu0 %v2395
  %v2397 = vpop.xlane.xlu0 %2396
  %vm2398 = vcmp.eq.f32.partialorder %v2395, %v2397
  %v2399 = vsel %vm2398, %v2394, -inf
  %2400 = vmax.xlane.f32.xlu0 %v2399
  %v2401 = vpop.xlane.xlu0 %2400
  %v2402 = vcvt.f32.s32 %v2401
  %v2403 = vcvt.f32.s32 %v2397
  %v2404 = vshll.u32 %v2403, 16
  %v2405 = vadd.s32 %v2404, %v2402
  %v2406 = vsel %vm360, %v2356, 2147483648
  %v2407 = vand.u32 %v2406, 65535
  %v2408 = vshra.s32 %v2406, 16
  %v2409 = vcvt.s32.f32 %v2407
  %v2410 = vcvt.s32.f32 %v2408
  %2411 = vmax.xlane.f32.xlu0 %v2410
  %v2412 = vpop.xlane.xlu0 %2411
  %vm2413 = vcmp.eq.f32.partialorder %v2410, %v2412
  %v2414 = vsel %vm2413, %v2409, -inf
  %2415 = vmax.xlane.f32.xlu0 %v2414
  %v2416 = vpop.xlane.xlu0 %2415
  %v2417 = vcvt.f32.s32 %v2416
  %v2418 = vcvt.f32.s32 %v2412
  %v2419 = vshll.u32 %v2418, 16
  %v2420 = vadd.s32 %v2419, %v2417
  %v2421 = vsel %vm360, %v2357, 2147483648
  %v2422 = vand.u32 %v2421, 65535
  %v2423 = vshra.s32 %v2421, 16
  %v2424 = vcvt.s32.f32 %v2422
  %v2425 = vcvt.s32.f32 %v2423
  %2426 = vmax.xlane.f32.xlu0 %v2425
  %v2427 = vpop.xlane.xlu0 %2426
  %vm2428 = vcmp.eq.f32.partialorder %v2425, %v2427
  %v2429 = vsel %vm2428, %v2424, -inf
  %2430 = vmax.xlane.f32.xlu0 %v2429
  %v2431 = vpop.xlane.xlu0 %2430
  %v2432 = vcvt.f32.s32 %v2431
  %v2433 = vcvt.f32.s32 %v2427
  %v2434 = vshll.u32 %v2433, 16
  %v2435 = vadd.s32 %v2434, %v2432
  %v2436 = vsel %vm360, %v2358, 2147483648
  %v2437 = vand.u32 %v2436, 65535
  %v2438 = vshra.s32 %v2436, 16
  %v2439 = vcvt.s32.f32 %v2437
  %v2440 = vcvt.s32.f32 %v2438
  %2441 = vmax.xlane.f32.xlu0 %v2440
  %v2442 = vpop.xlane.xlu0 %2441
  %vm2443 = vcmp.eq.f32.partialorder %v2440, %v2442
  %v2444 = vsel %vm2443, %v2439, -inf
  %2445 = vmax.xlane.f32.xlu0 %v2444
  %v2446 = vpop.xlane.xlu0 %2445
  %v2447 = vcvt.f32.s32 %v2446
  %v2448 = vcvt.f32.s32 %v2442
  %v2449 = vshll.u32 %v2448, 16
  %v2450 = vadd.s32 %v2449, %v2447
  %v2451 = vsel %vm360, %v2359, 2147483648
  %v2452 = vand.u32 %v2451, 65535
  %v2453 = vshra.s32 %v2451, 16
  %v2454 = vcvt.s32.f32 %v2452
  %v2455 = vcvt.s32.f32 %v2453
  %2456 = vmax.xlane.f32.xlu0 %v2455
  %v2457 = vpop.xlane.xlu0 %2456
  %vm2458 = vcmp.eq.f32.partialorder %v2455, %v2457
  %v2459 = vsel %vm2458, %v2454, -inf
  %2460 = vmax.xlane.f32.xlu0 %v2459
  %v2461 = vpop.xlane.xlu0 %2460
  %v2462 = vcvt.f32.s32 %v2461
  %v2463 = vcvt.f32.s32 %v2457
  %v2464 = vshll.u32 %v2463, 16
  %v2465 = vadd.s32 %v2464, %v2462
  %v2466 = vsel %vm360, %v2360, 2147483648
  %v2467 = vand.u32 %v2466, 65535
  %v2468 = vshra.s32 %v2466, 16
  %v2469 = vcvt.s32.f32 %v2467
  %v2470 = vcvt.s32.f32 %v2468
  %2471 = vmax.xlane.f32.xlu0 %v2470
  %v2472 = vpop.xlane.xlu0 %2471
  %vm2473 = vcmp.eq.f32.partialorder %v2470, %v2472
  %v2474 = vsel %vm2473, %v2469, -inf
  %2475 = vmax.xlane.f32.xlu0 %v2474
  %v2476 = vpop.xlane.xlu0 %2475
  %v2477 = vcvt.f32.s32 %v2476
  %v2478 = vcvt.f32.s32 %v2472
  %v2479 = vshll.u32 %v2478, 16
  %v2480 = vadd.s32 %v2479, %v2477
  %v2481 = vsel %vm2345, 1e+30, %v2177
  %v2482 = vsel %vm2346, 1e+30, %v2178
  %v2483 = vsel %vm2347, 1e+30, %v2179
  %v2484 = vsel %vm2348, 1e+30, %v2180
  %v2485 = vsel %vm2349, 1e+30, %v2181
  %v2486 = vsel %vm2350, 1e+30, %v2182
  %v2487 = vsel %vm2351, 1e+30, %v2183
  %v2488 = vsel %vm2352, 1e+30, %v2184
  %v2489 = vsel %vm360, %v2481, inf
  %2490 = vmin.xlane.f32.xlu0 %v2489
  %v2491 = vpop.xlane.xlu0 %2490
  %v2492 = vsel %vm360, %v2482, inf
  %2493 = vmin.xlane.f32.xlu0 %v2492
  %v2494 = vpop.xlane.xlu0 %2493
  %v2495 = vsel %vm360, %v2483, inf
  %2496 = vmin.xlane.f32.xlu0 %v2495
  %v2497 = vpop.xlane.xlu0 %2496
  %v2498 = vsel %vm360, %v2484, inf
  %2499 = vmin.xlane.f32.xlu0 %v2498
  %v2500 = vpop.xlane.xlu0 %2499
  %v2501 = vsel %vm360, %v2485, inf
  %2502 = vmin.xlane.f32.xlu0 %v2501
  %v2503 = vpop.xlane.xlu0 %2502
  %v2504 = vsel %vm360, %v2486, inf
  %2505 = vmin.xlane.f32.xlu0 %v2504
  %v2506 = vpop.xlane.xlu0 %2505
  %v2507 = vsel %vm360, %v2487, inf
  %2508 = vmin.xlane.f32.xlu0 %v2507
  %v2509 = vpop.xlane.xlu0 %2508
  %v2510 = vsel %vm360, %v2488, inf
  %2511 = vmin.xlane.f32.xlu0 %v2510
  %v2512 = vpop.xlane.xlu0 %2511
  %vm2513 = vcmp.eq.f32.partialorder %v2481, %v2491
  %vm2514 = vcmp.eq.f32.partialorder %v2482, %v2494
  %vm2515 = vcmp.eq.f32.partialorder %v2483, %v2497
  %vm2516 = vcmp.eq.f32.partialorder %v2484, %v2500
  %vm2517 = vcmp.eq.f32.partialorder %v2485, %v2503
  %vm2518 = vcmp.eq.f32.partialorder %v2486, %v2506
  %vm2519 = vcmp.eq.f32.partialorder %v2487, %v2509
  %vm2520 = vcmp.eq.f32.partialorder %v2488, %v2512
  %v2521 = vsel %vm2513, %v289, 1073741824
  %v2522 = vsel %vm2514, %v289, 1073741824
  %v2523 = vsel %vm2515, %v289, 1073741824
  %v2524 = vsel %vm2516, %v289, 1073741824
  %v2525 = vsel %vm2517, %v289, 1073741824
  %v2526 = vsel %vm2518, %v289, 1073741824
  %v2527 = vsel %vm2519, %v289, 1073741824
  %v2528 = vsel %vm2520, %v289, 1073741824
  %v2529 = vsel %vm360, %v2521, 2147483647
  %v2530 = vand.u32 %v2529, 65535
  %v2531 = vshra.s32 %v2529, 16
  %v2532 = vcvt.s32.f32 %v2530
  %v2533 = vcvt.s32.f32 %v2531
  %2534 = vmin.xlane.f32.xlu0 %v2533
  %v2535 = vpop.xlane.xlu0 %2534
  %vm2536 = vcmp.eq.f32.partialorder %v2533, %v2535
  %v2537 = vsel %vm2536, %v2532, inf
  %2538 = vmin.xlane.f32.xlu0 %v2537
  %v2539 = vpop.xlane.xlu0 %2538
  %v2540 = vcvt.f32.s32 %v2539
  %v2541 = vcvt.f32.s32 %v2535
  %v2542 = vshll.u32 %v2541, 16
  %v2543 = vadd.s32 %v2542, %v2540
  %v2544 = vsel %vm360, %v2522, 2147483647
  %v2545 = vand.u32 %v2544, 65535
  %v2546 = vshra.s32 %v2544, 16
  %v2547 = vcvt.s32.f32 %v2545
  %v2548 = vcvt.s32.f32 %v2546
  %2549 = vmin.xlane.f32.xlu0 %v2548
  %v2550 = vpop.xlane.xlu0 %2549
  %vm2551 = vcmp.eq.f32.partialorder %v2548, %v2550
  %v2552 = vsel %vm2551, %v2547, inf
  %2553 = vmin.xlane.f32.xlu0 %v2552
  %v2554 = vpop.xlane.xlu0 %2553
  %v2555 = vcvt.f32.s32 %v2554
  %v2556 = vcvt.f32.s32 %v2550
  %v2557 = vshll.u32 %v2556, 16
  %v2558 = vadd.s32 %v2557, %v2555
  %v2559 = vsel %vm360, %v2523, 2147483647
  %v2560 = vand.u32 %v2559, 65535
  %v2561 = vshra.s32 %v2559, 16
  %v2562 = vcvt.s32.f32 %v2560
  %v2563 = vcvt.s32.f32 %v2561
  %2564 = vmin.xlane.f32.xlu0 %v2563
  %v2565 = vpop.xlane.xlu0 %2564
  %vm2566 = vcmp.eq.f32.partialorder %v2563, %v2565
  %v2567 = vsel %vm2566, %v2562, inf
  %2568 = vmin.xlane.f32.xlu0 %v2567
  %v2569 = vpop.xlane.xlu0 %2568
  %v2570 = vcvt.f32.s32 %v2569
  %v2571 = vcvt.f32.s32 %v2565
  %v2572 = vshll.u32 %v2571, 16
  %v2573 = vadd.s32 %v2572, %v2570
  %v2574 = vsel %vm360, %v2524, 2147483647
  %v2575 = vand.u32 %v2574, 65535
  %v2576 = vshra.s32 %v2574, 16
  %v2577 = vcvt.s32.f32 %v2575
  %v2578 = vcvt.s32.f32 %v2576
  %2579 = vmin.xlane.f32.xlu0 %v2578
  %v2580 = vpop.xlane.xlu0 %2579
  %vm2581 = vcmp.eq.f32.partialorder %v2578, %v2580
  %v2582 = vsel %vm2581, %v2577, inf
  %2583 = vmin.xlane.f32.xlu0 %v2582
  %v2584 = vpop.xlane.xlu0 %2583
  %v2585 = vcvt.f32.s32 %v2584
  %v2586 = vcvt.f32.s32 %v2580
  %v2587 = vshll.u32 %v2586, 16
  %v2588 = vadd.s32 %v2587, %v2585
  %v2589 = vsel %vm360, %v2525, 2147483647
  %v2590 = vand.u32 %v2589, 65535
  %v2591 = vshra.s32 %v2589, 16
  %v2592 = vcvt.s32.f32 %v2590
  %v2593 = vcvt.s32.f32 %v2591
  %2594 = vmin.xlane.f32.xlu0 %v2593
  %v2595 = vpop.xlane.xlu0 %2594
  %vm2596 = vcmp.eq.f32.partialorder %v2593, %v2595
  %v2597 = vsel %vm2596, %v2592, inf
  %2598 = vmin.xlane.f32.xlu0 %v2597
  %v2599 = vpop.xlane.xlu0 %2598
  %v2600 = vcvt.f32.s32 %v2599
  %v2601 = vcvt.f32.s32 %v2595
  %v2602 = vshll.u32 %v2601, 16
  %v2603 = vadd.s32 %v2602, %v2600
  %v2604 = vsel %vm360, %v2526, 2147483647
  %v2605 = vand.u32 %v2604, 65535
  %v2606 = vshra.s32 %v2604, 16
  %v2607 = vcvt.s32.f32 %v2605
  %v2608 = vcvt.s32.f32 %v2606
  %2609 = vmin.xlane.f32.xlu0 %v2608
  %v2610 = vpop.xlane.xlu0 %2609
  %vm2611 = vcmp.eq.f32.partialorder %v2608, %v2610
  %v2612 = vsel %vm2611, %v2607, inf
  %2613 = vmin.xlane.f32.xlu0 %v2612
  %v2614 = vpop.xlane.xlu0 %2613
  %v2615 = vcvt.f32.s32 %v2614
  %v2616 = vcvt.f32.s32 %v2610
  %v2617 = vshll.u32 %v2616, 16
  %v2618 = vadd.s32 %v2617, %v2615
  %v2619 = vsel %vm360, %v2527, 2147483647
  %v2620 = vand.u32 %v2619, 65535
  %v2621 = vshra.s32 %v2619, 16
  %v2622 = vcvt.s32.f32 %v2620
  %v2623 = vcvt.s32.f32 %v2621
  %2624 = vmin.xlane.f32.xlu0 %v2623
  %v2625 = vpop.xlane.xlu0 %2624
  %vm2626 = vcmp.eq.f32.partialorder %v2623, %v2625
  %v2627 = vsel %vm2626, %v2622, inf
  %2628 = vmin.xlane.f32.xlu0 %v2627
  %v2629 = vpop.xlane.xlu0 %2628
  %v2630 = vcvt.f32.s32 %v2629
  %v2631 = vcvt.f32.s32 %v2625
  %v2632 = vshll.u32 %v2631, 16
  %v2633 = vadd.s32 %v2632, %v2630
  %v2634 = vsel %vm360, %v2528, 2147483647
  %v2635 = vand.u32 %v2634, 65535
  %v2636 = vshra.s32 %v2634, 16
  %v2637 = vcvt.s32.f32 %v2635
  %v2638 = vcvt.s32.f32 %v2636
  %2639 = vmin.xlane.f32.xlu0 %v2638
  %v2640 = vpop.xlane.xlu0 %2639
  %vm2641 = vcmp.eq.f32.partialorder %v2638, %v2640
  %v2642 = vsel %vm2641, %v2637, inf
  %2643 = vmin.xlane.f32.xlu0 %v2642
  %v2644 = vpop.xlane.xlu0 %2643
  %v2645 = vcvt.f32.s32 %v2644
  %v2646 = vcvt.f32.s32 %v2640
  %v2647 = vshll.u32 %v2646, 16
  %v2648 = vadd.s32 %v2647, %v2645
  %vm2649 = vcmp.eq.s32.totalorder %v289, %v2543
  %vm2650 = vcmp.eq.s32.totalorder %v289, %v2558
  %vm2651 = vcmp.eq.s32.totalorder %v289, %v2573
  %vm2652 = vcmp.eq.s32.totalorder %v289, %v2588
  %vm2653 = vcmp.eq.s32.totalorder %v289, %v2603
  %vm2654 = vcmp.eq.s32.totalorder %v289, %v2618
  %vm2655 = vcmp.eq.s32.totalorder %v289, %v2633
  %vm2656 = vcmp.eq.s32.totalorder %v289, %v2648
  %v2657 = vsel %vm2649, %v352, 0
  %v2658 = vsel %vm2650, %v353, 0
  %v2659 = vsel %vm2651, %v354, 0
  %v2660 = vsel %vm2652, %v355, 0
  %v2661 = vsel %vm2653, %v356, 0
  %v2662 = vsel %vm2654, %v357, 0
  %v2663 = vsel %vm2655, %v358, 0
  %v2664 = vsel %vm2656, %v359, 0
  %v2665 = vsel %vm360, %v2657, 2147483648
  %v2666 = vand.u32 %v2665, 65535
  %v2667 = vshra.s32 %v2665, 16
  %v2668 = vcvt.s32.f32 %v2666
  %v2669 = vcvt.s32.f32 %v2667
  %2670 = vmax.xlane.f32.xlu0 %v2669
  %v2671 = vpop.xlane.xlu0 %2670
  %vm2672 = vcmp.eq.f32.partialorder %v2669, %v2671
  %v2673 = vsel %vm2672, %v2668, -inf
  %2674 = vmax.xlane.f32.xlu0 %v2673
  %v2675 = vpop.xlane.xlu0 %2674
  %v2676 = vcvt.f32.s32 %v2675
  %v2677 = vcvt.f32.s32 %v2671
  %v2678 = vshll.u32 %v2677, 16
  %v2679 = vadd.s32 %v2678, %v2676
  %v2680 = vsel %vm360, %v2658, 2147483648
  %v2681 = vand.u32 %v2680, 65535
  %v2682 = vshra.s32 %v2680, 16
  %v2683 = vcvt.s32.f32 %v2681
  %v2684 = vcvt.s32.f32 %v2682
  %2685 = vmax.xlane.f32.xlu0 %v2684
  %v2686 = vpop.xlane.xlu0 %2685
  %vm2687 = vcmp.eq.f32.partialorder %v2684, %v2686
  %v2688 = vsel %vm2687, %v2683, -inf
  %2689 = vmax.xlane.f32.xlu0 %v2688
  %v2690 = vpop.xlane.xlu0 %2689
  %v2691 = vcvt.f32.s32 %v2690
  %v2692 = vcvt.f32.s32 %v2686
  %v2693 = vshll.u32 %v2692, 16
  %v2694 = vadd.s32 %v2693, %v2691
  %v2695 = vsel %vm360, %v2659, 2147483648
  %v2696 = vand.u32 %v2695, 65535
  %v2697 = vshra.s32 %v2695, 16
  %v2698 = vcvt.s32.f32 %v2696
  %v2699 = vcvt.s32.f32 %v2697
  %2700 = vmax.xlane.f32.xlu0 %v2699
  %v2701 = vpop.xlane.xlu0 %2700
  %vm2702 = vcmp.eq.f32.partialorder %v2699, %v2701
  %v2703 = vsel %vm2702, %v2698, -inf
  %2704 = vmax.xlane.f32.xlu0 %v2703
  %v2705 = vpop.xlane.xlu0 %2704
  %v2706 = vcvt.f32.s32 %v2705
  %v2707 = vcvt.f32.s32 %v2701
  %v2708 = vshll.u32 %v2707, 16
  %v2709 = vadd.s32 %v2708, %v2706
  %v2710 = vsel %vm360, %v2660, 2147483648
  %v2711 = vand.u32 %v2710, 65535
  %v2712 = vshra.s32 %v2710, 16
  %v2713 = vcvt.s32.f32 %v2711
  %v2714 = vcvt.s32.f32 %v2712
  %2715 = vmax.xlane.f32.xlu0 %v2714
  %v2716 = vpop.xlane.xlu0 %2715
  %vm2717 = vcmp.eq.f32.partialorder %v2714, %v2716
  %v2718 = vsel %vm2717, %v2713, -inf
  %2719 = vmax.xlane.f32.xlu0 %v2718
  %v2720 = vpop.xlane.xlu0 %2719
  %v2721 = vcvt.f32.s32 %v2720
  %v2722 = vcvt.f32.s32 %v2716
  %v2723 = vshll.u32 %v2722, 16
  %v2724 = vadd.s32 %v2723, %v2721
  %v2725 = vsel %vm360, %v2661, 2147483648
  %v2726 = vand.u32 %v2725, 65535
  %v2727 = vshra.s32 %v2725, 16
  %v2728 = vcvt.s32.f32 %v2726
  %v2729 = vcvt.s32.f32 %v2727
  %2730 = vmax.xlane.f32.xlu0 %v2729
  %v2731 = vpop.xlane.xlu0 %2730
  %vm2732 = vcmp.eq.f32.partialorder %v2729, %v2731
  %v2733 = vsel %vm2732, %v2728, -inf
  %2734 = vmax.xlane.f32.xlu0 %v2733
  %v2735 = vpop.xlane.xlu0 %2734
  %v2736 = vcvt.f32.s32 %v2735
  %v2737 = vcvt.f32.s32 %v2731
  %v2738 = vshll.u32 %v2737, 16
  %v2739 = vadd.s32 %v2738, %v2736
  %v2740 = vsel %vm360, %v2662, 2147483648
  %v2741 = vand.u32 %v2740, 65535
  %v2742 = vshra.s32 %v2740, 16
  %v2743 = vcvt.s32.f32 %v2741
  %v2744 = vcvt.s32.f32 %v2742
  %2745 = vmax.xlane.f32.xlu0 %v2744
  %v2746 = vpop.xlane.xlu0 %2745
  %vm2747 = vcmp.eq.f32.partialorder %v2744, %v2746
  %v2748 = vsel %vm2747, %v2743, -inf
  %2749 = vmax.xlane.f32.xlu0 %v2748
  %v2750 = vpop.xlane.xlu0 %2749
  %v2751 = vcvt.f32.s32 %v2750
  %v2752 = vcvt.f32.s32 %v2746
  %v2753 = vshll.u32 %v2752, 16
  %v2754 = vadd.s32 %v2753, %v2751
  %v2755 = vsel %vm360, %v2663, 2147483648
  %v2756 = vand.u32 %v2755, 65535
  %v2757 = vshra.s32 %v2755, 16
  %v2758 = vcvt.s32.f32 %v2756
  %v2759 = vcvt.s32.f32 %v2757
  %2760 = vmax.xlane.f32.xlu0 %v2759
  %v2761 = vpop.xlane.xlu0 %2760
  %vm2762 = vcmp.eq.f32.partialorder %v2759, %v2761
  %v2763 = vsel %vm2762, %v2758, -inf
  %2764 = vmax.xlane.f32.xlu0 %v2763
  %v2765 = vpop.xlane.xlu0 %2764
  %v2766 = vcvt.f32.s32 %v2765
  %v2767 = vcvt.f32.s32 %v2761
  %v2768 = vshll.u32 %v2767, 16
  %v2769 = vadd.s32 %v2768, %v2766
  %v2770 = vsel %vm360, %v2664, 2147483648
  %v2771 = vand.u32 %v2770, 65535
  %v2772 = vshra.s32 %v2770, 16
  %v2773 = vcvt.s32.f32 %v2771
  %v2774 = vcvt.s32.f32 %v2772
  %2775 = vmax.xlane.f32.xlu0 %v2774
  %v2776 = vpop.xlane.xlu0 %2775
  %vm2777 = vcmp.eq.f32.partialorder %v2774, %v2776
  %v2778 = vsel %vm2777, %v2773, -inf
  %2779 = vmax.xlane.f32.xlu0 %v2778
  %v2780 = vpop.xlane.xlu0 %2779
  %v2781 = vcvt.f32.s32 %v2780
  %v2782 = vcvt.f32.s32 %v2776
  %v2783 = vshll.u32 %v2782, 16
  %v2784 = vadd.s32 %v2783, %v2781
  %vm2785 = vcmask 7168
  %v2786 = vsel %vm2785, %v363, %v667
  %v2787 = vsel %vm2785, %v366, %v670
  %v2788 = vsel %vm2785, %v369, %v673
  %v2789 = vsel %vm2785, %v372, %v676
  %v2790 = vsel %vm2785, %v375, %v679
  %v2791 = vsel %vm2785, %v378, %v682
  %v2792 = vsel %vm2785, %v381, %v685
  %v2793 = vsel %vm2785, %v384, %v688
  %vm2794 = vcmask 15360
  %v2795 = vsel %vm2794, %v2786, %v971
  %v2796 = vsel %vm2794, %v2787, %v974
  %v2797 = vsel %vm2794, %v2788, %v977
  %v2798 = vsel %vm2794, %v2789, %v980
  %v2799 = vsel %vm2794, %v2790, %v983
  %v2800 = vsel %vm2794, %v2791, %v986
  %v2801 = vsel %vm2794, %v2792, %v989
  %v2802 = vsel %vm2794, %v2793, %v992
  %vm2803 = vcmask 23552
  %v2804 = vsel %vm2803, %v2795, %v1275
  %v2805 = vsel %vm2803, %v2796, %v1278
  %v2806 = vsel %vm2803, %v2797, %v1281
  %v2807 = vsel %vm2803, %v2798, %v1284
  %v2808 = vsel %vm2803, %v2799, %v1287
  %v2809 = vsel %vm2803, %v2800, %v1290
  %v2810 = vsel %vm2803, %v2801, %v1293
  %v2811 = vsel %vm2803, %v2802, %v1296
  %vm2812 = vcmask 31744
  %v2813 = vsel %vm2812, %v2804, %v1579
  %v2814 = vsel %vm2812, %v2805, %v1582
  %v2815 = vsel %vm2812, %v2806, %v1585
  %v2816 = vsel %vm2812, %v2807, %v1588
  %v2817 = vsel %vm2812, %v2808, %v1591
  %v2818 = vsel %vm2812, %v2809, %v1594
  %v2819 = vsel %vm2812, %v2810, %v1597
  %v2820 = vsel %vm2812, %v2811, %v1600
  %vm2821 = vcmask 39936
  %v2822 = vsel %vm2821, %v2813, %v1883
  %v2823 = vsel %vm2821, %v2814, %v1886
  %v2824 = vsel %vm2821, %v2815, %v1889
  %v2825 = vsel %vm2821, %v2816, %v1892
  %v2826 = vsel %vm2821, %v2817, %v1895
  %v2827 = vsel %vm2821, %v2818, %v1898
  %v2828 = vsel %vm2821, %v2819, %v1901
  %v2829 = vsel %vm2821, %v2820, %v1904
  %v2830 = vsel %vm98, %v2822, %v2187
  %v2831 = vsel %vm98, %v2823, %v2190
  %v2832 = vsel %vm98, %v2824, %v2193
  %v2833 = vsel %vm98, %v2825, %v2196
  %v2834 = vsel %vm98, %v2826, %v2199
  %v2835 = vsel %vm98, %v2827, %v2202
  %v2836 = vsel %vm98, %v2828, %v2205
  %v2837 = vsel %vm98, %v2829, %v2208
  %vm2838 = vcmask 56320
  %v2839 = vsel %vm2838, %v2830, %v2491
  %v2840 = vsel %vm2838, %v2831, %v2494
  %v2841 = vsel %vm2838, %v2832, %v2497
  %v2842 = vsel %vm2838, %v2833, %v2500
  %v2843 = vsel %vm2838, %v2834, %v2503
  %v2844 = vsel %vm2838, %v2835, %v2506
  %v2845 = vsel %vm2838, %v2836, %v2509
  %v2846 = vsel %vm2838, %v2837, %v2512
  %2847 = vst.msk [vmem:[#allocation2] sm:$0xff] %vm333, %v2839
  %2848 = vst.msk [vmem:[#allocation2 + $0x8] sm:$0xff] %vm333, %v2840
  %2849 = vst.msk [vmem:[#allocation2 + $0x10] sm:$0xff] %vm333, %v2841
  %2850 = vst.msk [vmem:[#allocation2 + $0x18] sm:$0xff] %vm333, %v2842
  %2851 = vst.msk [vmem:[#allocation2 + $0x20] sm:$0xff] %vm333, %v2843
  %2852 = vst.msk [vmem:[#allocation2 + $0x28] sm:$0xff] %vm333, %v2844
  %2853 = vst.msk [vmem:[#allocation2 + $0x30] sm:$0xff] %vm333, %v2845
  %2854 = vst.msk [vmem:[#allocation2 + $0x38] sm:$0xff] %vm333, %v2846
  %v2855 = vsel %vm2785, %v551, %v855
  %v2856 = vsel %vm2785, %v566, %v870
  %v2857 = vsel %vm2785, %v581, %v885
  %v2858 = vsel %vm2785, %v596, %v900
  %v2859 = vsel %vm2785, %v611, %v915
  %v2860 = vsel %vm2785, %v626, %v930
  %v2861 = vsel %vm2785, %v641, %v945
  %v2862 = vsel %vm2785, %v656, %v960
  %v2863 = vsel %vm2794, %v2855, %v1159
  %v2864 = vsel %vm2794, %v2856, %v1174
  %v2865 = vsel %vm2794, %v2857, %v1189
  %v2866 = vsel %vm2794, %v2858, %v1204
  %v2867 = vsel %vm2794, %v2859, %v1219
  %v2868 = vsel %vm2794, %v2860, %v1234
  %v2869 = vsel %vm2794, %v2861, %v1249
  %v2870 = vsel %vm2794, %v2862, %v1264
  %v2871 = vsel %vm2803, %v2863, %v1463
  %v2872 = vsel %vm2803, %v2864, %v1478
  %v2873 = vsel %vm2803, %v2865, %v1493
  %v2874 = vsel %vm2803, %v2866, %v1508
  %v2875 = vsel %vm2803, %v2867, %v1523
  %v2876 = vsel %vm2803, %v2868, %v1538
  %v2877 = vsel %vm2803, %v2869, %v1553
  %v2878 = vsel %vm2803, %v2870, %v1568
  %v2879 = vsel %vm2812, %v2871, %v1767
  %v2880 = vsel %vm2812, %v2872, %v1782
  %v2881 = vsel %vm2812, %v2873, %v1797
  %v2882 = vsel %vm2812, %v2874, %v1812
  %v2883 = vsel %vm2812, %v2875, %v1827
  %v2884 = vsel %vm2812, %v2876, %v1842
  %v2885 = vsel %vm2812, %v2877, %v1857
  %v2886 = vsel %vm2812, %v2878, %v1872
  %v2887 = vsel %vm2821, %v2879, %v2071
  %v2888 = vsel %vm2821, %v2880, %v2086
  %v2889 = vsel %vm2821, %v2881, %v2101
  %v2890 = vsel %vm2821, %v2882, %v2116
  %v2891 = vsel %vm2821, %v2883, %v2131
  %v2892 = vsel %vm2821, %v2884, %v2146
  %v2893 = vsel %vm2821, %v2885, %v2161
  %v2894 = vsel %vm2821, %v2886, %v2176
  %v2895 = vsel %vm98, %v2887, %v2375
  %v2896 = vsel %vm98, %v2888, %v2390
  %v2897 = vsel %vm98, %v2889, %v2405
  %v2898 = vsel %vm98, %v2890, %v2420
  %v2899 = vsel %vm98, %v2891, %v2435
  %v2900 = vsel %vm98, %v2892, %v2450
  %v2901 = vsel %vm98, %v2893, %v2465
  %v2902 = vsel %vm98, %v2894, %v2480
  %v2903 = vsel %vm2838, %v2895, %v2679
  %v2904 = vsel %vm2838, %v2896, %v2694
  %v2905 = vsel %vm2838, %v2897, %v2709
  %v2906 = vsel %vm2838, %v2898, %v2724
  %v2907 = vsel %vm2838, %v2899, %v2739
  %v2908 = vsel %vm2838, %v2900, %v2754
  %v2909 = vsel %vm2838, %v2901, %v2769
  %v2910 = vsel %vm2838, %v2902, %v2784
  %2911 = vst.msk [vmem:[#allocation3] sm:$0xff] %vm333, %v2903
  %2912 = vst.msk [vmem:[#allocation3 + $0x8] sm:$0xff] %vm333, %v2904
  %2913 = vst.msk [vmem:[#allocation3 + $0x10] sm:$0xff] %vm333, %v2905
  %2914 = vst.msk [vmem:[#allocation3 + $0x18] sm:$0xff] %vm333, %v2906
  %2915 = vst.msk [vmem:[#allocation3 + $0x20] sm:$0xff] %vm333, %v2907
  %2916 = vst.msk [vmem:[#allocation3 + $0x28] sm:$0xff] %vm333, %v2908
  %2917 = vst.msk [vmem:[#allocation3 + $0x30] sm:$0xff] %vm333, %v2909
  %2918 = vst.msk [vmem:[#allocation3 + $0x38] sm:$0xff] %vm333, %v2910
  // Predicated region
  $region26: #{net_forward.7} parent=0 // pred_check
    %p2919 = pneg %p21
  $region27: #{net_forward.7} parent=0 // pred_check_branch
    %2921 = sbr.rel (%p2919) target = $region29
  $region28: #{net_forward.7} parent=0 // pred_region
    %v2922 = vld [vmem:[#allocation3] sm:$0xff]
    %v2923 = vld [vmem:[#allocation3 + $0x8] sm:$0xff]
    %v2924 = vld [vmem:[#allocation3 + $0x10] sm:$0xff]
    %v2925 = vld [vmem:[#allocation3 + $0x18] sm:$0xff]
    %v2926 = vld [vmem:[#allocation3 + $0x20] sm:$0xff]
    %v2927 = vld [vmem:[#allocation3 + $0x28] sm:$0xff]
    %v2928 = vld [vmem:[#allocation3 + $0x30] sm:$0xff]
    %v2929 = vld [vmem:[#allocation3 + $0x38] sm:$0xff]
    %2930 = vst.msk [vmem:[%s5] sm:$0xff] %vm333, %v2922
    %2931 = vst.msk [vmem:[%s5 + $0x8] sm:$0xff] %vm333, %v2923
    %2932 = vst.msk [vmem:[%s5 + $0x10] sm:$0xff] %vm333, %v2924
    %2933 = vst.msk [vmem:[%s5 + $0x18] sm:$0xff] %vm333, %v2925
    %2934 = vst.msk [vmem:[%s5 + $0x20] sm:$0xff] %vm333, %v2926
    %2935 = vst.msk [vmem:[%s5 + $0x28] sm:$0xff] %vm333, %v2927
    %2936 = vst.msk [vmem:[%s5 + $0x30] sm:$0xff] %vm333, %v2928
    %2937 = vst.msk [vmem:[%s5 + $0x38] sm:$0xff] %vm333, %v2929
  $region29: #{net_forward.7} parent=0 // pred_fallthru
    _
  // Predicated region
  $region30: #{net_forward.7} parent=0 // pred_check
    _
  $region31: #{net_forward.7} parent=0 // pred_check_branch
    %2939 = sbr.rel (0) target = $region33
  $region32: #{net_forward.7} parent=0 // pred_region
    _
  $region33: #{net_forward.7} parent=0 // pred_fallthru
    _
  // Predicated region
  $region34: #{net_forward.7} parent=0 // pred_check
    _
  $region35: #{net_forward.7} parent=0 // pred_check_branch
    %2941 = sbr.rel (0) target = $region37
  $region36: #{net_forward.7} parent=0 // pred_region
    _
  $region37: #{net_forward.7} parent=0 // pred_fallthru
    _

// kernel: net_forward.10
$region0: #{net_forward.10}
  #allocation0 [shape = 'u32[]', space=smem, size = 0x4, offset = 0x4, fixed_abs, tag = 'smem constant byte address 0x4 - core index']
  #allocation1 [shape = 'u32[144,128]{1,0:T(1,128)}', space=vmem, size = 0x12000, scoped, tag = 'internal scratch']
  %s0 = inlined_call_operand.vmem [shape: bf16[64,64], index: 0, kind: input, shape index: {}]
  %s1 = inlined_call_operand.vmem [shape: bf16[8,64,64], index: 1, kind: input, shape index: {}]
  %s2 = inlined_call_operand.vmem [shape: bf16[64,64], index: 2, kind: input, shape index: {}]
  %s3 = inlined_call_operand.vmem [shape: bf16[64,64], index: 3, kind: input, shape index: {}]
  %s4 = inlined_call_operand.vmem [shape: f32[1,64], index: 4, kind: input, shape index: {}]
  %s5 = inlined_call_operand.vmem [shape: bf16[64,64], index: 5, kind: input, shape index: {}]
  %s6 = inlined_call_operand.vmem [shape: f32[1,64], index: 6, kind: input, shape index: {}]
  %s7 = inlined_call_operand.vmem [shape: bf16[64,64], index: 7, kind: output, shape index: {}]
  %s8 = sld [smem:[#allocation0]]
  $region38: #{net_forward.10} parent=0
    _
  %s10 = ssub.s32 1, %s8
  %s11 = scalar_select 0, %s10, %s8
  // Predicated region
  $region2: #{net_forward.10} parent=0 // pred_check
    _
  $region3: #{net_forward.10} parent=0 // pred_check_branch
    %13 = sbr.rel (0) target = $region5
  $region4: #{net_forward.10} parent=0 // pred_region
    _
  $region5: #{net_forward.10} parent=0 // pred_fallthru
    _
  // Predicated region
  $region6: #{net_forward.10} parent=0 // pred_check
    _
  $region7: #{net_forward.10} parent=0 // pred_check_branch
    %15 = sbr.rel (0) target = $region9
  $region8: #{net_forward.10} parent=0 // pred_region
    _
  $region9: #{net_forward.10} parent=0 // pred_fallthru
    _
  // Predicated region
  $region10: #{net_forward.10} parent=0 // pred_check
    _
  $region11: #{net_forward.10} parent=0 // pred_check_branch
    %17 = sbr.rel (0) target = $region13
  $region12: #{net_forward.10} parent=0 // pred_region
    _
  $region13: #{net_forward.10} parent=0 // pred_fallthru
    _
  // Predicated region
  $region14: #{net_forward.10} parent=0 // pred_check
    _
  $region15: #{net_forward.10} parent=0 // pred_check_branch
    %19 = sbr.rel (0) target = $region17
  $region16: #{net_forward.10} parent=0 // pred_region
    _
  $region17: #{net_forward.10} parent=0 // pred_fallthru
    _
  // Predicated region
  $region18: #{net_forward.10} parent=0 // pred_check
    _
  $region19: #{net_forward.10} parent=0 // pred_check_branch
    %21 = sbr.rel (0) target = $region21
  $region20: #{net_forward.10} parent=0 // pred_region
    _
  $region21: #{net_forward.10} parent=0 // pred_fallthru
    _
  // Predicated region
  $region22: #{net_forward.10} parent=0 // pred_check
    _
  $region23: #{net_forward.10} parent=0 // pred_check_branch
    %23 = sbr.rel (0) target = $region25
  $region24: #{net_forward.10} parent=0 // pred_region
    _
  $region25: #{net_forward.10} parent=0 // pred_fallthru
    _
  // Predicated region
  $region26: #{net_forward.10} parent=0 // pred_check
    _
  $region27: #{net_forward.10} parent=0 // pred_check_branch
    %25 = sbr.rel (0) target = $region29
  $region28: #{net_forward.10} parent=0 // pred_region
    _
  $region29: #{net_forward.10} parent=0 // pred_fallthru
    _
  %v27 = vld [vmem:[%s0] sm:$0xf]
  %v28 = vld [vmem:[%s0 + $0x4] sm:$0xf]
  %v29 = vld [vmem:[%s0 + $0x8] sm:$0xf]
  %v30 = vld [vmem:[%s0 + $0xc] sm:$0xf]
  %v31 = vld [vmem:[%s0 + $0x10] sm:$0xf]
  %v32 = vld [vmem:[%s0 + $0x14] sm:$0xf]
  %v33 = vld [vmem:[%s0 + $0x18] sm:$0xf]
  %v34 = vld [vmem:[%s0 + $0x1c] sm:$0xf]
  %v35 = vld [vmem:[%s2] sm:$0xf]
  %v36 = vld [vmem:[%s2 + $0x4] sm:$0xf]
  %v37 = vld [vmem:[%s2 + $0x8] sm:$0xf]
  %v38 = vld [vmem:[%s2 + $0xc] sm:$0xf]
  %v39 = vld [vmem:[%s2 + $0x10] sm:$0xf]
  %v40 = vld [vmem:[%s2 + $0x14] sm:$0xf]
  %v41 = vld [vmem:[%s2 + $0x18] sm:$0xf]
  %v42 = vld [vmem:[%s2 + $0x1c] sm:$0xf]
  %v43 = vld [vmem:[%s4] sm:$0x1]
  %v45 = vlaneseq
  %v46 = vshrl.u32 %v45, 7
  %v47 = vsub.s32 0, %v46
  %v48 = vrot.slane %v43, %v47
  %v58 = vunpack.c.l.b16 %v27
  %v59 = vunpack.c.l.b16 %v28
  %v60 = vunpack.c.l.b16 %v29
  %v61 = vunpack.c.l.b16 %v30
  %v62 = vunpack.c.l.b16 %v31
  %v63 = vunpack.c.l.b16 %v32
  %v64 = vunpack.c.l.b16 %v33
  %v65 = vunpack.c.l.b16 %v34
  %v66 = vpack.c.b16 %v59, %v58
  %v67 = vpack.c.b16 %v61, %v60
  %v68 = vpack.c.b16 %v63, %v62
  %v69 = vpack.c.b16 %v65, %v64
  %v78 = vunpack.c.l.b16 %v35
  %v79 = vunpack.c.l.b16 %v36
  %v80 = vunpack.c.l.b16 %v37
  %v81 = vunpack.c.l.b16 %v38
  %v82 = vunpack.c.l.b16 %v39
  %v83 = vunpack.c.l.b16 %v40
  %v84 = vunpack.c.l.b16 %v41
  %v85 = vunpack.c.l.b16 %v42
  %v86 = vpack.c.b16 %v79, %v78
  %v87 = vpack.c.b16 %v81, %v80
  %v88 = vpack.c.b16 %v83, %v82
  %v89 = vpack.c.b16 %v85, %v84
  %vm94 = vcmask 523264
  %v96 = vsel %vm94, %v66, 0
  %v99 = vsel %vm94, %v67, 0
  %v102 = vsel %vm94, %v68, 0
  %v105 = vsel %vm94, %v69, 0
  %107 = vmatprep.subr.bf16.mxu0 0
  %108 = vmatpush1.bf16.msra.mxu0 0
  %109 = vmatprep.subr.bf16.mxu0 0
  %110 = vmatpush1.bf16.msra.mxu0 0
  %111 = vmatprep.subr.bf16.mxu0 0
  %112 = vmatpush1.bf16.msra.mxu0 0
  %113 = vmatprep.subr.bf16.mxu0 0
  %114 = vmatpush1.bf16.msra.mxu0 0
  %115 = vmatprep.subr.bf16.mxu0 0
  %116 = vmatpush1.bf16.msra.mxu0 %v89
  %117 = vmatprep.subr.bf16.mxu0 0
  %118 = vmatpush1.bf16.msra.mxu0 %v88
  %119 = vmatprep.subr.bf16.mxu0 0
  %120 = vmatpush1.bf16.msra.mxu0 %v87
  %121 = vmatprep.subr.bf16.mxu0 0
  %122 = vmatpush1.bf16.msra.mxu0 %v86
  %123 = vmatprep.subr.bf16.mxu0 0
  %124 = vmatpush2.bf16.msra.mxu0 0
  %125 = vmatprep.subr.bf16.mxu0 0
  %126 = vmatpush2.bf16.msra.mxu0 0
  %127 = vmatprep.subr.bf16.mxu0 0
  %128 = vmatpush2.bf16.msra.mxu0 0
  %129 = vmatprep.subr.bf16.mxu0 0
  %130 = vmatpush2.bf16.msra.mxu0 0
  %131 = vmatprep.subr.bf16.mxu0 0
  %132 = vmatpush2.bf16.msra.mxu0 0
  %133 = vmatprep.subr.bf16.mxu0 0
  %134 = vmatpush2.bf16.msra.mxu0 0
  %135 = vmatprep.subr.bf16.mxu0 0
  %136 = vmatpush2.bf16.msra.mxu0 0
  %137 = vmatprep.subr.bf16.mxu0 0
  %138 = vmatpush2.bf16.msra.mxu0 0
  %139 = vmatprep.mubr.bf16.mxu0 0
  %140 = vmatmul.mubr.bf16.gmra.mxu0 %v96
  %v141 = vpop.f32.mrf.mxu0
  %v142 = vadd.f32 %v48, %v141
  %v143 = vpop.f32.mrf.mxu0
  %v144 = vpop.f32.mrf.mxu0
  %v145 = vadd.f32 %v48, %v144
  %v146 = vpop.f32.mrf.mxu0
  %147 = vmatprep.mubr.bf16.mxu0 0
  %148 = vmatmul.mubr.bf16.gmra.mxu0 %v99
  %v149 = vpop.f32.mrf.mxu0
  %v150 = vadd.f32 %v48, %v149
  %v151 = vpop.f32.mrf.mxu0
  %v152 = vpop.f32.mrf.mxu0
  %v153 = vadd.f32 %v48, %v152
  %v154 = vpop.f32.mrf.mxu0
  %155 = vmatprep.mubr.bf16.mxu0 0
  %156 = vmatmul.mubr.bf16.gmra.mxu0 %v102
  %v157 = vpop.f32.mrf.mxu0
  %v158 = vadd.f32 %v48, %v157
  %v159 = vpop.f32.mrf.mxu0
  %v160 = vpop.f32.mrf.mxu0
  %v161 = vadd.f32 %v48, %v160
  %v162 = vpop.f32.mrf.mxu0
  %163 = vmatprep.mubr.bf16.mxu0 0
  %164 = vmatmul.mubr.bf16.gmra.mxu0 %v105
  %v165 = vpop.f32.mrf.mxu0
  %v166 = vadd.f32 %v48, %v165
  %v167 = vpop.f32.mrf.mxu0
  %v168 = vpop.f32.mrf.mxu0
  %v169 = vadd.f32 %v48, %v168
  %v170 = vpop.f32.mrf.mxu0
  %171 = vdwg.mxu0
  %v172 = vld [vmem:[%s1] sm:$0xf]
  %v173 = vld [vmem:[%s1 + $0x4] sm:$0xf]
  %v174 = vld [vmem:[%s1 + $0x8] sm:$0xf]
  %v175 = vld [vmem:[%s1 + $0xc] sm:$0xf]
  %v176 = vld [vmem:[%s1 + $0x10] sm:$0xf]
  %v177 = vld [vmem:[%s1 + $0x14] sm:$0xf]
  %v178 = vld [vmem:[%s1 + $0x18] sm:$0xf]
  %v179 = vld [vmem:[%s1 + $0x1c] sm:$0xf]
  %v180 = vld [vmem:[%s1 + $0x20] sm:$0xf]
  %v181 = vld [vmem:[%s1 + $0x24] sm:$0xf]
  %v182 = vld [vmem:[%s1 + $0x28] sm:$0xf]
  %v183 = vld [vmem:[%s1 + $0x2c] sm:$0xf]
  %v184 = vld [vmem:[%s1 + $0x30] sm:$0xf]
  %v185 = vld [vmem:[%s1 + $0x34] sm:$0xf]
  %v186 = vld [vmem:[%s1 + $0x38] sm:$0xf]
  %v187 = vld [vmem:[%s1 + $0x3c] sm:$0xf]
  %v188 = vld [vmem:[%s1 + $0x40] sm:$0xf]
  %v189 = vld [vmem:[%s1 + $0x44] sm:$0xf]
  %v190 = vld [vmem:[%s1 + $0x48] sm:$0xf]
  %v191 = vld [vmem:[%s1 + $0x4c] sm:$0xf]
  %v192 = vld [vmem:[%s1 + $0x50] sm:$0xf]
  %v193 = vld [vmem:[%s1 + $0x54] sm:$0xf]
  %v194 = vld [vmem:[%s1 + $0x58] sm:$0xf]
  %v195 = vld [vmem:[%s1 + $0x5c] sm:$0xf]
  %v196 = vld [vmem:[%s1 + $0x60] sm:$0xf]
  %v197 = vld [vmem:[%s1 + $0x64] sm:$0xf]
  %v198 = vld [vmem:[%s1 + $0x68] sm:$0xf]
  %v199 = vld [vmem:[%s1 + $0x6c] sm:$0xf]
  %v200 = vld [vmem:[%s1 + $0x70] sm:$0xf]
  %v201 = vld [vmem:[%s1 + $0x74] sm:$0xf]
  %v202 = vld [vmem:[%s1 + $0x78] sm:$0xf]
  %v203 = vld [vmem:[%s1 + $0x7c] sm:$0xf]
  %v204 = vld [vmem:[%s1 + $0x80] sm:$0xf]
  %v205 = vld [vmem:[%s1 + $0x84] sm:$0xf]
  %v206 = vld [vmem:[%s1 + $0x88] sm:$0xf]
  %v207 = vld [vmem:[%s1 + $0x8c] sm:$0xf]
  %v208 = vld [vmem:[%s1 + $0x90] sm:$0xf]
  %v209 = vld [vmem:[%s1 + $0x94] sm:$0xf]
  %v210 = vld [vmem:[%s1 + $0x98] sm:$0xf]
  %v211 = vld [vmem:[%s1 + $0x9c] sm:$0xf]
  %v212 = vld [vmem:[%s1 + $0xa0] sm:$0xf]
  %v213 = vld [vmem:[%s1 + $0xa4] sm:$0xf]
  %v214 = vld [vmem:[%s1 + $0xa8] sm:$0xf]
  %v215 = vld [vmem:[%s1 + $0xac] sm:$0xf]
  %v216 = vld [vmem:[%s1 + $0xb0] sm:$0xf]
  %v217 = vld [vmem:[%s1 + $0xb4] sm:$0xf]
  %v218 = vld [vmem:[%s1 + $0xb8] sm:$0xf]
  %v219 = vld [vmem:[%s1 + $0xbc] sm:$0xf]
  %v220 = vld [vmem:[%s1 + $0xc0] sm:$0xf]
  %v221 = vld [vmem:[%s1 + $0xc4] sm:$0xf]
  %v222 = vld [vmem:[%s1 + $0xc8] sm:$0xf]
  %v223 = vld [vmem:[%s1 + $0xcc] sm:$0xf]
  %v224 = vld [vmem:[%s1 + $0xd0] sm:$0xf]
  %v225 = vld [vmem:[%s1 + $0xd4] sm:$0xf]
  %v226 = vld [vmem:[%s1 + $0xd8] sm:$0xf]
  %v227 = vld [vmem:[%s1 + $0xdc] sm:$0xf]
  %v228 = vld [vmem:[%s1 + $0xe0] sm:$0xf]
  %v229 = vld [vmem:[%s1 + $0xe4] sm:$0xf]
  %v230 = vld [vmem:[%s1 + $0xe8] sm:$0xf]
  %v231 = vld [vmem:[%s1 + $0xec] sm:$0xf]
  %v232 = vld [vmem:[%s1 + $0xf0] sm:$0xf]
  %v233 = vld [vmem:[%s1 + $0xf4] sm:$0xf]
  %v234 = vld [vmem:[%s1 + $0xf8] sm:$0xf]
  %v235 = vld [vmem:[%s1 + $0xfc] sm:$0xf]
  %v236 = vld [vmem:[%s3] sm:$0xf]
  %v237 = vld [vmem:[%s3 + $0x4] sm:$0xf]
  %v238 = vld [vmem:[%s3 + $0x8] sm:$0xf]
  %v239 = vld [vmem:[%s3 + $0xc] sm:$0xf]
  %v240 = vld [vmem:[%s3 + $0x10] sm:$0xf]
  %v241 = vld [vmem:[%s3 + $0x14] sm:$0xf]
  %v242 = vld [vmem:[%s3 + $0x18] sm:$0xf]
  %v243 = vld [vmem:[%s3 + $0x1c] sm:$0xf]
  %v308 = vunpack.c.l.b16 %v172
  %v309 = vunpack.c.l.b16 %v173
  %v310 = vunpack.c.l.b16 %v174
  %v311 = vunpack.c.l.b16 %v175
  %v312 = vunpack.c.l.b16 %v176
  %v313 = vunpack.c.l.b16 %v177
  %v314 = vunpack.c.l.b16 %v178
  %v315 = vunpack.c.l.b16 %v179
  %v316 = vunpack.c.l.b16 %v180
  %v317 = vunpack.c.l.b16 %v181
  %v318 = vunpack.c.l.b16 %v182
  %v319 = vunpack.c.l.b16 %v183
  %v320 = vunpack.c.l.b16 %v184
  %v321 = vunpack.c.l.b16 %v185
  %v322 = vunpack.c.l.b16 %v186
  %v323 = vunpack.c.l.b16 %v187
  %v324 = vunpack.c.l.b16 %v188
  %v325 = vunpack.c.l.b16 %v189
  %v326 = vunpack.c.l.b16 %v190
  %v327 = vunpack.c.l.b16 %v191
  %v328 = vunpack.c.l.b16 %v192
  %v329 = vunpack.c.l.b16 %v193
  %v330 = vunpack.c.l.b16 %v194
  %v331 = vunpack.c.l.b16 %v195
  %v332 = vunpack.c.l.b16 %v196
  %v333 = vunpack.c.l.b16 %v197
  %v334 = vunpack.c.l.b16 %v198
  %v335 = vunpack.c.l.b16 %v199
  %v336 = vunpack.c.l.b16 %v200
  %v337 = vunpack.c.l.b16 %v201
  %v338 = vunpack.c.l.b16 %v202
  %v339 = vunpack.c.l.b16 %v203
  %v340 = vunpack.c.l.b16 %v204
  %v341 = vunpack.c.l.b16 %v205
  %v342 = vunpack.c.l.b16 %v206
  %v343 = vunpack.c.l.b16 %v207
  %v344 = vunpack.c.l.b16 %v208
  %v345 = vunpack.c.l.b16 %v209
  %v346 = vunpack.c.l.b16 %v210
  %v347 = vunpack.c.l.b16 %v211
  %v348 = vunpack.c.l.b16 %v212
  %v349 = vunpack.c.l.b16 %v213
  %v350 = vunpack.c.l.b16 %v214
  %v351 = vunpack.c.l.b16 %v215
  %v352 = vunpack.c.l.b16 %v216
  %v353 = vunpack.c.l.b16 %v217
  %v354 = vunpack.c.l.b16 %v218
  %v355 = vunpack.c.l.b16 %v219
  %v356 = vunpack.c.l.b16 %v220
  %v357 = vunpack.c.l.b16 %v221
  %v358 = vunpack.c.l.b16 %v222
  %v359 = vunpack.c.l.b16 %v223
  %v360 = vunpack.c.l.b16 %v224
  %v361 = vunpack.c.l.b16 %v225
  %v362 = vunpack.c.l.b16 %v226
  %v363 = vunpack.c.l.b16 %v227
  %v364 = vunpack.c.l.b16 %v228
  %v365 = vunpack.c.l.b16 %v229
  %v366 = vunpack.c.l.b16 %v230
  %v367 = vunpack.c.l.b16 %v231
  %v368 = vunpack.c.l.b16 %v232
  %v369 = vunpack.c.l.b16 %v233
  %v370 = vunpack.c.l.b16 %v234
  %v371 = vunpack.c.l.b16 %v235
  %v372 = vpack.c.b16 %v309, %v308
  %v373 = vpack.c.b16 %v311, %v310
  %v374 = vpack.c.b16 %v313, %v312
  %v375 = vpack.c.b16 %v315, %v314
  %v376 = vpack.c.b16 %v317, %v316
  %v377 = vpack.c.b16 %v319, %v318
  %v378 = vpack.c.b16 %v321, %v320
  %v379 = vpack.c.b16 %v323, %v322
  %v380 = vpack.c.b16 %v325, %v324
  %v381 = vpack.c.b16 %v327, %v326
  %v382 = vpack.c.b16 %v329, %v328
  %v383 = vpack.c.b16 %v331, %v330
  %v384 = vpack.c.b16 %v333, %v332
  %v385 = vpack.c.b16 %v335, %v334
  %v386 = vpack.c.b16 %v337, %v336
  %v387 = vpack.c.b16 %v339, %v338
  %v388 = vpack.c.b16 %v341, %v340
  %v389 = vpack.c.b16 %v343, %v342
  %v390 = vpack.c.b16 %v345, %v344
  %v391 = vpack.c.b16 %v347, %v346
  %v392 = vpack.c.b16 %v349, %v348
  %v393 = vpack.c.b16 %v351, %v350
  %v394 = vpack.c.b16 %v353, %v352
  %v395 = vpack.c.b16 %v355, %v354
  %v396 = vpack.c.b16 %v357, %v356
  %v397 = vpack.c.b16 %v359, %v358
  %v398 = vpack.c.b16 %v361, %v360
  %v399 = vpack.c.b16 %v363, %v362
  %v400 = vpack.c.b16 %v365, %v364
  %v401 = vpack.c.b16 %v367, %v366
  %v402 = vpack.c.b16 %v369, %v368
  %v403 = vpack.c.b16 %v371, %v370
  %v412 = vunpack.c.l.b16 %v236
  %v413 = vunpack.c.l.b16 %v237
  %v414 = vunpack.c.l.b16 %v238
  %v415 = vunpack.c.l.b16 %v239
  %v416 = vunpack.c.l.b16 %v240
  %v417 = vunpack.c.l.b16 %v241
  %v418 = vunpack.c.l.b16 %v242
  %v419 = vunpack.c.l.b16 %v243
  %v420 = vpack.c.b16 %v413, %v412
  %v421 = vpack.c.b16 %v415, %v414
  %v422 = vpack.c.b16 %v417, %v416
  %v423 = vpack.c.b16 %v419, %v418
  %v429 = vsel %vm94, %v372, 0
  %v432 = vsel %vm94, %v373, 0
  %v435 = vsel %vm94, %v374, 0
  %v438 = vsel %vm94, %v375, 0
  %v441 = vsel %vm94, %v376, 0
  %v444 = vsel %vm94, %v377, 0
  %v447 = vsel %vm94, %v378, 0
  %v450 = vsel %vm94, %v379, 0
  %v453 = vsel %vm94, %v380, 0
  %v456 = vsel %vm94, %v381, 0
  %v459 = vsel %vm94, %v382, 0
  %v462 = vsel %vm94, %v383, 0
  %v465 = vsel %vm94, %v384, 0
  %v468 = vsel %vm94, %v385, 0
  %v471 = vsel %vm94, %v386, 0
  %v474 = vsel %vm94, %v387, 0
  %v477 = vsel %vm94, %v388, 0
  %v480 = vsel %vm94, %v389, 0
  %v483 = vsel %vm94, %v390, 0
  %v486 = vsel %vm94, %v391, 0
  %v489 = vsel %vm94, %v392, 0
  %v492 = vsel %vm94, %v393, 0
  %v495 = vsel %vm94, %v394, 0
  %v498 = vsel %vm94, %v395, 0
  %v501 = vsel %vm94, %v396, 0
  %v504 = vsel %vm94, %v397, 0
  %v507 = vsel %vm94, %v398, 0
  %v510 = vsel %vm94, %v399, 0
  %v513 = vsel %vm94, %v400, 0
  %v516 = vsel %vm94, %v401, 0
  %v519 = vsel %vm94, %v402, 0
  %v522 = vsel %vm94, %v403, 0
  %524 = vmatprep.subr.bf16.mxu0 0
  %525 = vmatpush1.bf16.msra.mxu0 0
  %526 = vmatprep.subr.bf16.mxu0 0
  %527 = vmatpush1.bf16.msra.mxu0 0
  %528 = vmatprep.subr.bf16.mxu0 0
  %529 = vmatpush1.bf16.msra.mxu0 0
  %530 = vmatprep.subr.bf16.mxu0 0
  %531 = vmatpush1.bf16.msra.mxu0 0
  %532 = vmatprep.subr.bf16.mxu0 0
  %533 = vmatpush1.bf16.msra.mxu0 %v423
  %534 = vmatprep.subr.bf16.mxu0 0
  %535 = vmatpush1.bf16.msra.mxu0 %v422
  %536 = vmatprep.subr.bf16.mxu0 0
  %537 = vmatpush1.bf16.msra.mxu0 %v421
  %538 = vmatprep.subr.bf16.mxu0 0
  %539 = vmatpush1.bf16.msra.mxu0 %v420
  %540 = vmatprep.subr.bf16.mxu0 0
  %541 = vmatpush2.bf16.msra.mxu0 0
  %542 = vmatprep.subr.bf16.mxu0 0
  %543 = vmatpush2.bf16.msra.mxu0 0
  %544 = vmatprep.subr.bf16.mxu0 0
  %545 = vmatpush2.bf16.msra.mxu0 0
  %546 = vmatprep.subr.bf16.mxu0 0
  %547 = vmatpush2.bf16.msra.mxu0 0
  %548 = vmatprep.subr.bf16.mxu0 0
  %549 = vmatpush2.bf16.msra.mxu0 0
  %550 = vmatprep.subr.bf16.mxu0 0
  %551 = vmatpush2.bf16.msra.mxu0 0
  %552 = vmatprep.subr.bf16.mxu0 0
  %553 = vmatpush2.bf16.msra.mxu0 0
  %554 = vmatprep.subr.bf16.mxu0 0
  %555 = vmatpush2.bf16.msra.mxu0 0
  %556 = vmatprep.mubr.bf16.mxu0 0
  %557 = vmatmul.mubr.bf16.gmra.mxu0 %v429
  %v558 = vpop.f32.mrf.mxu0
  %v559 = vadd.f32 0.0, %v558
  %v560 = vpop.f32.mrf.mxu0
  %v561 = vpop.f32.mrf.mxu0
  %v562 = vadd.f32 0.0, %v561
  %v563 = vpop.f32.mrf.mxu0
  %564 = vmatprep.mubr.bf16.mxu0 0
  %565 = vmatmul.mubr.bf16.gmra.mxu0 %v432
  %v566 = vpop.f32.mrf.mxu0
  %v567 = vadd.f32 0.0, %v566
  %v568 = vpop.f32.mrf.mxu0
  %v569 = vpop.f32.mrf.mxu0
  %v570 = vadd.f32 0.0, %v569
  %v571 = vpop.f32.mrf.mxu0
  %572 = vmatprep.mubr.bf16.mxu0 0
  %573 = vmatmul.mubr.bf16.gmra.mxu0 %v435
  %v574 = vpop.f32.mrf.mxu0
  %v575 = vadd.f32 0.0, %v574
  %v576 = vpop.f32.mrf.mxu0
  %v577 = vpop.f32.mrf.mxu0
  %v578 = vadd.f32 0.0, %v577
  %v579 = vpop.f32.mrf.mxu0
  %580 = vmatprep.mubr.bf16.mxu0 0
  %581 = vmatmul.mubr.bf16.gmra.mxu0 %v438
  %v582 = vpop.f32.mrf.mxu0
  %v583 = vadd.f32 0.0, %v582
  %v584 = vpop.f32.mrf.mxu0
  %v585 = vpop.f32.mrf.mxu0
  %v586 = vadd.f32 0.0, %v585
  %v587 = vpop.f32.mrf.mxu0
  %588 = vmatprep.mubr.bf16.mxu0 0
  %589 = vmatmul.mubr.bf16.gmra.mxu0 %v441
  %v590 = vpop.f32.mrf.mxu0
  %v591 = vadd.f32 0.0, %v590
  %v592 = vpop.f32.mrf.mxu0
  %v593 = vpop.f32.mrf.mxu0
  %v594 = vadd.f32 0.0, %v593
  %v595 = vpop.f32.mrf.mxu0
  %596 = vmatprep.mubr.bf16.mxu0 0
  %597 = vmatmul.mubr.bf16.gmra.mxu0 %v444
  %v598 = vpop.f32.mrf.mxu0
  %v599 = vadd.f32 0.0, %v598
  %v600 = vpop.f32.mrf.mxu0
  %v601 = vpop.f32.mrf.mxu0
  %v602 = vadd.f32 0.0, %v601
  %v603 = vpop.f32.mrf.mxu0
  %604 = vmatprep.mubr.bf16.mxu0 0
  %605 = vmatmul.mubr.bf16.gmra.mxu0 %v447
  %v606 = vpop.f32.mrf.mxu0
  %v607 = vadd.f32 0.0, %v606
  %v608 = vpop.f32.mrf.mxu0
  %v609 = vpop.f32.mrf.mxu0
  %v610 = vadd.f32 0.0, %v609
  %v611 = vpop.f32.mrf.mxu0
  %612 = vmatprep.mubr.bf16.mxu0 0
  %613 = vmatmul.mubr.bf16.gmra.mxu0 %v450
  %v614 = vpop.f32.mrf.mxu0
  %v615 = vadd.f32 0.0, %v614
  %v616 = vpop.f32.mrf.mxu0
  %v617 = vpop.f32.mrf.mxu0
  %v618 = vadd.f32 0.0, %v617
  %v619 = vpop.f32.mrf.mxu0
  %620 = vmatprep.mubr.bf16.mxu0 0
  %621 = vmatmul.mubr.bf16.gmra.mxu0 %v453
  %v622 = vpop.f32.mrf.mxu0
  %v623 = vadd.f32 0.0, %v622
  %v624 = vpop.f32.mrf.mxu0
  %v625 = vpop.f32.mrf.mxu0
  %v626 = vadd.f32 0.0, %v625
  %v627 = vpop.f32.mrf.mxu0
  %628 = vmatprep.mubr.bf16.mxu0 0
  %629 = vmatmul.mubr.bf16.gmra.mxu0 %v456
  %v630 = vpop.f32.mrf.mxu0
  %v631 = vadd.f32 0.0, %v630
  %v632 = vpop.f32.mrf.mxu0
  %v633 = vpop.f32.mrf.mxu0
  %v634 = vadd.f32 0.0, %v633
  %v635 = vpop.f32.mrf.mxu0
  %636 = vmatprep.mubr.bf16.mxu0 0
  %637 = vmatmul.mubr.bf16.gmra.mxu0 %v459
  %v638 = vpop.f32.mrf.mxu0
  %v639 = vadd.f32 0.0, %v638
  %v640 = vpop.f32.mrf.mxu0
  %v641 = vpop.f32.mrf.mxu0
  %v642 = vadd.f32 0.0, %v641
  %v643 = vpop.f32.mrf.mxu0
  %644 = vmatprep.mubr.bf16.mxu0 0
  %645 = vmatmul.mubr.bf16.gmra.mxu0 %v462
  %v646 = vpop.f32.mrf.mxu0
  %v647 = vadd.f32 0.0, %v646
  %v648 = vpop.f32.mrf.mxu0
  %v649 = vpop.f32.mrf.mxu0
  %v650 = vadd.f32 0.0, %v649
  %v651 = vpop.f32.mrf.mxu0
  %652 = vmatprep.mubr.bf16.mxu0 0
  %653 = vmatmul.mubr.bf16.gmra.mxu0 %v465
  %v654 = vpop.f32.mrf.mxu0
  %v655 = vadd.f32 0.0, %v654
  %v656 = vpop.f32.mrf.mxu0
  %v657 = vpop.f32.mrf.mxu0
  %v658 = vadd.f32 0.0, %v657
  %v659 = vpop.f32.mrf.mxu0
  %660 = vmatprep.mubr.bf16.mxu0 0
  %661 = vmatmul.mubr.bf16.gmra.mxu0 %v468
  %v662 = vpop.f32.mrf.mxu0
  %v663 = vadd.f32 0.0, %v662
  %v664 = vpop.f32.mrf.mxu0
  %v665 = vpop.f32.mrf.mxu0
  %v666 = vadd.f32 0.0, %v665
  %v667 = vpop.f32.mrf.mxu0
  %668 = vmatprep.mubr.bf16.mxu0 0
  %669 = vmatmul.mubr.bf16.gmra.mxu0 %v471
  %v670 = vpop.f32.mrf.mxu0
  %v671 = vadd.f32 0.0, %v670
  %v672 = vpop.f32.mrf.mxu0
  %v673 = vpop.f32.mrf.mxu0
  %v674 = vadd.f32 0.0, %v673
  %v675 = vpop.f32.mrf.mxu0
  %676 = vmatprep.mubr.bf16.mxu0 0
  %677 = vmatmul.mubr.bf16.gmra.mxu0 %v474
  %v678 = vpop.f32.mrf.mxu0
  %v679 = vadd.f32 0.0, %v678
  %v680 = vpop.f32.mrf.mxu0
  %v681 = vpop.f32.mrf.mxu0
  %v682 = vadd.f32 0.0, %v681
  %v683 = vpop.f32.mrf.mxu0
  %684 = vmatprep.mubr.bf16.mxu0 0
  %685 = vmatmul.mubr.bf16.gmra.mxu0 %v477
  %v686 = vpop.f32.mrf.mxu0
  %v687 = vadd.f32 0.0, %v686
  %v688 = vpop.f32.mrf.mxu0
  %v689 = vpop.f32.mrf.mxu0
  %v690 = vadd.f32 0.0, %v689
  %v691 = vpop.f32.mrf.mxu0
  %692 = vmatprep.mubr.bf16.mxu0 0
  %693 = vmatmul.mubr.bf16.gmra.mxu0 %v480
  %v694 = vpop.f32.mrf.mxu0
  %v695 = vadd.f32 0.0, %v694
  %v696 = vpop.f32.mrf.mxu0
  %v697 = vpop.f32.mrf.mxu0
  %v698 = vadd.f32 0.0, %v697
  %v699 = vpop.f32.mrf.mxu0
  %700 = vmatprep.mubr.bf16.mxu0 0
  %701 = vmatmul.mubr.bf16.gmra.mxu0 %v483
  %v702 = vpop.f32.mrf.mxu0
  %v703 = vadd.f32 0.0, %v702
  %v704 = vpop.f32.mrf.mxu0
  %v705 = vpop.f32.mrf.mxu0
  %v706 = vadd.f32 0.0, %v705
  %v707 = vpop.f32.mrf.mxu0
  %708 = vmatprep.mubr.bf16.mxu0 0
  %709 = vmatmul.mubr.bf16.gmra.mxu0 %v486
  %v710 = vpop.f32.mrf.mxu0
  %v711 = vadd.f32 0.0, %v710
  %v712 = vpop.f32.mrf.mxu0
  %v713 = vpop.f32.mrf.mxu0
  %v714 = vadd.f32 0.0, %v713
  %v715 = vpop.f32.mrf.mxu0
  %716 = vmatprep.mubr.bf16.mxu0 0
  %717 = vmatmul.mubr.bf16.gmra.mxu0 %v489
  %v718 = vpop.f32.mrf.mxu0
  %v719 = vadd.f32 0.0, %v718
  %v720 = vpop.f32.mrf.mxu0
  %v721 = vpop.f32.mrf.mxu0
  %v722 = vadd.f32 0.0, %v721
  %v723 = vpop.f32.mrf.mxu0
  %724 = vmatprep.mubr.bf16.mxu0 0
  %725 = vmatmul.mubr.bf16.gmra.mxu0 %v492
  %v726 = vpop.f32.mrf.mxu0
  %v727 = vadd.f32 0.0, %v726
  %v728 = vpop.f32.mrf.mxu0
  %v729 = vpop.f32.mrf.mxu0
  %v730 = vadd.f32 0.0, %v729
  %v731 = vpop.f32.mrf.mxu0
  %732 = vmatprep.mubr.bf16.mxu0 0
  %733 = vmatmul.mubr.bf16.gmra.mxu0 %v495
  %v734 = vpop.f32.mrf.mxu0
  %v735 = vadd.f32 0.0, %v734
  %v736 = vpop.f32.mrf.mxu0
  %v737 = vpop.f32.mrf.mxu0
  %v738 = vadd.f32 0.0, %v737
  %v739 = vpop.f32.mrf.mxu0
  %740 = vmatprep.mubr.bf16.mxu0 0
  %741 = vmatmul.mubr.bf16.gmra.mxu0 %v498
  %v742 = vpop.f32.mrf.mxu0
  %v743 = vadd.f32 0.0, %v742
  %v744 = vpop.f32.mrf.mxu0
  %v745 = vpop.f32.mrf.mxu0
  %v746 = vadd.f32 0.0, %v745
  %v747 = vpop.f32.mrf.mxu0
  %748 = vmatprep.mubr.bf16.mxu0 0
  %749 = vmatmul.mubr.bf16.gmra.mxu0 %v501
  %v750 = vpop.f32.mrf.mxu0
  %v751 = vadd.f32 0.0, %v750
  %v752 = vpop.f32.mrf.mxu0
  %v753 = vpop.f32.mrf.mxu0
  %v754 = vadd.f32 0.0, %v753
  %v755 = vpop.f32.mrf.mxu0
  %756 = vmatprep.mubr.bf16.mxu0 0
  %757 = vmatmul.mubr.bf16.gmra.mxu0 %v504
  %v758 = vpop.f32.mrf.mxu0
  %v759 = vadd.f32 0.0, %v758
  %v760 = vpop.f32.mrf.mxu0
  %v761 = vpop.f32.mrf.mxu0
  %v762 = vadd.f32 0.0, %v761
  %v763 = vpop.f32.mrf.mxu0
  %764 = vmatprep.mubr.bf16.mxu0 0
  %765 = vmatmul.mubr.bf16.gmra.mxu0 %v507
  %v766 = vpop.f32.mrf.mxu0
  %v767 = vadd.f32 0.0, %v766
  %v768 = vpop.f32.mrf.mxu0
  %v769 = vpop.f32.mrf.mxu0
  %v770 = vadd.f32 0.0, %v769
  %v771 = vpop.f32.mrf.mxu0
  %772 = vmatprep.mubr.bf16.mxu0 0
  %773 = vmatmul.mubr.bf16.gmra.mxu0 %v510
  %v774 = vpop.f32.mrf.mxu0
  %v775 = vadd.f32 0.0, %v774
  %v776 = vpop.f32.mrf.mxu0
  %v777 = vpop.f32.mrf.mxu0
  %v778 = vadd.f32 0.0, %v777
  %v779 = vpop.f32.mrf.mxu0
  %780 = vmatprep.mubr.bf16.mxu0 0
  %781 = vmatmul.mubr.bf16.gmra.mxu0 %v513
  %v782 = vpop.f32.mrf.mxu0
  %v783 = vadd.f32 0.0, %v782
  %v784 = vpop.f32.mrf.mxu0
  %v785 = vpop.f32.mrf.mxu0
  %v786 = vadd.f32 0.0, %v785
  %v787 = vpop.f32.mrf.mxu0
  %788 = vmatprep.mubr.bf16.mxu0 0
  %789 = vmatmul.mubr.bf16.gmra.mxu0 %v516
  %v790 = vpop.f32.mrf.mxu0
  %v791 = vadd.f32 0.0, %v790
  %v792 = vpop.f32.mrf.mxu0
  %v793 = vpop.f32.mrf.mxu0
  %v794 = vadd.f32 0.0, %v793
  %v795 = vpop.f32.mrf.mxu0
  %796 = vmatprep.mubr.bf16.mxu0 0
  %797 = vmatmul.mubr.bf16.gmra.mxu0 %v519
  %v798 = vpop.f32.mrf.mxu0
  %v799 = vadd.f32 0.0, %v798
  %v800 = vpop.f32.mrf.mxu0
  %v801 = vpop.f32.mrf.mxu0
  %v802 = vadd.f32 0.0, %v801
  %v803 = vpop.f32.mrf.mxu0
  %804 = vmatprep.mubr.bf16.mxu0 0
  %805 = vmatmul.mubr.bf16.gmra.mxu0 %v522
  %v806 = vpop.f32.mrf.mxu0
  %v807 = vadd.f32 0.0, %v806
  %v808 = vpop.f32.mrf.mxu0
  %v809 = vpop.f32.mrf.mxu0
  %v810 = vadd.f32 0.0, %v809
  %v811 = vpop.f32.mrf.mxu0
  %812 = vdwg.mxu0
  %v813 = vadd.f32 %v559, %v142
  %v814 = vadd.f32 %v562, %v145
  %v815 = vadd.f32 %v567, %v150
  %v816 = vadd.f32 %v570, %v153
  %v817 = vadd.f32 %v575, %v158
  %v818 = vadd.f32 %v578, %v161
  %v819 = vadd.f32 %v583, %v166
  %v820 = vadd.f32 %v586, %v169
  %v821 = vadd.f32 %v591, %v142
  %v822 = vadd.f32 %v594, %v145
  %v823 = vadd.f32 %v599, %v150
  %v824 = vadd.f32 %v602, %v153
  %v825 = vadd.f32 %v607, %v158
  %v826 = vadd.f32 %v610, %v161
  %v827 = vadd.f32 %v615, %v166
  %v828 = vadd.f32 %v618, %v169
  %v829 = vadd.f32 %v623, %v142
  %v830 = vadd.f32 %v626, %v145
  %v831 = vadd.f32 %v631, %v150
  %v832 = vadd.f32 %v634, %v153
  %v833 = vadd.f32 %v639, %v158
  %v834 = vadd.f32 %v642, %v161
  %v835 = vadd.f32 %v647, %v166
  %v836 = vadd.f32 %v650, %v169
  %v837 = vadd.f32 %v655, %v142
  %v838 = vadd.f32 %v658, %v145
  %v839 = vadd.f32 %v663, %v150
  %v840 = vadd.f32 %v666, %v153
  %v841 = vadd.f32 %v671, %v158
  %v842 = vadd.f32 %v674, %v161
  %v843 = vadd.f32 %v679, %v166
  %v844 = vadd.f32 %v682, %v169
  %v845 = vadd.f32 %v687, %v142
  %v846 = vadd.f32 %v690, %v145
  %v847 = vadd.f32 %v695, %v150
  %v848 = vadd.f32 %v698, %v153
  %v849 = vadd.f32 %v703, %v158
  %v850 = vadd.f32 %v706, %v161
  %v851 = vadd.f32 %v711, %v166
  %v852 = vadd.f32 %v714, %v169
  %v853 = vadd.f32 %v719, %v142
  %v854 = vadd.f32 %v722, %v145
  %v855 = vadd.f32 %v727, %v150
  %v856 = vadd.f32 %v730, %v153
  %v857 = vadd.f32 %v735, %v158
  %v858 = vadd.f32 %v738, %v161
  %v859 = vadd.f32 %v743, %v166
  %v860 = vadd.f32 %v746, %v169
  %v861 = vadd.f32 %v751, %v142
  %v862 = vadd.f32 %v754, %v145
  %v863 = vadd.f32 %v759, %v150
  %v864 = vadd.f32 %v762, %v153
  %v865 = vadd.f32 %v767, %v158
  %v866 = vadd.f32 %v770, %v161
  %v867 = vadd.f32 %v775, %v166
  %v868 = vadd.f32 %v778, %v169
  %v869 = vadd.f32 %v783, %v142
  %v870 = vadd.f32 %v786, %v145
  %v871 = vadd.f32 %v791, %v150
  %v872 = vadd.f32 %v794, %v153
  %v873 = vadd.f32 %v799, %v158
  %v874 = vadd.f32 %v802, %v161
  %v875 = vadd.f32 %v807, %v166
  %v876 = vadd.f32 %v810, %v169
  %v877 = vmax.f32 %v813, 0.0
  %v878 = vmax.f32 %v814, 0.0
  %v879 = vmax.f32 %v815, 0.0
  %v880 = vmax.f32 %v816, 0.0
  %v881 = vmax.f32 %v817, 0.0
  %v882 = vmax.f32 %v818, 0.0
  %v883 = vmax.f32 %v819, 0.0
  %v884 = vmax.f32 %v820, 0.0
  %v885 = vmax.f32 %v821, 0.0
  %v886 = vmax.f32 %v822, 0.0
  %v887 = vmax.f32 %v823, 0.0
  %v888 = vmax.f32 %v824, 0.0
  %v889 = vmax.f32 %v825, 0.0
  %v890 = vmax.f32 %v826, 0.0
  %v891 = vmax.f32 %v827, 0.0
  %v892 = vmax.f32 %v828, 0.0
  %v893 = vmax.f32 %v829, 0.0
  %v894 = vmax.f32 %v830, 0.0
  %v895 = vmax.f32 %v831, 0.0
  %v896 = vmax.f32 %v832, 0.0
  %v897 = vmax.f32 %v833, 0.0
  %v898 = vmax.f32 %v834, 0.0
  %v899 = vmax.f32 %v835, 0.0
  %v900 = vmax.f32 %v836, 0.0
  %v901 = vmax.f32 %v837, 0.0
  %v902 = vmax.f32 %v838, 0.0
  %v903 = vmax.f32 %v839, 0.0
  %v904 = vmax.f32 %v840, 0.0
  %v905 = vmax.f32 %v841, 0.0
  %v906 = vmax.f32 %v842, 0.0
  %v907 = vmax.f32 %v843, 0.0
  %v908 = vmax.f32 %v844, 0.0
  %v909 = vmax.f32 %v845, 0.0
  %v910 = vmax.f32 %v846, 0.0
  %v911 = vmax.f32 %v847, 0.0
  %v912 = vmax.f32 %v848, 0.0
  %v913 = vmax.f32 %v849, 0.0
  %v914 = vmax.f32 %v850, 0.0
  %v915 = vmax.f32 %v851, 0.0
  %v916 = vmax.f32 %v852, 0.0
  %v917 = vmax.f32 %v853, 0.0
  %v918 = vmax.f32 %v854, 0.0
  %v919 = vmax.f32 %v855, 0.0
  %v920 = vmax.f32 %v856, 0.0
  %v921 = vmax.f32 %v857, 0.0
  %v922 = vmax.f32 %v858, 0.0
  %v923 = vmax.f32 %v859, 0.0
  %v924 = vmax.f32 %v860, 0.0
  %v925 = vmax.f32 %v861, 0.0
  %v926 = vmax.f32 %v862, 0.0
  %v927 = vmax.f32 %v863, 0.0
  %v928 = vmax.f32 %v864, 0.0
  %v929 = vmax.f32 %v865, 0.0
  %v930 = vmax.f32 %v866, 0.0
  %v931 = vmax.f32 %v867, 0.0
  %v932 = vmax.f32 %v868, 0.0
  %v933 = vmax.f32 %v869, 0.0
  %v934 = vmax.f32 %v870, 0.0
  %v935 = vmax.f32 %v871, 0.0
  %v936 = vmax.f32 %v872, 0.0
  %v937 = vmax.f32 %v873, 0.0
  %v938 = vmax.f32 %v874, 0.0
  %v939 = vmax.f32 %v875, 0.0
  %v940 = vmax.f32 %v876, 0.0
  %v941 = vpack.c.bf16 %v878, %v877
  %v942 = vpack.c.bf16 %v880, %v879
  %v943 = vpack.c.bf16 %v882, %v881
  %v944 = vpack.c.bf16 %v884, %v883
  %v945 = vpack.c.bf16 %v886, %v885
  %v946 = vpack.c.bf16 %v888, %v887
  %v947 = vpack.c.bf16 %v890, %v889
  %v948 = vpack.c.bf16 %v892, %v891
  %v949 = vpack.c.bf16 %v894, %v893
  %v950 = vpack.c.bf16 %v896, %v895
  %v951 = vpack.c.bf16 %v898, %v897
  %v952 = vpack.c.bf16 %v900, %v899
  %v953 = vpack.c.bf16 %v902, %v901
  %v954 = vpack.c.bf16 %v904, %v903
  %v955 = vpack.c.bf16 %v906, %v905
  %v956 = vpack.c.bf16 %v908, %v907
  %v957 = vpack.c.bf16 %v910, %v909
  %v958 = vpack.c.bf16 %v912, %v911
  %v959 = vpack.c.bf16 %v914, %v913
  %v960 = vpack.c.bf16 %v916, %v915
  %v961 = vpack.c.bf16 %v918, %v917
  %v962 = vpack.c.bf16 %v920, %v919
  %v963 = vpack.c.bf16 %v922, %v921
  %v964 = vpack.c.bf16 %v924, %v923
  %v965 = vpack.c.bf16 %v926, %v925
  %v966 = vpack.c.bf16 %v928, %v927
  %v967 = vpack.c.bf16 %v930, %v929
  %v968 = vpack.c.bf16 %v932, %v931
  %v969 = vpack.c.bf16 %v934, %v933
  %v970 = vpack.c.bf16 %v936, %v935
  %v971 = vpack.c.bf16 %v938, %v937
  %v972 = vpack.c.bf16 %v940, %v939
  %v973 = vld [vmem:[%s5] sm:$0xf]
  %v974 = vld [vmem:[%s5 + $0x4] sm:$0xf]
  %v975 = vld [vmem:[%s5 + $0x8] sm:$0xf]
  %v976 = vld [vmem:[%s5 + $0xc] sm:$0xf]
  %v977 = vld [vmem:[%s5 + $0x10] sm:$0xf]
  %v978 = vld [vmem:[%s5 + $0x14] sm:$0xf]
  %v979 = vld [vmem:[%s5 + $0x18] sm:$0xf]
  %v980 = vld [vmem:[%s5 + $0x1c] sm:$0xf]
  %v981 = vld [vmem:[%s6] sm:$0x1]
  %v983 = vlaneseq
  %v984 = vshrl.u32 %v983, 7
  %v985 = vsub.s32 0, %v984
  %v986 = vrot.slane %v981, %v985
  %v996 = vunpack.c.l.b16 %v973
  %v997 = vunpack.c.l.b16 %v974
  %v998 = vunpack.c.l.b16 %v975
  %v999 = vunpack.c.l.b16 %v976
  %v1000 = vunpack.c.l.b16 %v977
  %v1001 = vunpack.c.l.b16 %v978
  %v1002 = vunpack.c.l.b16 %v979
  %v1003 = vunpack.c.l.b16 %v980
  %v1004 = vpack.c.b16 %v997, %v996
  %v1005 = vpack.c.b16 %v999, %v998
  %v1006 = vpack.c.b16 %v1001, %v1000
  %v1007 = vpack.c.b16 %v1003, %v1002
  %v1013 = vsel %vm94, %v941, 0
  %v1016 = vsel %vm94, %v942, 0
  %v1019 = vsel %vm94, %v943, 0
  %v1022 = vsel %vm94, %v944, 0
  %v1025 = vsel %vm94, %v945, 0
  %v1028 = vsel %vm94, %v946, 0
  %v1031 = vsel %vm94, %v947, 0
  %v1034 = vsel %vm94, %v948, 0
  %v1037 = vsel %vm94, %v949, 0
  %v1040 = vsel %vm94, %v950, 0
  %v1043 = vsel %vm94, %v951, 0
  %v1046 = vsel %vm94, %v952, 0
  %v1049 = vsel %vm94, %v953, 0
  %v1052 = vsel %vm94, %v954, 0
  %v1055 = vsel %vm94, %v955, 0
  %v1058 = vsel %vm94, %v956, 0
  %v1061 = vsel %vm94, %v957, 0
  %v1064 = vsel %vm94, %v958, 0
  %v1067 = vsel %vm94, %v959, 0
  %v1070 = vsel %vm94, %v960, 0
  %v1073 = vsel %vm94, %v961, 0
  %v1076 = vsel %vm94, %v962, 0
  %v1079 = vsel %vm94, %v963, 0
  %v1082 = vsel %vm94, %v964, 0
  %v1085 = vsel %vm94, %v965, 0
  %v1088 = vsel %vm94, %v966, 0
  %v1091 = vsel %vm94, %v967, 0
  %v1094 = vsel %vm94, %v968, 0
  %v1097 = vsel %vm94, %v969, 0
  %v1100 = vsel %vm94, %v970, 0
  %v1103 = vsel %vm94, %v971, 0
  %v1106 = vsel %vm94, %v972, 0
  %1108 = vmatprep.subr.bf16.mxu0 0
  %1109 = vmatpush1.bf16.msra.mxu0 0
  %1110 = vmatprep.subr.bf16.mxu0 0
  %1111 = vmatpush1.bf16.msra.mxu0 0
  %1112 = vmatprep.subr.bf16.mxu0 0
  %1113 = vmatpush1.bf16.msra.mxu0 0
  %1114 = vmatprep.subr.bf16.mxu0 0
  %1115 = vmatpush1.bf16.msra.mxu0 0
  %1116 = vmatprep.subr.bf16.mxu0 0
  %1117 = vmatpush1.bf16.msra.mxu0 %v1007
  %1118 = vmatprep.subr.bf16.mxu0 0
  %1119 = vmatpush1.bf16.msra.mxu0 %v1006
  %1120 = vmatprep.subr.bf16.mxu0 0
  %1121 = vmatpush1.bf16.msra.mxu0 %v1005
  %1122 = vmatprep.subr.bf16.mxu0 0
  %1123 = vmatpush1.bf16.msra.mxu0 %v1004
  %1124 = vmatprep.subr.bf16.mxu0 0
  %1125 = vmatpush2.bf16.msra.mxu0 0
  %1126 = vmatprep.subr.bf16.mxu0 0
  %1127 = vmatpush2.bf16.msra.mxu0 0
  %1128 = vmatprep.subr.bf16.mxu0 0
  %1129 = vmatpush2.bf16.msra.mxu0 0
  %1130 = vmatprep.subr.bf16.mxu0 0
  %1131 = vmatpush2.bf16.msra.mxu0 0
  %1132 = vmatprep.subr.bf16.mxu0 0
  %1133 = vmatpush2.bf16.msra.mxu0 0
  %1134 = vmatprep.subr.bf16.mxu0 0
  %1135 = vmatpush2.bf16.msra.mxu0 0
  %1136 = vmatprep.subr.bf16.mxu0 0
  %1137 = vmatpush2.bf16.msra.mxu0 0
  %1138 = vmatprep.subr.bf16.mxu0 0
  %1139 = vmatpush2.bf16.msra.mxu0 0
  %1140 = vmatprep.mubr.bf16.mxu0 0
  %1141 = vmatmul.mubr.bf16.gmra.mxu0 %v1013
  %v1142 = vpop.f32.mrf.mxu0
  %v1143 = vadd.f32 %v986, %v1142
  %v1144 = vpop.f32.mrf.mxu0
  %v1145 = vpop.f32.mrf.mxu0
  %v1146 = vadd.f32 %v986, %v1145
  %v1147 = vpop.f32.mrf.mxu0
  %1148 = vmatprep.mubr.bf16.mxu0 0
  %1149 = vmatmul.mubr.bf16.gmra.mxu0 %v1016
  %v1150 = vpop.f32.mrf.mxu0
  %v1151 = vadd.f32 %v986, %v1150
  %v1152 = vpop.f32.mrf.mxu0
  %v1153 = vpop.f32.mrf.mxu0
  %v1154 = vadd.f32 %v986, %v1153
  %v1155 = vpop.f32.mrf.mxu0
  %1156 = vmatprep.mubr.bf16.mxu0 0
  %1157 = vmatmul.mubr.bf16.gmra.mxu0 %v1019
  %v1158 = vpop.f32.mrf.mxu0
  %v1159 = vadd.f32 %v986, %v1158
  %v1160 = vpop.f32.mrf.mxu0
  %v1161 = vpop.f32.mrf.mxu0
  %v1162 = vadd.f32 %v986, %v1161
  %v1163 = vpop.f32.mrf.mxu0
  %1164 = vmatprep.mubr.bf16.mxu0 0
  %1165 = vmatmul.mubr.bf16.gmra.mxu0 %v1022
  %v1166 = vpop.f32.mrf.mxu0
  %v1167 = vadd.f32 %v986, %v1166
  %v1168 = vpop.f32.mrf.mxu0
  %v1169 = vpop.f32.mrf.mxu0
  %v1170 = vadd.f32 %v986, %v1169
  %v1171 = vpop.f32.mrf.mxu0
  %1172 = vmatprep.mubr.bf16.mxu0 0
  %1173 = vmatmul.mubr.bf16.gmra.mxu0 %v1025
  %v1174 = vpop.f32.mrf.mxu0
  %v1175 = vadd.f32 %v986, %v1174
  %v1176 = vpop.f32.mrf.mxu0
  %v1177 = vpop.f32.mrf.mxu0
  %v1178 = vadd.f32 %v986, %v1177
  %v1179 = vpop.f32.mrf.mxu0
  %1180 = vmatprep.mubr.bf16.mxu0 0
  %1181 = vmatmul.mubr.bf16.gmra.mxu0 %v1028
  %v1182 = vpop.f32.mrf.mxu0
  %v1183 = vadd.f32 %v986, %v1182
  %v1184 = vpop.f32.mrf.mxu0
  %v1185 = vpop.f32.mrf.mxu0
  %v1186 = vadd.f32 %v986, %v1185
  %v1187 = vpop.f32.mrf.mxu0
  %1188 = vmatprep.mubr.bf16.mxu0 0
  %1189 = vmatmul.mubr.bf16.gmra.mxu0 %v1031
  %v1190 = vpop.f32.mrf.mxu0
  %v1191 = vadd.f32 %v986, %v1190
  %v1192 = vpop.f32.mrf.mxu0
  %v1193 = vpop.f32.mrf.mxu0
  %v1194 = vadd.f32 %v986, %v1193
  %v1195 = vpop.f32.mrf.mxu0
  %1196 = vmatprep.mubr.bf16.mxu0 0
  %1197 = vmatmul.mubr.bf16.gmra.mxu0 %v1034
  %v1198 = vpop.f32.mrf.mxu0
  %v1199 = vadd.f32 %v986, %v1198
  %v1200 = vpop.f32.mrf.mxu0
  %v1201 = vpop.f32.mrf.mxu0
  %v1202 = vadd.f32 %v986, %v1201
  %v1203 = vpop.f32.mrf.mxu0
  %1204 = vmatprep.mubr.bf16.mxu0 0
  %1205 = vmatmul.mubr.bf16.gmra.mxu0 %v1037
  %v1206 = vpop.f32.mrf.mxu0
  %v1207 = vadd.f32 %v986, %v1206
  %v1208 = vpop.f32.mrf.mxu0
  %v1209 = vpop.f32.mrf.mxu0
  %v1210 = vadd.f32 %v986, %v1209
  %v1211 = vpop.f32.mrf.mxu0
  %1212 = vmatprep.mubr.bf16.mxu0 0
  %1213 = vmatmul.mubr.bf16.gmra.mxu0 %v1040
  %v1214 = vpop.f32.mrf.mxu0
  %v1215 = vadd.f32 %v986, %v1214
  %v1216 = vpop.f32.mrf.mxu0
  %v1217 = vpop.f32.mrf.mxu0
  %v1218 = vadd.f32 %v986, %v1217
  %v1219 = vpop.f32.mrf.mxu0
  %1220 = vmatprep.mubr.bf16.mxu0 0
  %1221 = vmatmul.mubr.bf16.gmra.mxu0 %v1043
  %v1222 = vpop.f32.mrf.mxu0
  %v1223 = vadd.f32 %v986, %v1222
  %v1224 = vpop.f32.mrf.mxu0
  %v1225 = vpop.f32.mrf.mxu0
  %v1226 = vadd.f32 %v986, %v1225
  %v1227 = vpop.f32.mrf.mxu0
  %1228 = vmatprep.mubr.bf16.mxu0 0
  %1229 = vmatmul.mubr.bf16.gmra.mxu0 %v1046
  %v1230 = vpop.f32.mrf.mxu0
  %v1231 = vadd.f32 %v986, %v1230
  %v1232 = vpop.f32.mrf.mxu0
  %v1233 = vpop.f32.mrf.mxu0
  %v1234 = vadd.f32 %v986, %v1233
  %v1235 = vpop.f32.mrf.mxu0
  %1236 = vmatprep.mubr.bf16.mxu0 0
  %1237 = vmatmul.mubr.bf16.gmra.mxu0 %v1049
  %v1238 = vpop.f32.mrf.mxu0
  %v1239 = vadd.f32 %v986, %v1238
  %v1240 = vpop.f32.mrf.mxu0
  %v1241 = vpop.f32.mrf.mxu0
  %v1242 = vadd.f32 %v986, %v1241
  %v1243 = vpop.f32.mrf.mxu0
  %1244 = vmatprep.mubr.bf16.mxu0 0
  %1245 = vmatmul.mubr.bf16.gmra.mxu0 %v1052
  %v1246 = vpop.f32.mrf.mxu0
  %v1247 = vadd.f32 %v986, %v1246
  %v1248 = vpop.f32.mrf.mxu0
  %v1249 = vpop.f32.mrf.mxu0
  %v1250 = vadd.f32 %v986, %v1249
  %v1251 = vpop.f32.mrf.mxu0
  %1252 = vmatprep.mubr.bf16.mxu0 0
  %1253 = vmatmul.mubr.bf16.gmra.mxu0 %v1055
  %v1254 = vpop.f32.mrf.mxu0
  %v1255 = vadd.f32 %v986, %v1254
  %v1256 = vpop.f32.mrf.mxu0
  %v1257 = vpop.f32.mrf.mxu0
  %v1258 = vadd.f32 %v986, %v1257
  %v1259 = vpop.f32.mrf.mxu0
  %1260 = vmatprep.mubr.bf16.mxu0 0
  %1261 = vmatmul.mubr.bf16.gmra.mxu0 %v1058
  %v1262 = vpop.f32.mrf.mxu0
  %v1263 = vadd.f32 %v986, %v1262
  %v1264 = vpop.f32.mrf.mxu0
  %v1265 = vpop.f32.mrf.mxu0
  %v1266 = vadd.f32 %v986, %v1265
  %v1267 = vpop.f32.mrf.mxu0
  %1268 = vmatprep.mubr.bf16.mxu0 0
  %1269 = vmatmul.mubr.bf16.gmra.mxu0 %v1061
  %v1270 = vpop.f32.mrf.mxu0
  %v1271 = vadd.f32 %v986, %v1270
  %v1272 = vpop.f32.mrf.mxu0
  %v1273 = vpop.f32.mrf.mxu0
  %v1274 = vadd.f32 %v986, %v1273
  %v1275 = vpop.f32.mrf.mxu0
  %1276 = vmatprep.mubr.bf16.mxu0 0
  %1277 = vmatmul.mubr.bf16.gmra.mxu0 %v1064
  %v1278 = vpop.f32.mrf.mxu0
  %v1279 = vadd.f32 %v986, %v1278
  %v1280 = vpop.f32.mrf.mxu0
  %v1281 = vpop.f32.mrf.mxu0
  %v1282 = vadd.f32 %v986, %v1281
  %v1283 = vpop.f32.mrf.mxu0
  %1284 = vmatprep.mubr.bf16.mxu0 0
  %1285 = vmatmul.mubr.bf16.gmra.mxu0 %v1067
  %v1286 = vpop.f32.mrf.mxu0
  %v1287 = vadd.f32 %v986, %v1286
  %v1288 = vpop.f32.mrf.mxu0
  %v1289 = vpop.f32.mrf.mxu0
  %v1290 = vadd.f32 %v986, %v1289
  %v1291 = vpop.f32.mrf.mxu0
  %1292 = vmatprep.mubr.bf16.mxu0 0
  %1293 = vmatmul.mubr.bf16.gmra.mxu0 %v1070
  %v1294 = vpop.f32.mrf.mxu0
  %v1295 = vadd.f32 %v986, %v1294
  %v1296 = vpop.f32.mrf.mxu0
  %v1297 = vpop.f32.mrf.mxu0
  %v1298 = vadd.f32 %v986, %v1297
  %v1299 = vpop.f32.mrf.mxu0
  %1300 = vmatprep.mubr.bf16.mxu0 0
  %1301 = vmatmul.mubr.bf16.gmra.mxu0 %v1073
  %v1302 = vpop.f32.mrf.mxu0
  %v1303 = vadd.f32 %v986, %v1302
  %v1304 = vpop.f32.mrf.mxu0
  %v1305 = vpop.f32.mrf.mxu0
  %v1306 = vadd.f32 %v986, %v1305
  %v1307 = vpop.f32.mrf.mxu0
  %1308 = vmatprep.mubr.bf16.mxu0 0
  %1309 = vmatmul.mubr.bf16.gmra.mxu0 %v1076
  %v1310 = vpop.f32.mrf.mxu0
  %v1311 = vadd.f32 %v986, %v1310
  %v1312 = vpop.f32.mrf.mxu0
  %v1313 = vpop.f32.mrf.mxu0
  %v1314 = vadd.f32 %v986, %v1313
  %v1315 = vpop.f32.mrf.mxu0
  %1316 = vmatprep.mubr.bf16.mxu0 0
  %1317 = vmatmul.mubr.bf16.gmra.mxu0 %v1079
  %v1318 = vpop.f32.mrf.mxu0
  %v1319 = vadd.f32 %v986, %v1318
  %v1320 = vpop.f32.mrf.mxu0
  %v1321 = vpop.f32.mrf.mxu0
  %v1322 = vadd.f32 %v986, %v1321
  %v1323 = vpop.f32.mrf.mxu0
  %1324 = vmatprep.mubr.bf16.mxu0 0
  %1325 = vmatmul.mubr.bf16.gmra.mxu0 %v1082
  %v1326 = vpop.f32.mrf.mxu0
  %v1327 = vadd.f32 %v986, %v1326
  %v1328 = vpop.f32.mrf.mxu0
  %v1329 = vpop.f32.mrf.mxu0
  %v1330 = vadd.f32 %v986, %v1329
  %v1331 = vpop.f32.mrf.mxu0
  %1332 = vmatprep.mubr.bf16.mxu0 0
  %1333 = vmatmul.mubr.bf16.gmra.mxu0 %v1085
  %v1334 = vpop.f32.mrf.mxu0
  %v1335 = vadd.f32 %v986, %v1334
  %v1336 = vpop.f32.mrf.mxu0
  %v1337 = vpop.f32.mrf.mxu0
  %v1338 = vadd.f32 %v986, %v1337
  %v1339 = vpop.f32.mrf.mxu0
  %1340 = vmatprep.mubr.bf16.mxu0 0
  %1341 = vmatmul.mubr.bf16.gmra.mxu0 %v1088
  %v1342 = vpop.f32.mrf.mxu0
  %v1343 = vadd.f32 %v986, %v1342
  %v1344 = vpop.f32.mrf.mxu0
  %v1345 = vpop.f32.mrf.mxu0
  %v1346 = vadd.f32 %v986, %v1345
  %v1347 = vpop.f32.mrf.mxu0
  %1348 = vmatprep.mubr.bf16.mxu0 0
  %1349 = vmatmul.mubr.bf16.gmra.mxu0 %v1091
  %v1350 = vpop.f32.mrf.mxu0
  %v1351 = vadd.f32 %v986, %v1350
  %v1352 = vpop.f32.mrf.mxu0
  %v1353 = vpop.f32.mrf.mxu0
  %v1354 = vadd.f32 %v986, %v1353
  %v1355 = vpop.f32.mrf.mxu0
  %1356 = vmatprep.mubr.bf16.mxu0 0
  %1357 = vmatmul.mubr.bf16.gmra.mxu0 %v1094
  %v1358 = vpop.f32.mrf.mxu0
  %v1359 = vadd.f32 %v986, %v1358
  %v1360 = vpop.f32.mrf.mxu0
  %v1361 = vpop.f32.mrf.mxu0
  %v1362 = vadd.f32 %v986, %v1361
  %v1363 = vpop.f32.mrf.mxu0
  %1364 = vmatprep.mubr.bf16.mxu0 0
  %1365 = vmatmul.mubr.bf16.gmra.mxu0 %v1097
  %v1366 = vpop.f32.mrf.mxu0
  %v1367 = vadd.f32 %v986, %v1366
  %v1368 = vpop.f32.mrf.mxu0
  %v1369 = vpop.f32.mrf.mxu0
  %v1370 = vadd.f32 %v986, %v1369
  %v1371 = vpop.f32.mrf.mxu0
  %1372 = vmatprep.mubr.bf16.mxu0 0
  %1373 = vmatmul.mubr.bf16.gmra.mxu0 %v1100
  %v1374 = vpop.f32.mrf.mxu0
  %v1375 = vadd.f32 %v986, %v1374
  %v1376 = vpop.f32.mrf.mxu0
  %v1377 = vpop.f32.mrf.mxu0
  %v1378 = vadd.f32 %v986, %v1377
  %v1379 = vpop.f32.mrf.mxu0
  %1380 = vmatprep.mubr.bf16.mxu0 0
  %1381 = vmatmul.mubr.bf16.gmra.mxu0 %v1103
  %v1382 = vpop.f32.mrf.mxu0
  %v1383 = vadd.f32 %v986, %v1382
  %v1384 = vpop.f32.mrf.mxu0
  %v1385 = vpop.f32.mrf.mxu0
  %v1386 = vadd.f32 %v986, %v1385
  %v1387 = vpop.f32.mrf.mxu0
  %1388 = vmatprep.mubr.bf16.mxu0 0
  %1389 = vmatmul.mubr.bf16.gmra.mxu0 %v1106
  %v1390 = vpop.f32.mrf.mxu0
  %v1391 = vadd.f32 %v986, %v1390
  %v1392 = vpop.f32.mrf.mxu0
  %v1393 = vpop.f32.mrf.mxu0
  %v1394 = vadd.f32 %v986, %v1393
  %v1395 = vpop.f32.mrf.mxu0
  %1396 = vdwg.mxu0
  %v1397 = vsel %vm94, %v1143, -inf
  %v1398 = vsel %vm94, %v1175, -inf
  %v1399 = vmax.f32 %v1397, %v1398
  %v1400 = vsel %vm94, %v1207, -inf
  %v1401 = vmax.f32 %v1399, %v1400
  %v1402 = vsel %vm94, %v1239, -inf
  %v1403 = vmax.f32 %v1401, %v1402
  %v1404 = vsel %vm94, %v1271, -inf
  %v1405 = vmax.f32 %v1403, %v1404
  %v1406 = vsel %vm94, %v1303, -inf
  %v1407 = vmax.f32 %v1405, %v1406
  %v1408 = vsel %vm94, %v1335, -inf
  %v1409 = vmax.f32 %v1407, %v1408
  %v1410 = vsel %vm94, %v1367, -inf
  %v1411 = vmax.f32 %v1409, %v1410
  %v1412 = vsel %vm94, %v1146, -inf
  %v1413 = vsel %vm94, %v1178, -inf
  %v1414 = vmax.f32 %v1412, %v1413
  %v1415 = vsel %vm94, %v1210, -inf
  %v1416 = vmax.f32 %v1414, %v1415
  %v1417 = vsel %vm94, %v1242, -inf
  %v1418 = vmax.f32 %v1416, %v1417
  %v1419 = vsel %vm94, %v1274, -inf
  %v1420 = vmax.f32 %v1418, %v1419
  %v1421 = vsel %vm94, %v1306, -inf
  %v1422 = vmax.f32 %v1420, %v1421
  %v1423 = vsel %vm94, %v1338, -inf
  %v1424 = vmax.f32 %v1422, %v1423
  %v1425 = vsel %vm94, %v1370, -inf
  %v1426 = vmax.f32 %v1424, %v1425
  %v1427 = vsel %vm94, %v1151, -inf
  %v1428 = vsel %vm94, %v1183, -inf
  %v1429 = vmax.f32 %v1427, %v1428
  %v1430 = vsel %vm94, %v1215, -inf
  %v1431 = vmax.f32 %v1429, %v1430
  %v1432 = vsel %vm94, %v1247, -inf
  %v1433 = vmax.f32 %v1431, %v1432
  %v1434 = vsel %vm94, %v1279, -inf
  %v1435 = vmax.f32 %v1433, %v1434
  %v1436 = vsel %vm94, %v1311, -inf
  %v1437 = vmax.f32 %v1435, %v1436
  %v1438 = vsel %vm94, %v1343, -inf
  %v1439 = vmax.f32 %v1437, %v1438
  %v1440 = vsel %vm94, %v1375, -inf
  %v1441 = vmax.f32 %v1439, %v1440
  %v1442 = vsel %vm94, %v1154, -inf
  %v1443 = vsel %vm94, %v1186, -inf
  %v1444 = vmax.f32 %v1442, %v1443
  %v1445 = vsel %vm94, %v1218, -inf
  %v1446 = vmax.f32 %v1444, %v1445
  %v1447 = vsel %vm94, %v1250, -inf
  %v1448 = vmax.f32 %v1446, %v1447
  %v1449 = vsel %vm94, %v1282, -inf
  %v1450 = vmax.f32 %v1448, %v1449
  %v1451 = vsel %vm94, %v1314, -inf
  %v1452 = vmax.f32 %v1450, %v1451
  %v1453 = vsel %vm94, %v1346, -inf
  %v1454 = vmax.f32 %v1452, %v1453
  %v1455 = vsel %vm94, %v1378, -inf
  %v1456 = vmax.f32 %v1454, %v1455
  %v1457 = vsel %vm94, %v1159, -inf
  %v1458 = vsel %vm94, %v1191, -inf
  %v1459 = vmax.f32 %v1457, %v1458
  %v1460 = vsel %vm94, %v1223, -inf
  %v1461 = vmax.f32 %v1459, %v1460
  %v1462 = vsel %vm94, %v1255, -inf
  %v1463 = vmax.f32 %v1461, %v1462
  %v1464 = vsel %vm94, %v1287, -inf
  %v1465 = vmax.f32 %v1463, %v1464
  %v1466 = vsel %vm94, %v1319, -inf
  %v1467 = vmax.f32 %v1465, %v1466
  %v1468 = vsel %vm94, %v1351, -inf
  %v1469 = vmax.f32 %v1467, %v1468
  %v1470 = vsel %vm94, %v1383, -inf
  %v1471 = vmax.f32 %v1469, %v1470
  %v1472 = vsel %vm94, %v1162, -inf
  %v1473 = vsel %vm94, %v1194, -inf
  %v1474 = vmax.f32 %v1472, %v1473
  %v1475 = vsel %vm94, %v1226, -inf
  %v1476 = vmax.f32 %v1474, %v1475
  %v1477 = vsel %vm94, %v1258, -inf
  %v1478 = vmax.f32 %v1476, %v1477
  %v1479 = vsel %vm94, %v1290, -inf
  %v1480 = vmax.f32 %v1478, %v1479
  %v1481 = vsel %vm94, %v1322, -inf
  %v1482 = vmax.f32 %v1480, %v1481
  %v1483 = vsel %vm94, %v1354, -inf
  %v1484 = vmax.f32 %v1482, %v1483
  %v1485 = vsel %vm94, %v1386, -inf
  %v1486 = vmax.f32 %v1484, %v1485
  %v1487 = vsel %vm94, %v1167, -inf
  %v1488 = vsel %vm94, %v1199, -inf
  %v1489 = vmax.f32 %v1487, %v1488
  %v1490 = vsel %vm94, %v1231, -inf
  %v1491 = vmax.f32 %v1489, %v1490
  %v1492 = vsel %vm94, %v1263, -inf
  %v1493 = vmax.f32 %v1491, %v1492
  %v1494 = vsel %vm94, %v1295, -inf
  %v1495 = vmax.f32 %v1493, %v1494
  %v1496 = vsel %vm94, %v1327, -inf
  %v1497 = vmax.f32 %v1495, %v1496
  %v1498 = vsel %vm94, %v1359, -inf
  %v1499 = vmax.f32 %v1497, %v1498
  %v1500 = vsel %vm94, %v1391, -inf
  %v1501 = vmax.f32 %v1499, %v1500
  %v1502 = vsel %vm94, %v1170, -inf
  %v1503 = vsel %vm94, %v1202, -inf
  %v1504 = vmax.f32 %v1502, %v1503
  %v1505 = vsel %vm94, %v1234, -inf
  %v1506 = vmax.f32 %v1504, %v1505
  %v1507 = vsel %vm94, %v1266, -inf
  %v1508 = vmax.f32 %v1506, %v1507
  %v1509 = vsel %vm94, %v1298, -inf
  %v1510 = vmax.f32 %v1508, %v1509
  %v1511 = vsel %vm94, %v1330, -inf
  %v1512 = vmax.f32 %v1510, %v1511
  %v1513 = vsel %vm94, %v1362, -inf
  %v1514 = vmax.f32 %v1512, %v1513
  %v1515 = vsel %vm94, %v1394, -inf
  %v1516 = vmax.f32 %v1514, %v1515
  %v1517 = vpack.c.bf16 %v1426, %v1411
  %v1518 = vpack.c.bf16 %v1456, %v1441
  %v1519 = vpack.c.bf16 %v1486, %v1471
  %v1520 = vpack.c.bf16 %v1516, %v1501
  %v1525 = vunpack.c.l.b16 %v1517
  %v1526 = vunpack.c.h.b16 %v1517
  %v1527 = vunpack.c.l.b16 %v1518
  %v1528 = vunpack.c.h.b16 %v1518
  %v1529 = vunpack.c.l.b16 %v1519
  %v1530 = vunpack.c.h.b16 %v1519
  %v1531 = vunpack.c.l.b16 %v1520
  %v1532 = vunpack.c.h.b16 %v1520
  %v1533 = vpack.c.b16 %v1525, %v1525
  %v1534 = vpack.c.b16 %v1526, %v1526
  %v1535 = vpack.c.b16 %v1527, %v1527
  %v1536 = vpack.c.b16 %v1528, %v1528
  %v1537 = vpack.c.b16 %v1529, %v1529
  %v1538 = vpack.c.b16 %v1530, %v1530
  %v1539 = vpack.c.b16 %v1531, %v1531
  %v1540 = vpack.c.b16 %v1532, %v1532
  %vm1549 = vcmask 519168
  %1550 = vst.msk [vmem:[%s7] sm:$0xf] %vm1549, %v1533
  %1551 = vst.msk [vmem:[%s7 + $0x4] sm:$0xf] %vm1549, %v1534
  %1552 = vst.msk [vmem:[%s7 + $0x8] sm:$0xf] %vm1549, %v1535
  %1553 = vst.msk [vmem:[%s7 + $0xc] sm:$0xf] %vm1549, %v1536
  %1554 = vst.msk [vmem:[%s7 + $0x10] sm:$0xf] %vm1549, %v1537
  %1555 = vst.msk [vmem:[%s7 + $0x14] sm:$0xf] %vm1549, %v1538
  %1556 = vst.msk [vmem:[%s7 + $0x18] sm:$0xf] %vm1549, %v1539
  %1557 = vst.msk [vmem:[%s7 + $0x1c] sm:$0xf] %vm1549, %v1540
  // Predicated region
  $region30: #{net_forward.10} parent=0 // pred_check
    _
  $region31: #{net_forward.10} parent=0 // pred_check_branch
    %1559 = sbr.rel (0) target = $region33
  $region32: #{net_forward.10} parent=0 // pred_region
    _
  $region33: #{net_forward.10} parent=0 // pred_fallthru
    _
  // Predicated region
  $region34: #{net_forward.10} parent=0 // pred_check
    _
  $region35: #{net_forward.10} parent=0 // pred_check_branch
    %1561 = sbr.rel (0) target = $region37
  $region36: #{net_forward.10} parent=0 // pred_region
    _
  $region37: #{net_forward.10} parent=0 // pred_fallthru
    _

// kernel: net_forward.13
$region0: #{net_forward.13}
  #allocation0 [shape = 'u32[]', space=smem, size = 0x4, offset = 0x4, fixed_abs, tag = 'smem constant byte address 0x4 - core index']
  #allocation1 [shape = 'u32[144,128]{1,0:T(1,128)}', space=vmem, size = 0x12000, scoped, tag = 'internal scratch']
  %s0 = inlined_call_operand.vmem [shape: bf16[64,64], index: 0, kind: input, shape index: {}]
  %s1 = inlined_call_operand.vmem [shape: bf16[64,64], index: 1, kind: input, shape index: {}]
  %s2 = inlined_call_operand.vmem [shape: bf16[64,64], index: 2, kind: input, shape index: {}]
  %s3 = inlined_call_operand.vmem [shape: bf16[192,1024], index: 3, kind: input, shape index: {}]
  %s4 = inlined_call_operand.vmem [shape: f32[1,1024], index: 4, kind: input, shape index: {}]
  %s5 = inlined_call_operand.vmem [shape: bf16[1024,256], index: 5, kind: input, shape index: {}]
  %s6 = inlined_call_operand.vmem [shape: f32[1,256], index: 6, kind: input, shape index: {}]
  %s7 = inlined_call_operand.vmem [shape: bf16[256,128], index: 7, kind: input, shape index: {}]
  %s8 = inlined_call_operand.vmem [shape: f32[1,128], index: 8, kind: input, shape index: {}]
  %s9 = inlined_call_operand.vmem [shape: bf16[128,8], index: 9, kind: input, shape index: {}]
  %s10 = inlined_call_operand.vmem [shape: f32[1,8], index: 10, kind: input, shape index: {}]
  %s11 = inlined_call_operand.vmem [shape: f32[64,8], index: 11, kind: output, shape index: {}]
  %s12 = sld [smem:[#allocation0]]
  $region54: #{net_forward.13} parent=0
    _
  %s14 = ssub.s32 1, %s12
  %s15 = scalar_select 0, %s14, %s12
  // Predicated region
  $region2: #{net_forward.13} parent=0 // pred_check
    _
  $region3: #{net_forward.13} parent=0 // pred_check_branch
    %17 = sbr.rel (0) target = $region5
  $region4: #{net_forward.13} parent=0 // pred_region
    _
  $region5: #{net_forward.13} parent=0 // pred_fallthru
    _
  // Predicated region
  $region6: #{net_forward.13} parent=0 // pred_check
    _
  $region7: #{net_forward.13} parent=0 // pred_check_branch
    %19 = sbr.rel (0) target = $region9
  $region8: #{net_forward.13} parent=0 // pred_region
    _
  $region9: #{net_forward.13} parent=0 // pred_fallthru
    _
  // Predicated region
  $region10: #{net_forward.13} parent=0 // pred_check
    _
  $region11: #{net_forward.13} parent=0 // pred_check_branch
    %21 = sbr.rel (0) target = $region13
  $region12: #{net_forward.13} parent=0 // pred_region
    _
  $region13: #{net_forward.13} parent=0 // pred_fallthru
    _
  // Predicated region
  $region14: #{net_forward.13} parent=0 // pred_check
    _
  $region15: #{net_forward.13} parent=0 // pred_check_branch
    %23 = sbr.rel (0) target = $region17
  $region16: #{net_forward.13} parent=0 // pred_region
    _
  $region17: #{net_forward.13} parent=0 // pred_fallthru
    _
  // Predicated region
  $region18: #{net_forward.13} parent=0 // pred_check
    _
  $region19: #{net_forward.13} parent=0 // pred_check_branch
    %25 = sbr.rel (0) target = $region21
  $region20: #{net_forward.13} parent=0 // pred_region
    _
  $region21: #{net_forward.13} parent=0 // pred_fallthru
    _
  // Predicated region
  $region22: #{net_forward.13} parent=0 // pred_check
    _
  $region23: #{net_forward.13} parent=0 // pred_check_branch
    %27 = sbr.rel (0) target = $region25
  $region24: #{net_forward.13} parent=0 // pred_region
    _
  $region25: #{net_forward.13} parent=0 // pred_fallthru
    _
  // Predicated region
  $region26: #{net_forward.13} parent=0 // pred_check
    _
  $region27: #{net_forward.13} parent=0 // pred_check_branch
    %29 = sbr.rel (0) target = $region29
  $region28: #{net_forward.13} parent=0 // pred_region
    _
  $region29: #{net_forward.13} parent=0 // pred_fallthru
    _
  // Predicated region
  $region30: #{net_forward.13} parent=0 // pred_check
    _
  $region31: #{net_forward.13} parent=0 // pred_check_branch
    %31 = sbr.rel (0) target = $region33
  $region32: #{net_forward.13} parent=0 // pred_region
    _
  $region33: #{net_forward.13} parent=0 // pred_fallthru
    _
  // Predicated region
  $region34: #{net_forward.13} parent=0 // pred_check
    _
  $region35: #{net_forward.13} parent=0 // pred_check_branch
    %33 = sbr.rel (0) target = $region37
  $region36: #{net_forward.13} parent=0 // pred_region
    _
  $region37: #{net_forward.13} parent=0 // pred_fallthru
    _
  // Predicated region
  $region38: #{net_forward.13} parent=0 // pred_check
    _
  $region39: #{net_forward.13} parent=0 // pred_check_branch
    %35 = sbr.rel (0) target = $region41
  $region40: #{net_forward.13} parent=0 // pred_region
    _
  $region41: #{net_forward.13} parent=0 // pred_fallthru
    _
  // Predicated region
  $region42: #{net_forward.13} parent=0 // pred_check
    _
  $region43: #{net_forward.13} parent=0 // pred_check_branch
    %37 = sbr.rel (0) target = $region45
  $region44: #{net_forward.13} parent=0 // pred_region
    _
  $region45: #{net_forward.13} parent=0 // pred_fallthru
    _
  %v39 = vld [vmem:[%s0] sm:$0xf]
  %v40 = vld [vmem:[%s0 + $0x4] sm:$0xf]
  %v41 = vld [vmem:[%s0 + $0x8] sm:$0xf]
  %v42 = vld [vmem:[%s0 + $0xc] sm:$0xf]
  %v43 = vld [vmem:[%s0 + $0x10] sm:$0xf]
  %v44 = vld [vmem:[%s0 + $0x14] sm:$0xf]
  %v45 = vld [vmem:[%s0 + $0x18] sm:$0xf]
  %v46 = vld [vmem:[%s0 + $0x1c] sm:$0xf]
  %v47 = vld [vmem:[%s1] sm:$0xf]
  %v48 = vld [vmem:[%s1 + $0x4] sm:$0xf]
  %v49 = vld [vmem:[%s1 + $0x8] sm:$0xf]
  %v50 = vld [vmem:[%s1 + $0xc] sm:$0xf]
  %v51 = vld [vmem:[%s1 + $0x10] sm:$0xf]
  %v52 = vld [vmem:[%s1 + $0x14] sm:$0xf]
  %v53 = vld [vmem:[%s1 + $0x18] sm:$0xf]
  %v54 = vld [vmem:[%s1 + $0x1c] sm:$0xf]
  %v55 = vld [vmem:[%s2] sm:$0xf]
  %v56 = vld [vmem:[%s2 + $0x4] sm:$0xf]
  %v57 = vld [vmem:[%s2 + $0x8] sm:$0xf]
  %v58 = vld [vmem:[%s2 + $0xc] sm:$0xf]
  %v59 = vld [vmem:[%s2 + $0x10] sm:$0xf]
  %v60 = vld [vmem:[%s2 + $0x14] sm:$0xf]
  %v61 = vld [vmem:[%s2 + $0x18] sm:$0xf]
  %v62 = vld [vmem:[%s2 + $0x1c] sm:$0xf]
  %v71 = vunpack.c.l.b16 %v39
  %v72 = vunpack.c.l.b16 %v40
  %v73 = vunpack.c.l.b16 %v41
  %v74 = vunpack.c.l.b16 %v42
  %v75 = vunpack.c.l.b16 %v43
  %v76 = vunpack.c.l.b16 %v44
  %v77 = vunpack.c.l.b16 %v45
  %v78 = vunpack.c.l.b16 %v46
  %v79 = vpack.c.b16 %v72, %v71
  %v80 = vpack.c.b16 %v74, %v73
  %v81 = vpack.c.b16 %v76, %v75
  %v82 = vpack.c.b16 %v78, %v77
  %v91 = vunpack.c.l.b16 %v47
  %v92 = vunpack.c.l.b16 %v48
  %v93 = vunpack.c.l.b16 %v49
  %v94 = vunpack.c.l.b16 %v50
  %v95 = vunpack.c.l.b16 %v51
  %v96 = vunpack.c.l.b16 %v52
  %v97 = vunpack.c.l.b16 %v53
  %v98 = vunpack.c.l.b16 %v54
  %v99 = vpack.c.b16 %v92, %v91
  %v100 = vpack.c.b16 %v94, %v93
  %v101 = vpack.c.b16 %v96, %v95
  %v102 = vpack.c.b16 %v98, %v97
  %103 = vrot.lane.b32.xlu0 %v99, 64
  %v104 = vpop.permute.xlu0 %103
  %105 = vrot.lane.b32.xlu0 %v100, 64
  %v106 = vpop.permute.xlu0 %105
  %107 = vrot.lane.b32.xlu0 %v101, 64
  %v108 = vpop.permute.xlu0 %107
  %109 = vrot.lane.b32.xlu0 %v102, 64
  %v110 = vpop.permute.xlu0 %109
  %v119 = vunpack.c.l.b16 %v55
  %v120 = vunpack.c.l.b16 %v56
  %v121 = vunpack.c.l.b16 %v57
  %v122 = vunpack.c.l.b16 %v58
  %v123 = vunpack.c.l.b16 %v59
  %v124 = vunpack.c.l.b16 %v60
  %v125 = vunpack.c.l.b16 %v61
  %v126 = vunpack.c.l.b16 %v62
  %v127 = vpack.c.b16 %v120, %v119
  %v128 = vpack.c.b16 %v122, %v121
  %v129 = vpack.c.b16 %v124, %v123
  %v130 = vpack.c.b16 %v126, %v125
  %vm131 = vcmask 523264
  %v134 = vsel %vm131, %v79, %v104
  %v138 = vsel %vm131, %v80, %v106
  %v142 = vsel %vm131, %v81, %v108
  %v146 = vsel %vm131, %v82, %v110
  %v148 = vld [vmem:[%s3] sm:$0xff]
  %v149 = vld [vmem:[%s3 + $0x8] sm:$0xff]
  %v150 = vld [vmem:[%s3 + $0x10] sm:$0xff]
  %v151 = vld [vmem:[%s3 + $0x18] sm:$0xff]
  %v152 = vld [vmem:[%s3 + $0x20] sm:$0xff]
  %v153 = vld [vmem:[%s3 + $0x28] sm:$0xff]
  %v154 = vld [vmem:[%s3 + $0x30] sm:$0xff]
  %v155 = vld [vmem:[%s3 + $0x38] sm:$0xff]
  %v156 = vld [vmem:[%s3 + $0x40] sm:$0xff]
  %v157 = vld [vmem:[%s3 + $0x48] sm:$0xff]
  %v158 = vld [vmem:[%s3 + $0x50] sm:$0xff]
  %v159 = vld [vmem:[%s3 + $0x58] sm:$0xff]
  %v160 = vld [vmem:[%s3 + $0x60] sm:$0xff]
  %v161 = vld [vmem:[%s3 + $0x68] sm:$0xff]
  %v162 = vld [vmem:[%s3 + $0x70] sm:$0xff]
  %v163 = vld [vmem:[%s3 + $0x78] sm:$0xff]
  %v164 = vld [vmem:[%s3 + $0x80] sm:$0xff]
  %v165 = vld [vmem:[%s3 + $0x88] sm:$0xff]
  %v166 = vld [vmem:[%s3 + $0x90] sm:$0xff]
  %v167 = vld [vmem:[%s3 + $0x98] sm:$0xff]
  %v168 = vld [vmem:[%s3 + $0xa0] sm:$0xff]
  %v169 = vld [vmem:[%s3 + $0xa8] sm:$0xff]
  %v170 = vld [vmem:[%s3 + $0xb0] sm:$0xff]
  %v171 = vld [vmem:[%s3 + $0xb8] sm:$0xff]
  %v172 = vld [vmem:[%s3 + $0xc0] sm:$0xff]
  %v173 = vld [vmem:[%s3 + $0xc8] sm:$0xff]
  %v174 = vld [vmem:[%s3 + $0xd0] sm:$0xff]
  %v175 = vld [vmem:[%s3 + $0xd8] sm:$0xff]
  %v176 = vld [vmem:[%s3 + $0xe0] sm:$0xff]
  %v177 = vld [vmem:[%s3 + $0xe8] sm:$0xff]
  %v178 = vld [vmem:[%s3 + $0xf0] sm:$0xff]
  %v179 = vld [vmem:[%s3 + $0xf8] sm:$0xff]
  %v180 = vld [vmem:[%s3 + $0x100] sm:$0xff]
  %v181 = vld [vmem:[%s3 + $0x108] sm:$0xff]
  %v182 = vld [vmem:[%s3 + $0x110] sm:$0xff]
  %v183 = vld [vmem:[%s3 + $0x118] sm:$0xff]
  %v184 = vld [vmem:[%s3 + $0x120] sm:$0xff]
  %v185 = vld [vmem:[%s3 + $0x128] sm:$0xff]
  %v186 = vld [vmem:[%s3 + $0x130] sm:$0xff]
  %v187 = vld [vmem:[%s3 + $0x138] sm:$0xff]
  %v188 = vld [vmem:[%s3 + $0x140] sm:$0xff]
  %v189 = vld [vmem:[%s3 + $0x148] sm:$0xff]
  %v190 = vld [vmem:[%s3 + $0x150] sm:$0xff]
  %v191 = vld [vmem:[%s3 + $0x158] sm:$0xff]
  %v192 = vld [vmem:[%s3 + $0x160] sm:$0xff]
  %v193 = vld [vmem:[%s3 + $0x168] sm:$0xff]
  %v194 = vld [vmem:[%s3 + $0x170] sm:$0xff]
  %v195 = vld [vmem:[%s3 + $0x178] sm:$0xff]
  %v196 = vld [vmem:[%s3 + $0x180] sm:$0xff]
  %v197 = vld [vmem:[%s3 + $0x188] sm:$0xff]
  %v198 = vld [vmem:[%s3 + $0x190] sm:$0xff]
  %v199 = vld [vmem:[%s3 + $0x198] sm:$0xff]
  %v200 = vld [vmem:[%s3 + $0x1a0] sm:$0xff]
  %v201 = vld [vmem:[%s3 + $0x1a8] sm:$0xff]
  %v202 = vld [vmem:[%s3 + $0x1b0] sm:$0xff]
  %v203 = vld [vmem:[%s3 + $0x1b8] sm:$0xff]
  %v204 = vld [vmem:[%s3 + $0x1c0] sm:$0xff]
  %v205 = vld [vmem:[%s3 + $0x1c8] sm:$0xff]
  %v206 = vld [vmem:[%s3 + $0x1d0] sm:$0xff]
  %v207 = vld [vmem:[%s3 + $0x1d8] sm:$0xff]
  %v208 = vld [vmem:[%s3 + $0x1e0] sm:$0xff]
  %v209 = vld [vmem:[%s3 + $0x1e8] sm:$0xff]
  %v210 = vld [vmem:[%s3 + $0x1f0] sm:$0xff]
  %v211 = vld [vmem:[%s3 + $0x1f8] sm:$0xff]
  %v212 = vld [vmem:[%s3 + $0x200] sm:$0xff]
  %v213 = vld [vmem:[%s3 + $0x208] sm:$0xff]
  %v214 = vld [vmem:[%s3 + $0x210] sm:$0xff]
  %v215 = vld [vmem:[%s3 + $0x218] sm:$0xff]
  %v216 = vld [vmem:[%s3 + $0x220] sm:$0xff]
  %v217 = vld [vmem:[%s3 + $0x228] sm:$0xff]
  %v218 = vld [vmem:[%s3 + $0x230] sm:$0xff]
  %v219 = vld [vmem:[%s3 + $0x238] sm:$0xff]
  %v220 = vld [vmem:[%s3 + $0x240] sm:$0xff]
  %v221 = vld [vmem:[%s3 + $0x248] sm:$0xff]
  %v222 = vld [vmem:[%s3 + $0x250] sm:$0xff]
  %v223 = vld [vmem:[%s3 + $0x258] sm:$0xff]
  %v224 = vld [vmem:[%s3 + $0x260] sm:$0xff]
  %v225 = vld [vmem:[%s3 + $0x268] sm:$0xff]
  %v226 = vld [vmem:[%s3 + $0x270] sm:$0xff]
  %v227 = vld [vmem:[%s3 + $0x278] sm:$0xff]
  %v228 = vld [vmem:[%s3 + $0x280] sm:$0xff]
  %v229 = vld [vmem:[%s3 + $0x288] sm:$0xff]
  %v230 = vld [vmem:[%s3 + $0x290] sm:$0xff]
  %v231 = vld [vmem:[%s3 + $0x298] sm:$0xff]
  %v232 = vld [vmem:[%s3 + $0x2a0] sm:$0xff]
  %v233 = vld [vmem:[%s3 + $0x2a8] sm:$0xff]
  %v234 = vld [vmem:[%s3 + $0x2b0] sm:$0xff]
  %v235 = vld [vmem:[%s3 + $0x2b8] sm:$0xff]
  %v236 = vld [vmem:[%s3 + $0x2c0] sm:$0xff]
  %v237 = vld [vmem:[%s3 + $0x2c8] sm:$0xff]
  %v238 = vld [vmem:[%s3 + $0x2d0] sm:$0xff]
  %v239 = vld [vmem:[%s3 + $0x2d8] sm:$0xff]
  %v240 = vld [vmem:[%s3 + $0x2e0] sm:$0xff]
  %v241 = vld [vmem:[%s3 + $0x2e8] sm:$0xff]
  %v242 = vld [vmem:[%s3 + $0x2f0] sm:$0xff]
  %v243 = vld [vmem:[%s3 + $0x2f8] sm:$0xff]
  %v244 = vld [vmem:[%s4] sm:$0xff]
  %v246 = vlaneseq
  %v247 = vshrl.u32 %v246, 7
  %v248 = vsub.s32 0, %v247
  %v249 = vrot.slane %v244, %v248
  %v250 = vlaneseq
  %v251 = vshrl.u32 %v250, 7
  %v252 = vsub.s32 1, %v251
  %v253 = vrot.slane %v244, %v252
  %v254 = vlaneseq
  %v255 = vshrl.u32 %v254, 7
  %v256 = vsub.s32 2, %v255
  %v257 = vrot.slane %v244, %v256
  %v258 = vlaneseq
  %v259 = vshrl.u32 %v258, 7
  %v260 = vsub.s32 3, %v259
  %v261 = vrot.slane %v244, %v260
  %v262 = vlaneseq
  %v263 = vshrl.u32 %v262, 7
  %v264 = vsub.s32 4, %v263
  %v265 = vrot.slane %v244, %v264
  %v266 = vlaneseq
  %v267 = vshrl.u32 %v266, 7
  %v268 = vsub.s32 5, %v267
  %v269 = vrot.slane %v244, %v268
  %v270 = vlaneseq
  %v271 = vshrl.u32 %v270, 7
  %v272 = vsub.s32 6, %v271
  %v273 = vrot.slane %v244, %v272
  %v274 = vlaneseq
  %v275 = vshrl.u32 %v274, 7
  %v276 = vsub.s32 7, %v275
  %v277 = vrot.slane %v244, %v276
  %v382 = vunpack.c.l.b16 %v148
  %v383 = vunpack.c.h.b16 %v148
  %v384 = vunpack.c.l.b16 %v149
  %v385 = vunpack.c.h.b16 %v149
  %v386 = vunpack.c.l.b16 %v150
  %v387 = vunpack.c.h.b16 %v150
  %v388 = vunpack.c.l.b16 %v151
  %v389 = vunpack.c.h.b16 %v151
  %v390 = vunpack.c.l.b16 %v152
  %v391 = vunpack.c.h.b16 %v152
  %v392 = vunpack.c.l.b16 %v153
  %v393 = vunpack.c.h.b16 %v153
  %v394 = vunpack.c.l.b16 %v154
  %v395 = vunpack.c.h.b16 %v154
  %v396 = vunpack.c.l.b16 %v155
  %v397 = vunpack.c.h.b16 %v155
  %v398 = vunpack.c.l.b16 %v156
  %v399 = vunpack.c.h.b16 %v156
  %v400 = vunpack.c.l.b16 %v157
  %v401 = vunpack.c.h.b16 %v157
  %v402 = vunpack.c.l.b16 %v158
  %v403 = vunpack.c.h.b16 %v158
  %v404 = vunpack.c.l.b16 %v159
  %v405 = vunpack.c.h.b16 %v159
  %v406 = vunpack.c.l.b16 %v160
  %v407 = vunpack.c.h.b16 %v160
  %v408 = vunpack.c.l.b16 %v161
  %v409 = vunpack.c.h.b16 %v161
  %v410 = vunpack.c.l.b16 %v162
  %v411 = vunpack.c.h.b16 %v162
  %v412 = vunpack.c.l.b16 %v163
  %v413 = vunpack.c.h.b16 %v163
  %v414 = vunpack.c.l.b16 %v164
  %v415 = vunpack.c.h.b16 %v164
  %v416 = vunpack.c.l.b16 %v165
  %v417 = vunpack.c.h.b16 %v165
  %v418 = vunpack.c.l.b16 %v166
  %v419 = vunpack.c.h.b16 %v166
  %v420 = vunpack.c.l.b16 %v167
  %v421 = vunpack.c.h.b16 %v167
  %v422 = vunpack.c.l.b16 %v168
  %v423 = vunpack.c.h.b16 %v168
  %v424 = vunpack.c.l.b16 %v169
  %v425 = vunpack.c.h.b16 %v169
  %v426 = vunpack.c.l.b16 %v170
  %v427 = vunpack.c.h.b16 %v170
  %v428 = vunpack.c.l.b16 %v171
  %v429 = vunpack.c.h.b16 %v171
  %v430 = vunpack.c.l.b16 %v172
  %v431 = vunpack.c.h.b16 %v172
  %v432 = vunpack.c.l.b16 %v173
  %v433 = vunpack.c.h.b16 %v173
  %v434 = vunpack.c.l.b16 %v174
  %v435 = vunpack.c.h.b16 %v174
  %v436 = vunpack.c.l.b16 %v175
  %v437 = vunpack.c.h.b16 %v175
  %v438 = vunpack.c.l.b16 %v176
  %v439 = vunpack.c.h.b16 %v176
  %v440 = vunpack.c.l.b16 %v177
  %v441 = vunpack.c.h.b16 %v177
  %v442 = vunpack.c.l.b16 %v178
  %v443 = vunpack.c.h.b16 %v178
  %v444 = vunpack.c.l.b16 %v179
  %v445 = vunpack.c.h.b16 %v179
  %v446 = vunpack.c.l.b16 %v180
  %v447 = vunpack.c.h.b16 %v180
  %v448 = vunpack.c.l.b16 %v181
  %v449 = vunpack.c.h.b16 %v181
  %v450 = vunpack.c.l.b16 %v182
  %v451 = vunpack.c.h.b16 %v182
  %v452 = vunpack.c.l.b16 %v183
  %v453 = vunpack.c.h.b16 %v183
  %v454 = vunpack.c.l.b16 %v184
  %v455 = vunpack.c.h.b16 %v184
  %v456 = vunpack.c.l.b16 %v185
  %v457 = vunpack.c.h.b16 %v185
  %v458 = vunpack.c.l.b16 %v186
  %v459 = vunpack.c.h.b16 %v186
  %v460 = vunpack.c.l.b16 %v187
  %v461 = vunpack.c.h.b16 %v187
  %v462 = vunpack.c.l.b16 %v188
  %v463 = vunpack.c.h.b16 %v188
  %v464 = vunpack.c.l.b16 %v189
  %v465 = vunpack.c.h.b16 %v189
  %v466 = vunpack.c.l.b16 %v190
  %v467 = vunpack.c.h.b16 %v190
  %v468 = vunpack.c.l.b16 %v191
  %v469 = vunpack.c.h.b16 %v191
  %v470 = vunpack.c.l.b16 %v192
  %v471 = vunpack.c.h.b16 %v192
  %v472 = vunpack.c.l.b16 %v193
  %v473 = vunpack.c.h.b16 %v193
  %v474 = vunpack.c.l.b16 %v194
  %v475 = vunpack.c.h.b16 %v194
  %v476 = vunpack.c.l.b16 %v195
  %v477 = vunpack.c.h.b16 %v195
  %v478 = vunpack.c.l.b16 %v196
  %v479 = vunpack.c.h.b16 %v196
  %v480 = vunpack.c.l.b16 %v197
  %v481 = vunpack.c.h.b16 %v197
  %v482 = vunpack.c.l.b16 %v198
  %v483 = vunpack.c.h.b16 %v198
  %v484 = vunpack.c.l.b16 %v199
  %v485 = vunpack.c.h.b16 %v199
  %v486 = vunpack.c.l.b16 %v200
  %v487 = vunpack.c.h.b16 %v200
  %v488 = vunpack.c.l.b16 %v201
  %v489 = vunpack.c.h.b16 %v201
  %v490 = vunpack.c.l.b16 %v202
  %v491 = vunpack.c.h.b16 %v202
  %v492 = vunpack.c.l.b16 %v203
  %v493 = vunpack.c.h.b16 %v203
  %v494 = vunpack.c.l.b16 %v204
  %v495 = vunpack.c.h.b16 %v204
  %v496 = vunpack.c.l.b16 %v205
  %v497 = vunpack.c.h.b16 %v205
  %v498 = vunpack.c.l.b16 %v206
  %v499 = vunpack.c.h.b16 %v206
  %v500 = vunpack.c.l.b16 %v207
  %v501 = vunpack.c.h.b16 %v207
  %v502 = vunpack.c.l.b16 %v208
  %v503 = vunpack.c.h.b16 %v208
  %v504 = vunpack.c.l.b16 %v209
  %v505 = vunpack.c.h.b16 %v209
  %v506 = vunpack.c.l.b16 %v210
  %v507 = vunpack.c.h.b16 %v210
  %v508 = vunpack.c.l.b16 %v211
  %v509 = vunpack.c.h.b16 %v211
  %v510 = vunpack.c.l.b16 %v212
  %v511 = vunpack.c.h.b16 %v212
  %v512 = vunpack.c.l.b16 %v213
  %v513 = vunpack.c.h.b16 %v213
  %v514 = vunpack.c.l.b16 %v214
  %v515 = vunpack.c.h.b16 %v214
  %v516 = vunpack.c.l.b16 %v215
  %v517 = vunpack.c.h.b16 %v215
  %v518 = vunpack.c.l.b16 %v216
  %v519 = vunpack.c.h.b16 %v216
  %v520 = vunpack.c.l.b16 %v217
  %v521 = vunpack.c.h.b16 %v217
  %v522 = vunpack.c.l.b16 %v218
  %v523 = vunpack.c.h.b16 %v218
  %v524 = vunpack.c.l.b16 %v219
  %v525 = vunpack.c.h.b16 %v219
  %v526 = vunpack.c.l.b16 %v220
  %v527 = vunpack.c.h.b16 %v220
  %v528 = vunpack.c.l.b16 %v221
  %v529 = vunpack.c.h.b16 %v221
  %v530 = vunpack.c.l.b16 %v222
  %v531 = vunpack.c.h.b16 %v222
  %v532 = vunpack.c.l.b16 %v223
  %v533 = vunpack.c.h.b16 %v223
  %v534 = vunpack.c.l.b16 %v224
  %v535 = vunpack.c.h.b16 %v224
  %v536 = vunpack.c.l.b16 %v225
  %v537 = vunpack.c.h.b16 %v225
  %v538 = vunpack.c.l.b16 %v226
  %v539 = vunpack.c.h.b16 %v226
  %v540 = vunpack.c.l.b16 %v227
  %v541 = vunpack.c.h.b16 %v227
  %v542 = vunpack.c.l.b16 %v228
  %v543 = vunpack.c.h.b16 %v228
  %v544 = vunpack.c.l.b16 %v229
  %v545 = vunpack.c.h.b16 %v229
  %v546 = vunpack.c.l.b16 %v230
  %v547 = vunpack.c.h.b16 %v230
  %v548 = vunpack.c.l.b16 %v231
  %v549 = vunpack.c.h.b16 %v231
  %v550 = vunpack.c.l.b16 %v232
  %v551 = vunpack.c.h.b16 %v232
  %v552 = vunpack.c.l.b16 %v233
  %v553 = vunpack.c.h.b16 %v233
  %v554 = vunpack.c.l.b16 %v234
  %v555 = vunpack.c.h.b16 %v234
  %v556 = vunpack.c.l.b16 %v235
  %v557 = vunpack.c.h.b16 %v235
  %v558 = vunpack.c.l.b16 %v236
  %v559 = vunpack.c.h.b16 %v236
  %v560 = vunpack.c.l.b16 %v237
  %v561 = vunpack.c.h.b16 %v237
  %v562 = vunpack.c.l.b16 %v238
  %v563 = vunpack.c.h.b16 %v238
  %v564 = vunpack.c.l.b16 %v239
  %v565 = vunpack.c.h.b16 %v239
  %v566 = vunpack.c.l.b16 %v240
  %v567 = vunpack.c.h.b16 %v240
  %v568 = vunpack.c.l.b16 %v241
  %v569 = vunpack.c.h.b16 %v241
  %v570 = vunpack.c.l.b16 %v242
  %v571 = vunpack.c.h.b16 %v242
  %v572 = vunpack.c.l.b16 %v243
  %v573 = vunpack.c.h.b16 %v243
  %v574 = vpack.c.b16 %v390, %v382
  %v575 = vpack.c.b16 %v391, %v383
  %v576 = vpack.c.b16 %v392, %v384
  %v577 = vpack.c.b16 %v393, %v385
  %v578 = vpack.c.b16 %v394, %v386
  %v579 = vpack.c.b16 %v395, %v387
  %v580 = vpack.c.b16 %v396, %v388
  %v581 = vpack.c.b16 %v397, %v389
  %v582 = vpack.c.b16 %v406, %v398
  %v583 = vpack.c.b16 %v407, %v399
  %v584 = vpack.c.b16 %v408, %v400
  %v585 = vpack.c.b16 %v409, %v401
  %v586 = vpack.c.b16 %v410, %v402
  %v587 = vpack.c.b16 %v411, %v403
  %v588 = vpack.c.b16 %v412, %v404
  %v589 = vpack.c.b16 %v413, %v405
  %v590 = vpack.c.b16 %v422, %v414
  %v591 = vpack.c.b16 %v423, %v415
  %v592 = vpack.c.b16 %v424, %v416
  %v593 = vpack.c.b16 %v425, %v417
  %v594 = vpack.c.b16 %v426, %v418
  %v595 = vpack.c.b16 %v427, %v419
  %v596 = vpack.c.b16 %v428, %v420
  %v597 = vpack.c.b16 %v429, %v421
  %v598 = vpack.c.b16 %v438, %v430
  %v599 = vpack.c.b16 %v439, %v431
  %v600 = vpack.c.b16 %v440, %v432
  %v601 = vpack.c.b16 %v441, %v433
  %v602 = vpack.c.b16 %v442, %v434
  %v603 = vpack.c.b16 %v443, %v435
  %v604 = vpack.c.b16 %v444, %v436
  %v605 = vpack.c.b16 %v445, %v437
  %v606 = vpack.c.b16 %v454, %v446
  %v607 = vpack.c.b16 %v455, %v447
  %v608 = vpack.c.b16 %v456, %v448
  %v609 = vpack.c.b16 %v457, %v449
  %v610 = vpack.c.b16 %v458, %v450
  %v611 = vpack.c.b16 %v459, %v451
  %v612 = vpack.c.b16 %v460, %v452
  %v613 = vpack.c.b16 %v461, %v453
  %v614 = vpack.c.b16 %v470, %v462
  %v615 = vpack.c.b16 %v471, %v463
  %v616 = vpack.c.b16 %v472, %v464
  %v617 = vpack.c.b16 %v473, %v465
  %v618 = vpack.c.b16 %v474, %v466
  %v619 = vpack.c.b16 %v475, %v467
  %v620 = vpack.c.b16 %v476, %v468
  %v621 = vpack.c.b16 %v477, %v469
  %v622 = vpack.c.b16 %v486, %v478
  %v623 = vpack.c.b16 %v487, %v479
  %v624 = vpack.c.b16 %v488, %v480
  %v625 = vpack.c.b16 %v489, %v481
  %v626 = vpack.c.b16 %v490, %v482
  %v627 = vpack.c.b16 %v491, %v483
  %v628 = vpack.c.b16 %v492, %v484
  %v629 = vpack.c.b16 %v493, %v485
  %v630 = vpack.c.b16 %v502, %v494
  %v631 = vpack.c.b16 %v503, %v495
  %v632 = vpack.c.b16 %v504, %v496
  %v633 = vpack.c.b16 %v505, %v497
  %v634 = vpack.c.b16 %v506, %v498
  %v635 = vpack.c.b16 %v507, %v499
  %v636 = vpack.c.b16 %v508, %v500
  %v637 = vpack.c.b16 %v509, %v501
  %v638 = vpack.c.b16 %v518, %v510
  %v639 = vpack.c.b16 %v519, %v511
  %v640 = vpack.c.b16 %v520, %v512
  %v641 = vpack.c.b16 %v521, %v513
  %v642 = vpack.c.b16 %v522, %v514
  %v643 = vpack.c.b16 %v523, %v515
  %v644 = vpack.c.b16 %v524, %v516
  %v645 = vpack.c.b16 %v525, %v517
  %v646 = vpack.c.b16 %v534, %v526
  %v647 = vpack.c.b16 %v535, %v527
  %v648 = vpack.c.b16 %v536, %v528
  %v649 = vpack.c.b16 %v537, %v529
  %v650 = vpack.c.b16 %v538, %v530
  %v651 = vpack.c.b16 %v539, %v531
  %v652 = vpack.c.b16 %v540, %v532
  %v653 = vpack.c.b16 %v541, %v533
  %v654 = vpack.c.b16 %v550, %v542
  %v655 = vpack.c.b16 %v551, %v543
  %v656 = vpack.c.b16 %v552, %v544
  %v657 = vpack.c.b16 %v553, %v545
  %v658 = vpack.c.b16 %v554, %v546
  %v659 = vpack.c.b16 %v555, %v547
  %v660 = vpack.c.b16 %v556, %v548
  %v661 = vpack.c.b16 %v557, %v549
  %v662 = vpack.c.b16 %v566, %v558
  %v663 = vpack.c.b16 %v567, %v559
  %v664 = vpack.c.b16 %v568, %v560
  %v665 = vpack.c.b16 %v569, %v561
  %v666 = vpack.c.b16 %v570, %v562
  %v667 = vpack.c.b16 %v571, %v563
  %v668 = vpack.c.b16 %v572, %v564
  %v669 = vpack.c.b16 %v573, %v565
  %v767 = vsel %vm131, %v127, 0
  %v770 = vsel %vm131, %v128, 0
  %v773 = vsel %vm131, %v129, 0
  %v776 = vsel %vm131, %v130, 0
  %778 = vmatprep.subr.bf16.mxu0 %v631
  %779 = vmatpush1.bf16.msra.mxu0 %v630
  %780 = vmatprep.subr.bf16.mxu0 %v623
  %781 = vmatpush1.bf16.msra.mxu0 %v622
  %782 = vmatprep.subr.bf16.mxu0 %v615
  %783 = vmatpush1.bf16.msra.mxu0 %v614
  %784 = vmatprep.subr.bf16.mxu0 %v607
  %785 = vmatpush1.bf16.msra.mxu0 %v606
  %786 = vmatprep.subr.bf16.mxu0 %v599
  %787 = vmatpush1.bf16.msra.mxu0 %v598
  %788 = vmatprep.subr.bf16.mxu0 %v591
  %789 = vmatpush1.bf16.msra.mxu0 %v590
  %790 = vmatprep.subr.bf16.mxu0 %v583
  %791 = vmatpush1.bf16.msra.mxu0 %v582
  %792 = vmatprep.subr.bf16.mxu0 %v575
  %793 = vmatpush1.bf16.msra.mxu0 %v574
  %794 = vmatprep.subr.bf16.mxu0 0
  %795 = vmatpush2.bf16.msra.mxu0 0
  %796 = vmatprep.subr.bf16.mxu0 0
  %797 = vmatpush2.bf16.msra.mxu0 0
  %798 = vmatprep.subr.bf16.mxu0 0
  %799 = vmatpush2.bf16.msra.mxu0 0
  %800 = vmatprep.subr.bf16.mxu0 0
  %801 = vmatpush2.bf16.msra.mxu0 0
  %802 = vmatprep.subr.bf16.mxu0 %v663
  %803 = vmatpush2.bf16.msra.mxu0 %v662
  %804 = vmatprep.subr.bf16.mxu0 %v655
  %805 = vmatpush2.bf16.msra.mxu0 %v654
  %806 = vmatprep.subr.bf16.mxu0 %v647
  %807 = vmatpush2.bf16.msra.mxu0 %v646
  %808 = vmatprep.subr.bf16.mxu0 %v639
  %809 = vmatpush2.bf16.msra.mxu0 %v638
  %810 = vmatprep.mubr.bf16.mxu0 %v767
  %811 = vmatmul.mubr.bf16.gmra.mxu0 %v134
  %v812 = vpop.f32.mrf.mxu0
  %v813 = vadd.f32 %v249, %v812
  %v814 = vpop.f32.mrf.mxu0
  %v815 = vadd.f32 %v253, %v814
  %v816 = vpop.f32.mrf.mxu0
  %v817 = vadd.f32 %v249, %v816
  %v818 = vpop.f32.mrf.mxu0
  %v819 = vadd.f32 %v253, %v818
  %820 = vmatprep.mubr.bf16.mxu0 %v770
  %821 = vmatmul.mubr.bf16.gmra.mxu0 %v138
  %v822 = vpop.f32.mrf.mxu0
  %v823 = vadd.f32 %v249, %v822
  %v824 = vpop.f32.mrf.mxu0
  %v825 = vadd.f32 %v253, %v824
  %v826 = vpop.f32.mrf.mxu0
  %v827 = vadd.f32 %v249, %v826
  %v828 = vpop.f32.mrf.mxu0
  %v829 = vadd.f32 %v253, %v828
  %830 = vmatprep.mubr.bf16.mxu0 %v773
  %831 = vmatmul.mubr.bf16.gmra.mxu0 %v142
  %v832 = vpop.f32.mrf.mxu0
  %v833 = vadd.f32 %v249, %v832
  %v834 = vpop.f32.mrf.mxu0
  %v835 = vadd.f32 %v253, %v834
  %v836 = vpop.f32.mrf.mxu0
  %v837 = vadd.f32 %v249, %v836
  %v838 = vpop.f32.mrf.mxu0
  %v839 = vadd.f32 %v253, %v838
  %840 = vmatprep.mubr.bf16.mxu0 %v776
  %841 = vmatmul.mubr.bf16.gmra.mxu0 %v146
  %v842 = vpop.f32.mrf.mxu0
  %v843 = vadd.f32 %v249, %v842
  %v844 = vpop.f32.mrf.mxu0
  %v845 = vadd.f32 %v253, %v844
  %v846 = vpop.f32.mrf.mxu0
  %v847 = vadd.f32 %v249, %v846
  %v848 = vpop.f32.mrf.mxu0
  %v849 = vadd.f32 %v253, %v848
  %850 = vdwg.mxu0
  %851 = vmatprep.subr.bf16.mxu0 %v633
  %852 = vmatpush1.bf16.msra.mxu0 %v632
  %853 = vmatprep.subr.bf16.mxu0 %v625
  %854 = vmatpush1.bf16.msra.mxu0 %v624
  %855 = vmatprep.subr.bf16.mxu0 %v617
  %856 = vmatpush1.bf16.msra.mxu0 %v616
  %857 = vmatprep.subr.bf16.mxu0 %v609
  %858 = vmatpush1.bf16.msra.mxu0 %v608
  %859 = vmatprep.subr.bf16.mxu0 %v601
  %860 = vmatpush1.bf16.msra.mxu0 %v600
  %861 = vmatprep.subr.bf16.mxu0 %v593
  %862 = vmatpush1.bf16.msra.mxu0 %v592
  %863 = vmatprep.subr.bf16.mxu0 %v585
  %864 = vmatpush1.bf16.msra.mxu0 %v584
  %865 = vmatprep.subr.bf16.mxu0 %v577
  %866 = vmatpush1.bf16.msra.mxu0 %v576
  %867 = vmatprep.subr.bf16.mxu0 0
  %868 = vmatpush2.bf16.msra.mxu0 0
  %869 = vmatprep.subr.bf16.mxu0 0
  %870 = vmatpush2.bf16.msra.mxu0 0
  %871 = vmatprep.subr.bf16.mxu0 0
  %872 = vmatpush2.bf16.msra.mxu0 0
  %873 = vmatprep.subr.bf16.mxu0 0
  %874 = vmatpush2.bf16.msra.mxu0 0
  %875 = vmatprep.subr.bf16.mxu0 %v665
  %876 = vmatpush2.bf16.msra.mxu0 %v664
  %877 = vmatprep.subr.bf16.mxu0 %v657
  %878 = vmatpush2.bf16.msra.mxu0 %v656
  %879 = vmatprep.subr.bf16.mxu0 %v649
  %880 = vmatpush2.bf16.msra.mxu0 %v648
  %881 = vmatprep.subr.bf16.mxu0 %v641
  %882 = vmatpush2.bf16.msra.mxu0 %v640
  %883 = vmatprep.mubr.bf16.mxu0 %v767
  %884 = vmatmul.mubr.bf16.gmra.mxu0 %v134
  %v885 = vpop.f32.mrf.mxu0
  %v886 = vadd.f32 %v257, %v885
  %v887 = vpop.f32.mrf.mxu0
  %v888 = vadd.f32 %v261, %v887
  %v889 = vpop.f32.mrf.mxu0
  %v890 = vadd.f32 %v257, %v889
  %v891 = vpop.f32.mrf.mxu0
  %v892 = vadd.f32 %v261, %v891
  %893 = vmatprep.mubr.bf16.mxu0 %v770
  %894 = vmatmul.mubr.bf16.gmra.mxu0 %v138
  %v895 = vpop.f32.mrf.mxu0
  %v896 = vadd.f32 %v257, %v895
  %v897 = vpop.f32.mrf.mxu0
  %v898 = vadd.f32 %v261, %v897
  %v899 = vpop.f32.mrf.mxu0
  %v900 = vadd.f32 %v257, %v899
  %v901 = vpop.f32.mrf.mxu0
  %v902 = vadd.f32 %v261, %v901
  %903 = vmatprep.mubr.bf16.mxu0 %v773
  %904 = vmatmul.mubr.bf16.gmra.mxu0 %v142
  %v905 = vpop.f32.mrf.mxu0
  %v906 = vadd.f32 %v257, %v905
  %v907 = vpop.f32.mrf.mxu0
  %v908 = vadd.f32 %v261, %v907
  %v909 = vpop.f32.mrf.mxu0
  %v910 = vadd.f32 %v257, %v909
  %v911 = vpop.f32.mrf.mxu0
  %v912 = vadd.f32 %v261, %v911
  %913 = vmatprep.mubr.bf16.mxu0 %v776
  %914 = vmatmul.mubr.bf16.gmra.mxu0 %v146
  %v915 = vpop.f32.mrf.mxu0
  %v916 = vadd.f32 %v257, %v915
  %v917 = vpop.f32.mrf.mxu0
  %v918 = vadd.f32 %v261, %v917
  %v919 = vpop.f32.mrf.mxu0
  %v920 = vadd.f32 %v257, %v919
  %v921 = vpop.f32.mrf.mxu0
  %v922 = vadd.f32 %v261, %v921
  %923 = vdwg.mxu0
  %924 = vmatprep.subr.bf16.mxu0 %v635
  %925 = vmatpush1.bf16.msra.mxu0 %v634
  %926 = vmatprep.subr.bf16.mxu0 %v627
  %927 = vmatpush1.bf16.msra.mxu0 %v626
  %928 = vmatprep.subr.bf16.mxu0 %v619
  %929 = vmatpush1.bf16.msra.mxu0 %v618
  %930 = vmatprep.subr.bf16.mxu0 %v611
  %931 = vmatpush1.bf16.msra.mxu0 %v610
  %932 = vmatprep.subr.bf16.mxu0 %v603
  %933 = vmatpush1.bf16.msra.mxu0 %v602
  %934 = vmatprep.subr.bf16.mxu0 %v595
  %935 = vmatpush1.bf16.msra.mxu0 %v594
  %936 = vmatprep.subr.bf16.mxu0 %v587
  %937 = vmatpush1.bf16.msra.mxu0 %v586
  %938 = vmatprep.subr.bf16.mxu0 %v579
  %939 = vmatpush1.bf16.msra.mxu0 %v578
  %940 = vmatprep.subr.bf16.mxu0 0
  %941 = vmatpush2.bf16.msra.mxu0 0
  %942 = vmatprep.subr.bf16.mxu0 0
  %943 = vmatpush2.bf16.msra.mxu0 0
  %944 = vmatprep.subr.bf16.mxu0 0
  %945 = vmatpush2.bf16.msra.mxu0 0
  %946 = vmatprep.subr.bf16.mxu0 0
  %947 = vmatpush2.bf16.msra.mxu0 0
  %948 = vmatprep.subr.bf16.mxu0 %v667
  %949 = vmatpush2.bf16.msra.mxu0 %v666
  %950 = vmatprep.subr.bf16.mxu0 %v659
  %951 = vmatpush2.bf16.msra.mxu0 %v658
  %952 = vmatprep.subr.bf16.mxu0 %v651
  %953 = vmatpush2.bf16.msra.mxu0 %v650
  %954 = vmatprep.subr.bf16.mxu0 %v643
  %955 = vmatpush2.bf16.msra.mxu0 %v642
  %956 = vmatprep.mubr.bf16.mxu0 %v767
  %957 = vmatmul.mubr.bf16.gmra.mxu0 %v134
  %v958 = vpop.f32.mrf.mxu0
  %v959 = vadd.f32 %v265, %v958
  %v960 = vpop.f32.mrf.mxu0
  %v961 = vadd.f32 %v269, %v960
  %v962 = vpop.f32.mrf.mxu0
  %v963 = vadd.f32 %v265, %v962
  %v964 = vpop.f32.mrf.mxu0
  %v965 = vadd.f32 %v269, %v964
  %966 = vmatprep.mubr.bf16.mxu0 %v770
  %967 = vmatmul.mubr.bf16.gmra.mxu0 %v138
  %v968 = vpop.f32.mrf.mxu0
  %v969 = vadd.f32 %v265, %v968
  %v970 = vpop.f32.mrf.mxu0
  %v971 = vadd.f32 %v269, %v970
  %v972 = vpop.f32.mrf.mxu0
  %v973 = vadd.f32 %v265, %v972
  %v974 = vpop.f32.mrf.mxu0
  %v975 = vadd.f32 %v269, %v974
  %976 = vmatprep.mubr.bf16.mxu0 %v773
  %977 = vmatmul.mubr.bf16.gmra.mxu0 %v142
  %v978 = vpop.f32.mrf.mxu0
  %v979 = vadd.f32 %v265, %v978
  %v980 = vpop.f32.mrf.mxu0
  %v981 = vadd.f32 %v269, %v980
  %v982 = vpop.f32.mrf.mxu0
  %v983 = vadd.f32 %v265, %v982
  %v984 = vpop.f32.mrf.mxu0
  %v985 = vadd.f32 %v269, %v984
  %986 = vmatprep.mubr.bf16.mxu0 %v776
  %987 = vmatmul.mubr.bf16.gmra.mxu0 %v146
  %v988 = vpop.f32.mrf.mxu0
  %v989 = vadd.f32 %v265, %v988
  %v990 = vpop.f32.mrf.mxu0
  %v991 = vadd.f32 %v269, %v990
  %v992 = vpop.f32.mrf.mxu0
  %v993 = vadd.f32 %v265, %v992
  %v994 = vpop.f32.mrf.mxu0
  %v995 = vadd.f32 %v269, %v994
  %996 = vdwg.mxu0
  %997 = vmatprep.subr.bf16.mxu0 %v637
  %998 = vmatpush1.bf16.msra.mxu0 %v636
  %999 = vmatprep.subr.bf16.mxu0 %v629
  %1000 = vmatpush1.bf16.msra.mxu0 %v628
  %1001 = vmatprep.subr.bf16.mxu0 %v621
  %1002 = vmatpush1.bf16.msra.mxu0 %v620
  %1003 = vmatprep.subr.bf16.mxu0 %v613
  %1004 = vmatpush1.bf16.msra.mxu0 %v612
  %1005 = vmatprep.subr.bf16.mxu0 %v605
  %1006 = vmatpush1.bf16.msra.mxu0 %v604
  %1007 = vmatprep.subr.bf16.mxu0 %v597
  %1008 = vmatpush1.bf16.msra.mxu0 %v596
  %1009 = vmatprep.subr.bf16.mxu0 %v589
  %1010 = vmatpush1.bf16.msra.mxu0 %v588
  %1011 = vmatprep.subr.bf16.mxu0 %v581
  %1012 = vmatpush1.bf16.msra.mxu0 %v580
  %1013 = vmatprep.subr.bf16.mxu0 0
  %1014 = vmatpush2.bf16.msra.mxu0 0
  %1015 = vmatprep.subr.bf16.mxu0 0
  %1016 = vmatpush2.bf16.msra.mxu0 0
  %1017 = vmatprep.subr.bf16.mxu0 0
  %1018 = vmatpush2.bf16.msra.mxu0 0
  %1019 = vmatprep.subr.bf16.mxu0 0
  %1020 = vmatpush2.bf16.msra.mxu0 0
  %1021 = vmatprep.subr.bf16.mxu0 %v669
  %1022 = vmatpush2.bf16.msra.mxu0 %v668
  %1023 = vmatprep.subr.bf16.mxu0 %v661
  %1024 = vmatpush2.bf16.msra.mxu0 %v660
  %1025 = vmatprep.subr.bf16.mxu0 %v653
  %1026 = vmatpush2.bf16.msra.mxu0 %v652
  %1027 = vmatprep.subr.bf16.mxu0 %v645
  %1028 = vmatpush2.bf16.msra.mxu0 %v644
  %1029 = vmatprep.mubr.bf16.mxu0 %v767
  %1030 = vmatmul.mubr.bf16.gmra.mxu0 %v134
  %v1031 = vpop.f32.mrf.mxu0
  %v1032 = vadd.f32 %v273, %v1031
  %v1033 = vpop.f32.mrf.mxu0
  %v1034 = vadd.f32 %v277, %v1033
  %v1035 = vpop.f32.mrf.mxu0
  %v1036 = vadd.f32 %v273, %v1035
  %v1037 = vpop.f32.mrf.mxu0
  %v1038 = vadd.f32 %v277, %v1037
  %1039 = vmatprep.mubr.bf16.mxu0 %v770
  %1040 = vmatmul.mubr.bf16.gmra.mxu0 %v138
  %v1041 = vpop.f32.mrf.mxu0
  %v1042 = vadd.f32 %v273, %v1041
  %v1043 = vpop.f32.mrf.mxu0
  %v1044 = vadd.f32 %v277, %v1043
  %v1045 = vpop.f32.mrf.mxu0
  %v1046 = vadd.f32 %v273, %v1045
  %v1047 = vpop.f32.mrf.mxu0
  %v1048 = vadd.f32 %v277, %v1047
  %1049 = vmatprep.mubr.bf16.mxu0 %v773
  %1050 = vmatmul.mubr.bf16.gmra.mxu0 %v142
  %v1051 = vpop.f32.mrf.mxu0
  %v1052 = vadd.f32 %v273, %v1051
  %v1053 = vpop.f32.mrf.mxu0
  %v1054 = vadd.f32 %v277, %v1053
  %v1055 = vpop.f32.mrf.mxu0
  %v1056 = vadd.f32 %v273, %v1055
  %v1057 = vpop.f32.mrf.mxu0
  %v1058 = vadd.f32 %v277, %v1057
  %1059 = vmatprep.mubr.bf16.mxu0 %v776
  %1060 = vmatmul.mubr.bf16.gmra.mxu0 %v146
  %v1061 = vpop.f32.mrf.mxu0
  %v1062 = vadd.f32 %v273, %v1061
  %v1063 = vpop.f32.mrf.mxu0
  %v1064 = vadd.f32 %v277, %v1063
  %v1065 = vpop.f32.mrf.mxu0
  %v1066 = vadd.f32 %v273, %v1065
  %v1067 = vpop.f32.mrf.mxu0
  %v1068 = vadd.f32 %v277, %v1067
  %1069 = vdwg.mxu0
  %v1070 = vmax.f32 %v813, 0.0
  %v1071 = vmax.f32 %v815, 0.0
  %v1072 = vmax.f32 %v886, 0.0
  %v1073 = vmax.f32 %v888, 0.0
  %v1074 = vmax.f32 %v959, 0.0
  %v1075 = vmax.f32 %v961, 0.0
  %v1076 = vmax.f32 %v1032, 0.0
  %v1077 = vmax.f32 %v1034, 0.0
  %v1078 = vmax.f32 %v817, 0.0
  %v1079 = vmax.f32 %v819, 0.0
  %v1080 = vmax.f32 %v890, 0.0
  %v1081 = vmax.f32 %v892, 0.0
  %v1082 = vmax.f32 %v963, 0.0
  %v1083 = vmax.f32 %v965, 0.0
  %v1084 = vmax.f32 %v1036, 0.0
  %v1085 = vmax.f32 %v1038, 0.0
  %v1086 = vmax.f32 %v823, 0.0
  %v1087 = vmax.f32 %v825, 0.0
  %v1088 = vmax.f32 %v896, 0.0
  %v1089 = vmax.f32 %v898, 0.0
  %v1090 = vmax.f32 %v969, 0.0
  %v1091 = vmax.f32 %v971, 0.0
  %v1092 = vmax.f32 %v1042, 0.0
  %v1093 = vmax.f32 %v1044, 0.0
  %v1094 = vmax.f32 %v827, 0.0
  %v1095 = vmax.f32 %v829, 0.0
  %v1096 = vmax.f32 %v900, 0.0
  %v1097 = vmax.f32 %v902, 0.0
  %v1098 = vmax.f32 %v973, 0.0
  %v1099 = vmax.f32 %v975, 0.0
  %v1100 = vmax.f32 %v1046, 0.0
  %v1101 = vmax.f32 %v1048, 0.0
  %v1102 = vmax.f32 %v833, 0.0
  %v1103 = vmax.f32 %v835, 0.0
  %v1104 = vmax.f32 %v906, 0.0
  %v1105 = vmax.f32 %v908, 0.0
  %v1106 = vmax.f32 %v979, 0.0
  %v1107 = vmax.f32 %v981, 0.0
  %v1108 = vmax.f32 %v1052, 0.0
  %v1109 = vmax.f32 %v1054, 0.0
  %v1110 = vmax.f32 %v837, 0.0
  %v1111 = vmax.f32 %v839, 0.0
  %v1112 = vmax.f32 %v910, 0.0
  %v1113 = vmax.f32 %v912, 0.0
  %v1114 = vmax.f32 %v983, 0.0
  %v1115 = vmax.f32 %v985, 0.0
  %v1116 = vmax.f32 %v1056, 0.0
  %v1117 = vmax.f32 %v1058, 0.0
  %v1118 = vmax.f32 %v843, 0.0
  %v1119 = vmax.f32 %v845, 0.0
  %v1120 = vmax.f32 %v916, 0.0
  %v1121 = vmax.f32 %v918, 0.0
  %v1122 = vmax.f32 %v989, 0.0
  %v1123 = vmax.f32 %v991, 0.0
  %v1124 = vmax.f32 %v1062, 0.0
  %v1125 = vmax.f32 %v1064, 0.0
  %v1126 = vmax.f32 %v847, 0.0
  %v1127 = vmax.f32 %v849, 0.0
  %v1128 = vmax.f32 %v920, 0.0
  %v1129 = vmax.f32 %v922, 0.0
  %v1130 = vmax.f32 %v993, 0.0
  %v1131 = vmax.f32 %v995, 0.0
  %v1132 = vmax.f32 %v1066, 0.0
  %v1133 = vmax.f32 %v1068, 0.0
  %v1134 = vpack.c.bf16 %v1078, %v1070
  %v1135 = vpack.c.bf16 %v1079, %v1071
  %v1136 = vpack.c.bf16 %v1080, %v1072
  %v1137 = vpack.c.bf16 %v1081, %v1073
  %v1138 = vpack.c.bf16 %v1082, %v1074
  %v1139 = vpack.c.bf16 %v1083, %v1075
  %v1140 = vpack.c.bf16 %v1084, %v1076
  %v1141 = vpack.c.bf16 %v1085, %v1077
  %v1142 = vpack.c.bf16 %v1094, %v1086
  %v1143 = vpack.c.bf16 %v1095, %v1087
  %v1144 = vpack.c.bf16 %v1096, %v1088
  %v1145 = vpack.c.bf16 %v1097, %v1089
  %v1146 = vpack.c.bf16 %v1098, %v1090
  %v1147 = vpack.c.bf16 %v1099, %v1091
  %v1148 = vpack.c.bf16 %v1100, %v1092
  %v1149 = vpack.c.bf16 %v1101, %v1093
  %v1150 = vpack.c.bf16 %v1110, %v1102
  %v1151 = vpack.c.bf16 %v1111, %v1103
  %v1152 = vpack.c.bf16 %v1112, %v1104
  %v1153 = vpack.c.bf16 %v1113, %v1105
  %v1154 = vpack.c.bf16 %v1114, %v1106
  %v1155 = vpack.c.bf16 %v1115, %v1107
  %v1156 = vpack.c.bf16 %v1116, %v1108
  %v1157 = vpack.c.bf16 %v1117, %v1109
  %v1158 = vpack.c.bf16 %v1126, %v1118
  %v1159 = vpack.c.bf16 %v1127, %v1119
  %v1160 = vpack.c.bf16 %v1128, %v1120
  %v1161 = vpack.c.bf16 %v1129, %v1121
  %v1162 = vpack.c.bf16 %v1130, %v1122
  %v1163 = vpack.c.bf16 %v1131, %v1123
  %v1164 = vpack.c.bf16 %v1132, %v1124
  %v1165 = vpack.c.bf16 %v1133, %v1125
  %v1166 = vld [vmem:[%s5] sm:$0xff]
  %v1167 = vld [vmem:[%s5 + $0x8] sm:$0xff]
  %v1168 = vld [vmem:[%s5 + $0x10] sm:$0xff]
  %v1169 = vld [vmem:[%s5 + $0x18] sm:$0xff]
  %v1170 = vld [vmem:[%s5 + $0x20] sm:$0xff]
  %v1171 = vld [vmem:[%s5 + $0x28] sm:$0xff]
  %v1172 = vld [vmem:[%s5 + $0x30] sm:$0xff]
  %v1173 = vld [vmem:[%s5 + $0x38] sm:$0xff]
  %v1174 = vld [vmem:[%s5 + $0x40] sm:$0xff]
  %v1175 = vld [vmem:[%s5 + $0x48] sm:$0xff]
  %v1176 = vld [vmem:[%s5 + $0x50] sm:$0xff]
  %v1177 = vld [vmem:[%s5 + $0x58] sm:$0xff]
  %v1178 = vld [vmem:[%s5 + $0x60] sm:$0xff]
  %v1179 = vld [vmem:[%s5 + $0x68] sm:$0xff]
  %v1180 = vld [vmem:[%s5 + $0x70] sm:$0xff]
  %v1181 = vld [vmem:[%s5 + $0x78] sm:$0xff]
  %v1182 = vld [vmem:[%s5 + $0x80] sm:$0xff]
  %v1183 = vld [vmem:[%s5 + $0x88] sm:$0xff]
  %v1184 = vld [vmem:[%s5 + $0x90] sm:$0xff]
  %v1185 = vld [vmem:[%s5 + $0x98] sm:$0xff]
  %v1186 = vld [vmem:[%s5 + $0xa0] sm:$0xff]
  %v1187 = vld [vmem:[%s5 + $0xa8] sm:$0xff]
  %v1188 = vld [vmem:[%s5 + $0xb0] sm:$0xff]
  %v1189 = vld [vmem:[%s5 + $0xb8] sm:$0xff]
  %v1190 = vld [vmem:[%s5 + $0xc0] sm:$0xff]
  %v1191 = vld [vmem:[%s5 + $0xc8] sm:$0xff]
  %v1192 = vld [vmem:[%s5 + $0xd0] sm:$0xff]
  %v1193 = vld [vmem:[%s5 + $0xd8] sm:$0xff]
  %v1194 = vld [vmem:[%s5 + $0xe0] sm:$0xff]
  %v1195 = vld [vmem:[%s5 + $0xe8] sm:$0xff]
  %v1196 = vld [vmem:[%s5 + $0xf0] sm:$0xff]
  %v1197 = vld [vmem:[%s5 + $0xf8] sm:$0xff]
  %v1198 = vld [vmem:[%s5 + $0x100] sm:$0xff]
  %v1199 = vld [vmem:[%s5 + $0x108] sm:$0xff]
  %v1200 = vld [vmem:[%s5 + $0x110] sm:$0xff]
  %v1201 = vld [vmem:[%s5 + $0x118] sm:$0xff]
  %v1202 = vld [vmem:[%s5 + $0x120] sm:$0xff]
  %v1203 = vld [vmem:[%s5 + $0x128] sm:$0xff]
  %v1204 = vld [vmem:[%s5 + $0x130] sm:$0xff]
  %v1205 = vld [vmem:[%s5 + $0x138] sm:$0xff]
  %v1206 = vld [vmem:[%s5 + $0x140] sm:$0xff]
  %v1207 = vld [vmem:[%s5 + $0x148] sm:$0xff]
  %v1208 = vld [vmem:[%s5 + $0x150] sm:$0xff]
  %v1209 = vld [vmem:[%s5 + $0x158] sm:$0xff]
  %v1210 = vld [vmem:[%s5 + $0x160] sm:$0xff]
  %v1211 = vld [vmem:[%s5 + $0x168] sm:$0xff]
  %v1212 = vld [vmem:[%s5 + $0x170] sm:$0xff]
  %v1213 = vld [vmem:[%s5 + $0x178] sm:$0xff]
  %v1214 = vld [vmem:[%s5 + $0x180] sm:$0xff]
  %v1215 = vld [vmem:[%s5 + $0x188] sm:$0xff]
  %v1216 = vld [vmem:[%s5 + $0x190] sm:$0xff]
  %v1217 = vld [vmem:[%s5 + $0x198] sm:$0xff]
  %v1218 = vld [vmem:[%s5 + $0x1a0] sm:$0xff]
  %v1219 = vld [vmem:[%s5 + $0x1a8] sm:$0xff]
  %v1220 = vld [vmem:[%s5 + $0x1b0] sm:$0xff]
  %v1221 = vld [vmem:[%s5 + $0x1b8] sm:$0xff]
  %v1222 = vld [vmem:[%s5 + $0x1c0] sm:$0xff]
  %v1223 = vld [vmem:[%s5 + $0x1c8] sm:$0xff]
  %v1224 = vld [vmem:[%s5 + $0x1d0] sm:$0xff]
  %v1225 = vld [vmem:[%s5 + $0x1d8] sm:$0xff]
  %v1226 = vld [vmem:[%s5 + $0x1e0] sm:$0xff]
  %v1227 = vld [vmem:[%s5 + $0x1e8] sm:$0xff]
  %v1228 = vld [vmem:[%s5 + $0x1f0] sm:$0xff]
  %v1229 = vld [vmem:[%s5 + $0x1f8] sm:$0xff]
  %v1230 = vld [vmem:[%s5 + $0x200] sm:$0xff]
  %v1231 = vld [vmem:[%s5 + $0x208] sm:$0xff]
  %v1232 = vld [vmem:[%s5 + $0x210] sm:$0xff]
  %v1233 = vld [vmem:[%s5 + $0x218] sm:$0xff]
  %v1234 = vld [vmem:[%s5 + $0x220] sm:$0xff]
  %v1235 = vld [vmem:[%s5 + $0x228] sm:$0xff]
  %v1236 = vld [vmem:[%s5 + $0x230] sm:$0xff]
  %v1237 = vld [vmem:[%s5 + $0x238] sm:$0xff]
  %v1238 = vld [vmem:[%s5 + $0x240] sm:$0xff]
  %v1239 = vld [vmem:[%s5 + $0x248] sm:$0xff]
  %v1240 = vld [vmem:[%s5 + $0x250] sm:$0xff]
  %v1241 = vld [vmem:[%s5 + $0x258] sm:$0xff]
  %v1242 = vld [vmem:[%s5 + $0x260] sm:$0xff]
  %v1243 = vld [vmem:[%s5 + $0x268] sm:$0xff]
  %v1244 = vld [vmem:[%s5 + $0x270] sm:$0xff]
  %v1245 = vld [vmem:[%s5 + $0x278] sm:$0xff]
  %v1246 = vld [vmem:[%s5 + $0x280] sm:$0xff]
  %v1247 = vld [vmem:[%s5 + $0x288] sm:$0xff]
  %v1248 = vld [vmem:[%s5 + $0x290] sm:$0xff]
  %v1249 = vld [vmem:[%s5 + $0x298] sm:$0xff]
  %v1250 = vld [vmem:[%s5 + $0x2a0] sm:$0xff]
  %v1251 = vld [vmem:[%s5 + $0x2a8] sm:$0xff]
  %v1252 = vld [vmem:[%s5 + $0x2b0] sm:$0xff]
  %v1253 = vld [vmem:[%s5 + $0x2b8] sm:$0xff]
  %v1254 = vld [vmem:[%s5 + $0x2c0] sm:$0xff]
  %v1255 = vld [vmem:[%s5 + $0x2c8] sm:$0xff]
  %v1256 = vld [vmem:[%s5 + $0x2d0] sm:$0xff]
  %v1257 = vld [vmem:[%s5 + $0x2d8] sm:$0xff]
  %v1258 = vld [vmem:[%s5 + $0x2e0] sm:$0xff]
  %v1259 = vld [vmem:[%s5 + $0x2e8] sm:$0xff]
  %v1260 = vld [vmem:[%s5 + $0x2f0] sm:$0xff]
  %v1261 = vld [vmem:[%s5 + $0x2f8] sm:$0xff]
  %v1262 = vld [vmem:[%s5 + $0x300] sm:$0xff]
  %v1263 = vld [vmem:[%s5 + $0x308] sm:$0xff]
  %v1264 = vld [vmem:[%s5 + $0x310] sm:$0xff]
  %v1265 = vld [vmem:[%s5 + $0x318] sm:$0xff]
  %v1266 = vld [vmem:[%s5 + $0x320] sm:$0xff]
  %v1267 = vld [vmem:[%s5 + $0x328] sm:$0xff]
  %v1268 = vld [vmem:[%s5 + $0x330] sm:$0xff]
  %v1269 = vld [vmem:[%s5 + $0x338] sm:$0xff]
  %v1270 = vld [vmem:[%s5 + $0x340] sm:$0xff]
  %v1271 = vld [vmem:[%s5 + $0x348] sm:$0xff]
  %v1272 = vld [vmem:[%s5 + $0x350] sm:$0xff]
  %v1273 = vld [vmem:[%s5 + $0x358] sm:$0xff]
  %v1274 = vld [vmem:[%s5 + $0x360] sm:$0xff]
  %v1275 = vld [vmem:[%s5 + $0x368] sm:$0xff]
  %v1276 = vld [vmem:[%s5 + $0x370] sm:$0xff]
  %v1277 = vld [vmem:[%s5 + $0x378] sm:$0xff]
  %v1278 = vld [vmem:[%s5 + $0x380] sm:$0xff]
  %v1279 = vld [vmem:[%s5 + $0x388] sm:$0xff]
  %v1280 = vld [vmem:[%s5 + $0x390] sm:$0xff]
  %v1281 = vld [vmem:[%s5 + $0x398] sm:$0xff]
  %v1282 = vld [vmem:[%s5 + $0x3a0] sm:$0xff]
  %v1283 = vld [vmem:[%s5 + $0x3a8] sm:$0xff]
  %v1284 = vld [vmem:[%s5 + $0x3b0] sm:$0xff]
  %v1285 = vld [vmem:[%s5 + $0x3b8] sm:$0xff]
  %v1286 = vld [vmem:[%s5 + $0x3c0] sm:$0xff]
  %v1287 = vld [vmem:[%s5 + $0x3c8] sm:$0xff]
  %v1288 = vld [vmem:[%s5 + $0x3d0] sm:$0xff]
  %v1289 = vld [vmem:[%s5 + $0x3d8] sm:$0xff]
  %v1290 = vld [vmem:[%s5 + $0x3e0] sm:$0xff]
  %v1291 = vld [vmem:[%s5 + $0x3e8] sm:$0xff]
  %v1292 = vld [vmem:[%s5 + $0x3f0] sm:$0xff]
  %v1293 = vld [vmem:[%s5 + $0x3f8] sm:$0xff]
  %v1294 = vld [vmem:[%s6] sm:$0x3]
  %v1296 = vlaneseq
  %v1297 = vshrl.u32 %v1296, 7
  %v1298 = vsub.s32 0, %v1297
  %v1299 = vrot.slane %v1294, %v1298
  %v1300 = vlaneseq
  %v1301 = vshrl.u32 %v1300, 7
  %v1302 = vsub.s32 1, %v1301
  %v1303 = vrot.slane %v1294, %v1302
  %v1434 = vunpack.c.l.b16 %v1166
  %v1435 = vunpack.c.h.b16 %v1166
  %v1436 = vunpack.c.l.b16 %v1167
  %v1437 = vunpack.c.h.b16 %v1167
  %v1438 = vunpack.c.l.b16 %v1168
  %v1439 = vunpack.c.h.b16 %v1168
  %v1440 = vunpack.c.l.b16 %v1169
  %v1441 = vunpack.c.h.b16 %v1169
  %v1442 = vunpack.c.l.b16 %v1170
  %v1443 = vunpack.c.h.b16 %v1170
  %v1444 = vunpack.c.l.b16 %v1171
  %v1445 = vunpack.c.h.b16 %v1171
  %v1446 = vunpack.c.l.b16 %v1172
  %v1447 = vunpack.c.h.b16 %v1172
  %v1448 = vunpack.c.l.b16 %v1173
  %v1449 = vunpack.c.h.b16 %v1173
  %v1450 = vunpack.c.l.b16 %v1174
  %v1451 = vunpack.c.h.b16 %v1174
  %v1452 = vunpack.c.l.b16 %v1175
  %v1453 = vunpack.c.h.b16 %v1175
  %v1454 = vunpack.c.l.b16 %v1176
  %v1455 = vunpack.c.h.b16 %v1176
  %v1456 = vunpack.c.l.b16 %v1177
  %v1457 = vunpack.c.h.b16 %v1177
  %v1458 = vunpack.c.l.b16 %v1178
  %v1459 = vunpack.c.h.b16 %v1178
  %v1460 = vunpack.c.l.b16 %v1179
  %v1461 = vunpack.c.h.b16 %v1179
  %v1462 = vunpack.c.l.b16 %v1180
  %v1463 = vunpack.c.h.b16 %v1180
  %v1464 = vunpack.c.l.b16 %v1181
  %v1465 = vunpack.c.h.b16 %v1181
  %v1466 = vunpack.c.l.b16 %v1182
  %v1467 = vunpack.c.h.b16 %v1182
  %v1468 = vunpack.c.l.b16 %v1183
  %v1469 = vunpack.c.h.b16 %v1183
  %v1470 = vunpack.c.l.b16 %v1184
  %v1471 = vunpack.c.h.b16 %v1184
  %v1472 = vunpack.c.l.b16 %v1185
  %v1473 = vunpack.c.h.b16 %v1185
  %v1474 = vunpack.c.l.b16 %v1186
  %v1475 = vunpack.c.h.b16 %v1186
  %v1476 = vunpack.c.l.b16 %v1187
  %v1477 = vunpack.c.h.b16 %v1187
  %v1478 = vunpack.c.l.b16 %v1188
  %v1479 = vunpack.c.h.b16 %v1188
  %v1480 = vunpack.c.l.b16 %v1189
  %v1481 = vunpack.c.h.b16 %v1189
  %v1482 = vunpack.c.l.b16 %v1190
  %v1483 = vunpack.c.h.b16 %v1190
  %v1484 = vunpack.c.l.b16 %v1191
  %v1485 = vunpack.c.h.b16 %v1191
  %v1486 = vunpack.c.l.b16 %v1192
  %v1487 = vunpack.c.h.b16 %v1192
  %v1488 = vunpack.c.l.b16 %v1193
  %v1489 = vunpack.c.h.b16 %v1193
  %v1490 = vunpack.c.l.b16 %v1194
  %v1491 = vunpack.c.h.b16 %v1194
  %v1492 = vunpack.c.l.b16 %v1195
  %v1493 = vunpack.c.h.b16 %v1195
  %v1494 = vunpack.c.l.b16 %v1196
  %v1495 = vunpack.c.h.b16 %v1196
  %v1496 = vunpack.c.l.b16 %v1197
  %v1497 = vunpack.c.h.b16 %v1197
  %v1498 = vunpack.c.l.b16 %v1198
  %v1499 = vunpack.c.h.b16 %v1198
  %v1500 = vunpack.c.l.b16 %v1199
  %v1501 = vunpack.c.h.b16 %v1199
  %v1502 = vunpack.c.l.b16 %v1200
  %v1503 = vunpack.c.h.b16 %v1200
  %v1504 = vunpack.c.l.b16 %v1201
  %v1505 = vunpack.c.h.b16 %v1201
  %v1506 = vunpack.c.l.b16 %v1202
  %v1507 = vunpack.c.h.b16 %v1202
  %v1508 = vunpack.c.l.b16 %v1203
  %v1509 = vunpack.c.h.b16 %v1203
  %v1510 = vunpack.c.l.b16 %v1204
  %v1511 = vunpack.c.h.b16 %v1204
  %v1512 = vunpack.c.l.b16 %v1205
  %v1513 = vunpack.c.h.b16 %v1205
  %v1514 = vunpack.c.l.b16 %v1206
  %v1515 = vunpack.c.h.b16 %v1206
  %v1516 = vunpack.c.l.b16 %v1207
  %v1517 = vunpack.c.h.b16 %v1207
  %v1518 = vunpack.c.l.b16 %v1208
  %v1519 = vunpack.c.h.b16 %v1208
  %v1520 = vunpack.c.l.b16 %v1209
  %v1521 = vunpack.c.h.b16 %v1209
  %v1522 = vunpack.c.l.b16 %v1210
  %v1523 = vunpack.c.h.b16 %v1210
  %v1524 = vunpack.c.l.b16 %v1211
  %v1525 = vunpack.c.h.b16 %v1211
  %v1526 = vunpack.c.l.b16 %v1212
  %v1527 = vunpack.c.h.b16 %v1212
  %v1528 = vunpack.c.l.b16 %v1213
  %v1529 = vunpack.c.h.b16 %v1213
  %v1530 = vunpack.c.l.b16 %v1214
  %v1531 = vunpack.c.h.b16 %v1214
  %v1532 = vunpack.c.l.b16 %v1215
  %v1533 = vunpack.c.h.b16 %v1215
  %v1534 = vunpack.c.l.b16 %v1216
  %v1535 = vunpack.c.h.b16 %v1216
  %v1536 = vunpack.c.l.b16 %v1217
  %v1537 = vunpack.c.h.b16 %v1217
  %v1538 = vunpack.c.l.b16 %v1218
  %v1539 = vunpack.c.h.b16 %v1218
  %v1540 = vunpack.c.l.b16 %v1219
  %v1541 = vunpack.c.h.b16 %v1219
  %v1542 = vunpack.c.l.b16 %v1220
  %v1543 = vunpack.c.h.b16 %v1220
  %v1544 = vunpack.c.l.b16 %v1221
  %v1545 = vunpack.c.h.b16 %v1221
  %v1546 = vunpack.c.l.b16 %v1222
  %v1547 = vunpack.c.h.b16 %v1222
  %v1548 = vunpack.c.l.b16 %v1223
  %v1549 = vunpack.c.h.b16 %v1223
  %v1550 = vunpack.c.l.b16 %v1224
  %v1551 = vunpack.c.h.b16 %v1224
  %v1552 = vunpack.c.l.b16 %v1225
  %v1553 = vunpack.c.h.b16 %v1225
  %v1554 = vunpack.c.l.b16 %v1226
  %v1555 = vunpack.c.h.b16 %v1226
  %v1556 = vunpack.c.l.b16 %v1227
  %v1557 = vunpack.c.h.b16 %v1227
  %v1558 = vunpack.c.l.b16 %v1228
  %v1559 = vunpack.c.h.b16 %v1228
  %v1560 = vunpack.c.l.b16 %v1229
  %v1561 = vunpack.c.h.b16 %v1229
  %v1562 = vunpack.c.l.b16 %v1230
  %v1563 = vunpack.c.h.b16 %v1230
  %v1564 = vunpack.c.l.b16 %v1231
  %v1565 = vunpack.c.h.b16 %v1231
  %v1566 = vunpack.c.l.b16 %v1232
  %v1567 = vunpack.c.h.b16 %v1232
  %v1568 = vunpack.c.l.b16 %v1233
  %v1569 = vunpack.c.h.b16 %v1233
  %v1570 = vunpack.c.l.b16 %v1234
  %v1571 = vunpack.c.h.b16 %v1234
  %v1572 = vunpack.c.l.b16 %v1235
  %v1573 = vunpack.c.h.b16 %v1235
  %v1574 = vunpack.c.l.b16 %v1236
  %v1575 = vunpack.c.h.b16 %v1236
  %v1576 = vunpack.c.l.b16 %v1237
  %v1577 = vunpack.c.h.b16 %v1237
  %v1578 = vunpack.c.l.b16 %v1238
  %v1579 = vunpack.c.h.b16 %v1238
  %v1580 = vunpack.c.l.b16 %v1239
  %v1581 = vunpack.c.h.b16 %v1239
  %v1582 = vunpack.c.l.b16 %v1240
  %v1583 = vunpack.c.h.b16 %v1240
  %v1584 = vunpack.c.l.b16 %v1241
  %v1585 = vunpack.c.h.b16 %v1241
  %v1586 = vunpack.c.l.b16 %v1242
  %v1587 = vunpack.c.h.b16 %v1242
  %v1588 = vunpack.c.l.b16 %v1243
  %v1589 = vunpack.c.h.b16 %v1243
  %v1590 = vunpack.c.l.b16 %v1244
  %v1591 = vunpack.c.h.b16 %v1244
  %v1592 = vunpack.c.l.b16 %v1245
  %v1593 = vunpack.c.h.b16 %v1245
  %v1594 = vunpack.c.l.b16 %v1246
  %v1595 = vunpack.c.h.b16 %v1246
  %v1596 = vunpack.c.l.b16 %v1247
  %v1597 = vunpack.c.h.b16 %v1247
  %v1598 = vunpack.c.l.b16 %v1248
  %v1599 = vunpack.c.h.b16 %v1248
  %v1600 = vunpack.c.l.b16 %v1249
  %v1601 = vunpack.c.h.b16 %v1249
  %v1602 = vunpack.c.l.b16 %v1250
  %v1603 = vunpack.c.h.b16 %v1250
  %v1604 = vunpack.c.l.b16 %v1251
  %v1605 = vunpack.c.h.b16 %v1251
  %v1606 = vunpack.c.l.b16 %v1252
  %v1607 = vunpack.c.h.b16 %v1252
  %v1608 = vunpack.c.l.b16 %v1253
  %v1609 = vunpack.c.h.b16 %v1253
  %v1610 = vunpack.c.l.b16 %v1254
  %v1611 = vunpack.c.h.b16 %v1254
  %v1612 = vunpack.c.l.b16 %v1255
  %v1613 = vunpack.c.h.b16 %v1255
  %v1614 = vunpack.c.l.b16 %v1256
  %v1615 = vunpack.c.h.b16 %v1256
  %v1616 = vunpack.c.l.b16 %v1257
  %v1617 = vunpack.c.h.b16 %v1257
  %v1618 = vunpack.c.l.b16 %v1258
  %v1619 = vunpack.c.h.b16 %v1258
  %v1620 = vunpack.c.l.b16 %v1259
  %v1621 = vunpack.c.h.b16 %v1259
  %v1622 = vunpack.c.l.b16 %v1260
  %v1623 = vunpack.c.h.b16 %v1260
  %v1624 = vunpack.c.l.b16 %v1261
  %v1625 = vunpack.c.h.b16 %v1261
  %v1626 = vunpack.c.l.b16 %v1262
  %v1627 = vunpack.c.h.b16 %v1262
  %v1628 = vunpack.c.l.b16 %v1263
  %v1629 = vunpack.c.h.b16 %v1263
  %v1630 = vunpack.c.l.b16 %v1264
  %v1631 = vunpack.c.h.b16 %v1264
  %v1632 = vunpack.c.l.b16 %v1265
  %v1633 = vunpack.c.h.b16 %v1265
  %v1634 = vunpack.c.l.b16 %v1266
  %v1635 = vunpack.c.h.b16 %v1266
  %v1636 = vunpack.c.l.b16 %v1267
  %v1637 = vunpack.c.h.b16 %v1267
  %v1638 = vunpack.c.l.b16 %v1268
  %v1639 = vunpack.c.h.b16 %v1268
  %v1640 = vunpack.c.l.b16 %v1269
  %v1641 = vunpack.c.h.b16 %v1269
  %v1642 = vunpack.c.l.b16 %v1270
  %v1643 = vunpack.c.h.b16 %v1270
  %v1644 = vunpack.c.l.b16 %v1271
  %v1645 = vunpack.c.h.b16 %v1271
  %v1646 = vunpack.c.l.b16 %v1272
  %v1647 = vunpack.c.h.b16 %v1272
  %v1648 = vunpack.c.l.b16 %v1273
  %v1649 = vunpack.c.h.b16 %v1273
  %v1650 = vunpack.c.l.b16 %v1274
  %v1651 = vunpack.c.h.b16 %v1274
  %v1652 = vunpack.c.l.b16 %v1275
  %v1653 = vunpack.c.h.b16 %v1275
  %v1654 = vunpack.c.l.b16 %v1276
  %v1655 = vunpack.c.h.b16 %v1276
  %v1656 = vunpack.c.l.b16 %v1277
  %v1657 = vunpack.c.h.b16 %v1277
  %v1658 = vunpack.c.l.b16 %v1278
  %v1659 = vunpack.c.h.b16 %v1278
  %v1660 = vunpack.c.l.b16 %v1279
  %v1661 = vunpack.c.h.b16 %v1279
  %v1662 = vunpack.c.l.b16 %v1280
  %v1663 = vunpack.c.h.b16 %v1280
  %v1664 = vunpack.c.l.b16 %v1281
  %v1665 = vunpack.c.h.b16 %v1281
  %v1666 = vunpack.c.l.b16 %v1282
  %v1667 = vunpack.c.h.b16 %v1282
  %v1668 = vunpack.c.l.b16 %v1283
  %v1669 = vunpack.c.h.b16 %v1283
  %v1670 = vunpack.c.l.b16 %v1284
  %v1671 = vunpack.c.h.b16 %v1284
  %v1672 = vunpack.c.l.b16 %v1285
  %v1673 = vunpack.c.h.b16 %v1285
  %v1674 = vunpack.c.l.b16 %v1286
  %v1675 = vunpack.c.h.b16 %v1286
  %v1676 = vunpack.c.l.b16 %v1287
  %v1677 = vunpack.c.h.b16 %v1287
  %v1678 = vunpack.c.l.b16 %v1288
  %v1679 = vunpack.c.h.b16 %v1288
  %v1680 = vunpack.c.l.b16 %v1289
  %v1681 = vunpack.c.h.b16 %v1289
  %v1682 = vunpack.c.l.b16 %v1290
  %v1683 = vunpack.c.h.b16 %v1290
  %v1684 = vunpack.c.l.b16 %v1291
  %v1685 = vunpack.c.h.b16 %v1291
  %v1686 = vunpack.c.l.b16 %v1292
  %v1687 = vunpack.c.h.b16 %v1292
  %v1688 = vunpack.c.l.b16 %v1293
  %v1689 = vunpack.c.h.b16 %v1293
  %v1690 = vpack.c.b16 %v1436, %v1434
  %v1691 = vpack.c.b16 %v1437, %v1435
  %v1692 = vpack.c.b16 %v1440, %v1438
  %v1693 = vpack.c.b16 %v1441, %v1439
  %v1694 = vpack.c.b16 %v1444, %v1442
  %v1695 = vpack.c.b16 %v1445, %v1443
  %v1696 = vpack.c.b16 %v1448, %v1446
  %v1697 = vpack.c.b16 %v1449, %v1447
  %v1698 = vpack.c.b16 %v1452, %v1450
  %v1699 = vpack.c.b16 %v1453, %v1451
  %v1700 = vpack.c.b16 %v1456, %v1454
  %v1701 = vpack.c.b16 %v1457, %v1455
  %v1702 = vpack.c.b16 %v1460, %v1458
  %v1703 = vpack.c.b16 %v1461, %v1459
  %v1704 = vpack.c.b16 %v1464, %v1462
  %v1705 = vpack.c.b16 %v1465, %v1463
  %v1706 = vpack.c.b16 %v1468, %v1466
  %v1707 = vpack.c.b16 %v1469, %v1467
  %v1708 = vpack.c.b16 %v1472, %v1470
  %v1709 = vpack.c.b16 %v1473, %v1471
  %v1710 = vpack.c.b16 %v1476, %v1474
  %v1711 = vpack.c.b16 %v1477, %v1475
  %v1712 = vpack.c.b16 %v1480, %v1478
  %v1713 = vpack.c.b16 %v1481, %v1479
  %v1714 = vpack.c.b16 %v1484, %v1482
  %v1715 = vpack.c.b16 %v1485, %v1483
  %v1716 = vpack.c.b16 %v1488, %v1486
  %v1717 = vpack.c.b16 %v1489, %v1487
  %v1718 = vpack.c.b16 %v1492, %v1490
  %v1719 = vpack.c.b16 %v1493, %v1491
  %v1720 = vpack.c.b16 %v1496, %v1494
  %v1721 = vpack.c.b16 %v1497, %v1495
  %v1722 = vpack.c.b16 %v1500, %v1498
  %v1723 = vpack.c.b16 %v1501, %v1499
  %v1724 = vpack.c.b16 %v1504, %v1502
  %v1725 = vpack.c.b16 %v1505, %v1503
  %v1726 = vpack.c.b16 %v1508, %v1506
  %v1727 = vpack.c.b16 %v1509, %v1507
  %v1728 = vpack.c.b16 %v1512, %v1510
  %v1729 = vpack.c.b16 %v1513, %v1511
  %v1730 = vpack.c.b16 %v1516, %v1514
  %v1731 = vpack.c.b16 %v1517, %v1515
  %v1732 = vpack.c.b16 %v1520, %v1518
  %v1733 = vpack.c.b16 %v1521, %v1519
  %v1734 = vpack.c.b16 %v1524, %v1522
  %v1735 = vpack.c.b16 %v1525, %v1523
  %v1736 = vpack.c.b16 %v1528, %v1526
  %v1737 = vpack.c.b16 %v1529, %v1527
  %v1738 = vpack.c.b16 %v1532, %v1530
  %v1739 = vpack.c.b16 %v1533, %v1531
  %v1740 = vpack.c.b16 %v1536, %v1534
  %v1741 = vpack.c.b16 %v1537, %v1535
  %v1742 = vpack.c.b16 %v1540, %v1538
  %v1743 = vpack.c.b16 %v1541, %v1539
  %v1744 = vpack.c.b16 %v1544, %v1542
  %v1745 = vpack.c.b16 %v1545, %v1543
  %v1746 = vpack.c.b16 %v1548, %v1546
  %v1747 = vpack.c.b16 %v1549, %v1547
  %v1748 = vpack.c.b16 %v1552, %v1550
  %v1749 = vpack.c.b16 %v1553, %v1551
  %v1750 = vpack.c.b16 %v1556, %v1554
  %v1751 = vpack.c.b16 %v1557, %v1555
  %v1752 = vpack.c.b16 %v1560, %v1558
  %v1753 = vpack.c.b16 %v1561, %v1559
  %v1754 = vpack.c.b16 %v1564, %v1562
  %v1755 = vpack.c.b16 %v1565, %v1563
  %v1756 = vpack.c.b16 %v1568, %v1566
  %v1757 = vpack.c.b16 %v1569, %v1567
  %v1758 = vpack.c.b16 %v1572, %v1570
  %v1759 = vpack.c.b16 %v1573, %v1571
  %v1760 = vpack.c.b16 %v1576, %v1574
  %v1761 = vpack.c.b16 %v1577, %v1575
  %v1762 = vpack.c.b16 %v1580, %v1578
  %v1763 = vpack.c.b16 %v1581, %v1579
  %v1764 = vpack.c.b16 %v1584, %v1582
  %v1765 = vpack.c.b16 %v1585, %v1583
  %v1766 = vpack.c.b16 %v1588, %v1586
  %v1767 = vpack.c.b16 %v1589, %v1587
  %v1768 = vpack.c.b16 %v1592, %v1590
  %v1769 = vpack.c.b16 %v1593, %v1591
  %v1770 = vpack.c.b16 %v1596, %v1594
  %v1771 = vpack.c.b16 %v1597, %v1595
  %v1772 = vpack.c.b16 %v1600, %v1598
  %v1773 = vpack.c.b16 %v1601, %v1599
  %v1774 = vpack.c.b16 %v1604, %v1602
  %v1775 = vpack.c.b16 %v1605, %v1603
  %v1776 = vpack.c.b16 %v1608, %v1606
  %v1777 = vpack.c.b16 %v1609, %v1607
  %v1778 = vpack.c.b16 %v1612, %v1610
  %v1779 = vpack.c.b16 %v1613, %v1611
  %v1780 = vpack.c.b16 %v1616, %v1614
  %v1781 = vpack.c.b16 %v1617, %v1615
  %v1782 = vpack.c.b16 %v1620, %v1618
  %v1783 = vpack.c.b16 %v1621, %v1619
  %v1784 = vpack.c.b16 %v1624, %v1622
  %v1785 = vpack.c.b16 %v1625, %v1623
  %v1786 = vpack.c.b16 %v1628, %v1626
  %v1787 = vpack.c.b16 %v1629, %v1627
  %v1788 = vpack.c.b16 %v1632, %v1630
  %v1789 = vpack.c.b16 %v1633, %v1631
  %v1790 = vpack.c.b16 %v1636, %v1634
  %v1791 = vpack.c.b16 %v1637, %v1635
  %v1792 = vpack.c.b16 %v1640, %v1638
  %v1793 = vpack.c.b16 %v1641, %v1639
  %v1794 = vpack.c.b16 %v1644, %v1642
  %v1795 = vpack.c.b16 %v1645, %v1643
  %v1796 = vpack.c.b16 %v1648, %v1646
  %v1797 = vpack.c.b16 %v1649, %v1647
  %v1798 = vpack.c.b16 %v1652, %v1650
  %v1799 = vpack.c.b16 %v1653, %v1651
  %v1800 = vpack.c.b16 %v1656, %v1654
  %v1801 = vpack.c.b16 %v1657, %v1655
  %v1802 = vpack.c.b16 %v1660, %v1658
  %v1803 = vpack.c.b16 %v1661, %v1659
  %v1804 = vpack.c.b16 %v1664, %v1662
  %v1805 = vpack.c.b16 %v1665, %v1663
  %v1806 = vpack.c.b16 %v1668, %v1666
  %v1807 = vpack.c.b16 %v1669, %v1667
  %v1808 = vpack.c.b16 %v1672, %v1670
  %v1809 = vpack.c.b16 %v1673, %v1671
  %v1810 = vpack.c.b16 %v1676, %v1674
  %v1811 = vpack.c.b16 %v1677, %v1675
  %v1812 = vpack.c.b16 %v1680, %v1678
  %v1813 = vpack.c.b16 %v1681, %v1679
  %v1814 = vpack.c.b16 %v1684, %v1682
  %v1815 = vpack.c.b16 %v1685, %v1683
  %v1816 = vpack.c.b16 %v1688, %v1686
  %v1817 = vpack.c.b16 %v1689, %v1687
  %1946 = vmatprep.subr.bf16.mxu0 %v1705
  %1947 = vmatpush1.bf16.msra.mxu0 %v1704
  %1948 = vmatprep.subr.bf16.mxu0 %v1703
  %1949 = vmatpush1.bf16.msra.mxu0 %v1702
  %1950 = vmatprep.subr.bf16.mxu0 %v1701
  %1951 = vmatpush1.bf16.msra.mxu0 %v1700
  %1952 = vmatprep.subr.bf16.mxu0 %v1699
  %1953 = vmatpush1.bf16.msra.mxu0 %v1698
  %1954 = vmatprep.subr.bf16.mxu0 %v1697
  %1955 = vmatpush1.bf16.msra.mxu0 %v1696
  %1956 = vmatprep.subr.bf16.mxu0 %v1695
  %1957 = vmatpush1.bf16.msra.mxu0 %v1694
  %1958 = vmatprep.subr.bf16.mxu0 %v1693
  %1959 = vmatpush1.bf16.msra.mxu0 %v1692
  %1960 = vmatprep.subr.bf16.mxu0 %v1691
  %1961 = vmatpush1.bf16.msra.mxu0 %v1690
  %1962 = vmatprep.subr.bf16.mxu0 %v1721
  %1963 = vmatpush2.bf16.msra.mxu0 %v1720
  %1964 = vmatprep.subr.bf16.mxu0 %v1719
  %1965 = vmatpush2.bf16.msra.mxu0 %v1718
  %1966 = vmatprep.subr.bf16.mxu0 %v1717
  %1967 = vmatpush2.bf16.msra.mxu0 %v1716
  %1968 = vmatprep.subr.bf16.mxu0 %v1715
  %1969 = vmatpush2.bf16.msra.mxu0 %v1714
  %1970 = vmatprep.subr.bf16.mxu0 %v1713
  %1971 = vmatpush2.bf16.msra.mxu0 %v1712
  %1972 = vmatprep.subr.bf16.mxu0 %v1711
  %1973 = vmatpush2.bf16.msra.mxu0 %v1710
  %1974 = vmatprep.subr.bf16.mxu0 %v1709
  %1975 = vmatpush2.bf16.msra.mxu0 %v1708
  %1976 = vmatprep.subr.bf16.mxu0 %v1707
  %1977 = vmatpush2.bf16.msra.mxu0 %v1706
  %1978 = vmatprep.mubr.bf16.mxu0 %v1135
  %1979 = vmatmul.mubr.bf16.gmra.mxu0 %v1134
  %v1980 = vpop.f32.mrf.mxu0
  %v1981 = vadd.f32 %v1299, %v1980
  %v1982 = vpop.f32.mrf.mxu0
  %v1983 = vadd.f32 %v1303, %v1982
  %v1984 = vpop.f32.mrf.mxu0
  %v1985 = vadd.f32 %v1299, %v1984
  %v1986 = vpop.f32.mrf.mxu0
  %v1987 = vadd.f32 %v1303, %v1986
  %1988 = vmatprep.mubr.bf16.mxu0 %v1143
  %1989 = vmatmul.mubr.bf16.gmra.mxu0 %v1142
  %v1990 = vpop.f32.mrf.mxu0
  %v1991 = vadd.f32 %v1299, %v1990
  %v1992 = vpop.f32.mrf.mxu0
  %v1993 = vadd.f32 %v1303, %v1992
  %v1994 = vpop.f32.mrf.mxu0
  %v1995 = vadd.f32 %v1299, %v1994
  %v1996 = vpop.f32.mrf.mxu0
  %v1997 = vadd.f32 %v1303, %v1996
  %1998 = vmatprep.mubr.bf16.mxu0 %v1151
  %1999 = vmatmul.mubr.bf16.gmra.mxu0 %v1150
  %v2000 = vpop.f32.mrf.mxu0
  %v2001 = vadd.f32 %v1299, %v2000
  %v2002 = vpop.f32.mrf.mxu0
  %v2003 = vadd.f32 %v1303, %v2002
  %v2004 = vpop.f32.mrf.mxu0
  %v2005 = vadd.f32 %v1299, %v2004
  %v2006 = vpop.f32.mrf.mxu0
  %v2007 = vadd.f32 %v1303, %v2006
  %2008 = vmatprep.mubr.bf16.mxu0 %v1159
  %2009 = vmatmul.mubr.bf16.gmra.mxu0 %v1158
  %v2010 = vpop.f32.mrf.mxu0
  %v2011 = vadd.f32 %v1299, %v2010
  %v2012 = vpop.f32.mrf.mxu0
  %v2013 = vadd.f32 %v1303, %v2012
  %v2014 = vpop.f32.mrf.mxu0
  %v2015 = vadd.f32 %v1299, %v2014
  %v2016 = vpop.f32.mrf.mxu0
  %v2017 = vadd.f32 %v1303, %v2016
  %2018 = vdwg.mxu0
  %2019 = vmatprep.subr.bf16.mxu0 %v1737
  %2020 = vmatpush1.bf16.msra.mxu0 %v1736
  %2021 = vmatprep.subr.bf16.mxu0 %v1735
  %2022 = vmatpush1.bf16.msra.mxu0 %v1734
  %2023 = vmatprep.subr.bf16.mxu0 %v1733
  %2024 = vmatpush1.bf16.msra.mxu0 %v1732
  %2025 = vmatprep.subr.bf16.mxu0 %v1731
  %2026 = vmatpush1.bf16.msra.mxu0 %v1730
  %2027 = vmatprep.subr.bf16.mxu0 %v1729
  %2028 = vmatpush1.bf16.msra.mxu0 %v1728
  %2029 = vmatprep.subr.bf16.mxu0 %v1727
  %2030 = vmatpush1.bf16.msra.mxu0 %v1726
  %2031 = vmatprep.subr.bf16.mxu0 %v1725
  %2032 = vmatpush1.bf16.msra.mxu0 %v1724
  %2033 = vmatprep.subr.bf16.mxu0 %v1723
  %2034 = vmatpush1.bf16.msra.mxu0 %v1722
  %2035 = vmatprep.subr.bf16.mxu0 %v1753
  %2036 = vmatpush2.bf16.msra.mxu0 %v1752
  %2037 = vmatprep.subr.bf16.mxu0 %v1751
  %2038 = vmatpush2.bf16.msra.mxu0 %v1750
  %2039 = vmatprep.subr.bf16.mxu0 %v1749
  %2040 = vmatpush2.bf16.msra.mxu0 %v1748
  %2041 = vmatprep.subr.bf16.mxu0 %v1747
  %2042 = vmatpush2.bf16.msra.mxu0 %v1746
  %2043 = vmatprep.subr.bf16.mxu0 %v1745
  %2044 = vmatpush2.bf16.msra.mxu0 %v1744
  %2045 = vmatprep.subr.bf16.mxu0 %v1743
  %2046 = vmatpush2.bf16.msra.mxu0 %v1742
  %2047 = vmatprep.subr.bf16.mxu0 %v1741
  %2048 = vmatpush2.bf16.msra.mxu0 %v1740
  %2049 = vmatprep.subr.bf16.mxu0 %v1739
  %2050 = vmatpush2.bf16.msra.mxu0 %v1738
  %2051 = vmatprep.mubr.bf16.mxu0 %v1137
  %2052 = vmatmul.mubr.bf16.gmra.mxu0 %v1136
  %v2053 = vpop.f32.mrf.mxu0
  %v2054 = vadd.f32 %v1981, %v2053
  %v2055 = vpop.f32.mrf.mxu0
  %v2056 = vadd.f32 %v1983, %v2055
  %v2057 = vpop.f32.mrf.mxu0
  %v2058 = vadd.f32 %v1985, %v2057
  %v2059 = vpop.f32.mrf.mxu0
  %v2060 = vadd.f32 %v1987, %v2059
  %2061 = vmatprep.mubr.bf16.mxu0 %v1145
  %2062 = vmatmul.mubr.bf16.gmra.mxu0 %v1144
  %v2063 = vpop.f32.mrf.mxu0
  %v2064 = vadd.f32 %v1991, %v2063
  %v2065 = vpop.f32.mrf.mxu0
  %v2066 = vadd.f32 %v1993, %v2065
  %v2067 = vpop.f32.mrf.mxu0
  %v2068 = vadd.f32 %v1995, %v2067
  %v2069 = vpop.f32.mrf.mxu0
  %v2070 = vadd.f32 %v1997, %v2069
  %2071 = vmatprep.mubr.bf16.mxu0 %v1153
  %2072 = vmatmul.mubr.bf16.gmra.mxu0 %v1152
  %v2073 = vpop.f32.mrf.mxu0
  %v2074 = vadd.f32 %v2001, %v2073
  %v2075 = vpop.f32.mrf.mxu0
  %v2076 = vadd.f32 %v2003, %v2075
  %v2077 = vpop.f32.mrf.mxu0
  %v2078 = vadd.f32 %v2005, %v2077
  %v2079 = vpop.f32.mrf.mxu0
  %v2080 = vadd.f32 %v2007, %v2079
  %2081 = vmatprep.mubr.bf16.mxu0 %v1161
  %2082 = vmatmul.mubr.bf16.gmra.mxu0 %v1160
  %v2083 = vpop.f32.mrf.mxu0
  %v2084 = vadd.f32 %v2011, %v2083
  %v2085 = vpop.f32.mrf.mxu0
  %v2086 = vadd.f32 %v2013, %v2085
  %v2087 = vpop.f32.mrf.mxu0
  %v2088 = vadd.f32 %v2015, %v2087
  %v2089 = vpop.f32.mrf.mxu0
  %v2090 = vadd.f32 %v2017, %v2089
  %2091 = vdwg.mxu0
  %2092 = vmatprep.subr.bf16.mxu0 %v1769
  %2093 = vmatpush1.bf16.msra.mxu0 %v1768
  %2094 = vmatprep.subr.bf16.mxu0 %v1767
  %2095 = vmatpush1.bf16.msra.mxu0 %v1766
  %2096 = vmatprep.subr.bf16.mxu0 %v1765
  %2097 = vmatpush1.bf16.msra.mxu0 %v1764
  %2098 = vmatprep.subr.bf16.mxu0 %v1763
  %2099 = vmatpush1.bf16.msra.mxu0 %v1762
  %2100 = vmatprep.subr.bf16.mxu0 %v1761
  %2101 = vmatpush1.bf16.msra.mxu0 %v1760
  %2102 = vmatprep.subr.bf16.mxu0 %v1759
  %2103 = vmatpush1.bf16.msra.mxu0 %v1758
  %2104 = vmatprep.subr.bf16.mxu0 %v1757
  %2105 = vmatpush1.bf16.msra.mxu0 %v1756
  %2106 = vmatprep.subr.bf16.mxu0 %v1755
  %2107 = vmatpush1.bf16.msra.mxu0 %v1754
  %2108 = vmatprep.subr.bf16.mxu0 %v1785
  %2109 = vmatpush2.bf16.msra.mxu0 %v1784
  %2110 = vmatprep.subr.bf16.mxu0 %v1783
  %2111 = vmatpush2.bf16.msra.mxu0 %v1782
  %2112 = vmatprep.subr.bf16.mxu0 %v1781
  %2113 = vmatpush2.bf16.msra.mxu0 %v1780
  %2114 = vmatprep.subr.bf16.mxu0 %v1779
  %2115 = vmatpush2.bf16.msra.mxu0 %v1778
  %2116 = vmatprep.subr.bf16.mxu0 %v1777
  %2117 = vmatpush2.bf16.msra.mxu0 %v1776
  %2118 = vmatprep.subr.bf16.mxu0 %v1775
  %2119 = vmatpush2.bf16.msra.mxu0 %v1774
  %2120 = vmatprep.subr.bf16.mxu0 %v1773
  %2121 = vmatpush2.bf16.msra.mxu0 %v1772
  %2122 = vmatprep.subr.bf16.mxu0 %v1771
  %2123 = vmatpush2.bf16.msra.mxu0 %v1770
  %2124 = vmatprep.mubr.bf16.mxu0 %v1139
  %2125 = vmatmul.mubr.bf16.gmra.mxu0 %v1138
  %v2126 = vpop.f32.mrf.mxu0
  %v2127 = vadd.f32 %v2054, %v2126
  %v2128 = vpop.f32.mrf.mxu0
  %v2129 = vadd.f32 %v2056, %v2128
  %v2130 = vpop.f32.mrf.mxu0
  %v2131 = vadd.f32 %v2058, %v2130
  %v2132 = vpop.f32.mrf.mxu0
  %v2133 = vadd.f32 %v2060, %v2132
  %2134 = vmatprep.mubr.bf16.mxu0 %v1147
  %2135 = vmatmul.mubr.bf16.gmra.mxu0 %v1146
  %v2136 = vpop.f32.mrf.mxu0
  %v2137 = vadd.f32 %v2064, %v2136
  %v2138 = vpop.f32.mrf.mxu0
  %v2139 = vadd.f32 %v2066, %v2138
  %v2140 = vpop.f32.mrf.mxu0
  %v2141 = vadd.f32 %v2068, %v2140
  %v2142 = vpop.f32.mrf.mxu0
  %v2143 = vadd.f32 %v2070, %v2142
  %2144 = vmatprep.mubr.bf16.mxu0 %v1155
  %2145 = vmatmul.mubr.bf16.gmra.mxu0 %v1154
  %v2146 = vpop.f32.mrf.mxu0
  %v2147 = vadd.f32 %v2074, %v2146
  %v2148 = vpop.f32.mrf.mxu0
  %v2149 = vadd.f32 %v2076, %v2148
  %v2150 = vpop.f32.mrf.mxu0
  %v2151 = vadd.f32 %v2078, %v2150
  %v2152 = vpop.f32.mrf.mxu0
  %v2153 = vadd.f32 %v2080, %v2152
  %2154 = vmatprep.mubr.bf16.mxu0 %v1163
  %2155 = vmatmul.mubr.bf16.gmra.mxu0 %v1162
  %v2156 = vpop.f32.mrf.mxu0
  %v2157 = vadd.f32 %v2084, %v2156
  %v2158 = vpop.f32.mrf.mxu0
  %v2159 = vadd.f32 %v2086, %v2158
  %v2160 = vpop.f32.mrf.mxu0
  %v2161 = vadd.f32 %v2088, %v2160
  %v2162 = vpop.f32.mrf.mxu0
  %v2163 = vadd.f32 %v2090, %v2162
  %2164 = vdwg.mxu0
  %2165 = vmatprep.subr.bf16.mxu0 %v1801
  %2166 = vmatpush1.bf16.msra.mxu0 %v1800
  %2167 = vmatprep.subr.bf16.mxu0 %v1799
  %2168 = vmatpush1.bf16.msra.mxu0 %v1798
  %2169 = vmatprep.subr.bf16.mxu0 %v1797
  %2170 = vmatpush1.bf16.msra.mxu0 %v1796
  %2171 = vmatprep.subr.bf16.mxu0 %v1795
  %2172 = vmatpush1.bf16.msra.mxu0 %v1794
  %2173 = vmatprep.subr.bf16.mxu0 %v1793
  %2174 = vmatpush1.bf16.msra.mxu0 %v1792
  %2175 = vmatprep.subr.bf16.mxu0 %v1791
  %2176 = vmatpush1.bf16.msra.mxu0 %v1790
  %2177 = vmatprep.subr.bf16.mxu0 %v1789
  %2178 = vmatpush1.bf16.msra.mxu0 %v1788
  %2179 = vmatprep.subr.bf16.mxu0 %v1787
  %2180 = vmatpush1.bf16.msra.mxu0 %v1786
  %2181 = vmatprep.subr.bf16.mxu0 %v1817
  %2182 = vmatpush2.bf16.msra.mxu0 %v1816
  %2183 = vmatprep.subr.bf16.mxu0 %v1815
  %2184 = vmatpush2.bf16.msra.mxu0 %v1814
  %2185 = vmatprep.subr.bf16.mxu0 %v1813
  %2186 = vmatpush2.bf16.msra.mxu0 %v1812
  %2187 = vmatprep.subr.bf16.mxu0 %v1811
  %2188 = vmatpush2.bf16.msra.mxu0 %v1810
  %2189 = vmatprep.subr.bf16.mxu0 %v1809
  %2190 = vmatpush2.bf16.msra.mxu0 %v1808
  %2191 = vmatprep.subr.bf16.mxu0 %v1807
  %2192 = vmatpush2.bf16.msra.mxu0 %v1806
  %2193 = vmatprep.subr.bf16.mxu0 %v1805
  %2194 = vmatpush2.bf16.msra.mxu0 %v1804
  %2195 = vmatprep.subr.bf16.mxu0 %v1803
  %2196 = vmatpush2.bf16.msra.mxu0 %v1802
  %2197 = vmatprep.mubr.bf16.mxu0 %v1141
  %2198 = vmatmul.mubr.bf16.gmra.mxu0 %v1140
  %v2199 = vpop.f32.mrf.mxu0
  %v2200 = vadd.f32 %v2127, %v2199
  %v2201 = vpop.f32.mrf.mxu0
  %v2202 = vadd.f32 %v2129, %v2201
  %v2203 = vpop.f32.mrf.mxu0
  %v2204 = vadd.f32 %v2131, %v2203
  %v2205 = vpop.f32.mrf.mxu0
  %v2206 = vadd.f32 %v2133, %v2205
  %2207 = vmatprep.mubr.bf16.mxu0 %v1149
  %2208 = vmatmul.mubr.bf16.gmra.mxu0 %v1148
  %v2209 = vpop.f32.mrf.mxu0
  %v2210 = vadd.f32 %v2137, %v2209
  %v2211 = vpop.f32.mrf.mxu0
  %v2212 = vadd.f32 %v2139, %v2211
  %v2213 = vpop.f32.mrf.mxu0
  %v2214 = vadd.f32 %v2141, %v2213
  %v2215 = vpop.f32.mrf.mxu0
  %v2216 = vadd.f32 %v2143, %v2215
  %2217 = vmatprep.mubr.bf16.mxu0 %v1157
  %2218 = vmatmul.mubr.bf16.gmra.mxu0 %v1156
  %v2219 = vpop.f32.mrf.mxu0
  %v2220 = vadd.f32 %v2147, %v2219
  %v2221 = vpop.f32.mrf.mxu0
  %v2222 = vadd.f32 %v2149, %v2221
  %v2223 = vpop.f32.mrf.mxu0
  %v2224 = vadd.f32 %v2151, %v2223
  %v2225 = vpop.f32.mrf.mxu0
  %v2226 = vadd.f32 %v2153, %v2225
  %2227 = vmatprep.mubr.bf16.mxu0 %v1165
  %2228 = vmatmul.mubr.bf16.gmra.mxu0 %v1164
  %v2229 = vpop.f32.mrf.mxu0
  %v2230 = vadd.f32 %v2157, %v2229
  %v2231 = vpop.f32.mrf.mxu0
  %v2232 = vadd.f32 %v2159, %v2231
  %v2233 = vpop.f32.mrf.mxu0
  %v2234 = vadd.f32 %v2161, %v2233
  %v2235 = vpop.f32.mrf.mxu0
  %v2236 = vadd.f32 %v2163, %v2235
  %2237 = vdwg.mxu0
  %v2238 = vmax.f32 %v2200, 0.0
  %v2239 = vmax.f32 %v2202, 0.0
  %v2240 = vmax.f32 %v2204, 0.0
  %v2241 = vmax.f32 %v2206, 0.0
  %v2242 = vmax.f32 %v2210, 0.0
  %v2243 = vmax.f32 %v2212, 0.0
  %v2244 = vmax.f32 %v2214, 0.0
  %v2245 = vmax.f32 %v2216, 0.0
  %v2246 = vmax.f32 %v2220, 0.0
  %v2247 = vmax.f32 %v2222, 0.0
  %v2248 = vmax.f32 %v2224, 0.0
  %v2249 = vmax.f32 %v2226, 0.0
  %v2250 = vmax.f32 %v2230, 0.0
  %v2251 = vmax.f32 %v2232, 0.0
  %v2252 = vmax.f32 %v2234, 0.0
  %v2253 = vmax.f32 %v2236, 0.0
  %v2254 = vpack.c.bf16 %v2240, %v2238
  %v2255 = vpack.c.bf16 %v2241, %v2239
  %v2256 = vpack.c.bf16 %v2244, %v2242
  %v2257 = vpack.c.bf16 %v2245, %v2243
  %v2258 = vpack.c.bf16 %v2248, %v2246
  %v2259 = vpack.c.bf16 %v2249, %v2247
  %v2260 = vpack.c.bf16 %v2252, %v2250
  %v2261 = vpack.c.bf16 %v2253, %v2251
  %v2262 = vld [vmem:[%s7] sm:$0xf]
  %v2263 = vld [vmem:[%s7 + $0x4] sm:$0xf]
  %v2264 = vld [vmem:[%s7 + $0x8] sm:$0xf]
  %v2265 = vld [vmem:[%s7 + $0xc] sm:$0xf]
  %v2266 = vld [vmem:[%s7 + $0x10] sm:$0xf]
  %v2267 = vld [vmem:[%s7 + $0x14] sm:$0xf]
  %v2268 = vld [vmem:[%s7 + $0x18] sm:$0xf]
  %v2269 = vld [vmem:[%s7 + $0x1c] sm:$0xf]
  %v2270 = vld [vmem:[%s7 + $0x20] sm:$0xf]
  %v2271 = vld [vmem:[%s7 + $0x24] sm:$0xf]
  %v2272 = vld [vmem:[%s7 + $0x28] sm:$0xf]
  %v2273 = vld [vmem:[%s7 + $0x2c] sm:$0xf]
  %v2274 = vld [vmem:[%s7 + $0x30] sm:$0xf]
  %v2275 = vld [vmem:[%s7 + $0x34] sm:$0xf]
  %v2276 = vld [vmem:[%s7 + $0x38] sm:$0xf]
  %v2277 = vld [vmem:[%s7 + $0x3c] sm:$0xf]
  %v2278 = vld [vmem:[%s7 + $0x40] sm:$0xf]
  %v2279 = vld [vmem:[%s7 + $0x44] sm:$0xf]
  %v2280 = vld [vmem:[%s7 + $0x48] sm:$0xf]
  %v2281 = vld [vmem:[%s7 + $0x4c] sm:$0xf]
  %v2282 = vld [vmem:[%s7 + $0x50] sm:$0xf]
  %v2283 = vld [vmem:[%s7 + $0x54] sm:$0xf]
  %v2284 = vld [vmem:[%s7 + $0x58] sm:$0xf]
  %v2285 = vld [vmem:[%s7 + $0x5c] sm:$0xf]
  %v2286 = vld [vmem:[%s7 + $0x60] sm:$0xf]
  %v2287 = vld [vmem:[%s7 + $0x64] sm:$0xf]
  %v2288 = vld [vmem:[%s7 + $0x68] sm:$0xf]
  %v2289 = vld [vmem:[%s7 + $0x6c] sm:$0xf]
  %v2290 = vld [vmem:[%s7 + $0x70] sm:$0xf]
  %v2291 = vld [vmem:[%s7 + $0x74] sm:$0xf]
  %v2292 = vld [vmem:[%s7 + $0x78] sm:$0xf]
  %v2293 = vld [vmem:[%s7 + $0x7c] sm:$0xf]
  %v2294 = vld [vmem:[%s8] sm:$0x1]
  %v2296 = vlaneseq
  %v2297 = vshrl.u32 %v2296, 7
  %v2298 = vsub.s32 0, %v2297
  %v2299 = vrot.slane %v2294, %v2298
  %v2333 = vunpack.c.l.b16 %v2262
  %v2334 = vunpack.c.l.b16 %v2263
  %v2335 = vunpack.c.l.b16 %v2264
  %v2336 = vunpack.c.l.b16 %v2265
  %v2337 = vunpack.c.l.b16 %v2266
  %v2338 = vunpack.c.l.b16 %v2267
  %v2339 = vunpack.c.l.b16 %v2268
  %v2340 = vunpack.c.l.b16 %v2269
  %v2341 = vunpack.c.l.b16 %v2270
  %v2342 = vunpack.c.l.b16 %v2271
  %v2343 = vunpack.c.l.b16 %v2272
  %v2344 = vunpack.c.l.b16 %v2273
  %v2345 = vunpack.c.l.b16 %v2274
  %v2346 = vunpack.c.l.b16 %v2275
  %v2347 = vunpack.c.l.b16 %v2276
  %v2348 = vunpack.c.l.b16 %v2277
  %v2349 = vunpack.c.l.b16 %v2278
  %v2350 = vunpack.c.l.b16 %v2279
  %v2351 = vunpack.c.l.b16 %v2280
  %v2352 = vunpack.c.l.b16 %v2281
  %v2353 = vunpack.c.l.b16 %v2282
  %v2354 = vunpack.c.l.b16 %v2283
  %v2355 = vunpack.c.l.b16 %v2284
  %v2356 = vunpack.c.l.b16 %v2285
  %v2357 = vunpack.c.l.b16 %v2286
  %v2358 = vunpack.c.l.b16 %v2287
  %v2359 = vunpack.c.l.b16 %v2288
  %v2360 = vunpack.c.l.b16 %v2289
  %v2361 = vunpack.c.l.b16 %v2290
  %v2362 = vunpack.c.l.b16 %v2291
  %v2363 = vunpack.c.l.b16 %v2292
  %v2364 = vunpack.c.l.b16 %v2293
  %v2365 = vpack.c.b16 %v2334, %v2333
  %v2366 = vpack.c.b16 %v2336, %v2335
  %v2367 = vpack.c.b16 %v2338, %v2337
  %v2368 = vpack.c.b16 %v2340, %v2339
  %v2369 = vpack.c.b16 %v2342, %v2341
  %v2370 = vpack.c.b16 %v2344, %v2343
  %v2371 = vpack.c.b16 %v2346, %v2345
  %v2372 = vpack.c.b16 %v2348, %v2347
  %v2373 = vpack.c.b16 %v2350, %v2349
  %v2374 = vpack.c.b16 %v2352, %v2351
  %v2375 = vpack.c.b16 %v2354, %v2353
  %v2376 = vpack.c.b16 %v2356, %v2355
  %v2377 = vpack.c.b16 %v2358, %v2357
  %v2378 = vpack.c.b16 %v2360, %v2359
  %v2379 = vpack.c.b16 %v2362, %v2361
  %v2380 = vpack.c.b16 %v2364, %v2363
  %2397 = vmatprep.subr.bf16.mxu0 0
  %2398 = vmatpush1.bf16.msra.mxu0 %v2372
  %2399 = vmatprep.subr.bf16.mxu0 0
  %2400 = vmatpush1.bf16.msra.mxu0 %v2371
  %2401 = vmatprep.subr.bf16.mxu0 0
  %2402 = vmatpush1.bf16.msra.mxu0 %v2370
  %2403 = vmatprep.subr.bf16.mxu0 0
  %2404 = vmatpush1.bf16.msra.mxu0 %v2369
  %2405 = vmatprep.subr.bf16.mxu0 0
  %2406 = vmatpush1.bf16.msra.mxu0 %v2368
  %2407 = vmatprep.subr.bf16.mxu0 0
  %2408 = vmatpush1.bf16.msra.mxu0 %v2367
  %2409 = vmatprep.subr.bf16.mxu0 0
  %2410 = vmatpush1.bf16.msra.mxu0 %v2366
  %2411 = vmatprep.subr.bf16.mxu0 0
  %2412 = vmatpush1.bf16.msra.mxu0 %v2365
  %2413 = vmatprep.subr.bf16.mxu0 0
  %2414 = vmatpush2.bf16.msra.mxu0 %v2380
  %2415 = vmatprep.subr.bf16.mxu0 0
  %2416 = vmatpush2.bf16.msra.mxu0 %v2379
  %2417 = vmatprep.subr.bf16.mxu0 0
  %2418 = vmatpush2.bf16.msra.mxu0 %v2378
  %2419 = vmatprep.subr.bf16.mxu0 0
  %2420 = vmatpush2.bf16.msra.mxu0 %v2377
  %2421 = vmatprep.subr.bf16.mxu0 0
  %2422 = vmatpush2.bf16.msra.mxu0 %v2376
  %2423 = vmatprep.subr.bf16.mxu0 0
  %2424 = vmatpush2.bf16.msra.mxu0 %v2375
  %2425 = vmatprep.subr.bf16.mxu0 0
  %2426 = vmatpush2.bf16.msra.mxu0 %v2374
  %2427 = vmatprep.subr.bf16.mxu0 0
  %2428 = vmatpush2.bf16.msra.mxu0 %v2373
  %2429 = vmatprep.mubr.bf16.mxu0 %v2255
  %2430 = vmatmul.mubr.bf16.gmra.mxu0 %v2254
  %v2431 = vpop.f32.mrf.mxu0
  %v2432 = vadd.f32 %v2299, %v2431
  %v2433 = vpop.f32.mrf.mxu0
  %v2434 = vpop.f32.mrf.mxu0
  %v2435 = vadd.f32 %v2299, %v2434
  %v2436 = vpop.f32.mrf.mxu0
  %2437 = vmatprep.mubr.bf16.mxu0 %v2257
  %2438 = vmatmul.mubr.bf16.gmra.mxu0 %v2256
  %v2439 = vpop.f32.mrf.mxu0
  %v2440 = vadd.f32 %v2299, %v2439
  %v2441 = vpop.f32.mrf.mxu0
  %v2442 = vpop.f32.mrf.mxu0
  %v2443 = vadd.f32 %v2299, %v2442
  %v2444 = vpop.f32.mrf.mxu0
  %2445 = vmatprep.mubr.bf16.mxu0 %v2259
  %2446 = vmatmul.mubr.bf16.gmra.mxu0 %v2258
  %v2447 = vpop.f32.mrf.mxu0
  %v2448 = vadd.f32 %v2299, %v2447
  %v2449 = vpop.f32.mrf.mxu0
  %v2450 = vpop.f32.mrf.mxu0
  %v2451 = vadd.f32 %v2299, %v2450
  %v2452 = vpop.f32.mrf.mxu0
  %2453 = vmatprep.mubr.bf16.mxu0 %v2261
  %2454 = vmatmul.mubr.bf16.gmra.mxu0 %v2260
  %v2455 = vpop.f32.mrf.mxu0
  %v2456 = vadd.f32 %v2299, %v2455
  %v2457 = vpop.f32.mrf.mxu0
  %v2458 = vpop.f32.mrf.mxu0
  %v2459 = vadd.f32 %v2299, %v2458
  %v2460 = vpop.f32.mrf.mxu0
  %2461 = vdwg.mxu0
  %v2462 = vmax.f32 %v2432, 0.0
  %v2463 = vmax.f32 %v2435, 0.0
  %v2464 = vmax.f32 %v2440, 0.0
  %v2465 = vmax.f32 %v2443, 0.0
  %v2466 = vmax.f32 %v2448, 0.0
  %v2467 = vmax.f32 %v2451, 0.0
  %v2468 = vmax.f32 %v2456, 0.0
  %v2469 = vmax.f32 %v2459, 0.0
  %v2470 = vpack.c.bf16 %v2463, %v2462
  %v2471 = vpack.c.bf16 %v2465, %v2464
  %v2472 = vpack.c.bf16 %v2467, %v2466
  %v2473 = vpack.c.bf16 %v2469, %v2468
  %v2474 = vld [vmem:[%s9] sm:$0xf]
  %v2475 = vld [vmem:[%s9 + $0x4] sm:$0xf]
  %v2476 = vld [vmem:[%s9 + $0x8] sm:$0xf]
  %v2477 = vld [vmem:[%s9 + $0xc] sm:$0xf]
  %v2478 = vld [vmem:[%s9 + $0x10] sm:$0xf]
  %v2479 = vld [vmem:[%s9 + $0x14] sm:$0xf]
  %v2480 = vld [vmem:[%s9 + $0x18] sm:$0xf]
  %v2481 = vld [vmem:[%s9 + $0x1c] sm:$0xf]
  %v2482 = vld [vmem:[%s9 + $0x20] sm:$0xf]
  %v2483 = vld [vmem:[%s9 + $0x24] sm:$0xf]
  %v2484 = vld [vmem:[%s9 + $0x28] sm:$0xf]
  %v2485 = vld [vmem:[%s9 + $0x2c] sm:$0xf]
  %v2486 = vld [vmem:[%s9 + $0x30] sm:$0xf]
  %v2487 = vld [vmem:[%s9 + $0x34] sm:$0xf]
  %v2488 = vld [vmem:[%s9 + $0x38] sm:$0xf]
  %v2489 = vld [vmem:[%s9 + $0x3c] sm:$0xf]
  %v2490 = vld [vmem:[%s10] sm:$0x1]
  %v2492 = vlaneseq
  %v2493 = vshrl.u32 %v2492, 7
  %v2494 = vsub.s32 0, %v2493
  %v2495 = vrot.slane %v2490, %v2494
  %v2513 = vunpack.c.l.b16 %v2474
  %v2514 = vunpack.c.l.b16 %v2475
  %v2515 = vunpack.c.l.b16 %v2476
  %v2516 = vunpack.c.l.b16 %v2477
  %v2517 = vunpack.c.l.b16 %v2478
  %v2518 = vunpack.c.l.b16 %v2479
  %v2519 = vunpack.c.l.b16 %v2480
  %v2520 = vunpack.c.l.b16 %v2481
  %v2521 = vunpack.c.l.b16 %v2482
  %v2522 = vunpack.c.l.b16 %v2483
  %v2523 = vunpack.c.l.b16 %v2484
  %v2524 = vunpack.c.l.b16 %v2485
  %v2525 = vunpack.c.l.b16 %v2486
  %v2526 = vunpack.c.l.b16 %v2487
  %v2527 = vunpack.c.l.b16 %v2488
  %v2528 = vunpack.c.l.b16 %v2489
  %v2529 = vpack.c.b16 %v2514, %v2513
  %v2530 = vpack.c.b16 %v2516, %v2515
  %v2531 = vpack.c.b16 %v2518, %v2517
  %v2532 = vpack.c.b16 %v2520, %v2519
  %v2533 = vpack.c.b16 %v2522, %v2521
  %v2534 = vpack.c.b16 %v2524, %v2523
  %v2535 = vpack.c.b16 %v2526, %v2525
  %v2536 = vpack.c.b16 %v2528, %v2527
  %2545 = vmatprep.subr.bf16.mxu0 0
  %2546 = vmatpush1.bf16.msra.mxu0 %v2536
  %2547 = vmatprep.subr.bf16.mxu0 0
  %2548 = vmatpush1.bf16.msra.mxu0 %v2535
  %2549 = vmatprep.subr.bf16.mxu0 0
  %2550 = vmatpush1.bf16.msra.mxu0 %v2534
  %2551 = vmatprep.subr.bf16.mxu0 0
  %2552 = vmatpush1.bf16.msra.mxu0 %v2533
  %2553 = vmatprep.subr.bf16.mxu0 0
  %2554 = vmatpush1.bf16.msra.mxu0 %v2532
  %2555 = vmatprep.subr.bf16.mxu0 0
  %2556 = vmatpush1.bf16.msra.mxu0 %v2531
  %2557 = vmatprep.subr.bf16.mxu0 0
  %2558 = vmatpush1.bf16.msra.mxu0 %v2530
  %2559 = vmatprep.subr.bf16.mxu0 0
  %2560 = vmatpush1.bf16.msra.mxu0 %v2529
  %2561 = vmatprep.subr.bf16.mxu0 0
  %2562 = vmatpush2.bf16.msra.mxu0 0
  %2563 = vmatprep.subr.bf16.mxu0 0
  %2564 = vmatpush2.bf16.msra.mxu0 0
  %2565 = vmatprep.subr.bf16.mxu0 0
  %2566 = vmatpush2.bf16.msra.mxu0 0
  %2567 = vmatprep.subr.bf16.mxu0 0
  %2568 = vmatpush2.bf16.msra.mxu0 0
  %2569 = vmatprep.subr.bf16.mxu0 0
  %2570 = vmatpush2.bf16.msra.mxu0 0
  %2571 = vmatprep.subr.bf16.mxu0 0
  %2572 = vmatpush2.bf16.msra.mxu0 0
  %2573 = vmatprep.subr.bf16.mxu0 0
  %2574 = vmatpush2.bf16.msra.mxu0 0
  %2575 = vmatprep.subr.bf16.mxu0 0
  %2576 = vmatpush2.bf16.msra.mxu0 0
  %2577 = vmatprep.mubr.bf16.mxu0 0
  %2578 = vmatmul.mubr.bf16.gmra.mxu0 %v2470
  %v2579 = vpop.f32.mrf.mxu0
  %v2580 = vadd.f32 %v2495, %v2579
  %v2581 = vpop.f32.mrf.mxu0
  %v2582 = vpop.f32.mrf.mxu0
  %v2583 = vadd.f32 %v2495, %v2582
  %v2584 = vpop.f32.mrf.mxu0
  %2585 = vmatprep.mubr.bf16.mxu0 0
  %2586 = vmatmul.mubr.bf16.gmra.mxu0 %v2471
  %v2587 = vpop.f32.mrf.mxu0
  %v2588 = vadd.f32 %v2495, %v2587
  %v2589 = vpop.f32.mrf.mxu0
  %v2590 = vpop.f32.mrf.mxu0
  %v2591 = vadd.f32 %v2495, %v2590
  %v2592 = vpop.f32.mrf.mxu0
  %2593 = vmatprep.mubr.bf16.mxu0 0
  %2594 = vmatmul.mubr.bf16.gmra.mxu0 %v2472
  %v2595 = vpop.f32.mrf.mxu0
  %v2596 = vadd.f32 %v2495, %v2595
  %v2597 = vpop.f32.mrf.mxu0
  %v2598 = vpop.f32.mrf.mxu0
  %v2599 = vadd.f32 %v2495, %v2598
  %v2600 = vpop.f32.mrf.mxu0
  %2601 = vmatprep.mubr.bf16.mxu0 0
  %2602 = vmatmul.mubr.bf16.gmra.mxu0 %v2473
  %v2603 = vpop.f32.mrf.mxu0
  %v2604 = vadd.f32 %v2495, %v2603
  %v2605 = vpop.f32.mrf.mxu0
  %v2606 = vpop.f32.mrf.mxu0
  %v2607 = vadd.f32 %v2495, %v2606
  %v2608 = vpop.f32.mrf.mxu0
  %2609 = vdwg.mxu0
  %vm2610 = vcmask 64512
  %v2611 = vsel %vm2610, %v2580, -inf
  %2612 = vmax.xlane.f32.xlu0 %v2611
  %v2613 = vpop.xlane.xlu0 %2612
  %v2614 = vsel %vm2610, %v2583, -inf
  %2615 = vmax.xlane.f32.xlu0 %v2614
  %v2616 = vpop.xlane.xlu0 %2615
  %v2617 = vsel %vm2610, %v2588, -inf
  %2618 = vmax.xlane.f32.xlu0 %v2617
  %v2619 = vpop.xlane.xlu0 %2618
  %v2620 = vsel %vm2610, %v2591, -inf
  %2621 = vmax.xlane.f32.xlu0 %v2620
  %v2622 = vpop.xlane.xlu0 %2621
  %v2623 = vsel %vm2610, %v2596, -inf
  %2624 = vmax.xlane.f32.xlu0 %v2623
  %v2625 = vpop.xlane.xlu0 %2624
  %v2626 = vsel %vm2610, %v2599, -inf
  %2627 = vmax.xlane.f32.xlu0 %v2626
  %v2628 = vpop.xlane.xlu0 %2627
  %v2629 = vsel %vm2610, %v2604, -inf
  %2630 = vmax.xlane.f32.xlu0 %v2629
  %v2631 = vpop.xlane.xlu0 %2630
  %v2632 = vsel %vm2610, %v2607, -inf
  %2633 = vmax.xlane.f32.xlu0 %v2632
  %v2634 = vpop.xlane.xlu0 %2633
  %v2635 = vsub.f32 %v2580, %v2613
  %v2636 = vsub.f32 %v2583, %v2616
  %v2637 = vsub.f32 %v2588, %v2619
  %v2638 = vsub.f32 %v2591, %v2622
  %v2639 = vsub.f32 %v2596, %v2625
  %v2640 = vsub.f32 %v2599, %v2628
  %v2641 = vsub.f32 %v2604, %v2631
  %v2642 = vsub.f32 %v2607, %v2634
  %v2643 = vmul.f32 %v2635, 1.442695
  %v2644 = vpow.pop %v2643
  %v2645 = vmul.f32 %v2636, 1.442695
  %v2646 = vpow.pop %v2645
  %v2647 = vmul.f32 %v2637, 1.442695
  %v2648 = vpow.pop %v2647
  %v2649 = vmul.f32 %v2638, 1.442695
  %v2650 = vpow.pop %v2649
  %v2651 = vmul.f32 %v2639, 1.442695
  %v2652 = vpow.pop %v2651
  %v2653 = vmul.f32 %v2640, 1.442695
  %v2654 = vpow.pop %v2653
  %v2655 = vmul.f32 %v2641, 1.442695
  %v2656 = vpow.pop %v2655
  %v2657 = vmul.f32 %v2642, 1.442695
  %v2658 = vpow.pop %v2657
  %v2659 = vsel %vm2610, %v2644, 0.0
  %2660 = vadd.xlane.f32.xlu0 %v2659
  %v2661 = vpop.xlane.xlu0 %2660
  %v2662 = vsel %vm2610, %v2646, 0.0
  %2663 = vadd.xlane.f32.xlu0 %v2662
  %v2664 = vpop.xlane.xlu0 %2663
  %v2665 = vsel %vm2610, %v2648, 0.0
  %2666 = vadd.xlane.f32.xlu0 %v2665
  %v2667 = vpop.xlane.xlu0 %2666
  %v2668 = vsel %vm2610, %v2650, 0.0
  %2669 = vadd.xlane.f32.xlu0 %v2668
  %v2670 = vpop.xlane.xlu0 %2669
  %v2671 = vsel %vm2610, %v2652, 0.0
  %2672 = vadd.xlane.f32.xlu0 %v2671
  %v2673 = vpop.xlane.xlu0 %2672
  %v2674 = vsel %vm2610, %v2654, 0.0
  %2675 = vadd.xlane.f32.xlu0 %v2674
  %v2676 = vpop.xlane.xlu0 %2675
  %v2677 = vsel %vm2610, %v2656, 0.0
  %2678 = vadd.xlane.f32.xlu0 %v2677
  %v2679 = vpop.xlane.xlu0 %2678
  %v2680 = vsel %vm2610, %v2658, 0.0
  %2681 = vadd.xlane.f32.xlu0 %v2680
  %v2682 = vpop.xlane.xlu0 %2681
  %v2683 = vlog2.pop %v2661
  %v2684 = vmul.f32 %v2683, 0.6931472
  %v2685 = vlog2.pop %v2664
  %v2686 = vmul.f32 %v2685, 0.6931472
  %v2687 = vlog2.pop %v2667
  %v2688 = vmul.f32 %v2687, 0.6931472
  %v2689 = vlog2.pop %v2670
  %v2690 = vmul.f32 %v2689, 0.6931472
  %v2691 = vlog2.pop %v2673
  %v2692 = vmul.f32 %v2691, 0.6931472
  %v2693 = vlog2.pop %v2676
  %v2694 = vmul.f32 %v2693, 0.6931472
  %v2695 = vlog2.pop %v2679
  %v2696 = vmul.f32 %v2695, 0.6931472
  %v2697 = vlog2.pop %v2682
  %v2698 = vmul.f32 %v2697, 0.6931472
  %v2699 = vadd.f32 %v2684, %v2613
  %v2700 = vadd.f32 %v2686, %v2616
  %v2701 = vadd.f32 %v2688, %v2619
  %v2702 = vadd.f32 %v2690, %v2622
  %v2703 = vadd.f32 %v2692, %v2625
  %v2704 = vadd.f32 %v2694, %v2628
  %v2705 = vadd.f32 %v2696, %v2631
  %v2706 = vadd.f32 %v2698, %v2634
  %v2707 = vsub.f32 %v2580, %v2699
  %v2708 = vsub.f32 %v2583, %v2700
  %v2709 = vsub.f32 %v2588, %v2701
  %v2710 = vsub.f32 %v2591, %v2702
  %v2711 = vsub.f32 %v2596, %v2703
  %v2712 = vsub.f32 %v2599, %v2704
  %v2713 = vsub.f32 %v2604, %v2705
  %v2714 = vsub.f32 %v2607, %v2706
  %2715 = vst.msk [vmem:[%s11] sm:$0xff] %vm2610, %v2707
  %2716 = vst.msk [vmem:[%s11 + $0x8] sm:$0xff] %vm2610, %v2708
  %2717 = vst.msk [vmem:[%s11 + $0x10] sm:$0xff] %vm2610, %v2709
  %2718 = vst.msk [vmem:[%s11 + $0x18] sm:$0xff] %vm2610, %v2710
  %2719 = vst.msk [vmem:[%s11 + $0x20] sm:$0xff] %vm2610, %v2711
  %2720 = vst.msk [vmem:[%s11 + $0x28] sm:$0xff] %vm2610, %v2712
  %2721 = vst.msk [vmem:[%s11 + $0x30] sm:$0xff] %vm2610, %v2713
  %2722 = vst.msk [vmem:[%s11 + $0x38] sm:$0xff] %vm2610, %v2714
  // Predicated region
  $region46: #{net_forward.13} parent=0 // pred_check
    _
  $region47: #{net_forward.13} parent=0 // pred_check_branch
    %2724 = sbr.rel (0) target = $region49
  $region48: #{net_forward.13} parent=0 // pred_region
    _
  $region49: #{net_forward.13} parent=0 // pred_fallthru
    _
  // Predicated region
  $region50: #{net_forward.13} parent=0 // pred_check
    _
  $region51: #{net_forward.13} parent=0 // pred_check_branch
    %2726 = sbr.rel (0) target = $region53
  $region52: #{net_forward.13} parent=0 // pred_region
    _
  $region53: #{net_forward.13} parent=0 // pred_fallthru
    _

</llo_original>
